<compile_context>
chip_gen: v5e
topology: v5e:2x2
jax: 0.10.0
libtpu: 0.0.40
codegen_flags: <defaults>
</compile_context>

<pallas_src>
import functools

import jax
import jax.numpy as jnp
from jax.experimental import pallas as pl
from jax.experimental.pallas import tpu as pltpu

_EPS = 1e-5
_COL_OFF = 16   # image interior starts at column 16 of the padded scratch
                # (sublane-aligned for the bf16 (16,128) tile)


def _vmem_limit_bytes():
    # Per-generation VMEM budget (v7x has 64 MiB/TC vs 128 MiB on v5e/v6e).
    limit = 48 * 1024 * 1024
    try:
        cap = int(pltpu.get_tpu_info().vmem_capacity_bytes)
        limit = min(cap * 3 // 4, 100 * 1024 * 1024)
    except Exception:
        pass
    return limit


_VMEM_LIMIT = _vmem_limit_bytes()


def _compiler_params(dimension_semantics):
    return pltpu.CompilerParams(dimension_semantics=dimension_semantics,
                                vmem_limit_bytes=_VMEM_LIMIT)


def _pick_row_tile(H, W, Cout):
    """Rows per conv tile: target TR*W >= 256 matmul rows (fills the 256-deep
    MXU M on v6e/v7x; 128 suffices on v5e), f32 accumulator capped ~2 MiB and
    M capped at 2048 rows."""
    acc_budget = 2 * 1024 * 1024
    divs = [d for d in range(1, H + 1) if H % d == 0]
    fits = [d for d in divs if d * W * max(Cout, 128) * 4 <= acc_budget] or [1]
    cap = [d for d in fits if d * W <= 2048] or [fits[0]]
    reach = [d for d in cap if d * W >= 256]
    return max(reach) if reach else max(cap)


def _pick_tm(M, C):
    """Row tile for the fused BN+ReLU+transpose tail: multiple of 128 so the
    transposed output block is lane-dense, ~<= 2 MiB per block."""
    for tm in (8192, 4096, 2048, 1024, 512, 256, 128):
        if M % tm == 0 and tm * C * 6 <= 2 * 1024 * 1024:
            return tm
    return M


def _check_vmem_budget(H, W, Cin, Cout, TR):
    # TODO(synk): add a column-tiled (halo) grid axis instead of raising when
    # the per-image-resident design does not fit (large H*W*Cin on v7x).
    scratch = (H + 2) * (W + 2 * _COL_OFF) * Cin * 2          # bf16 padded image
    resident_in = 2 * H * W * Cin * 2                         # double-buffered input
    outs = 2 * (TR * W * Cout * 2 + 2 * Cout * 4)             # double-buffered outputs
    weights = 2 * (9 * Cin * Cout * 2 + 3 * Cout * 4)
    total = scratch + resident_in + outs + weights
    if total > _VMEM_LIMIT:
        raise ValueError(
            "DoubleConv conv kernel needs ~%d MiB VMEM (limit %d MiB); image too "
            "large for the per-image-resident design." % (total >> 20, _VMEM_LIMIT >> 20))


# ----------------------------- Pallas kernels ------------------------------

def _conv3x3_kernel(x_ref, w_ref, b_ref, sc_ref, sh_ref,      # inputs
                    y_ref, st_ref,                            # outputs
                    xpad_ref,                                 # bf16 VMEM scratch
                    *, H, W, Cin, Cout, TR, prep_affine, prep_relu):
    """One (image n, row-tile r) step of Conv2d(3x3, pad=1) + bias.

    The previous layer's BN+ReLU (per-channel affine sc,sh + optional ReLU)
    and the zero padding are fused into a once-per-image bf16 scratch prep;
    per-tile per-channel (sum, M2) of the (bf16-rounded) conv output are
    emitted so the following BatchNorm stays exact under tiling.
    """
    r = pl.program_id(1)

    # --- once per image: build the padded, prepped input in VMEM (bf16) -----
    @pl.when(r == 0)
    def _prep():
        zdt = xpad_ref.dtype
        # Zero only the halo actually read by the conv: two aligned 16-column
        # slabs (left/right) plus the top and bottom interior rows.  The
        # interior itself is fully overwritten below.
        right0 = ((_COL_OFF + W) // 16) * 16
        xpad_ref[0, :, 0:_COL_OFF, :] = jnp.zeros((H + 2, _COL_OFF, Cin), zdt)
        xpad_ref[0, :, right0:right0 + 16, :] = jnp.zeros((H + 2, 16, Cin), zdt)
        xpad_ref[0, 0:1, _COL_OFF:_COL_OFF + W, :] = jnp.zeros((1, W, Cin), zdt)
        xpad_ref[0, H + 1:H + 2, _COL_OFF:_COL_OFF + W, :] = jnp.zeros((1, W, Cin), zdt)

        xin = x_ref[0].astype(jnp.float32)                 # (H, W, Cin)
        if prep_affine:
            xin = xin * sc_ref[...] + sh_ref[...]          # previous BN (affine)
        if prep_relu:
            xin = jnp.maximum(xin, 0.0)                    # previous ReLU
        # interior at (row 1, col _COL_OFF): sublane-aligned bf16 store
        xpad_ref[0, 1:H + 1, _COL_OFF:_COL_OFF + W, :] = xin.astype(zdt)

    # --- 3x3 conv for this row tile: 9 shifted bf16 matmuls, f32 accum ------
    r0 = pl.multiple_of(r * TR, TR)
    acc = jnp.zeros((TR * W, Cout), jnp.float32)
    for ky in range(3):
        for kx in range(3):
            c0 = _COL_OFF - 1 + kx
            a = xpad_ref[0, pl.ds(r0 + ky, TR), c0:c0 + W, :]   # bf16, no cast needed
            acc = acc + jnp.dot(a.reshape(TR * W, Cin), w_ref[ky * 3 + kx],
                                preferred_element_type=jnp.float32)
    acc = acc + b_ref[...]                                  # conv bias

    # Store bf16 activations; take BN statistics from the SAME rounded values
    # the next kernel reads (removes the f32-stats vs bf16-activation mismatch).
    yb = acc.astype(jnp.bfloat16)
    y_ref[0] = yb.reshape(TR, W, Cout)

    yf = yb.astype(jnp.float32)
    s = jnp.sum(yf, axis=0, keepdims=True)                  # (1, Cout)
    mu = s * (1.0 / (TR * W))
    d = yf - mu
    m2 = jnp.sum(d * d, axis=0, keepdims=True)              # (1, Cout) centered
    st_ref[0, 0] = jnp.concatenate([s, m2], axis=0)         # (2, Cout)


def _bn_relu_t_kernel(x_ref, sc_ref, sh_ref, o_ref):
    """Fused BN + ReLU + NHWC->NCHW transpose (lane-dense transposed output)."""
    x = x_ref[0].astype(jnp.float32)                        # (TM, C)
    y = jnp.maximum(x * sc_ref[...] + sh_ref[...], 0.0)
    o_ref[0] = y.T                                          # (C, TM): spatial on lanes


# ------------------------------ kernel wrappers ------------------------------

def conv3x3_fused(x_nhwc, w_taps, bias, in_scale, in_shift, *,
                  prep_affine, prep_relu):
    """Conv2d(3x3, pad=1)+bias with the preceding BN+ReLU fused into the input.

    x_nhwc : (N, H, W, Cin) bf16
    w_taps : (9, Cin, Cout) bf16, tap index = ky*3 + kx
    bias   : (1, Cout) f32
    in_scale/in_shift : (1, Cin) f32 affine applied to the input before the conv
    Returns (y (N,H,W,Cout) bf16, partial_stats (N, H//TR, 2, Cout) f32).
    """
    N, H, W, Cin = x_nhwc.shape
    Cout = w_taps.shape[-1]
    TR = _pick_row_tile(H, W, Cout)
    RT = H // TR
    _check_vmem_budget(H, W, Cin, Cout, TR)

    kernel = functools.partial(_conv3x3_kernel, H=H, W=W, Cin=Cin, Cout=Cout,
                               TR=TR, prep_affine=prep_affine, prep_relu=prep_relu)
    return pl.pallas_call(
        kernel,
        grid=(N, RT),
        in_specs=[
            pl.BlockSpec((1, H, W, Cin), lambda n, r: (n, 0, 0, 0)),  # resident per image
            pl.BlockSpec((9, Cin, Cout), lambda n, r: (0, 0, 0)),     # weights resident
            pl.BlockSpec((1, Cout), lambda n, r: (0, 0)),
            pl.BlockSpec((1, Cin), lambda n, r: (0, 0)),
            pl.BlockSpec((1, Cin), lambda n, r: (0, 0)),
        ],
        out_specs=(
            pl.BlockSpec((1, TR, W, Cout), lambda n, r: (n, r, 0, 0)),
            pl.BlockSpec((1, 1, 2, Cout), lambda n, r: (n, r, 0, 0)),
        ),
        out_shape=(
            jax.ShapeDtypeStruct((N, H, W, Cout), jnp.bfloat16),
            jax.ShapeDtypeStruct((N, RT, 2, Cout), jnp.float32),
        ),
        scratch_shapes=[
            # bf16 padded image; interior at (row 1, col _COL_OFF)
            pltpu.VMEM((1, H + 2, W + 2 * _COL_OFF, Cin), jnp.bfloat16),
        ],
        compiler_params=_compiler_params(("parallel", "arbitrary")),
    )(x_nhwc, w_taps, bias, in_scale, in_shift)


def bn_relu_transpose(y_nhwc, scale, shift):
    """y = max(y*scale + shift, 0) fused with the NHWC -> NCHW transpose.

    Input (N, H, W, C) bf16, output (N, C, H, W) f32.  The output block is
    (1, C, TM) so the spatial dimension lands on lanes (lane-dense stores even
    when C < 128)."""
    N, H, W, C = y_nhwc.shape
    M = H * W
    TM = _pick_tm(M, C)
    x = y_nhwc.reshape(N, M, C)
    out = pl.pallas_call(
        _bn_relu_t_kernel,
        grid=(N, M // TM),
        in_specs=[pl.BlockSpec((1, TM, C), lambda n, i: (n, i, 0)),
                  pl.BlockSpec((1, C), lambda n, i: (0, 0)),
                  pl.BlockSpec((1, C), lambda n, i: (0, 0))],
        out_specs=pl.BlockSpec((1, C, TM), lambda n, i: (n, 0, i)),
        out_shape=jax.ShapeDtypeStruct((N, C, M), jnp.float32),
        compiler_params=_compiler_params(("parallel", "parallel")),
    )(x, scale, shift)
    return out.reshape(N, C, H, W)


# ------------------------------ glue helpers ---------------------------------

def _weight_to_taps(w):
    # PyTorch (Cout, Cin, 3, 3) -> (ky*3+kx, Cin, Cout) bf16 MXU operand.
    cout, cin = w.shape[0], w.shape[1]
    return jnp.transpose(w, (2, 3, 1, 0)).reshape(9, cin, cout).astype(jnp.bfloat16)


def _bn_scale_shift(partial_stats, gamma, beta, count):
    """Combine per-tile (sum, M2-about-tile-mean) partials with Chan's formula.

    partial_stats : (N, RT, 2, C) f32; count = N*H*W.  Tiny XLA reduction."""
    st = partial_stats.astype(jnp.float32)
    sums = st[:, :, 0, :]                                   # (N, RT, C)
    m2s = st[:, :, 1, :]
    n_tiles = sums.shape[0] * sums.shape[1]
    tile_rows = count // n_tiles                            # equal-size tiles
    mean = jnp.sum(sums, axis=(0, 1)) / count
    tile_mean = sums / tile_rows
    m2 = jnp.sum(m2s, axis=(0, 1)) + tile_rows * jnp.sum((tile_mean - mean) ** 2,
                                                         axis=(0, 1))
    var = jnp.maximum(m2 / count, 0.0)                      # biased variance
    scale = gamma.astype(jnp.float32) * jax.lax.rsqrt(var + _EPS)
    shift = beta.astype(jnp.float32) - mean * scale
    return (scale.reshape(1, -1).astype(jnp.float32),
            shift.reshape(1, -1).astype(jnp.float32))


# ------------------------------- forward --------------------------------------

def double_conv_forward(params, x_nchw):
    N, Cin, H, W = x_nchw.shape
    Cout = params["w1"].shape[0]
    x = jnp.transpose(x_nchw, (0, 2, 3, 1)).astype(jnp.bfloat16)    # NCHW -> NHWC

    w1 = _weight_to_taps(params["w1"])
    w2 = _weight_to_taps(params["w2"])
    b1 = params["b1"].reshape(1, Cout).astype(jnp.float32)
    b2 = params["b2"].reshape(1, Cout).astype(jnp.float32)

    # conv1 (no input prep) + fused per-tile stats for BN1
    ident_sc = jnp.ones((1, Cin), jnp.float32)
    ident_sh = jnp.zeros((1, Cin), jnp.float32)
    y1, st1 = conv3x3_fused(x, w1, b1, ident_sc, ident_sh,
                            prep_affine=False, prep_relu=False)
    sc1, sh1 = _bn_scale_shift(st1, params["g1"], params["be1"], N * H * W)

    # conv2 with BN1+ReLU1 fused into its input prep, + fused stats for BN2
    y2, st2 = conv3x3_fused(y1, w2, b2, sc1, sh1,
                            prep_affine=True, prep_relu=True)
    sc2, sh2 = _bn_scale_shift(st2, params["g2"], params["be2"], N * H * W)

    # BN2 + ReLU2 fused with the NHWC -> NCHW transpose (single Pallas pass)
    return bn_relu_transpose(y2, sc2, sh2)                           # (N, C, H, W) f32


# ------------------------------ parameters ------------------------------------

def init_double_conv_params(key, in_ch, out_ch):
    ks = jax.random.split(key, 4)
    return {
        "w1": jax.random.normal(ks[0], (out_ch, in_ch, 3, 3), jnp.float32) * (in_ch * 9) ** -0.5,
        "b1": jax.random.normal(ks[1], (out_ch,), jnp.float32) * 0.01,
        "g1": jnp.ones((out_ch,), jnp.float32),
        "be1": jnp.zeros((out_ch,), jnp.float32),
        "w2": jax.random.normal(ks[2], (out_ch, out_ch, 3, 3), jnp.float32) * (out_ch * 9) ** -0.5,
        "b2": jax.random.normal(ks[3], (out_ch,), jnp.float32) * 0.01,
        "g2": jnp.ones((out_ch,), jnp.float32),
        "be2": jnp.zeros((out_ch,), jnp.float32),
    }


# ----------------------------- pure-JAX reference ------------------------------

def _reference_double_conv(params, x_nchw):
    x = jnp.transpose(x_nchw, (0, 2, 3, 1)).astype(jnp.float32)

    def conv(v, w, b):   # w: torch layout (Cout, Cin, 3, 3)
        wh = jnp.transpose(w, (2, 3, 1, 0))   # HWIO
        y = jax.lax.conv_general_dilated(
            v, wh, (1, 1), "SAME", dimension_numbers=("NHWC", "HWIO", "NHWC"))
        return y + b

    def bn_relu(v, g, be):
        m = jnp.mean(v, axis=(0, 1, 2))
        var = jnp.mean((v - m) ** 2, axis=(0, 1, 2))
        return jnp.maximum((v - m) * jax.lax.rsqrt(var + _EPS) * g + be, 0.0)

    y = bn_relu(conv(x, params["w1"], params["b1"]), params["g1"], params["be1"])
    y = bn_relu(conv(y, params["w2"], params["b2"]), params["g2"], params["be2"])
    return jnp.transpose(y, (0, 3, 1, 2))


if __name__ == "__main__":
    key = jax.random.PRNGKey(0)
    kx, kp = jax.random.split(key)
    in_ch, out_ch = 4, 32
    x = jax.random.normal(kx, (2, in_ch, 16, 16), jnp.float32)   # NCHW like PyTorch
    params = init_double_conv_params(kp, in_ch, out_ch)

    fwd = jax.jit(double_conv_forward)
    out = fwd(params, x)
    jax.block_until_ready(out)

    assert out.shape == (2, out_ch, 16, 16), out.shape
    assert bool(jnp.all(jnp.isfinite(out)))
    assert bool(jnp.all(out >= 0.0))          # post-ReLU

    ref = jax.jit(_reference_double_conv)(params, x)
    max_err = float(jnp.max(jnp.abs(out - ref)))
    mean_err = float(jnp.mean(jnp.abs(out - ref)))
    assert max_err < 0.35 and mean_err < 0.05, (max_err, mean_err)

    print("KERNEL_OK")
</pallas_src>

<mosaic_0001>
module attributes {stable_mosaic.version = 11 : i64} {
  func.func @_conv3x3_kernel(%arg0: i32, %arg1: i32, %arg2: memref<1x16x16x4xbf16, #tpu.memory_space<vmem>>, %arg3: memref<9x4x32xbf16, #tpu.memory_space<vmem>>, %arg4: memref<1x32xf32, #tpu.memory_space<vmem>>, %arg5: memref<1x4xf32, #tpu.memory_space<vmem>>, %arg6: memref<1x4xf32, #tpu.memory_space<vmem>>, %arg7: memref<1x16x16x32xbf16, #tpu.memory_space<vmem>>, %arg8: memref<1x1x2x32xf32, #tpu.memory_space<vmem>>, %arg9: memref<1x18x48x4xbf16, #tpu.memory_space<vmem>>) attributes {dimension_semantics = [#tpu.dimension_semantics<parallel>, #tpu.dimension_semantics<arbitrary>], iteration_bounds = array<i64: 2, 1>, scalar_prefetch = 0 : i64, scratch_operands = 1 : i64, tpu.core_type = #tpu.core_type<tc>, window_params = [{transform_indices = @transform_0, window_bounds = array<i64: 1, 16, 16, 4>}, {pipeline_mode = #tpu.pipeline_mode<synchronous>, transform_indices = @transform_1, window_bounds = array<i64: 9, 4, 32>}, {pipeline_mode = #tpu.pipeline_mode<synchronous>, transform_indices = @transform_2, window_bounds = array<i64: 1, 32>}, {pipeline_mode = #tpu.pipeline_mode<synchronous>, transform_indices = @transform_3, window_bounds = array<i64: 1, 4>}, {pipeline_mode = #tpu.pipeline_mode<synchronous>, transform_indices = @transform_4, window_bounds = array<i64: 1, 4>}, {transform_indices = @transform_5, window_bounds = array<i64: 1, 16, 16, 32>}, {transform_indices = @transform_6, window_bounds = array<i64: 1, 1, 2, 32>}]} {
    %c0_i32 = arith.constant 0 : i32
    %0 = arith.cmpi eq, %arg1, %c0_i32 : i32
    %1 = arith.extui %0 : i1 to i32
    %c0_i32_0 = arith.constant 0 : i32
    %2 = arith.cmpi ne, %1, %c0_i32_0 : i32
    scf.if %2 {
      %cst_72 = arith.constant 0.000000e+00 : bf16
      %109 = vector.broadcast %cst_72 : bf16 to vector<18x16x4xbf16>
      %c0_73 = arith.constant 0 : index
      %c0_74 = arith.constant 0 : index
      %c0_75 = arith.constant 0 : index
      %c0_76 = arith.constant 0 : index
      %110 = vector.load %arg9[%c0_73, %c0_74, %c0_75, %c0_76] : memref<1x18x48x4xbf16, #tpu.memory_space<vmem>>, vector<1x18x16x4xbf16>
      %111 = vector.shape_cast %110 : vector<1x18x16x4xbf16> to vector<18x16x4xbf16>
      %112 = vector.shape_cast %109 : vector<18x16x4xbf16> to vector<1x18x16x4xbf16>
      tpu.vector_store %arg9[%c0_73, %c0_74, %c0_75, %c0_76], %112 {strides = array<i32>} : memref<1x18x48x4xbf16, #tpu.memory_space<vmem>>, vector<1x18x16x4xbf16>,
      %cst_77 = arith.constant 0.000000e+00 : bf16
      %113 = vector.broadcast %cst_77 : bf16 to vector<18x16x4xbf16>
      %c0_78 = arith.constant 0 : index
      %c0_79 = arith.constant 0 : index
      %c32 = arith.constant 32 : index
      %c0_80 = arith.constant 0 : index
      %114 = vector.load %arg9[%c0_78, %c0_79, %c32, %c0_80] : memref<1x18x48x4xbf16, #tpu.memory_space<vmem>>, vector<1x18x16x4xbf16>
      %115 = vector.shape_cast %114 : vector<1x18x16x4xbf16> to vector<18x16x4xbf16>
      %116 = vector.shape_cast %113 : vector<18x16x4xbf16> to vector<1x18x16x4xbf16>
      tpu.vector_store %arg9[%c0_78, %c0_79, %c32, %c0_80], %116 {strides = array<i32>} : memref<1x18x48x4xbf16, #tpu.memory_space<vmem>>, vector<1x18x16x4xbf16>,
      %cst_81 = arith.constant 0.000000e+00 : bf16
      %117 = vector.broadcast %cst_81 : bf16 to vector<1x16x4xbf16>
      %c0_82 = arith.constant 0 : index
      %c0_83 = arith.constant 0 : index
      %c16_84 = arith.constant 16 : index
      %c0_85 = arith.constant 0 : index
      %118 = vector.load %arg9[%c0_82, %c0_83, %c16_84, %c0_85] : memref<1x18x48x4xbf16, #tpu.memory_space<vmem>>, vector<1x1x16x4xbf16>
      %119 = vector.shape_cast %118 : vector<1x1x16x4xbf16> to vector<1x16x4xbf16>
      %120 = vector.shape_cast %117 : vector<1x16x4xbf16> to vector<1x1x16x4xbf16>
      tpu.vector_store %arg9[%c0_82, %c0_83, %c16_84, %c0_85], %120 {strides = array<i32>} : memref<1x18x48x4xbf16, #tpu.memory_space<vmem>>, vector<1x1x16x4xbf16>,
      %cst_86 = arith.constant 0.000000e+00 : bf16
      %121 = vector.broadcast %cst_86 : bf16 to vector<1x16x4xbf16>
      %c0_87 = arith.constant 0 : index
      %c17_88 = arith.constant 17 : index
      %c16_89 = arith.constant 16 : index
      %c0_90 = arith.constant 0 : index
      %122 = vector.load %arg9[%c0_87, %c17_88, %c16_89, %c0_90] : memref<1x18x48x4xbf16, #tpu.memory_space<vmem>>, vector<1x1x16x4xbf16>
      %123 = vector.shape_cast %122 : vector<1x1x16x4xbf16> to vector<1x16x4xbf16>
      %124 = vector.shape_cast %121 : vector<1x16x4xbf16> to vector<1x1x16x4xbf16>
      tpu.vector_store %arg9[%c0_87, %c17_88, %c16_89, %c0_90], %124 {strides = array<i32>} : memref<1x18x48x4xbf16, #tpu.memory_space<vmem>>, vector<1x1x16x4xbf16>,
      %c0_91 = arith.constant 0 : index
      %c0_92 = arith.constant 0 : index
      %c0_93 = arith.constant 0 : index
      %c0_94 = arith.constant 0 : index
      %125 = vector.load %arg2[%c0_91, %c0_92, %c0_93, %c0_94] : memref<1x16x16x4xbf16, #tpu.memory_space<vmem>>, vector<1x16x16x4xbf16>
      %126 = vector.shape_cast %125 : vector<1x16x16x4xbf16> to vector<16x16x4xbf16>
      %127 = arith.extf %126 : vector<16x16x4xbf16> to vector<16x16x4xf32>
      %128 = arith.truncf %127 : vector<16x16x4xf32> to vector<16x16x4xbf16>
      %c0_95 = arith.constant 0 : index
      %c1_96 = arith.constant 1 : index
      %c16_97 = arith.constant 16 : index
      %c0_98 = arith.constant 0 : index
      %129 = vector.load %arg9[%c0_95, %c1_96, %c16_97, %c0_98] : memref<1x18x48x4xbf16, #tpu.memory_space<vmem>>, vector<1x16x16x4xbf16>
      %130 = vector.shape_cast %129 : vector<1x16x16x4xbf16> to vector<16x16x4xbf16>
      %131 = vector.shape_cast %128 : vector<16x16x4xbf16> to vector<1x16x16x4xbf16>
      tpu.vector_store %arg9[%c0_95, %c1_96, %c16_97, %c0_98], %131 {strides = array<i32>} : memref<1x18x48x4xbf16, #tpu.memory_space<vmem>>, vector<1x16x16x4xbf16>,
    } else {
    }
    %c16_i32 = arith.constant 16 : i32
    %3 = arith.muli %arg1, %c16_i32 : i32
    %4 = tpu.assume_multiple %3, 16 : i32
    %cst = arith.constant 0.000000e+00 : f32
    %5 = vector.broadcast %cst : f32 to vector<256x32xf32>
    %c0_i32_1 = arith.constant 0 : i32
    %6 = arith.addi %4, %c0_i32_1 : i32
    %c0 = arith.constant 0 : index
    %7 = arith.index_cast %6 : i32 to index
    %c15 = arith.constant 15 : index
    %c0_2 = arith.constant 0 : index
    %8 = vector.load %arg9[%c0, %7, %c15, %c0_2] : memref<1x18x48x4xbf16, #tpu.memory_space<vmem>>, vector<1x16x16x4xbf16>
    %9 = vector.shape_cast %8 : vector<1x16x16x4xbf16> to vector<16x16x4xbf16>
    %10 = vector.shape_cast %9 : vector<16x16x4xbf16> to vector<256x4xbf16>
    %c0_3 = arith.constant 0 : index
    %c0_4 = arith.constant 0 : index
    %c0_5 = arith.constant 0 : index
    %11 = vector.load %arg3[%c0_3, %c0_4, %c0_5] : memref<9x4x32xbf16, #tpu.memory_space<vmem>>, vector<1x4x32xbf16>
    %12 = vector.shape_cast %11 : vector<1x4x32xbf16> to vector<4x32xbf16>
    %cst_6 = arith.constant dense<0.000000e+00> : vector<256x32xf32>
    %13 = tpu.matmul %10, %12, %cst_6 {dimension_numbers = #tpu.dot_dimension_numbers<[1], [0], [0], [1], [0, 0, 1, 1], [], []>} : vector<256x4xbf16>, vector<4x32xbf16>, vector<256x32xf32> -> vector<256x32xf32>
    %14 = arith.addf %5, %13 : vector<256x32xf32>
    %c0_i32_7 = arith.constant 0 : i32
    %15 = arith.addi %4, %c0_i32_7 : i32
    %c0_8 = arith.constant 0 : index
    %16 = arith.index_cast %15 : i32 to index
    %c16 = arith.constant 16 : index
    %c0_9 = arith.constant 0 : index
    %17 = vector.load %arg9[%c0_8, %16, %c16, %c0_9] : memref<1x18x48x4xbf16, #tpu.memory_space<vmem>>, vector<1x16x16x4xbf16>
    %18 = vector.shape_cast %17 : vector<1x16x16x4xbf16> to vector<16x16x4xbf16>
    %19 = vector.shape_cast %18 : vector<16x16x4xbf16> to vector<256x4xbf16>
    %c1 = arith.constant 1 : index
    %c0_10 = arith.constant 0 : index
    %c0_11 = arith.constant 0 : index
    %20 = vector.load %arg3[%c1, %c0_10, %c0_11] : memref<9x4x32xbf16, #tpu.memory_space<vmem>>, vector<1x4x32xbf16>
    %21 = vector.shape_cast %20 : vector<1x4x32xbf16> to vector<4x32xbf16>
    %cst_12 = arith.constant dense<0.000000e+00> : vector<256x32xf32>
    %22 = tpu.matmul %19, %21, %cst_12 {dimension_numbers = #tpu.dot_dimension_numbers<[1], [0], [0], [1], [0, 0, 1, 1], [], []>} : vector<256x4xbf16>, vector<4x32xbf16>, vector<256x32xf32> -> vector<256x32xf32>
    %23 = arith.addf %14, %22 : vector<256x32xf32>
    %c0_i32_13 = arith.constant 0 : i32
    %24 = arith.addi %4, %c0_i32_13 : i32
    %c0_14 = arith.constant 0 : index
    %25 = arith.index_cast %24 : i32 to index
    %c17 = arith.constant 17 : index
    %c0_15 = arith.constant 0 : index
    %26 = vector.load %arg9[%c0_14, %25, %c17, %c0_15] : memref<1x18x48x4xbf16, #tpu.memory_space<vmem>>, vector<1x16x16x4xbf16>
    %27 = vector.shape_cast %26 : vector<1x16x16x4xbf16> to vector<16x16x4xbf16>
    %28 = vector.shape_cast %27 : vector<16x16x4xbf16> to vector<256x4xbf16>
    %c2 = arith.constant 2 : index
    %c0_16 = arith.constant 0 : index
    %c0_17 = arith.constant 0 : index
    %29 = vector.load %arg3[%c2, %c0_16, %c0_17] : memref<9x4x32xbf16, #tpu.memory_space<vmem>>, vector<1x4x32xbf16>
    %30 = vector.shape_cast %29 : vector<1x4x32xbf16> to vector<4x32xbf16>
    %cst_18 = arith.constant dense<0.000000e+00> : vector<256x32xf32>
    %31 = tpu.matmul %28, %30, %cst_18 {dimension_numbers = #tpu.dot_dimension_numbers<[1], [0], [0], [1], [0, 0, 1, 1], [], []>} : vector<256x4xbf16>, vector<4x32xbf16>, vector<256x32xf32> -> vector<256x32xf32>
    %32 = arith.addf %23, %31 : vector<256x32xf32>
    %c1_i32 = arith.constant 1 : i32
    %33 = arith.addi %4, %c1_i32 : i32
    %c0_19 = arith.constant 0 : index
    %34 = arith.index_cast %33 : i32 to index
    %c15_20 = arith.constant 15 : index
    %c0_21 = arith.constant 0 : index
    %35 = vector.load %arg9[%c0_19, %34, %c15_20, %c0_21] : memref<1x18x48x4xbf16, #tpu.memory_space<vmem>>, vector<1x16x16x4xbf16>
    %36 = vector.shape_cast %35 : vector<1x16x16x4xbf16> to vector<16x16x4xbf16>
    %37 = vector.shape_cast %36 : vector<16x16x4xbf16> to vector<256x4xbf16>
    %c3 = arith.constant 3 : index
    %c0_22 = arith.constant 0 : index
    %c0_23 = arith.constant 0 : index
    %38 = vector.load %arg3[%c3, %c0_22, %c0_23] : memref<9x4x32xbf16, #tpu.memory_space<vmem>>, vector<1x4x32xbf16>
    %39 = vector.shape_cast %38 : vector<1x4x32xbf16> to vector<4x32xbf16>
    %cst_24 = arith.constant dense<0.000000e+00> : vector<256x32xf32>
    %40 = tpu.matmul %37, %39, %cst_24 {dimension_numbers = #tpu.dot_dimension_numbers<[1], [0], [0], [1], [0, 0, 1, 1], [], []>} : vector<256x4xbf16>, vector<4x32xbf16>, vector<256x32xf32> -> vector<256x32xf32>
    %41 = arith.addf %32, %40 : vector<256x32xf32>
    %c1_i32_25 = arith.constant 1 : i32
    %42 = arith.addi %4, %c1_i32_25 : i32
    %c0_26 = arith.constant 0 : index
    %43 = arith.index_cast %42 : i32 to index
    %c16_27 = arith.constant 16 : index
    %c0_28 = arith.constant 0 : index
    %44 = vector.load %arg9[%c0_26, %43, %c16_27, %c0_28] : memref<1x18x48x4xbf16, #tpu.memory_space<vmem>>, vector<1x16x16x4xbf16>
    %45 = vector.shape_cast %44 : vector<1x16x16x4xbf16> to vector<16x16x4xbf16>
    %46 = vector.shape_cast %45 : vector<16x16x4xbf16> to vector<256x4xbf16>
    %c4 = arith.constant 4 : index
    %c0_29 = arith.constant 0 : index
    %c0_30 = arith.constant 0 : index
    %47 = vector.load %arg3[%c4, %c0_29, %c0_30] : memref<9x4x32xbf16, #tpu.memory_space<vmem>>, vector<1x4x32xbf16>
    %48 = vector.shape_cast %47 : vector<1x4x32xbf16> to vector<4x32xbf16>
    %cst_31 = arith.constant dense<0.000000e+00> : vector<256x32xf32>
    %49 = tpu.matmul %46, %48, %cst_31 {dimension_numbers = #tpu.dot_dimension_numbers<[1], [0], [0], [1], [0, 0, 1, 1], [], []>} : vector<256x4xbf16>, vector<4x32xbf16>, vector<256x32xf32> -> vector<256x32xf32>
    %50 = arith.addf %41, %49 : vector<256x32xf32>
    %c1_i32_32 = arith.constant 1 : i32
    %51 = arith.addi %4, %c1_i32_32 : i32
    %c0_33 = arith.constant 0 : index
    %52 = arith.index_cast %51 : i32 to index
    %c17_34 = arith.constant 17 : index
    %c0_35 = arith.constant 0 : index
    %53 = vector.load %arg9[%c0_33, %52, %c17_34, %c0_35] : memref<1x18x48x4xbf16, #tpu.memory_space<vmem>>, vector<1x16x16x4xbf16>
    %54 = vector.shape_cast %53 : vector<1x16x16x4xbf16> to vector<16x16x4xbf16>
    %55 = vector.shape_cast %54 : vector<16x16x4xbf16> to vector<256x4xbf16>
    %c5 = arith.constant 5 : index
    %c0_36 = arith.constant 0 : index
    %c0_37 = arith.constant 0 : index
    %56 = vector.load %arg3[%c5, %c0_36, %c0_37] : memref<9x4x32xbf16, #tpu.memory_space<vmem>>, vector<1x4x32xbf16>
    %57 = vector.shape_cast %56 : vector<1x4x32xbf16> to vector<4x32xbf16>
    %cst_38 = arith.constant dense<0.000000e+00> : vector<256x32xf32>
    %58 = tpu.matmul %55, %57, %cst_38 {dimension_numbers = #tpu.dot_dimension_numbers<[1], [0], [0], [1], [0, 0, 1, 1], [], []>} : vector<256x4xbf16>, vector<4x32xbf16>, vector<256x32xf32> -> vector<256x32xf32>
    %59 = arith.addf %50, %58 : vector<256x32xf32>
    %c2_i32 = arith.constant 2 : i32
    %60 = arith.addi %4, %c2_i32 : i32
    %c0_39 = arith.constant 0 : index
    %61 = arith.index_cast %60 : i32 to index
    %c15_40 = arith.constant 15 : index
    %c0_41 = arith.constant 0 : index
    %62 = vector.load %arg9[%c0_39, %61, %c15_40, %c0_41] : memref<1x18x48x4xbf16, #tpu.memory_space<vmem>>, vector<1x16x16x4xbf16>
    %63 = vector.shape_cast %62 : vector<1x16x16x4xbf16> to vector<16x16x4xbf16>
    %64 = vector.shape_cast %63 : vector<16x16x4xbf16> to vector<256x4xbf16>
    %c6 = arith.constant 6 : index
    %c0_42 = arith.constant 0 : index
    %c0_43 = arith.constant 0 : index
    %65 = vector.load %arg3[%c6, %c0_42, %c0_43] : memref<9x4x32xbf16, #tpu.memory_space<vmem>>, vector<1x4x32xbf16>
    %66 = vector.shape_cast %65 : vector<1x4x32xbf16> to vector<4x32xbf16>
    %cst_44 = arith.constant dense<0.000000e+00> : vector<256x32xf32>
    %67 = tpu.matmul %64, %66, %cst_44 {dimension_numbers = #tpu.dot_dimension_numbers<[1], [0], [0], [1], [0, 0, 1, 1], [], []>} : vector<256x4xbf16>, vector<4x32xbf16>, vector<256x32xf32> -> vector<256x32xf32>
    %68 = arith.addf %59, %67 : vector<256x32xf32>
    %c2_i32_45 = arith.constant 2 : i32
    %69 = arith.addi %4, %c2_i32_45 : i32
    %c0_46 = arith.constant 0 : index
    %70 = arith.index_cast %69 : i32 to index
    %c16_47 = arith.constant 16 : index
    %c0_48 = arith.constant 0 : index
    %71 = vector.load %arg9[%c0_46, %70, %c16_47, %c0_48] : memref<1x18x48x4xbf16, #tpu.memory_space<vmem>>, vector<1x16x16x4xbf16>
    %72 = vector.shape_cast %71 : vector<1x16x16x4xbf16> to vector<16x16x4xbf16>
    %73 = vector.shape_cast %72 : vector<16x16x4xbf16> to vector<256x4xbf16>
    %c7 = arith.constant 7 : index
    %c0_49 = arith.constant 0 : index
    %c0_50 = arith.constant 0 : index
    %74 = vector.load %arg3[%c7, %c0_49, %c0_50] : memref<9x4x32xbf16, #tpu.memory_space<vmem>>, vector<1x4x32xbf16>
    %75 = vector.shape_cast %74 : vector<1x4x32xbf16> to vector<4x32xbf16>
    %cst_51 = arith.constant dense<0.000000e+00> : vector<256x32xf32>
    %76 = tpu.matmul %73, %75, %cst_51 {dimension_numbers = #tpu.dot_dimension_numbers<[1], [0], [0], [1], [0, 0, 1, 1], [], []>} : vector<256x4xbf16>, vector<4x32xbf16>, vector<256x32xf32> -> vector<256x32xf32>
    %77 = arith.addf %68, %76 : vector<256x32xf32>
    %c2_i32_52 = arith.constant 2 : i32
    %78 = arith.addi %4, %c2_i32_52 : i32
    %c0_53 = arith.constant 0 : index
    %79 = arith.index_cast %78 : i32 to index
    %c17_54 = arith.constant 17 : index
    %c0_55 = arith.constant 0 : index
    %80 = vector.load %arg9[%c0_53, %79, %c17_54, %c0_55] : memref<1x18x48x4xbf16, #tpu.memory_space<vmem>>, vector<1x16x16x4xbf16>
    %81 = vector.shape_cast %80 : vector<1x16x16x4xbf16> to vector<16x16x4xbf16>
    %82 = vector.shape_cast %81 : vector<16x16x4xbf16> to vector<256x4xbf16>
    %c8 = arith.constant 8 : index
    %c0_56 = arith.constant 0 : index
    %c0_57 = arith.constant 0 : index
    %83 = vector.load %arg3[%c8, %c0_56, %c0_57] : memref<9x4x32xbf16, #tpu.memory_space<vmem>>, vector<1x4x32xbf16>
    %84 = vector.shape_cast %83 : vector<1x4x32xbf16> to vector<4x32xbf16>
    %cst_58 = arith.constant dense<0.000000e+00> : vector<256x32xf32>
    %85 = tpu.matmul %82, %84, %cst_58 {dimension_numbers = #tpu.dot_dimension_numbers<[1], [0], [0], [1], [0, 0, 1, 1], [], []>} : vector<256x4xbf16>, vector<4x32xbf16>, vector<256x32xf32> -> vector<256x32xf32>
    %86 = arith.addf %77, %85 : vector<256x32xf32>
    %c0_59 = arith.constant 0 : index
    %c0_60 = arith.constant 0 : index
    %87 = vector.load %arg4[%c0_59, %c0_60] : memref<1x32xf32, #tpu.memory_space<vmem>>, vector<1x32xf32>
    %88 = vector.broadcast %87 : vector<1x32xf32> to vector<256x32xf32>
    %89 = arith.addf %86, %88 : vector<256x32xf32>
    %90 = arith.truncf %89 : vector<256x32xf32> to vector<256x32xbf16>
    %91 = vector.shape_cast %90 : vector<256x32xbf16> to vector<16x16x32xbf16>
    %c0_61 = arith.constant 0 : index
    %c0_62 = arith.constant 0 : index
    %c0_63 = arith.constant 0 : index
    %c0_64 = arith.constant 0 : index
    %92 = vector.load %arg7[%c0_61, %c0_62, %c0_63, %c0_64] : memref<1x16x16x32xbf16, #tpu.memory_space<vmem>>, vector<1x16x16x32xbf16>
    %93 = vector.shape_cast %92 : vector<1x16x16x32xbf16> to vector<16x16x32xbf16>
    %94 = vector.shape_cast %91 : vector<16x16x32xbf16> to vector<1x16x16x32xbf16>
    tpu.vector_store %arg7[%c0_61, %c0_62, %c0_63, %c0_64], %94 {strides = array<i32>} : memref<1x16x16x32xbf16, #tpu.memory_space<vmem>>, vector<1x16x16x32xbf16>,
    %95 = arith.extf %90 : vector<256x32xbf16> to vector<256x32xf32>
    %cst_65 = arith.constant dense<0.000000e+00> : vector<32xf32>
    %96 = vector.multi_reduction <add>, %95, %cst_65 [0] : vector<256x32xf32> to vector<32xf32>
    %97 = vector.shape_cast %96 : vector<32xf32> to vector<1x32xf32>
    %cst_66 = arith.constant 3.906250e-03 : f32
    %98 = vector.broadcast %cst_66 : f32 to vector<1x32xf32>
    %99 = arith.mulf %97, %98 : vector<1x32xf32>
    %100 = vector.broadcast %99 : vector<1x32xf32> to vector<256x32xf32>
    %101 = arith.subf %95, %100 : vector<256x32xf32>
    %102 = arith.mulf %101, %101 : vector<256x32xf32>
    %cst_67 = arith.constant dense<0.000000e+00> : vector<32xf32>
    %103 = vector.multi_reduction <add>, %102, %cst_67 [0] : vector<256x32xf32> to vector<32xf32>
    %104 = vector.shape_cast %103 : vector<32xf32> to vector<1x32xf32>
    %105 = tpu.concatenate %97, %104 in 0 : vector<1x32xf32>, vector<1x32xf32> -> vector<2x32xf32>
    %c0_68 = arith.constant 0 : index
    %c0_69 = arith.constant 0 : index
    %c0_70 = arith.constant 0 : index
    %c0_71 = arith.constant 0 : index
    %106 = vector.load %arg8[%c0_68, %c0_69, %c0_70, %c0_71] : memref<1x1x2x32xf32, #tpu.memory_space<vmem>>, vector<1x1x2x32xf32>
    %107 = vector.shape_cast %106 : vector<1x1x2x32xf32> to vector<2x32xf32>
    %108 = vector.shape_cast %105 : vector<2x32xf32> to vector<1x1x2x32xf32>
    tpu.vector_store %arg8[%c0_68, %c0_69, %c0_70, %c0_71], %108 {strides = array<i32>} : memref<1x1x2x32xf32, #tpu.memory_space<vmem>>, vector<1x1x2x32xf32>,
    return
  }
  func.func @transform_0(%arg0: i32, %arg1: i32) -> (i32, i32, i32, i32) {
    %c0_i32 = arith.constant 0 : i32
    %c0_i32_0 = arith.constant 0 : i32
    %c0_i32_1 = arith.constant 0 : i32
    %c0_i32_2 = arith.constant 0 : i32
    return %arg0, %c0_i32, %c0_i32_0, %c0_i32_1 : i32, i32, i32, i32
  }
  func.func @transform_1(%arg0: i32, %arg1: i32) -> (i32, i32, i32) {
    %c0_i32 = arith.constant 0 : i32
    %c0_i32_0 = arith.constant 0 : i32
    %c0_i32_1 = arith.constant 0 : i32
    %c0_i32_2 = arith.constant 0 : i32
    return %c0_i32, %c0_i32_0, %c0_i32_1 : i32, i32, i32
  }
  func.func @transform_2(%arg0: i32, %arg1: i32) -> (i32, i32) {
    %c0_i32 = arith.constant 0 : i32
    %c0_i32_0 = arith.constant 0 : i32
    %c0_i32_1 = arith.constant 0 : i32
    return %c0_i32, %c0_i32_0 : i32, i32
  }
  func.func @transform_3(%arg0: i32, %arg1: i32) -> (i32, i32) {
    %c0_i32 = arith.constant 0 : i32
    %c0_i32_0 = arith.constant 0 : i32
    %c0_i32_1 = arith.constant 0 : i32
    return %c0_i32, %c0_i32_0 : i32, i32
  }
  func.func @transform_4(%arg0: i32, %arg1: i32) -> (i32, i32) {
    %c0_i32 = arith.constant 0 : i32
    %c0_i32_0 = arith.constant 0 : i32
    %c0_i32_1 = arith.constant 0 : i32
    return %c0_i32, %c0_i32_0 : i32, i32
  }
  func.func @transform_5(%arg0: i32, %arg1: i32) -> (i32, i32, i32, i32) {
    %c0_i32 = arith.constant 0 : i32
    %c0_i32_0 = arith.constant 0 : i32
    %c0_i32_1 = arith.constant 0 : i32
    return %arg0, %arg1, %c0_i32, %c0_i32_0 : i32, i32, i32, i32
  }
  func.func @transform_6(%arg0: i32, %arg1: i32) -> (i32, i32, i32, i32) {
    %c0_i32 = arith.constant 0 : i32
    %c0_i32_0 = arith.constant 0 : i32
    %c0_i32_1 = arith.constant 0 : i32
    return %arg0, %arg1, %c0_i32, %c0_i32_0 : i32, i32, i32, i32
  }
}

module attributes {stable_mosaic.version = 11 : i64} {
  func.func @_conv3x3_kernel(%arg0: i32, %arg1: i32, %arg2: memref<1x16x16x32xbf16, #tpu.memory_space<vmem>>, %arg3: memref<9x32x32xbf16, #tpu.memory_space<vmem>>, %arg4: memref<1x32xf32, #tpu.memory_space<vmem>>, %arg5: memref<1x32xf32, #tpu.memory_space<vmem>>, %arg6: memref<1x32xf32, #tpu.memory_space<vmem>>, %arg7: memref<1x16x16x32xbf16, #tpu.memory_space<vmem>>, %arg8: memref<1x1x2x32xf32, #tpu.memory_space<vmem>>, %arg9: memref<1x18x48x32xbf16, #tpu.memory_space<vmem>>) attributes {dimension_semantics = [#tpu.dimension_semantics<parallel>, #tpu.dimension_semantics<arbitrary>], iteration_bounds = array<i64: 2, 1>, scalar_prefetch = 0 : i64, scratch_operands = 1 : i64, tpu.core_type = #tpu.core_type<tc>, window_params = [{transform_indices = @transform_0, window_bounds = array<i64: 1, 16, 16, 32>}, {pipeline_mode = #tpu.pipeline_mode<synchronous>, transform_indices = @transform_1, window_bounds = array<i64: 9, 32, 32>}, {pipeline_mode = #tpu.pipeline_mode<synchronous>, transform_indices = @transform_2, window_bounds = array<i64: 1, 32>}, {pipeline_mode = #tpu.pipeline_mode<synchronous>, transform_indices = @transform_3, window_bounds = array<i64: 1, 32>}, {pipeline_mode = #tpu.pipeline_mode<synchronous>, transform_indices = @transform_4, window_bounds = array<i64: 1, 32>}, {transform_indices = @transform_5, window_bounds = array<i64: 1, 16, 16, 32>}, {transform_indices = @transform_6, window_bounds = array<i64: 1, 1, 2, 32>}]} {
    %c0_i32 = arith.constant 0 : i32
    %0 = arith.cmpi eq, %arg1, %c0_i32 : i32
    %1 = arith.extui %0 : i1 to i32
    %c0_i32_0 = arith.constant 0 : i32
    %2 = arith.cmpi ne, %1, %c0_i32_0 : i32
    scf.if %2 {
      %cst_72 = arith.constant 0.000000e+00 : bf16
      %109 = vector.broadcast %cst_72 : bf16 to vector<18x16x32xbf16>
      %c0_73 = arith.constant 0 : index
      %c0_74 = arith.constant 0 : index
      %c0_75 = arith.constant 0 : index
      %c0_76 = arith.constant 0 : index
      %110 = vector.load %arg9[%c0_73, %c0_74, %c0_75, %c0_76] : memref<1x18x48x32xbf16, #tpu.memory_space<vmem>>, vector<1x18x16x32xbf16>
      %111 = vector.shape_cast %110 : vector<1x18x16x32xbf16> to vector<18x16x32xbf16>
      %112 = vector.shape_cast %109 : vector<18x16x32xbf16> to vector<1x18x16x32xbf16>
      tpu.vector_store %arg9[%c0_73, %c0_74, %c0_75, %c0_76], %112 {strides = array<i32>} : memref<1x18x48x32xbf16, #tpu.memory_space<vmem>>, vector<1x18x16x32xbf16>,
      %cst_77 = arith.constant 0.000000e+00 : bf16
      %113 = vector.broadcast %cst_77 : bf16 to vector<18x16x32xbf16>
      %c0_78 = arith.constant 0 : index
      %c0_79 = arith.constant 0 : index
      %c32 = arith.constant 32 : index
      %c0_80 = arith.constant 0 : index
      %114 = vector.load %arg9[%c0_78, %c0_79, %c32, %c0_80] : memref<1x18x48x32xbf16, #tpu.memory_space<vmem>>, vector<1x18x16x32xbf16>
      %115 = vector.shape_cast %114 : vector<1x18x16x32xbf16> to vector<18x16x32xbf16>
      %116 = vector.shape_cast %113 : vector<18x16x32xbf16> to vector<1x18x16x32xbf16>
      tpu.vector_store %arg9[%c0_78, %c0_79, %c32, %c0_80], %116 {strides = array<i32>} : memref<1x18x48x32xbf16, #tpu.memory_space<vmem>>, vector<1x18x16x32xbf16>,
      %cst_81 = arith.constant 0.000000e+00 : bf16
      %117 = vector.broadcast %cst_81 : bf16 to vector<1x16x32xbf16>
      %c0_82 = arith.constant 0 : index
      %c0_83 = arith.constant 0 : index
      %c16_84 = arith.constant 16 : index
      %c0_85 = arith.constant 0 : index
      %118 = vector.load %arg9[%c0_82, %c0_83, %c16_84, %c0_85] : memref<1x18x48x32xbf16, #tpu.memory_space<vmem>>, vector<1x1x16x32xbf16>
      %119 = vector.shape_cast %118 : vector<1x1x16x32xbf16> to vector<1x16x32xbf16>
      %120 = vector.shape_cast %117 : vector<1x16x32xbf16> to vector<1x1x16x32xbf16>
      tpu.vector_store %arg9[%c0_82, %c0_83, %c16_84, %c0_85], %120 {strides = array<i32>} : memref<1x18x48x32xbf16, #tpu.memory_space<vmem>>, vector<1x1x16x32xbf16>,
      %cst_86 = arith.constant 0.000000e+00 : bf16
      %121 = vector.broadcast %cst_86 : bf16 to vector<1x16x32xbf16>
      %c0_87 = arith.constant 0 : index
      %c17_88 = arith.constant 17 : index
      %c16_89 = arith.constant 16 : index
      %c0_90 = arith.constant 0 : index
      %122 = vector.load %arg9[%c0_87, %c17_88, %c16_89, %c0_90] : memref<1x18x48x32xbf16, #tpu.memory_space<vmem>>, vector<1x1x16x32xbf16>
      %123 = vector.shape_cast %122 : vector<1x1x16x32xbf16> to vector<1x16x32xbf16>
      %124 = vector.shape_cast %121 : vector<1x16x32xbf16> to vector<1x1x16x32xbf16>
      tpu.vector_store %arg9[%c0_87, %c17_88, %c16_89, %c0_90], %124 {strides = array<i32>} : memref<1x18x48x32xbf16, #tpu.memory_space<vmem>>, vector<1x1x16x32xbf16>,
      %c0_91 = arith.constant 0 : index
      %c0_92 = arith.constant 0 : index
      %c0_93 = arith.constant 0 : index
      %c0_94 = arith.constant 0 : index
      %125 = vector.load %arg2[%c0_91, %c0_92, %c0_93, %c0_94] : memref<1x16x16x32xbf16, #tpu.memory_space<vmem>>, vector<1x16x16x32xbf16>
      %126 = vector.shape_cast %125 : vector<1x16x16x32xbf16> to vector<16x16x32xbf16>
      %127 = arith.extf %126 : vector<16x16x32xbf16> to vector<16x16x32xf32>
      %c0_95 = arith.constant 0 : index
      %c0_96 = arith.constant 0 : index
      %128 = vector.load %arg5[%c0_95, %c0_96] : memref<1x32xf32, #tpu.memory_space<vmem>>, vector<1x32xf32>
      %129 = vector.shape_cast %128 : vector<1x32xf32> to vector<1x1x32xf32>
      %130 = vector.broadcast %129 : vector<1x1x32xf32> to vector<16x16x32xf32>
      %131 = arith.mulf %127, %130 : vector<16x16x32xf32>
      %c0_97 = arith.constant 0 : index
      %c0_98 = arith.constant 0 : index
      %132 = vector.load %arg6[%c0_97, %c0_98] : memref<1x32xf32, #tpu.memory_space<vmem>>, vector<1x32xf32>
      %133 = vector.shape_cast %132 : vector<1x32xf32> to vector<1x1x32xf32>
      %134 = vector.broadcast %133 : vector<1x1x32xf32> to vector<16x16x32xf32>
      %135 = arith.addf %131, %134 : vector<16x16x32xf32>
      %cst_99 = arith.constant 0.000000e+00 : f32
      %136 = vector.broadcast %cst_99 : f32 to vector<16x16x32xf32>
      %137 = arith.maximumf %135, %136 : vector<16x16x32xf32>
      %138 = arith.truncf %137 : vector<16x16x32xf32> to vector<16x16x32xbf16>
      %c0_100 = arith.constant 0 : index
      %c1_101 = arith.constant 1 : index
      %c16_102 = arith.constant 16 : index
      %c0_103 = arith.constant 0 : index
      %139 = vector.load %arg9[%c0_100, %c1_101, %c16_102, %c0_103] : memref<1x18x48x32xbf16, #tpu.memory_space<vmem>>, vector<1x16x16x32xbf16>
      %140 = vector.shape_cast %139 : vector<1x16x16x32xbf16> to vector<16x16x32xbf16>
      %141 = vector.shape_cast %138 : vector<16x16x32xbf16> to vector<1x16x16x32xbf16>
      tpu.vector_store %arg9[%c0_100, %c1_101, %c16_102, %c0_103], %141 {strides = array<i32>} : memref<1x18x48x32xbf16, #tpu.memory_space<vmem>>, vector<1x16x16x32xbf16>,
    } else {
    }
    %c16_i32 = arith.constant 16 : i32
    %3 = arith.muli %arg1, %c16_i32 : i32
    %4 = tpu.assume_multiple %3, 16 : i32
    %cst = arith.constant 0.000000e+00 : f32
    %5 = vector.broadcast %cst : f32 to vector<256x32xf32>
    %c0_i32_1 = arith.constant 0 : i32
    %6 = arith.addi %4, %c0_i32_1 : i32
    %c0 = arith.constant 0 : index
    %7 = arith.index_cast %6 : i32 to index
    %c15 = arith.constant 15 : index
    %c0_2 = arith.constant 0 : index
    %8 = vector.load %arg9[%c0, %7, %c15, %c0_2] : memref<1x18x48x32xbf16, #tpu.memory_space<vmem>>, vector<1x16x16x32xbf16>
    %9 = vector.shape_cast %8 : vector<1x16x16x32xbf16> to vector<16x16x32xbf16>
    %10 = vector.shape_cast %9 : vector<16x16x32xbf16> to vector<256x32xbf16>
    %c0_3 = arith.constant 0 : index
    %c0_4 = arith.constant 0 : index
    %c0_5 = arith.constant 0 : index
    %11 = vector.load %arg3[%c0_3, %c0_4, %c0_5] : memref<9x32x32xbf16, #tpu.memory_space<vmem>>, vector<1x32x32xbf16>
    %12 = vector.shape_cast %11 : vector<1x32x32xbf16> to vector<32x32xbf16>
    %cst_6 = arith.constant dense<0.000000e+00> : vector<256x32xf32>
    %13 = tpu.matmul %10, %12, %cst_6 {dimension_numbers = #tpu.dot_dimension_numbers<[1], [0], [0], [1], [0, 0, 1, 1], [], []>} : vector<256x32xbf16>, vector<32x32xbf16>, vector<256x32xf32> -> vector<256x32xf32>
    %14 = arith.addf %5, %13 : vector<256x32xf32>
    %c0_i32_7 = arith.constant 0 : i32
    %15 = arith.addi %4, %c0_i32_7 : i32
    %c0_8 = arith.constant 0 : index
    %16 = arith.index_cast %15 : i32 to index
    %c16 = arith.constant 16 : index
    %c0_9 = arith.constant 0 : index
    %17 = vector.load %arg9[%c0_8, %16, %c16, %c0_9] : memref<1x18x48x32xbf16, #tpu.memory_space<vmem>>, vector<1x16x16x32xbf16>
    %18 = vector.shape_cast %17 : vector<1x16x16x32xbf16> to vector<16x16x32xbf16>
    %19 = vector.shape_cast %18 : vector<16x16x32xbf16> to vector<256x32xbf16>
    %c1 = arith.constant 1 : index
    %c0_10 = arith.constant 0 : index
    %c0_11 = arith.constant 0 : index
    %20 = vector.load %arg3[%c1, %c0_10, %c0_11] : memref<9x32x32xbf16, #tpu.memory_space<vmem>>, vector<1x32x32xbf16>
    %21 = vector.shape_cast %20 : vector<1x32x32xbf16> to vector<32x32xbf16>
    %cst_12 = arith.constant dense<0.000000e+00> : vector<256x32xf32>
    %22 = tpu.matmul %19, %21, %cst_12 {dimension_numbers = #tpu.dot_dimension_numbers<[1], [0], [0], [1], [0, 0, 1, 1], [], []>} : vector<256x32xbf16>, vector<32x32xbf16>, vector<256x32xf32> -> vector<256x32xf32>
    %23 = arith.addf %14, %22 : vector<256x32xf32>
    %c0_i32_13 = arith.constant 0 : i32
    %24 = arith.addi %4, %c0_i32_13 : i32
    %c0_14 = arith.constant 0 : index
    %25 = arith.index_cast %24 : i32 to index
    %c17 = arith.constant 17 : index
    %c0_15 = arith.constant 0 : index
    %26 = vector.load %arg9[%c0_14, %25, %c17, %c0_15] : memref<1x18x48x32xbf16, #tpu.memory_space<vmem>>, vector<1x16x16x32xbf16>
    %27 = vector.shape_cast %26 : vector<1x16x16x32xbf16> to vector<16x16x32xbf16>
    %28 = vector.shape_cast %27 : vector<16x16x32xbf16> to vector<256x32xbf16>
    %c2 = arith.constant 2 : index
    %c0_16 = arith.constant 0 : index
    %c0_17 = arith.constant 0 : index
    %29 = vector.load %arg3[%c2, %c0_16, %c0_17] : memref<9x32x32xbf16, #tpu.memory_space<vmem>>, vector<1x32x32xbf16>
    %30 = vector.shape_cast %29 : vector<1x32x32xbf16> to vector<32x32xbf16>
    %cst_18 = arith.constant dense<0.000000e+00> : vector<256x32xf32>
    %31 = tpu.matmul %28, %30, %cst_18 {dimension_numbers = #tpu.dot_dimension_numbers<[1], [0], [0], [1], [0, 0, 1, 1], [], []>} : vector<256x32xbf16>, vector<32x32xbf16>, vector<256x32xf32> -> vector<256x32xf32>
    %32 = arith.addf %23, %31 : vector<256x32xf32>
    %c1_i32 = arith.constant 1 : i32
    %33 = arith.addi %4, %c1_i32 : i32
    %c0_19 = arith.constant 0 : index
    %34 = arith.index_cast %33 : i32 to index
    %c15_20 = arith.constant 15 : index
    %c0_21 = arith.constant 0 : index
    %35 = vector.load %arg9[%c0_19, %34, %c15_20, %c0_21] : memref<1x18x48x32xbf16, #tpu.memory_space<vmem>>, vector<1x16x16x32xbf16>
    %36 = vector.shape_cast %35 : vector<1x16x16x32xbf16> to vector<16x16x32xbf16>
    %37 = vector.shape_cast %36 : vector<16x16x32xbf16> to vector<256x32xbf16>
    %c3 = arith.constant 3 : index
    %c0_22 = arith.constant 0 : index
    %c0_23 = arith.constant 0 : index
    %38 = vector.load %arg3[%c3, %c0_22, %c0_23] : memref<9x32x32xbf16, #tpu.memory_space<vmem>>, vector<1x32x32xbf16>
    %39 = vector.shape_cast %38 : vector<1x32x32xbf16> to vector<32x32xbf16>
    %cst_24 = arith.constant dense<0.000000e+00> : vector<256x32xf32>
    %40 = tpu.matmul %37, %39, %cst_24 {dimension_numbers = #tpu.dot_dimension_numbers<[1], [0], [0], [1], [0, 0, 1, 1], [], []>} : vector<256x32xbf16>, vector<32x32xbf16>, vector<256x32xf32> -> vector<256x32xf32>
    %41 = arith.addf %32, %40 : vector<256x32xf32>
    %c1_i32_25 = arith.constant 1 : i32
    %42 = arith.addi %4, %c1_i32_25 : i32
    %c0_26 = arith.constant 0 : index
    %43 = arith.index_cast %42 : i32 to index
    %c16_27 = arith.constant 16 : index
    %c0_28 = arith.constant 0 : index
    %44 = vector.load %arg9[%c0_26, %43, %c16_27, %c0_28] : memref<1x18x48x32xbf16, #tpu.memory_space<vmem>>, vector<1x16x16x32xbf16>
    %45 = vector.shape_cast %44 : vector<1x16x16x32xbf16> to vector<16x16x32xbf16>
    %46 = vector.shape_cast %45 : vector<16x16x32xbf16> to vector<256x32xbf16>
    %c4 = arith.constant 4 : index
    %c0_29 = arith.constant 0 : index
    %c0_30 = arith.constant 0 : index
    %47 = vector.load %arg3[%c4, %c0_29, %c0_30] : memref<9x32x32xbf16, #tpu.memory_space<vmem>>, vector<1x32x32xbf16>
    %48 = vector.shape_cast %47 : vector<1x32x32xbf16> to vector<32x32xbf16>
    %cst_31 = arith.constant dense<0.000000e+00> : vector<256x32xf32>
    %49 = tpu.matmul %46, %48, %cst_31 {dimension_numbers = #tpu.dot_dimension_numbers<[1], [0], [0], [1], [0, 0, 1, 1], [], []>} : vector<256x32xbf16>, vector<32x32xbf16>, vector<256x32xf32> -> vector<256x32xf32>
    %50 = arith.addf %41, %49 : vector<256x32xf32>
    %c1_i32_32 = arith.constant 1 : i32
    %51 = arith.addi %4, %c1_i32_32 : i32
    %c0_33 = arith.constant 0 : index
    %52 = arith.index_cast %51 : i32 to index
    %c17_34 = arith.constant 17 : index
    %c0_35 = arith.constant 0 : index
    %53 = vector.load %arg9[%c0_33, %52, %c17_34, %c0_35] : memref<1x18x48x32xbf16, #tpu.memory_space<vmem>>, vector<1x16x16x32xbf16>
    %54 = vector.shape_cast %53 : vector<1x16x16x32xbf16> to vector<16x16x32xbf16>
    %55 = vector.shape_cast %54 : vector<16x16x32xbf16> to vector<256x32xbf16>
    %c5 = arith.constant 5 : index
    %c0_36 = arith.constant 0 : index
    %c0_37 = arith.constant 0 : index
    %56 = vector.load %arg3[%c5, %c0_36, %c0_37] : memref<9x32x32xbf16, #tpu.memory_space<vmem>>, vector<1x32x32xbf16>
    %57 = vector.shape_cast %56 : vector<1x32x32xbf16> to vector<32x32xbf16>
    %cst_38 = arith.constant dense<0.000000e+00> : vector<256x32xf32>
    %58 = tpu.matmul %55, %57, %cst_38 {dimension_numbers = #tpu.dot_dimension_numbers<[1], [0], [0], [1], [0, 0, 1, 1], [], []>} : vector<256x32xbf16>, vector<32x32xbf16>, vector<256x32xf32> -> vector<256x32xf32>
    %59 = arith.addf %50, %58 : vector<256x32xf32>
    %c2_i32 = arith.constant 2 : i32
    %60 = arith.addi %4, %c2_i32 : i32
    %c0_39 = arith.constant 0 : index
    %61 = arith.index_cast %60 : i32 to index
    %c15_40 = arith.constant 15 : index
    %c0_41 = arith.constant 0 : index
    %62 = vector.load %arg9[%c0_39, %61, %c15_40, %c0_41] : memref<1x18x48x32xbf16, #tpu.memory_space<vmem>>, vector<1x16x16x32xbf16>
    %63 = vector.shape_cast %62 : vector<1x16x16x32xbf16> to vector<16x16x32xbf16>
    %64 = vector.shape_cast %63 : vector<16x16x32xbf16> to vector<256x32xbf16>
    %c6 = arith.constant 6 : index
    %c0_42 = arith.constant 0 : index
    %c0_43 = arith.constant 0 : index
    %65 = vector.load %arg3[%c6, %c0_42, %c0_43] : memref<9x32x32xbf16, #tpu.memory_space<vmem>>, vector<1x32x32xbf16>
    %66 = vector.shape_cast %65 : vector<1x32x32xbf16> to vector<32x32xbf16>
    %cst_44 = arith.constant dense<0.000000e+00> : vector<256x32xf32>
    %67 = tpu.matmul %64, %66, %cst_44 {dimension_numbers = #tpu.dot_dimension_numbers<[1], [0], [0], [1], [0, 0, 1, 1], [], []>} : vector<256x32xbf16>, vector<32x32xbf16>, vector<256x32xf32> -> vector<256x32xf32>
    %68 = arith.addf %59, %67 : vector<256x32xf32>
    %c2_i32_45 = arith.constant 2 : i32
    %69 = arith.addi %4, %c2_i32_45 : i32
    %c0_46 = arith.constant 0 : index
    %70 = arith.index_cast %69 : i32 to index
    %c16_47 = arith.constant 16 : index
    %c0_48 = arith.constant 0 : index
    %71 = vector.load %arg9[%c0_46, %70, %c16_47, %c0_48] : memref<1x18x48x32xbf16, #tpu.memory_space<vmem>>, vector<1x16x16x32xbf16>
    %72 = vector.shape_cast %71 : vector<1x16x16x32xbf16> to vector<16x16x32xbf16>
    %73 = vector.shape_cast %72 : vector<16x16x32xbf16> to vector<256x32xbf16>
    %c7 = arith.constant 7 : index
    %c0_49 = arith.constant 0 : index
    %c0_50 = arith.constant 0 : index
    %74 = vector.load %arg3[%c7, %c0_49, %c0_50] : memref<9x32x32xbf16, #tpu.memory_space<vmem>>, vector<1x32x32xbf16>
    %75 = vector.shape_cast %74 : vector<1x32x32xbf16> to vector<32x32xbf16>
    %cst_51 = arith.constant dense<0.000000e+00> : vector<256x32xf32>
    %76 = tpu.matmul %73, %75, %cst_51 {dimension_numbers = #tpu.dot_dimension_numbers<[1], [0], [0], [1], [0, 0, 1, 1], [], []>} : vector<256x32xbf16>, vector<32x32xbf16>, vector<256x32xf32> -> vector<256x32xf32>
    %77 = arith.addf %68, %76 : vector<256x32xf32>
    %c2_i32_52 = arith.constant 2 : i32
    %78 = arith.addi %4, %c2_i32_52 : i32
    %c0_53 = arith.constant 0 : index
    %79 = arith.index_cast %78 : i32 to index
    %c17_54 = arith.constant 17 : index
    %c0_55 = arith.constant 0 : index
    %80 = vector.load %arg9[%c0_53, %79, %c17_54, %c0_55] : memref<1x18x48x32xbf16, #tpu.memory_space<vmem>>, vector<1x16x16x32xbf16>
    %81 = vector.shape_cast %80 : vector<1x16x16x32xbf16> to vector<16x16x32xbf16>
    %82 = vector.shape_cast %81 : vector<16x16x32xbf16> to vector<256x32xbf16>
    %c8 = arith.constant 8 : index
    %c0_56 = arith.constant 0 : index
    %c0_57 = arith.constant 0 : index
    %83 = vector.load %arg3[%c8, %c0_56, %c0_57] : memref<9x32x32xbf16, #tpu.memory_space<vmem>>, vector<1x32x32xbf16>
    %84 = vector.shape_cast %83 : vector<1x32x32xbf16> to vector<32x32xbf16>
    %cst_58 = arith.constant dense<0.000000e+00> : vector<256x32xf32>
    %85 = tpu.matmul %82, %84, %cst_58 {dimension_numbers = #tpu.dot_dimension_numbers<[1], [0], [0], [1], [0, 0, 1, 1], [], []>} : vector<256x32xbf16>, vector<32x32xbf16>, vector<256x32xf32> -> vector<256x32xf32>
    %86 = arith.addf %77, %85 : vector<256x32xf32>
    %c0_59 = arith.constant 0 : index
    %c0_60 = arith.constant 0 : index
    %87 = vector.load %arg4[%c0_59, %c0_60] : memref<1x32xf32, #tpu.memory_space<vmem>>, vector<1x32xf32>
    %88 = vector.broadcast %87 : vector<1x32xf32> to vector<256x32xf32>
    %89 = arith.addf %86, %88 : vector<256x32xf32>
    %90 = arith.truncf %89 : vector<256x32xf32> to vector<256x32xbf16>
    %91 = vector.shape_cast %90 : vector<256x32xbf16> to vector<16x16x32xbf16>
    %c0_61 = arith.constant 0 : index
    %c0_62 = arith.constant 0 : index
    %c0_63 = arith.constant 0 : index
    %c0_64 = arith.constant 0 : index
    %92 = vector.load %arg7[%c0_61, %c0_62, %c0_63, %c0_64] : memref<1x16x16x32xbf16, #tpu.memory_space<vmem>>, vector<1x16x16x32xbf16>
    %93 = vector.shape_cast %92 : vector<1x16x16x32xbf16> to vector<16x16x32xbf16>
    %94 = vector.shape_cast %91 : vector<16x16x32xbf16> to vector<1x16x16x32xbf16>
    tpu.vector_store %arg7[%c0_61, %c0_62, %c0_63, %c0_64], %94 {strides = array<i32>} : memref<1x16x16x32xbf16, #tpu.memory_space<vmem>>, vector<1x16x16x32xbf16>,
    %95 = arith.extf %90 : vector<256x32xbf16> to vector<256x32xf32>
    %cst_65 = arith.constant dense<0.000000e+00> : vector<32xf32>
    %96 = vector.multi_reduction <add>, %95, %cst_65 [0] : vector<256x32xf32> to vector<32xf32>
    %97 = vector.shape_cast %96 : vector<32xf32> to vector<1x32xf32>
    %cst_66 = arith.constant 3.906250e-03 : f32
    %98 = vector.broadcast %cst_66 : f32 to vector<1x32xf32>
    %99 = arith.mulf %97, %98 : vector<1x32xf32>
    %100 = vector.broadcast %99 : vector<1x32xf32> to vector<256x32xf32>
    %101 = arith.subf %95, %100 : vector<256x32xf32>
    %102 = arith.mulf %101, %101 : vector<256x32xf32>
    %cst_67 = arith.constant dense<0.000000e+00> : vector<32xf32>
    %103 = vector.multi_reduction <add>, %102, %cst_67 [0] : vector<256x32xf32> to vector<32xf32>
    %104 = vector.shape_cast %103 : vector<32xf32> to vector<1x32xf32>
    %105 = tpu.concatenate %97, %104 in 0 : vector<1x32xf32>, vector<1x32xf32> -> vector<2x32xf32>
    %c0_68 = arith.constant 0 : index
    %c0_69 = arith.constant 0 : index
    %c0_70 = arith.constant 0 : index
    %c0_71 = arith.constant 0 : index
    %106 = vector.load %arg8[%c0_68, %c0_69, %c0_70, %c0_71] : memref<1x1x2x32xf32, #tpu.memory_space<vmem>>, vector<1x1x2x32xf32>
    %107 = vector.shape_cast %106 : vector<1x1x2x32xf32> to vector<2x32xf32>
    %108 = vector.shape_cast %105 : vector<2x32xf32> to vector<1x1x2x32xf32>
    tpu.vector_store %arg8[%c0_68, %c0_69, %c0_70, %c0_71], %108 {strides = array<i32>} : memref<1x1x2x32xf32, #tpu.memory_space<vmem>>, vector<1x1x2x32xf32>,
    return
  }
  func.func @transform_0(%arg0: i32, %arg1: i32) -> (i32, i32, i32, i32) {
    %c0_i32 = arith.constant 0 : i32
    %c0_i32_0 = arith.constant 0 : i32
    %c0_i32_1 = arith.constant 0 : i32
    %c0_i32_2 = arith.constant 0 : i32
    return %arg0, %c0_i32, %c0_i32_0, %c0_i32_1 : i32, i32, i32, i32
  }
  func.func @transform_1(%arg0: i32, %arg1: i32) -> (i32, i32, i32) {
    %c0_i32 = arith.constant 0 : i32
    %c0_i32_0 = arith.constant 0 : i32
    %c0_i32_1 = arith.constant 0 : i32
    %c0_i32_2 = arith.constant 0 : i32
    return %c0_i32, %c0_i32_0, %c0_i32_1 : i32, i32, i32
  }
  func.func @transform_2(%arg0: i32, %arg1: i32) -> (i32, i32) {
    %c0_i32 = arith.constant 0 : i32
    %c0_i32_0 = arith.constant 0 : i32
    %c0_i32_1 = arith.constant 0 : i32
    return %c0_i32, %c0_i32_0 : i32, i32
  }
  func.func @transform_3(%arg0: i32, %arg1: i32) -> (i32, i32) {
    %c0_i32 = arith.constant 0 : i32
    %c0_i32_0 = arith.constant 0 : i32
    %c0_i32_1 = arith.constant 0 : i32
    return %c0_i32, %c0_i32_0 : i32, i32
  }
  func.func @transform_4(%arg0: i32, %arg1: i32) -> (i32, i32) {
    %c0_i32 = arith.constant 0 : i32
    %c0_i32_0 = arith.constant 0 : i32
    %c0_i32_1 = arith.constant 0 : i32
    return %c0_i32, %c0_i32_0 : i32, i32
  }
  func.func @transform_5(%arg0: i32, %arg1: i32) -> (i32, i32, i32, i32) {
    %c0_i32 = arith.constant 0 : i32
    %c0_i32_0 = arith.constant 0 : i32
    %c0_i32_1 = arith.constant 0 : i32
    return %arg0, %arg1, %c0_i32, %c0_i32_0 : i32, i32, i32, i32
  }
  func.func @transform_6(%arg0: i32, %arg1: i32) -> (i32, i32, i32, i32) {
    %c0_i32 = arith.constant 0 : i32
    %c0_i32_0 = arith.constant 0 : i32
    %c0_i32_1 = arith.constant 0 : i32
    return %arg0, %arg1, %c0_i32, %c0_i32_0 : i32, i32, i32, i32
  }
}

module attributes {stable_mosaic.version = 11 : i64} {
  func.func @_bn_relu_t_kernel(%arg0: i32, %arg1: i32, %arg2: memref<1x256x32xbf16, #tpu.memory_space<vmem>>, %arg3: memref<1x32xf32, #tpu.memory_space<vmem>>, %arg4: memref<1x32xf32, #tpu.memory_space<vmem>>, %arg5: memref<1x32x256xf32, #tpu.memory_space<vmem>>) attributes {dimension_semantics = [#tpu.dimension_semantics<parallel>, #tpu.dimension_semantics<parallel>], iteration_bounds = array<i64: 2, 1>, scalar_prefetch = 0 : i64, scratch_operands = 0 : i64, tpu.core_type = #tpu.core_type<tc>, window_params = [{transform_indices = @transform_0, window_bounds = array<i64: 1, 256, 32>}, {pipeline_mode = #tpu.pipeline_mode<synchronous>, transform_indices = @transform_1, window_bounds = array<i64: 1, 32>}, {pipeline_mode = #tpu.pipeline_mode<synchronous>, transform_indices = @transform_2, window_bounds = array<i64: 1, 32>}, {transform_indices = @transform_3, window_bounds = array<i64: 1, 32, 256>}]} {
    %c0 = arith.constant 0 : index
    %c0_0 = arith.constant 0 : index
    %c0_1 = arith.constant 0 : index
    %0 = vector.load %arg2[%c0, %c0_0, %c0_1] : memref<1x256x32xbf16, #tpu.memory_space<vmem>>, vector<1x256x32xbf16>
    %1 = vector.shape_cast %0 : vector<1x256x32xbf16> to vector<256x32xbf16>
    %2 = arith.extf %1 : vector<256x32xbf16> to vector<256x32xf32>
    %c0_2 = arith.constant 0 : index
    %c0_3 = arith.constant 0 : index
    %3 = vector.load %arg3[%c0_2, %c0_3] : memref<1x32xf32, #tpu.memory_space<vmem>>, vector<1x32xf32>
    %4 = vector.broadcast %3 : vector<1x32xf32> to vector<256x32xf32>
    %5 = arith.mulf %2, %4 : vector<256x32xf32>
    %c0_4 = arith.constant 0 : index
    %c0_5 = arith.constant 0 : index
    %6 = vector.load %arg4[%c0_4, %c0_5] : memref<1x32xf32, #tpu.memory_space<vmem>>, vector<1x32xf32>
    %7 = vector.broadcast %6 : vector<1x32xf32> to vector<256x32xf32>
    %8 = arith.addf %5, %7 : vector<256x32xf32>
    %cst = arith.constant 0.000000e+00 : f32
    %9 = vector.broadcast %cst : f32 to vector<256x32xf32>
    %10 = arith.maximumf %8, %9 : vector<256x32xf32>
    %11 = tpu.transpose %10, [1, 0] : vector<256x32xf32> -> vector<32x256xf32>
    %c0_6 = arith.constant 0 : index
    %c0_7 = arith.constant 0 : index
    %c0_8 = arith.constant 0 : index
    %12 = vector.load %arg5[%c0_6, %c0_7, %c0_8] : memref<1x32x256xf32, #tpu.memory_space<vmem>>, vector<1x32x256xf32>
    %13 = vector.shape_cast %12 : vector<1x32x256xf32> to vector<32x256xf32>
    %14 = vector.shape_cast %11 : vector<32x256xf32> to vector<1x32x256xf32>
    tpu.vector_store %arg5[%c0_6, %c0_7, %c0_8], %14 {strides = array<i32>} : memref<1x32x256xf32, #tpu.memory_space<vmem>>, vector<1x32x256xf32>,
    return
  }
  func.func @transform_0(%arg0: i32, %arg1: i32) -> (i32, i32, i32) {
    %c0_i32 = arith.constant 0 : i32
    %c0_i32_0 = arith.constant 0 : i32
    return %arg0, %arg1, %c0_i32 : i32, i32, i32
  }
  func.func @transform_1(%arg0: i32, %arg1: i32) -> (i32, i32) {
    %c0_i32 = arith.constant 0 : i32
    %c0_i32_0 = arith.constant 0 : i32
    %c0_i32_1 = arith.constant 0 : i32
    return %c0_i32, %c0_i32_0 : i32, i32
  }
  func.func @transform_2(%arg0: i32, %arg1: i32) -> (i32, i32) {
    %c0_i32 = arith.constant 0 : i32
    %c0_i32_0 = arith.constant 0 : i32
    %c0_i32_1 = arith.constant 0 : i32
    return %c0_i32, %c0_i32_0 : i32, i32
  }
  func.func @transform_3(%arg0: i32, %arg1: i32) -> (i32, i32, i32) {
    %c0_i32 = arith.constant 0 : i32
    %c0_i32_0 = arith.constant 0 : i32
    return %arg0, %c0_i32, %arg1 : i32, i32, i32
  }
}

</mosaic_0001>

<llo_original>
// kernel: double_conv_forward.5
$region0: #{double_conv_forward.5}
  #allocation0 [shape = 'u32[]', space=smem, size = 0x4, offset = 0x4, fixed_abs, tag = 'smem constant byte address 0x4 - core index']
  #allocation1 [shape = 'u32[72,128]{1,0:T(1,128)}', space=vmem, size = 0x9000, scoped, tag = 'internal scratch']
  %s0 = inlined_call_operand.vmem [shape: bf16[2,256,32], index: 0, kind: input, shape index: {}]
  %s1 = inlined_call_operand.vmem [shape: f32[1,32], index: 1, kind: input, shape index: {}]
  %s2 = inlined_call_operand.vmem [shape: f32[1,32], index: 2, kind: input, shape index: {}]
  %s3 = inlined_call_operand.vmem [shape: f32[2,32,256], index: 3, kind: output, shape index: {}]
  %s4 = sld [smem:[#allocation0]]
  $region45: #{double_conv_forward.5} parent=0
    _
  %s6 = ssub.s32 1, %s4
  %s7 = scalar_select 0, %s6, %s4
  loop: start=0, step=1, limit=4
  $region2: #{double_conv_forward.5} parent=0 // loop_pre_header
    _
  $region3: #{double_conv_forward.5} parent=0 // loop_header
    %s9 = sphi 0, %s13
    %p10 = scmp.ge.s32.totalorder %s9, 4
    %s16 = sphi 0, %s28
    %s17 = sphi 0, %s24
    %s18 = sphi 0, %s16
    %s19 = sphi 0, %s17
    %s20 = sphi 0, %s18
    %s21 = sphi 0, %s19
    %s33 = sphi 0, %s35
    %s36 = sphi 0, %s33
    %s37 = sphi 0, %s36
    %s53 = sphi 0, %s37
    %s57 = sphi 0, %s57
    %s59 = sphi 0, %s57
    %s60 = sphi 0, %s59
    %s74 = sphi 0, %s60
    %s78 = sphi 0, %s78
    %s80 = sphi 0, %s78
    %s81 = sphi 0, %s80
    %s95 = sphi 0, %s81
    %s103 = sphi 0, %s105
    %s106 = sphi 0, %s103
    %s107 = sphi 0, %s106
    %s123 = sphi 0, %s107
  $region4: #{double_conv_forward.5} parent=0 // loop_header_branch
    %12 = sbr.rel (%p10) target = $region8
  $region5: #{double_conv_forward.5} parent=0 // loop_body
    %s14 = ssub.s32 %s9, 1
    %s15 = ssub.s32 %s9, 2
    %s22 = sadd.s32 1, %s17
    %p23 = scmp.ge.s32.totalorder %s22, 1
    %s24 = scalar_select %p23, 0, %s22
    %s25 = sadd.s32 1, %s16
    %s26 = scalar_select %p23, %s25, %s16
    %p27 = scmp.ge.s32.totalorder %s26, 2
    %s28 = scalar_select %p27, 0, %s26
    %s29 = ssub.s32 %s16, %s28
    %s30 = ssub.s32 %s17, %s24
    %s31 = sor.u32 %s29, %s30
    %p32 = scmp.eq.s32.totalorder %s31, 0
    %s34 = sadd.s32 %s33, 1
    %s35 = scalar_select %p32, %s33, %s34
    %p38 = pneg %p32
    %p39 = scmp.eq.s32.totalorder %s9, 1
    %p40 = por %p38, %p39
    %p41 = scmp.ne.s32.totalorder %s33, %s36
    %p42 = scmp.eq.s32.totalorder %s9, 0
    %p43 = por %p41, %p42
    %p44 = scmp.ne.s32.totalorder %s33, %s36
    %p45 = scmp.eq.s32.totalorder %s14, 1
    %p46 = por %p44, %p45
    %p47 = scmp.ne.s32.totalorder %s36, %s37
    %p48 = scmp.eq.s32.totalorder %s14, 0
    %p49 = por %p47, %p48
    %p50 = scmp.ne.s32.totalorder %s36, %s37
    %p51 = scmp.eq.s32.totalorder %s15, 1
    %p52 = por %p50, %p51
    %p54 = scmp.ne.s32.totalorder %s37, %s53
    %p55 = scmp.eq.s32.totalorder %s15, 0
    %p56 = por %p54, %p55
    %s58 = sadd.s32 %s57, 1
    %p61 = scmp.eq.s32.totalorder %s9, 1
    %p62 = scmp.ne.s32.totalorder %s57, %s59
    %p63 = scmp.eq.s32.totalorder %s9, 0
    %p64 = por %p62, %p63
    %p65 = scmp.ne.s32.totalorder %s57, %s59
    %p66 = scmp.eq.s32.totalorder %s14, 1
    %p67 = por %p65, %p66
    %p68 = scmp.ne.s32.totalorder %s59, %s60
    %p69 = scmp.eq.s32.totalorder %s14, 0
    %p70 = por %p68, %p69
    %p71 = scmp.ne.s32.totalorder %s59, %s60
    %p72 = scmp.eq.s32.totalorder %s15, 1
    %p73 = por %p71, %p72
    %p75 = scmp.ne.s32.totalorder %s60, %s74
    %p76 = scmp.eq.s32.totalorder %s15, 0
    %p77 = por %p75, %p76
    %s79 = sadd.s32 %s78, 1
    %p82 = scmp.eq.s32.totalorder %s9, 1
    %p83 = scmp.ne.s32.totalorder %s78, %s80
    %p84 = scmp.eq.s32.totalorder %s9, 0
    %p85 = por %p83, %p84
    %p86 = scmp.ne.s32.totalorder %s78, %s80
    %p87 = scmp.eq.s32.totalorder %s14, 1
    %p88 = por %p86, %p87
    %p89 = scmp.ne.s32.totalorder %s80, %s81
    %p90 = scmp.eq.s32.totalorder %s14, 0
    %p91 = por %p89, %p90
    %p92 = scmp.ne.s32.totalorder %s80, %s81
    %p93 = scmp.eq.s32.totalorder %s15, 1
    %p94 = por %p92, %p93
    %p96 = scmp.ne.s32.totalorder %s81, %s95
    %p97 = scmp.eq.s32.totalorder %s15, 0
    %p98 = por %p96, %p97
    %s99 = ssub.s32 %s16, %s28
    %s100 = ssub.s32 %s17, %s24
    %s101 = sor.u32 %s99, %s100
    %p102 = scmp.eq.s32.totalorder %s101, 0
    %s104 = sadd.s32 %s103, 1
    %s105 = scalar_select %p102, %s103, %s104
    %p108 = pneg %p102
    %p109 = scmp.eq.s32.totalorder %s9, 1
    %p110 = por %p108, %p109
    %p111 = scmp.ne.s32.totalorder %s103, %s106
    %p112 = scmp.eq.s32.totalorder %s9, 0
    %p113 = por %p111, %p112
    %p114 = scmp.ne.s32.totalorder %s103, %s106
    %p115 = scmp.eq.s32.totalorder %s14, 1
    %p116 = por %p114, %p115
    %p117 = scmp.ne.s32.totalorder %s106, %s107
    %p118 = scmp.eq.s32.totalorder %s14, 0
    %p119 = por %p117, %p118
    %p120 = scmp.ne.s32.totalorder %s106, %s107
    %p121 = scmp.eq.s32.totalorder %s15, 1
    %p122 = por %p120, %p121
    %p124 = scmp.ne.s32.totalorder %s107, %s123
    %p125 = scmp.eq.s32.totalorder %s15, 0
    %p126 = por %p124, %p125
    %p127 = scmp.le.s32.totalorder 1, %s9
    %p128 = scmp.lt.s32.totalorder %s9, 3
    %p129 = pnand %p127, %p128
    %p130 = pneg %p129
    // Predicated region
    $region9: #{double_conv_forward.5} parent=5 // pred_check
      _
    $region10: #{double_conv_forward.5} parent=5 // pred_check_branch
      %132 = sbr.rel (%p129) target = $region12
    $region11: #{double_conv_forward.5} parent=5 // pred_region
      %s133 = ssub.s32 %s9, 1
      // Predicated region
      $region13: #{double_conv_forward.5} parent=11 // pred_check
        %p134 = pneg %p70
      $region14: #{double_conv_forward.5} parent=11 // pred_check_branch
        %136 = sbr.rel (%p134) target = $region16
      $region15: #{double_conv_forward.5} parent=11 // pred_region
        _
      $region16: #{double_conv_forward.5} parent=11 // pred_fallthru
        _
      // Predicated region
      $region17: #{double_conv_forward.5} parent=11 // pred_check
        %p137 = pneg %p91
      $region18: #{double_conv_forward.5} parent=11 // pred_check_branch
        %139 = sbr.rel (%p137) target = $region20
      $region19: #{double_conv_forward.5} parent=11 // pred_region
        _
      $region20: #{double_conv_forward.5} parent=11 // pred_fallthru
        _
    $region12: #{double_conv_forward.5} parent=5 // pred_fallthru
      _
    %p140 = scmp.lt.s32.totalorder %s9, 2
    // Predicated region
    $region21: #{double_conv_forward.5} parent=5 // pred_check
      %p141 = pneg %p140
    $region22: #{double_conv_forward.5} parent=5 // pred_check_branch
      %143 = sbr.rel (%p141) target = $region24
    $region23: #{double_conv_forward.5} parent=5 // pred_region
      // Predicated region
      $region25: #{double_conv_forward.5} parent=23 // pred_check
        %p144 = pneg %p43
      $region26: #{double_conv_forward.5} parent=23 // pred_check_branch
        %146 = sbr.rel (%p144) target = $region28
      $region27: #{double_conv_forward.5} parent=23 // pred_region
        %s147 = smul.u32 32, %s17
        %p148 = scmp.lt.s32.totalorder %s16, 1
        %s149 = scalar_select %p148, %s16, 1
        %p150 = scmp.lt.s32.totalorder %s147, 31
        %s151 = scalar_select %p150, %s147, 31
        %s152 = smul.addr %s149, 32
        %s153 = sadd.s32 %s151, %s152
        %s154 = smul.addr %s153, 4
        %s155 = scalar_lea.vmem %s0, %s154
        %s156 = smul.u32 32, %s17
      $region28: #{double_conv_forward.5} parent=23 // pred_fallthru
        _
    $region24: #{double_conv_forward.5} parent=5 // pred_fallthru
      _
    %p157 = scmp.le.s32.totalorder 1, %s9
    %p158 = scmp.lt.s32.totalorder %s9, 3
    %p159 = pnand %p157, %p158
    %p160 = pneg %p159
    // Predicated region
    $region29: #{double_conv_forward.5} parent=5 // pred_check
      _
    $region30: #{double_conv_forward.5} parent=5 // pred_check_branch
      %162 = sbr.rel (%p159) target = $region32
    $region31: #{double_conv_forward.5} parent=5 // pred_region
      %s163 = ssub.s32 %s9, 1
      %s164 = smul.u32 32, %s19
      %p165 = scmp.lt.s32.totalorder %s18, 1
      %s166 = scalar_select %p165, %s18, 1
      %p167 = scmp.lt.s32.totalorder %s164, 31
      %s168 = scalar_select %p167, %s164, 31
      %s169 = smul.addr %s166, 32
      %s170 = sadd.s32 %s168, %s169
      %s171 = smul.addr %s170, 4
      %s172 = scalar_lea.vmem %s0, %s171
      %p173 = pneg %p49
      %p174 = pneg %p46
      %p175 = pneg %p70
      %p176 = pneg %p67
      %p177 = pneg %p91
      %p178 = pneg %p88
      %p179 = pneg %p119
      %p180 = pneg %p116
      %s181 = smul.u32 2, %s19
      %p182 = scmp.lt.s32.totalorder %s18, 1
      %s183 = scalar_select %p182, %s18, 1
      %p184 = scmp.lt.s32.totalorder %s181, 1
      %s185 = scalar_select %p184, %s181, 1
      %s186 = smul.addr %s183, 8
      %s187 = sadd.s32 %s185, %s186
      %s188 = smul.addr %s187, 8
      %s189 = scalar_lea.vmem %s3, %s188
      %s190 = smul.u32 32, %s19
      %p191 = scmp.lt.s32.totalorder %s18, 1
      %s192 = scalar_select %p191, %s18, 1
      %p193 = scmp.lt.s32.totalorder %s190, 31
      %s194 = scalar_select %p193, %s190, 31
      %s195 = smul.addr %s192, 32
      %s196 = sadd.s32 %s194, %s195
      %s197 = smul.addr %s196, 4
      %s198 = scalar_lea.vmem %s0, %s197
      %s199 = smul.u32 32, %s19
      %s200 = smul.u32 2, %s19
      %p201 = scmp.lt.s32.totalorder %s18, 1
      %s202 = scalar_select %p201, %s18, 1
      %p203 = scmp.lt.s32.totalorder %s200, 1
      %s204 = scalar_select %p203, %s200, 1
      %s205 = smul.addr %s202, 8
      %s206 = sadd.s32 %s204, %s205
      %s207 = smul.addr %s206, 8
      %s208 = scalar_lea.vmem %s3, %s207
      %s209 = smul.u32 2, %s19
      %v210 = vld [vmem:[%s198] sm:$0xf]
      %v211 = vld [vmem:[%s198 + $0x4] sm:$0xf]
      %v212 = vld [vmem:[%s198 + $0x8] sm:$0xf]
      %v213 = vld [vmem:[%s198 + $0xc] sm:$0xf]
      %v214 = vld [vmem:[%s198 + $0x10] sm:$0xf]
      %v215 = vld [vmem:[%s198 + $0x14] sm:$0xf]
      %v216 = vld [vmem:[%s198 + $0x18] sm:$0xf]
      %v217 = vld [vmem:[%s198 + $0x1c] sm:$0xf]
      %v218 = vld [vmem:[%s198 + $0x20] sm:$0xf]
      %v219 = vld [vmem:[%s198 + $0x24] sm:$0xf]
      %v220 = vld [vmem:[%s198 + $0x28] sm:$0xf]
      %v221 = vld [vmem:[%s198 + $0x2c] sm:$0xf]
      %v222 = vld [vmem:[%s198 + $0x30] sm:$0xf]
      %v223 = vld [vmem:[%s198 + $0x34] sm:$0xf]
      %v224 = vld [vmem:[%s198 + $0x38] sm:$0xf]
      %v225 = vld [vmem:[%s198 + $0x3c] sm:$0xf]
      %v226 = vld [vmem:[%s198 + $0x40] sm:$0xf]
      %v227 = vld [vmem:[%s198 + $0x44] sm:$0xf]
      %v228 = vld [vmem:[%s198 + $0x48] sm:$0xf]
      %v229 = vld [vmem:[%s198 + $0x4c] sm:$0xf]
      %v230 = vld [vmem:[%s198 + $0x50] sm:$0xf]
      %v231 = vld [vmem:[%s198 + $0x54] sm:$0xf]
      %v232 = vld [vmem:[%s198 + $0x58] sm:$0xf]
      %v233 = vld [vmem:[%s198 + $0x5c] sm:$0xf]
      %v234 = vld [vmem:[%s198 + $0x60] sm:$0xf]
      %v235 = vld [vmem:[%s198 + $0x64] sm:$0xf]
      %v236 = vld [vmem:[%s198 + $0x68] sm:$0xf]
      %v237 = vld [vmem:[%s198 + $0x6c] sm:$0xf]
      %v238 = vld [vmem:[%s198 + $0x70] sm:$0xf]
      %v239 = vld [vmem:[%s198 + $0x74] sm:$0xf]
      %v240 = vld [vmem:[%s198 + $0x78] sm:$0xf]
      %v241 = vld [vmem:[%s198 + $0x7c] sm:$0xf]
      %v242 = vunpack.c.l.bf16 %v210
      %v243 = vunpack.c.l.bf16 %v211
      %v244 = vunpack.c.l.bf16 %v212
      %v245 = vunpack.c.l.bf16 %v213
      %v246 = vunpack.c.l.bf16 %v214
      %v247 = vunpack.c.l.bf16 %v215
      %v248 = vunpack.c.l.bf16 %v216
      %v249 = vunpack.c.l.bf16 %v217
      %v250 = vunpack.c.l.bf16 %v218
      %v251 = vunpack.c.l.bf16 %v219
      %v252 = vunpack.c.l.bf16 %v220
      %v253 = vunpack.c.l.bf16 %v221
      %v254 = vunpack.c.l.bf16 %v222
      %v255 = vunpack.c.l.bf16 %v223
      %v256 = vunpack.c.l.bf16 %v224
      %v257 = vunpack.c.l.bf16 %v225
      %v258 = vunpack.c.l.bf16 %v226
      %v259 = vunpack.c.l.bf16 %v227
      %v260 = vunpack.c.l.bf16 %v228
      %v261 = vunpack.c.l.bf16 %v229
      %v262 = vunpack.c.l.bf16 %v230
      %v263 = vunpack.c.l.bf16 %v231
      %v264 = vunpack.c.l.bf16 %v232
      %v265 = vunpack.c.l.bf16 %v233
      %v266 = vunpack.c.l.bf16 %v234
      %v267 = vunpack.c.l.bf16 %v235
      %v268 = vunpack.c.l.bf16 %v236
      %v269 = vunpack.c.l.bf16 %v237
      %v270 = vunpack.c.l.bf16 %v238
      %v271 = vunpack.c.l.bf16 %v239
      %v272 = vunpack.c.l.bf16 %v240
      %v273 = vunpack.c.l.bf16 %v241
      %v274 = vld [vmem:[%s1] sm:$0x1]
      %v276 = vperm.slane %v274, 0
      %v278 = vmul.f32 %v242, %v276
      %v279 = vmul.f32 %v243, %v276
      %v280 = vmul.f32 %v244, %v276
      %v281 = vmul.f32 %v245, %v276
      %v282 = vmul.f32 %v246, %v276
      %v283 = vmul.f32 %v247, %v276
      %v284 = vmul.f32 %v248, %v276
      %v285 = vmul.f32 %v249, %v276
      %v286 = vmul.f32 %v250, %v276
      %v287 = vmul.f32 %v251, %v276
      %v288 = vmul.f32 %v252, %v276
      %v289 = vmul.f32 %v253, %v276
      %v290 = vmul.f32 %v254, %v276
      %v291 = vmul.f32 %v255, %v276
      %v292 = vmul.f32 %v256, %v276
      %v293 = vmul.f32 %v257, %v276
      %v294 = vmul.f32 %v258, %v276
      %v295 = vmul.f32 %v259, %v276
      %v296 = vmul.f32 %v260, %v276
      %v297 = vmul.f32 %v261, %v276
      %v298 = vmul.f32 %v262, %v276
      %v299 = vmul.f32 %v263, %v276
      %v300 = vmul.f32 %v264, %v276
      %v301 = vmul.f32 %v265, %v276
      %v302 = vmul.f32 %v266, %v276
      %v303 = vmul.f32 %v267, %v276
      %v304 = vmul.f32 %v268, %v276
      %v305 = vmul.f32 %v269, %v276
      %v306 = vmul.f32 %v270, %v276
      %v307 = vmul.f32 %v271, %v276
      %v308 = vmul.f32 %v272, %v276
      %v309 = vmul.f32 %v273, %v276
      %v310 = vld [vmem:[%s2] sm:$0x1]
      %v312 = vperm.slane %v310, 0
      %v314 = vadd.f32 %v278, %v312
      %v315 = vadd.f32 %v279, %v312
      %v316 = vadd.f32 %v280, %v312
      %v317 = vadd.f32 %v281, %v312
      %v318 = vadd.f32 %v282, %v312
      %v319 = vadd.f32 %v283, %v312
      %v320 = vadd.f32 %v284, %v312
      %v321 = vadd.f32 %v285, %v312
      %v322 = vadd.f32 %v286, %v312
      %v323 = vadd.f32 %v287, %v312
      %v324 = vadd.f32 %v288, %v312
      %v325 = vadd.f32 %v289, %v312
      %v326 = vadd.f32 %v290, %v312
      %v327 = vadd.f32 %v291, %v312
      %v328 = vadd.f32 %v292, %v312
      %v329 = vadd.f32 %v293, %v312
      %v330 = vadd.f32 %v294, %v312
      %v331 = vadd.f32 %v295, %v312
      %v332 = vadd.f32 %v296, %v312
      %v333 = vadd.f32 %v297, %v312
      %v334 = vadd.f32 %v298, %v312
      %v335 = vadd.f32 %v299, %v312
      %v336 = vadd.f32 %v300, %v312
      %v337 = vadd.f32 %v301, %v312
      %v338 = vadd.f32 %v302, %v312
      %v339 = vadd.f32 %v303, %v312
      %v340 = vadd.f32 %v304, %v312
      %v341 = vadd.f32 %v305, %v312
      %v342 = vadd.f32 %v306, %v312
      %v343 = vadd.f32 %v307, %v312
      %v344 = vadd.f32 %v308, %v312
      %v345 = vadd.f32 %v309, %v312
      %v346 = vmax.f32 %v314, 0.0
      %v347 = vmax.f32 %v315, 0.0
      %v348 = vmax.f32 %v316, 0.0
      %v349 = vmax.f32 %v317, 0.0
      %v350 = vmax.f32 %v318, 0.0
      %v351 = vmax.f32 %v319, 0.0
      %v352 = vmax.f32 %v320, 0.0
      %v353 = vmax.f32 %v321, 0.0
      %v354 = vmax.f32 %v322, 0.0
      %v355 = vmax.f32 %v323, 0.0
      %v356 = vmax.f32 %v324, 0.0
      %v357 = vmax.f32 %v325, 0.0
      %v358 = vmax.f32 %v326, 0.0
      %v359 = vmax.f32 %v327, 0.0
      %v360 = vmax.f32 %v328, 0.0
      %v361 = vmax.f32 %v329, 0.0
      %v362 = vmax.f32 %v330, 0.0
      %v363 = vmax.f32 %v331, 0.0
      %v364 = vmax.f32 %v332, 0.0
      %v365 = vmax.f32 %v333, 0.0
      %v366 = vmax.f32 %v334, 0.0
      %v367 = vmax.f32 %v335, 0.0
      %v368 = vmax.f32 %v336, 0.0
      %v369 = vmax.f32 %v337, 0.0
      %v370 = vmax.f32 %v338, 0.0
      %v371 = vmax.f32 %v339, 0.0
      %v372 = vmax.f32 %v340, 0.0
      %v373 = vmax.f32 %v341, 0.0
      %v374 = vmax.f32 %v342, 0.0
      %v375 = vmax.f32 %v343, 0.0
      %v376 = vmax.f32 %v344, 0.0
      %v377 = vmax.f32 %v345, 0.0
      %378 = vxpose.xlu0.b32.start [1/16] %v346, 128
      %379 = vxpose.xlu0.b32.cont [2/16] %v347, 128
      %380 = vxpose.xlu0.b32.cont [3/16] %v348, 128
      %381 = vxpose.xlu0.b32.cont [4/16] %v349, 128
      %382 = vxpose.xlu0.b32.cont [5/16] %v350, 128
      %383 = vxpose.xlu0.b32.cont [6/16] %v351, 128
      %384 = vxpose.xlu0.b32.cont [7/16] %v352, 128
      %385 = vxpose.xlu0.b32.cont [8/16] %v353, 128
      %386 = vxpose.xlu0.b32.cont [9/16] %v354, 128
      %387 = vxpose.xlu0.b32.cont [10/16] %v355, 128
      %388 = vxpose.xlu0.b32.cont [11/16] %v356, 128
      %389 = vxpose.xlu0.b32.cont [12/16] %v357, 128
      %390 = vxpose.xlu0.b32.cont [13/16] %v358, 128
      %391 = vxpose.xlu0.b32.cont [14/16] %v359, 128
      %392 = vxpose.xlu0.b32.cont [15/16] %v360, 128
      %393 = vxpose.xlu0.b32.end [16/16] %v361, 128
      %v394 = vpop.trf.xlu0
      %v395 = vpop.trf.xlu0
      %v396 = vpop.trf.xlu0
      %v397 = vpop.trf.xlu0
      %v398 = vpop.trf.xlu0
      %v399 = vpop.trf.xlu0
      %v400 = vpop.trf.xlu0
      %v401 = vpop.trf.xlu0
      %v402 = vpop.trf.xlu0
      %v403 = vpop.trf.xlu0
      %v404 = vpop.trf.xlu0
      %v405 = vpop.trf.xlu0
      %v406 = vpop.trf.xlu0
      %v407 = vpop.trf.xlu0
      %v408 = vpop.trf.xlu0
      %v409 = vpop.trf.xlu0
      %410 = vxpose.xlu0.b32.start [1/16] %v362, 128
      %411 = vxpose.xlu0.b32.cont [2/16] %v363, 128
      %412 = vxpose.xlu0.b32.cont [3/16] %v364, 128
      %413 = vxpose.xlu0.b32.cont [4/16] %v365, 128
      %414 = vxpose.xlu0.b32.cont [5/16] %v366, 128
      %415 = vxpose.xlu0.b32.cont [6/16] %v367, 128
      %416 = vxpose.xlu0.b32.cont [7/16] %v368, 128
      %417 = vxpose.xlu0.b32.cont [8/16] %v369, 128
      %418 = vxpose.xlu0.b32.cont [9/16] %v370, 128
      %419 = vxpose.xlu0.b32.cont [10/16] %v371, 128
      %420 = vxpose.xlu0.b32.cont [11/16] %v372, 128
      %421 = vxpose.xlu0.b32.cont [12/16] %v373, 128
      %422 = vxpose.xlu0.b32.cont [13/16] %v374, 128
      %423 = vxpose.xlu0.b32.cont [14/16] %v375, 128
      %424 = vxpose.xlu0.b32.cont [15/16] %v376, 128
      %425 = vxpose.xlu0.b32.end [16/16] %v377, 128
      %v426 = vpop.trf.xlu0
      %v427 = vpop.trf.xlu0
      %v428 = vpop.trf.xlu0
      %v429 = vpop.trf.xlu0
      %v430 = vpop.trf.xlu0
      %v431 = vpop.trf.xlu0
      %v432 = vpop.trf.xlu0
      %v433 = vpop.trf.xlu0
      %v434 = vpop.trf.xlu0
      %v435 = vpop.trf.xlu0
      %v436 = vpop.trf.xlu0
      %v437 = vpop.trf.xlu0
      %v438 = vpop.trf.xlu0
      %v439 = vpop.trf.xlu0
      %v440 = vpop.trf.xlu0
      %v441 = vpop.trf.xlu0
      %442 = vst [vmem:[%s208] sm:$0xff] %v394
      %443 = vst [vmem:[%s208 + $0x8] sm:$0xff] %v426
      %444 = vst [vmem:[%s208 + $0x10] sm:$0xff] %v395
      %445 = vst [vmem:[%s208 + $0x18] sm:$0xff] %v427
      %446 = vst [vmem:[%s208 + $0x20] sm:$0xff] %v396
      %447 = vst [vmem:[%s208 + $0x28] sm:$0xff] %v428
      %448 = vst [vmem:[%s208 + $0x30] sm:$0xff] %v397
      %449 = vst [vmem:[%s208 + $0x38] sm:$0xff] %v429
      %s450 = smul.u32 2, %s19
      %p451 = scmp.lt.s32.totalorder %s18, 1
      %s452 = scalar_select %p451, %s18, 1
      %p453 = scmp.lt.s32.totalorder %s450, 1
      %s454 = scalar_select %p453, %s450, 1
      %s455 = smul.addr %s452, 8
      %s456 = sadd.s32 %s454, %s455
      %s457 = smul.addr %s456, 8
      %s458 = scalar_lea.vmem %s3, %s457
      // Predicated region
      $region33: #{double_conv_forward.5} parent=31 // pred_check
        %p459 = pneg %p116
      $region34: #{double_conv_forward.5} parent=31 // pred_check_branch
        %461 = sbr.rel (%p459) target = $region36
      $region35: #{double_conv_forward.5} parent=31 // pred_region
        %s462 = smul.u32 2, %s19
      $region36: #{double_conv_forward.5} parent=31 // pred_fallthru
        _
    $region32: #{double_conv_forward.5} parent=5 // pred_fallthru
      _
    %p463 = scmp.le.s32.totalorder 2, %s9
    // Predicated region
    $region37: #{double_conv_forward.5} parent=5 // pred_check
      %p464 = pneg %p463
    $region38: #{double_conv_forward.5} parent=5 // pred_check_branch
      %466 = sbr.rel (%p464) target = $region40
    $region39: #{double_conv_forward.5} parent=5 // pred_region
      %s467 = ssub.s32 %s9, 2
      // Predicated region
      $region41: #{double_conv_forward.5} parent=39 // pred_check
        %p468 = pneg %p122
      $region42: #{double_conv_forward.5} parent=39 // pred_check_branch
        %470 = sbr.rel (%p468) target = $region44
      $region43: #{double_conv_forward.5} parent=39 // pred_region
        %s471 = smul.u32 2, %s21
        %p472 = scmp.lt.s32.totalorder %s20, 1
        %s473 = scalar_select %p472, %s20, 1
        %p474 = scmp.lt.s32.totalorder %s471, 1
        %s475 = scalar_select %p474, %s471, 1
        %s476 = smul.addr %s473, 8
        %s477 = sadd.s32 %s475, %s476
        %s478 = smul.addr %s477, 8
        %s479 = scalar_lea.vmem %s3, %s478
      $region44: #{double_conv_forward.5} parent=39 // pred_fallthru
        _
    $region40: #{double_conv_forward.5} parent=5 // pred_fallthru
      _
  $region6: #{double_conv_forward.5} parent=0 // loop_footer
    %s13 = sadd.s32 1, %s9
  $region7: #{double_conv_forward.5} parent=0 // loop_footer_branch
    %8 = sbr.rel target = $region3
  $region8: #{double_conv_forward.5} parent=0 // loop_exit
    _

// kernel: double_conv_forward.3
$region0: #{double_conv_forward.3}
  #allocation0 [shape = 'u32[]', space=smem, size = 0x4, offset = 0x4, fixed_abs, tag = 'smem constant byte address 0x4 - core index']
  #allocation1 [shape = 'u32[72,128]{1,0:T(1,128)}', space=vmem, size = 0x9000, scoped, tag = 'internal scratch']
  #allocation2 [shape = 'bf16[1,18,48,4]{3,2,1,0:T(8,128)(2,1)}', space=vmem, size = 0x36000, scoped, tag = 'scratch operand']
  %s0 = inlined_call_operand.vmem [shape: bf16[2,16,16,4], index: 0, kind: input, shape index: {}]
  %s1 = inlined_call_operand.vmem [shape: bf16[9,4,32], index: 1, kind: input, shape index: {}]
  %s2 = inlined_call_operand.vmem [shape: f32[1,32], index: 2, kind: input, shape index: {}]
  %s3 = inlined_call_operand.vmem [shape: f32[1,4], index: 3, kind: input, shape index: {}]
  %s4 = inlined_call_operand.vmem [shape: f32[1,4], index: 4, kind: input, shape index: {}]
  %s5 = inlined_call_operand.vmem [shape: bf16[2,16,16,32], index: 5, kind: output, shape index: {0}]
  %s6 = inlined_call_operand.vmem [shape: f32[2,1,2,32], index: 6, kind: output, shape index: {1}]
  %7 = xla_tuple %s5, %s6
  %s8 = sld [smem:[#allocation0]]
  $region65: #{double_conv_forward.3} parent=0
    _
  %s10 = ssub.s32 1, %s8
  %s11 = scalar_select 0, %s10, %s8
  loop: start=0, step=1, limit=4
  $region2: #{double_conv_forward.3} parent=0 // loop_pre_header
    _
  $region3: #{double_conv_forward.3} parent=0 // loop_header
    %s13 = sphi 0, %s17
    %p14 = scmp.ge.s32.totalorder %s13, 4
    %s20 = sphi 0, %s32
    %s21 = sphi 0, %s28
    %s22 = sphi 0, %s20
    %s23 = sphi 0, %s21
    %s24 = sphi 0, %s22
    %s25 = sphi 0, %s23
    %s35 = sphi 0, %s37
    %s38 = sphi 0, %s35
    %s39 = sphi 0, %s38
    %s55 = sphi 0, %s39
    %s59 = sphi 0, %s59
    %s61 = sphi 0, %s59
    %s62 = sphi 0, %s61
    %s76 = sphi 0, %s62
    %s80 = sphi 0, %s80
    %s82 = sphi 0, %s80
    %s83 = sphi 0, %s82
    %s97 = sphi 0, %s83
    %s101 = sphi 0, %s101
    %s103 = sphi 0, %s101
    %s104 = sphi 0, %s103
    %s118 = sphi 0, %s104
    %s122 = sphi 0, %s122
    %s124 = sphi 0, %s122
    %s125 = sphi 0, %s124
    %s139 = sphi 0, %s125
    %s147 = sphi 0, %s149
    %s150 = sphi 0, %s147
    %s151 = sphi 0, %s150
    %s167 = sphi 0, %s151
    %s175 = sphi 0, %s177
    %s178 = sphi 0, %s175
    %s179 = sphi 0, %s178
    %s195 = sphi 0, %s179
  $region4: #{double_conv_forward.3} parent=0 // loop_header_branch
    %16 = sbr.rel (%p14) target = $region8
  $region5: #{double_conv_forward.3} parent=0 // loop_body
    %s18 = ssub.s32 %s13, 1
    %s19 = ssub.s32 %s13, 2
    %s26 = sadd.s32 1, %s21
    %p27 = scmp.ge.s32.totalorder %s26, 1
    %s28 = scalar_select %p27, 0, %s26
    %s29 = sadd.s32 1, %s20
    %s30 = scalar_select %p27, %s29, %s20
    %p31 = scmp.ge.s32.totalorder %s30, 2
    %s32 = scalar_select %p31, 0, %s30
    %s33 = ssub.s32 %s20, %s32
    %p34 = scmp.eq.s32.totalorder %s33, 0
    %s36 = sadd.s32 %s35, 1
    %s37 = scalar_select %p34, %s35, %s36
    %p40 = pneg %p34
    %p41 = scmp.eq.s32.totalorder %s13, 1
    %p42 = por %p40, %p41
    %p43 = scmp.ne.s32.totalorder %s35, %s38
    %p44 = scmp.eq.s32.totalorder %s13, 0
    %p45 = por %p43, %p44
    %p46 = scmp.ne.s32.totalorder %s35, %s38
    %p47 = scmp.eq.s32.totalorder %s18, 1
    %p48 = por %p46, %p47
    %p49 = scmp.ne.s32.totalorder %s38, %s39
    %p50 = scmp.eq.s32.totalorder %s18, 0
    %p51 = por %p49, %p50
    %p52 = scmp.ne.s32.totalorder %s38, %s39
    %p53 = scmp.eq.s32.totalorder %s19, 1
    %p54 = por %p52, %p53
    %p56 = scmp.ne.s32.totalorder %s39, %s55
    %p57 = scmp.eq.s32.totalorder %s19, 0
    %p58 = por %p56, %p57
    %s60 = sadd.s32 %s59, 1
    %p63 = scmp.eq.s32.totalorder %s13, 1
    %p64 = scmp.ne.s32.totalorder %s59, %s61
    %p65 = scmp.eq.s32.totalorder %s13, 0
    %p66 = por %p64, %p65
    %p67 = scmp.ne.s32.totalorder %s59, %s61
    %p68 = scmp.eq.s32.totalorder %s18, 1
    %p69 = por %p67, %p68
    %p70 = scmp.ne.s32.totalorder %s61, %s62
    %p71 = scmp.eq.s32.totalorder %s18, 0
    %p72 = por %p70, %p71
    %p73 = scmp.ne.s32.totalorder %s61, %s62
    %p74 = scmp.eq.s32.totalorder %s19, 1
    %p75 = por %p73, %p74
    %p77 = scmp.ne.s32.totalorder %s62, %s76
    %p78 = scmp.eq.s32.totalorder %s19, 0
    %p79 = por %p77, %p78
    %s81 = sadd.s32 %s80, 1
    %p84 = scmp.eq.s32.totalorder %s13, 1
    %p85 = scmp.ne.s32.totalorder %s80, %s82
    %p86 = scmp.eq.s32.totalorder %s13, 0
    %p87 = por %p85, %p86
    %p88 = scmp.ne.s32.totalorder %s80, %s82
    %p89 = scmp.eq.s32.totalorder %s18, 1
    %p90 = por %p88, %p89
    %p91 = scmp.ne.s32.totalorder %s82, %s83
    %p92 = scmp.eq.s32.totalorder %s18, 0
    %p93 = por %p91, %p92
    %p94 = scmp.ne.s32.totalorder %s82, %s83
    %p95 = scmp.eq.s32.totalorder %s19, 1
    %p96 = por %p94, %p95
    %p98 = scmp.ne.s32.totalorder %s83, %s97
    %p99 = scmp.eq.s32.totalorder %s19, 0
    %p100 = por %p98, %p99
    %s102 = sadd.s32 %s101, 1
    %p105 = scmp.eq.s32.totalorder %s13, 1
    %p106 = scmp.ne.s32.totalorder %s101, %s103
    %p107 = scmp.eq.s32.totalorder %s13, 0
    %p108 = por %p106, %p107
    %p109 = scmp.ne.s32.totalorder %s101, %s103
    %p110 = scmp.eq.s32.totalorder %s18, 1
    %p111 = por %p109, %p110
    %p112 = scmp.ne.s32.totalorder %s103, %s104
    %p113 = scmp.eq.s32.totalorder %s18, 0
    %p114 = por %p112, %p113
    %p115 = scmp.ne.s32.totalorder %s103, %s104
    %p116 = scmp.eq.s32.totalorder %s19, 1
    %p117 = por %p115, %p116
    %p119 = scmp.ne.s32.totalorder %s104, %s118
    %p120 = scmp.eq.s32.totalorder %s19, 0
    %p121 = por %p119, %p120
    %s123 = sadd.s32 %s122, 1
    %p126 = scmp.eq.s32.totalorder %s13, 1
    %p127 = scmp.ne.s32.totalorder %s122, %s124
    %p128 = scmp.eq.s32.totalorder %s13, 0
    %p129 = por %p127, %p128
    %p130 = scmp.ne.s32.totalorder %s122, %s124
    %p131 = scmp.eq.s32.totalorder %s18, 1
    %p132 = por %p130, %p131
    %p133 = scmp.ne.s32.totalorder %s124, %s125
    %p134 = scmp.eq.s32.totalorder %s18, 0
    %p135 = por %p133, %p134
    %p136 = scmp.ne.s32.totalorder %s124, %s125
    %p137 = scmp.eq.s32.totalorder %s19, 1
    %p138 = por %p136, %p137
    %p140 = scmp.ne.s32.totalorder %s125, %s139
    %p141 = scmp.eq.s32.totalorder %s19, 0
    %p142 = por %p140, %p141
    %s143 = ssub.s32 %s20, %s32
    %s144 = ssub.s32 %s21, %s28
    %s145 = sor.u32 %s143, %s144
    %p146 = scmp.eq.s32.totalorder %s145, 0
    %s148 = sadd.s32 %s147, 1
    %s149 = scalar_select %p146, %s147, %s148
    %p152 = pneg %p146
    %p153 = scmp.eq.s32.totalorder %s13, 1
    %p154 = por %p152, %p153
    %p155 = scmp.ne.s32.totalorder %s147, %s150
    %p156 = scmp.eq.s32.totalorder %s13, 0
    %p157 = por %p155, %p156
    %p158 = scmp.ne.s32.totalorder %s147, %s150
    %p159 = scmp.eq.s32.totalorder %s18, 1
    %p160 = por %p158, %p159
    %p161 = scmp.ne.s32.totalorder %s150, %s151
    %p162 = scmp.eq.s32.totalorder %s18, 0
    %p163 = por %p161, %p162
    %p164 = scmp.ne.s32.totalorder %s150, %s151
    %p165 = scmp.eq.s32.totalorder %s19, 1
    %p166 = por %p164, %p165
    %p168 = scmp.ne.s32.totalorder %s151, %s167
    %p169 = scmp.eq.s32.totalorder %s19, 0
    %p170 = por %p168, %p169
    %s171 = ssub.s32 %s20, %s32
    %s172 = ssub.s32 %s21, %s28
    %s173 = sor.u32 %s171, %s172
    %p174 = scmp.eq.s32.totalorder %s173, 0
    %s176 = sadd.s32 %s175, 1
    %s177 = scalar_select %p174, %s175, %s176
    %p180 = pneg %p174
    %p181 = scmp.eq.s32.totalorder %s13, 1
    %p182 = por %p180, %p181
    %p183 = scmp.ne.s32.totalorder %s175, %s178
    %p184 = scmp.eq.s32.totalorder %s13, 0
    %p185 = por %p183, %p184
    %p186 = scmp.ne.s32.totalorder %s175, %s178
    %p187 = scmp.eq.s32.totalorder %s18, 1
    %p188 = por %p186, %p187
    %p189 = scmp.ne.s32.totalorder %s178, %s179
    %p190 = scmp.eq.s32.totalorder %s18, 0
    %p191 = por %p189, %p190
    %p192 = scmp.ne.s32.totalorder %s178, %s179
    %p193 = scmp.eq.s32.totalorder %s19, 1
    %p194 = por %p192, %p193
    %p196 = scmp.ne.s32.totalorder %s179, %s195
    %p197 = scmp.eq.s32.totalorder %s19, 0
    %p198 = por %p196, %p197
    %p199 = scmp.le.s32.totalorder 1, %s13
    %p200 = scmp.lt.s32.totalorder %s13, 3
    %p201 = pnand %p199, %p200
    %p202 = pneg %p201
    // Predicated region
    $region9: #{double_conv_forward.3} parent=5 // pred_check
      _
    $region10: #{double_conv_forward.3} parent=5 // pred_check_branch
      %204 = sbr.rel (%p201) target = $region12
    $region11: #{double_conv_forward.3} parent=5 // pred_region
      %s205 = ssub.s32 %s13, 1
      // Predicated region
      $region13: #{double_conv_forward.3} parent=11 // pred_check
        %p206 = pneg %p72
      $region14: #{double_conv_forward.3} parent=11 // pred_check_branch
        %208 = sbr.rel (%p206) target = $region16
      $region15: #{double_conv_forward.3} parent=11 // pred_region
        _
      $region16: #{double_conv_forward.3} parent=11 // pred_fallthru
        _
      // Predicated region
      $region17: #{double_conv_forward.3} parent=11 // pred_check
        %p209 = pneg %p93
      $region18: #{double_conv_forward.3} parent=11 // pred_check_branch
        %211 = sbr.rel (%p209) target = $region20
      $region19: #{double_conv_forward.3} parent=11 // pred_region
        _
      $region20: #{double_conv_forward.3} parent=11 // pred_fallthru
        _
      // Predicated region
      $region21: #{double_conv_forward.3} parent=11 // pred_check
        %p212 = pneg %p114
      $region22: #{double_conv_forward.3} parent=11 // pred_check_branch
        %214 = sbr.rel (%p212) target = $region24
      $region23: #{double_conv_forward.3} parent=11 // pred_region
        _
      $region24: #{double_conv_forward.3} parent=11 // pred_fallthru
        _
      // Predicated region
      $region25: #{double_conv_forward.3} parent=11 // pred_check
        %p215 = pneg %p135
      $region26: #{double_conv_forward.3} parent=11 // pred_check_branch
        %217 = sbr.rel (%p215) target = $region28
      $region27: #{double_conv_forward.3} parent=11 // pred_region
        _
      $region28: #{double_conv_forward.3} parent=11 // pred_fallthru
        _
    $region12: #{double_conv_forward.3} parent=5 // pred_fallthru
      _
    %p218 = scmp.lt.s32.totalorder %s13, 2
    // Predicated region
    $region29: #{double_conv_forward.3} parent=5 // pred_check
      %p219 = pneg %p218
    $region30: #{double_conv_forward.3} parent=5 // pred_check_branch
      %221 = sbr.rel (%p219) target = $region32
    $region31: #{double_conv_forward.3} parent=5 // pred_region
      // Predicated region
      $region33: #{double_conv_forward.3} parent=31 // pred_check
        %p222 = pneg %p45
      $region34: #{double_conv_forward.3} parent=31 // pred_check_branch
        %224 = sbr.rel (%p222) target = $region36
      $region35: #{double_conv_forward.3} parent=31 // pred_region
        %p225 = scmp.lt.s32.totalorder %s20, 1
        %s226 = scalar_select %p225, %s20, 1
        %s227 = smul.addr %s226, 32
        %s228 = smul.addr %s227, 4
        %s229 = scalar_lea.vmem %s0, %s228
      $region36: #{double_conv_forward.3} parent=31 // pred_fallthru
        _
    $region32: #{double_conv_forward.3} parent=5 // pred_fallthru
      _
    %p230 = scmp.le.s32.totalorder 1, %s13
    %p231 = scmp.lt.s32.totalorder %s13, 3
    %p232 = pnand %p230, %p231
    %p233 = pneg %p232
    // Predicated region
    $region37: #{double_conv_forward.3} parent=5 // pred_check
      _
    $region38: #{double_conv_forward.3} parent=5 // pred_check_branch
      %235 = sbr.rel (%p232) target = $region40
    $region39: #{double_conv_forward.3} parent=5 // pred_region
      %s236 = ssub.s32 %s13, 1
      %p237 = scmp.lt.s32.totalorder %s22, 1
      %s238 = scalar_select %p237, %s22, 1
      %s239 = smul.addr %s238, 32
      %s240 = smul.addr %s239, 4
      %s241 = scalar_lea.vmem %s0, %s240
      %p242 = pneg %p51
      %p243 = pneg %p48
      %p244 = pneg %p72
      %p245 = pneg %p69
      %p246 = pneg %p93
      %p247 = pneg %p90
      %p248 = pneg %p114
      %p249 = pneg %p111
      %p250 = pneg %p135
      %p251 = pneg %p132
      %p252 = pneg %p163
      %p253 = pneg %p160
      %s254 = smul.u32 16, %s23
      %p255 = scmp.lt.s32.totalorder %s22, 1
      %s256 = scalar_select %p255, %s22, 1
      %p257 = scmp.lt.s32.totalorder %s254, 15
      %s258 = scalar_select %p257, %s254, 15
      %s259 = smul.addr %s258, 2
      %s260 = smul.addr %s256, 32
      %s261 = sadd.s32 %s259, %s260
      %s262 = smul.addr %s261, 4
      %s263 = scalar_lea.vmem %s5, %s262
      %p264 = pneg %p191
      %p265 = pneg %p188
      %p266 = scmp.lt.s32.totalorder %s22, 1
      %s267 = scalar_select %p266, %s22, 1
      %p268 = scmp.lt.s32.totalorder %s23, 0
      %s269 = scalar_select %p268, %s23, 0
      %s270 = sadd.s32 %s269, %s267
      %s271 = smul.addr %s270, 2
      %s272 = scalar_lea.vmem %s6, %s271
      %p273 = scmp.lt.s32.totalorder %s22, 1
      %s274 = scalar_select %p273, %s22, 1
      %s275 = smul.addr %s274, 32
      %s276 = smul.addr %s275, 4
      %s277 = scalar_lea.vmem %s0, %s276
      %s278 = smul.u32 16, %s23
      %p279 = scmp.lt.s32.totalorder %s22, 1
      %s280 = scalar_select %p279, %s22, 1
      %p281 = scmp.lt.s32.totalorder %s278, 15
      %s282 = scalar_select %p281, %s278, 15
      %s283 = smul.addr %s282, 2
      %s284 = smul.addr %s280, 32
      %s285 = sadd.s32 %s283, %s284
      %s286 = smul.addr %s285, 4
      %s287 = scalar_lea.vmem %s5, %s286
      %s288 = smul.u32 16, %s23
      %p289 = scmp.lt.s32.totalorder %s22, 1
      %s290 = scalar_select %p289, %s22, 1
      %p291 = scmp.lt.s32.totalorder %s23, 0
      %s292 = scalar_select %p291, %s23, 0
      %s293 = sadd.s32 %s292, %s290
      %s294 = smul.addr %s293, 2
      %s295 = scalar_lea.vmem %s6, %s294
      %p297 = scmp.eq.s32.totalorder %s23, 0
      // Predicated region
      $region41: #{double_conv_forward.3} parent=39 // pred_check
        %p298 = pneg %p297
      $region42: #{double_conv_forward.3} parent=39 // pred_check_branch
        %300 = sbr.rel (%p298) target = $region44
      $region43: #{double_conv_forward.3} parent=39 // pred_region
        %vm301 = vcmask 27648
        %302 = vst.msk [vmem:[#allocation2] sm:$0xf] %vm301, 0
        %303 = vst.msk [vmem:[#allocation2 + $0x4] sm:$0xf] %vm301, 0
        %304 = vst.msk [vmem:[#allocation2 + $0x18] sm:$0xf] %vm301, 0
        %305 = vst.msk [vmem:[#allocation2 + $0x1c] sm:$0xf] %vm301, 0
        %306 = vst.msk [vmem:[#allocation2 + $0x30] sm:$0xf] %vm301, 0
        %307 = vst.msk [vmem:[#allocation2 + $0x34] sm:$0xf] %vm301, 0
        %308 = vst.msk [vmem:[#allocation2 + $0x48] sm:$0xf] %vm301, 0
        %309 = vst.msk [vmem:[#allocation2 + $0x4c] sm:$0xf] %vm301, 0
        %310 = vst.msk [vmem:[#allocation2 + $0x60] sm:$0xf] %vm301, 0
        %311 = vst.msk [vmem:[#allocation2 + $0x64] sm:$0xf] %vm301, 0
        %312 = vst.msk [vmem:[#allocation2 + $0x78] sm:$0xf] %vm301, 0
        %313 = vst.msk [vmem:[#allocation2 + $0x7c] sm:$0xf] %vm301, 0
        %314 = vst.msk [vmem:[#allocation2 + $0x90] sm:$0xf] %vm301, 0
        %315 = vst.msk [vmem:[#allocation2 + $0x94] sm:$0xf] %vm301, 0
        %316 = vst.msk [vmem:[#allocation2 + $0xa8] sm:$0xf] %vm301, 0
        %317 = vst.msk [vmem:[#allocation2 + $0xac] sm:$0xf] %vm301, 0
        %318 = vst.msk [vmem:[#allocation2 + $0xc0] sm:$0xf] %vm301, 0
        %319 = vst.msk [vmem:[#allocation2 + $0xc4] sm:$0xf] %vm301, 0
        %320 = vst.msk [vmem:[#allocation2 + $0xd8] sm:$0xf] %vm301, 0
        %321 = vst.msk [vmem:[#allocation2 + $0xdc] sm:$0xf] %vm301, 0
        %322 = vst.msk [vmem:[#allocation2 + $0xf0] sm:$0xf] %vm301, 0
        %323 = vst.msk [vmem:[#allocation2 + $0xf4] sm:$0xf] %vm301, 0
        %324 = vst.msk [vmem:[#allocation2 + $0x108] sm:$0xf] %vm301, 0
        %325 = vst.msk [vmem:[#allocation2 + $0x10c] sm:$0xf] %vm301, 0
        %326 = vst.msk [vmem:[#allocation2 + $0x120] sm:$0xf] %vm301, 0
        %327 = vst.msk [vmem:[#allocation2 + $0x124] sm:$0xf] %vm301, 0
        %328 = vst.msk [vmem:[#allocation2 + $0x138] sm:$0xf] %vm301, 0
        %329 = vst.msk [vmem:[#allocation2 + $0x13c] sm:$0xf] %vm301, 0
        %330 = vst.msk [vmem:[#allocation2 + $0x150] sm:$0xf] %vm301, 0
        %331 = vst.msk [vmem:[#allocation2 + $0x154] sm:$0xf] %vm301, 0
        %332 = vst.msk [vmem:[#allocation2 + $0x168] sm:$0xf] %vm301, 0
        %333 = vst.msk [vmem:[#allocation2 + $0x16c] sm:$0xf] %vm301, 0
        %334 = vst.msk [vmem:[#allocation2 + $0x180] sm:$0xf] %vm301, 0
        %335 = vst.msk [vmem:[#allocation2 + $0x184] sm:$0xf] %vm301, 0
        %336 = vst.msk [vmem:[#allocation2 + $0x198] sm:$0xf] %vm301, 0
        %337 = vst.msk [vmem:[#allocation2 + $0x19c] sm:$0xf] %vm301, 0
        %338 = vst.msk [vmem:[#allocation2 + $0x10] sm:$0xf] %vm301, 0
        %339 = vst.msk [vmem:[#allocation2 + $0x14] sm:$0xf] %vm301, 0
        %340 = vst.msk [vmem:[#allocation2 + $0x28] sm:$0xf] %vm301, 0
        %341 = vst.msk [vmem:[#allocation2 + $0x2c] sm:$0xf] %vm301, 0
        %342 = vst.msk [vmem:[#allocation2 + $0x40] sm:$0xf] %vm301, 0
        %343 = vst.msk [vmem:[#allocation2 + $0x44] sm:$0xf] %vm301, 0
        %344 = vst.msk [vmem:[#allocation2 + $0x58] sm:$0xf] %vm301, 0
        %345 = vst.msk [vmem:[#allocation2 + $0x5c] sm:$0xf] %vm301, 0
        %346 = vst.msk [vmem:[#allocation2 + $0x70] sm:$0xf] %vm301, 0
        %347 = vst.msk [vmem:[#allocation2 + $0x74] sm:$0xf] %vm301, 0
        %348 = vst.msk [vmem:[#allocation2 + $0x88] sm:$0xf] %vm301, 0
        %349 = vst.msk [vmem:[#allocation2 + $0x8c] sm:$0xf] %vm301, 0
        %350 = vst.msk [vmem:[#allocation2 + $0xa0] sm:$0xf] %vm301, 0
        %351 = vst.msk [vmem:[#allocation2 + $0xa4] sm:$0xf] %vm301, 0
        %352 = vst.msk [vmem:[#allocation2 + $0xb8] sm:$0xf] %vm301, 0
        %353 = vst.msk [vmem:[#allocation2 + $0xbc] sm:$0xf] %vm301, 0
        %354 = vst.msk [vmem:[#allocation2 + $0xd0] sm:$0xf] %vm301, 0
        %355 = vst.msk [vmem:[#allocation2 + $0xd4] sm:$0xf] %vm301, 0
        %356 = vst.msk [vmem:[#allocation2 + $0xe8] sm:$0xf] %vm301, 0
        %357 = vst.msk [vmem:[#allocation2 + $0xec] sm:$0xf] %vm301, 0
        %358 = vst.msk [vmem:[#allocation2 + $0x100] sm:$0xf] %vm301, 0
        %359 = vst.msk [vmem:[#allocation2 + $0x104] sm:$0xf] %vm301, 0
        %360 = vst.msk [vmem:[#allocation2 + $0x118] sm:$0xf] %vm301, 0
        %361 = vst.msk [vmem:[#allocation2 + $0x11c] sm:$0xf] %vm301, 0
        %362 = vst.msk [vmem:[#allocation2 + $0x130] sm:$0xf] %vm301, 0
        %363 = vst.msk [vmem:[#allocation2 + $0x134] sm:$0xf] %vm301, 0
        %364 = vst.msk [vmem:[#allocation2 + $0x148] sm:$0xf] %vm301, 0
        %365 = vst.msk [vmem:[#allocation2 + $0x14c] sm:$0xf] %vm301, 0
        %366 = vst.msk [vmem:[#allocation2 + $0x160] sm:$0xf] %vm301, 0
        %367 = vst.msk [vmem:[#allocation2 + $0x164] sm:$0xf] %vm301, 0
        %368 = vst.msk [vmem:[#allocation2 + $0x178] sm:$0xf] %vm301, 0
        %369 = vst.msk [vmem:[#allocation2 + $0x17c] sm:$0xf] %vm301, 0
        %370 = vst.msk [vmem:[#allocation2 + $0x190] sm:$0xf] %vm301, 0
        %371 = vst.msk [vmem:[#allocation2 + $0x194] sm:$0xf] %vm301, 0
        %372 = vst.msk [vmem:[#allocation2 + $0x1a8] sm:$0xf] %vm301, 0
        %373 = vst.msk [vmem:[#allocation2 + $0x1ac] sm:$0xf] %vm301, 0
        %374 = vst.msk [vmem:[#allocation2 + $0x8] sm:$0xf] %vm301, 0
        %375 = vst.msk [vmem:[#allocation2 + $0xc] sm:$0xf] %vm301, 0
        %s376 = scalar_lea.vmem [#allocation2], 408
        %377 = vst.msk [vmem:[%s376 + $0x8] sm:$0xf] %vm301, 0
        %378 = vst.msk [vmem:[%s376 + $0xc] sm:$0xf] %vm301, 0
        %v379 = vld [vmem:[%s277] sm:$0xf]
        %v380 = vld [vmem:[%s277 + $0x4] sm:$0xf]
        %v381 = vld [vmem:[%s277 + $0x8] sm:$0xf]
        %v382 = vld [vmem:[%s277 + $0xc] sm:$0xf]
        %v383 = vld [vmem:[%s277 + $0x10] sm:$0xf]
        %v384 = vld [vmem:[%s277 + $0x14] sm:$0xf]
        %v385 = vld [vmem:[%s277 + $0x18] sm:$0xf]
        %v386 = vld [vmem:[%s277 + $0x1c] sm:$0xf]
        %v387 = vld [vmem:[%s277 + $0x20] sm:$0xf]
        %v388 = vld [vmem:[%s277 + $0x24] sm:$0xf]
        %v389 = vld [vmem:[%s277 + $0x28] sm:$0xf]
        %v390 = vld [vmem:[%s277 + $0x2c] sm:$0xf]
        %v391 = vld [vmem:[%s277 + $0x30] sm:$0xf]
        %v392 = vld [vmem:[%s277 + $0x34] sm:$0xf]
        %v393 = vld [vmem:[%s277 + $0x38] sm:$0xf]
        %v394 = vld [vmem:[%s277 + $0x3c] sm:$0xf]
        %v395 = vld [vmem:[%s277 + $0x40] sm:$0xf]
        %v396 = vld [vmem:[%s277 + $0x44] sm:$0xf]
        %v397 = vld [vmem:[%s277 + $0x48] sm:$0xf]
        %v398 = vld [vmem:[%s277 + $0x4c] sm:$0xf]
        %v399 = vld [vmem:[%s277 + $0x50] sm:$0xf]
        %v400 = vld [vmem:[%s277 + $0x54] sm:$0xf]
        %v401 = vld [vmem:[%s277 + $0x58] sm:$0xf]
        %v402 = vld [vmem:[%s277 + $0x5c] sm:$0xf]
        %v403 = vld [vmem:[%s277 + $0x60] sm:$0xf]
        %v404 = vld [vmem:[%s277 + $0x64] sm:$0xf]
        %v405 = vld [vmem:[%s277 + $0x68] sm:$0xf]
        %v406 = vld [vmem:[%s277 + $0x6c] sm:$0xf]
        %v407 = vld [vmem:[%s277 + $0x70] sm:$0xf]
        %v408 = vld [vmem:[%s277 + $0x74] sm:$0xf]
        %v409 = vld [vmem:[%s277 + $0x78] sm:$0xf]
        %v410 = vld [vmem:[%s277 + $0x7c] sm:$0xf]
        %s411 = scalar_lea.vmem [#allocation2], 24
        %412 = vst.msk [vmem:[%s411 + $0x8] sm:$0xf] %vm301, %v379
        %413 = vst.msk [vmem:[%s411 + $0xc] sm:$0xf] %vm301, %v380
        %414 = vst.msk [vmem:[%s411 + $0x20] sm:$0xf] %vm301, %v381
        %415 = vst.msk [vmem:[%s411 + $0x24] sm:$0xf] %vm301, %v382
        %416 = vst.msk [vmem:[%s411 + $0x38] sm:$0xf] %vm301, %v383
        %417 = vst.msk [vmem:[%s411 + $0x3c] sm:$0xf] %vm301, %v384
        %418 = vst.msk [vmem:[%s411 + $0x50] sm:$0xf] %vm301, %v385
        %419 = vst.msk [vmem:[%s411 + $0x54] sm:$0xf] %vm301, %v386
        %420 = vst.msk [vmem:[%s411 + $0x68] sm:$0xf] %vm301, %v387
        %421 = vst.msk [vmem:[%s411 + $0x6c] sm:$0xf] %vm301, %v388
        %422 = vst.msk [vmem:[%s411 + $0x80] sm:$0xf] %vm301, %v389
        %423 = vst.msk [vmem:[%s411 + $0x84] sm:$0xf] %vm301, %v390
        %424 = vst.msk [vmem:[%s411 + $0x98] sm:$0xf] %vm301, %v391
        %425 = vst.msk [vmem:[%s411 + $0x9c] sm:$0xf] %vm301, %v392
        %426 = vst.msk [vmem:[%s411 + $0xb0] sm:$0xf] %vm301, %v393
        %427 = vst.msk [vmem:[%s411 + $0xb4] sm:$0xf] %vm301, %v394
        %428 = vst.msk [vmem:[%s411 + $0xc8] sm:$0xf] %vm301, %v395
        %429 = vst.msk [vmem:[%s411 + $0xcc] sm:$0xf] %vm301, %v396
        %430 = vst.msk [vmem:[%s411 + $0xe0] sm:$0xf] %vm301, %v397
        %431 = vst.msk [vmem:[%s411 + $0xe4] sm:$0xf] %vm301, %v398
        %432 = vst.msk [vmem:[%s411 + $0xf8] sm:$0xf] %vm301, %v399
        %433 = vst.msk [vmem:[%s411 + $0xfc] sm:$0xf] %vm301, %v400
        %434 = vst.msk [vmem:[%s411 + $0x110] sm:$0xf] %vm301, %v401
        %435 = vst.msk [vmem:[%s411 + $0x114] sm:$0xf] %vm301, %v402
        %436 = vst.msk [vmem:[%s411 + $0x128] sm:$0xf] %vm301, %v403
        %437 = vst.msk [vmem:[%s411 + $0x12c] sm:$0xf] %vm301, %v404
        %438 = vst.msk [vmem:[%s411 + $0x140] sm:$0xf] %vm301, %v405
        %439 = vst.msk [vmem:[%s411 + $0x144] sm:$0xf] %vm301, %v406
        %440 = vst.msk [vmem:[%s411 + $0x158] sm:$0xf] %vm301, %v407
        %441 = vst.msk [vmem:[%s411 + $0x15c] sm:$0xf] %vm301, %v408
        %442 = vst.msk [vmem:[%s411 + $0x170] sm:$0xf] %vm301, %v409
        %443 = vst.msk [vmem:[%s411 + $0x174] sm:$0xf] %vm301, %v410
      $region44: #{double_conv_forward.3} parent=39 // pred_fallthru
        _
      %s444 = smul.u32 %s23, 16
      %s445 = smul.u32 %s444, 6
      %s446 = smul.addr %s445, 4
      %s447 = scalar_lea.vmem [#allocation2], %s446
      %v448 = vld [vmem:[%s447 + $0x4] sm:$0x8]
      %v449 = vld [vmem:[%s447 + $0x8] sm:$0xf]
      %v450 = vld [vmem:[%s447 + $0xc] sm:$0xf]
      %v451 = vld [vmem:[%s447 + $0x1c] sm:$0x8]
      %v452 = vld [vmem:[%s447 + $0x20] sm:$0xf]
      %v453 = vld [vmem:[%s447 + $0x24] sm:$0xf]
      %v454 = vld [vmem:[%s447 + $0x34] sm:$0x8]
      %v455 = vld [vmem:[%s447 + $0x38] sm:$0xf]
      %v456 = vld [vmem:[%s447 + $0x3c] sm:$0xf]
      %v457 = vld [vmem:[%s447 + $0x4c] sm:$0x8]
      %v458 = vld [vmem:[%s447 + $0x50] sm:$0xf]
      %v459 = vld [vmem:[%s447 + $0x54] sm:$0xf]
      %v460 = vld [vmem:[%s447 + $0x64] sm:$0x8]
      %v461 = vld [vmem:[%s447 + $0x68] sm:$0xf]
      %v462 = vld [vmem:[%s447 + $0x6c] sm:$0xf]
      %v463 = vld [vmem:[%s447 + $0x7c] sm:$0x8]
      %v464 = vld [vmem:[%s447 + $0x80] sm:$0xf]
      %v465 = vld [vmem:[%s447 + $0x84] sm:$0xf]
      %v466 = vld [vmem:[%s447 + $0x94] sm:$0x8]
      %v467 = vld [vmem:[%s447 + $0x98] sm:$0xf]
      %v468 = vld [vmem:[%s447 + $0x9c] sm:$0xf]
      %v469 = vld [vmem:[%s447 + $0xac] sm:$0x8]
      %v470 = vld [vmem:[%s447 + $0xb0] sm:$0xf]
      %v471 = vld [vmem:[%s447 + $0xb4] sm:$0xf]
      %v472 = vld [vmem:[%s447 + $0xc4] sm:$0x8]
      %v473 = vld [vmem:[%s447 + $0xc8] sm:$0xf]
      %v474 = vld [vmem:[%s447 + $0xcc] sm:$0xf]
      %v475 = vld [vmem:[%s447 + $0xdc] sm:$0x8]
      %v476 = vld [vmem:[%s447 + $0xe0] sm:$0xf]
      %v477 = vld [vmem:[%s447 + $0xe4] sm:$0xf]
      %v478 = vld [vmem:[%s447 + $0xf4] sm:$0x8]
      %v479 = vld [vmem:[%s447 + $0xf8] sm:$0xf]
      %v480 = vld [vmem:[%s447 + $0xfc] sm:$0xf]
      %v481 = vld [vmem:[%s447 + $0x10c] sm:$0x8]
      %v482 = vld [vmem:[%s447 + $0x110] sm:$0xf]
      %v483 = vld [vmem:[%s447 + $0x114] sm:$0xf]
      %v484 = vld [vmem:[%s447 + $0x124] sm:$0x8]
      %v485 = vld [vmem:[%s447 + $0x128] sm:$0xf]
      %v486 = vld [vmem:[%s447 + $0x12c] sm:$0xf]
      %v487 = vld [vmem:[%s447 + $0x13c] sm:$0x8]
      %v488 = vld [vmem:[%s447 + $0x140] sm:$0xf]
      %v489 = vld [vmem:[%s447 + $0x144] sm:$0xf]
      %v490 = vld [vmem:[%s447 + $0x154] sm:$0x8]
      %v491 = vld [vmem:[%s447 + $0x158] sm:$0xf]
      %v492 = vld [vmem:[%s447 + $0x15c] sm:$0xf]
      %v493 = vld [vmem:[%s447 + $0x16c] sm:$0x8]
      %v494 = vld [vmem:[%s447 + $0x170] sm:$0xf]
      %v495 = vld [vmem:[%s447 + $0x174] sm:$0xf]
      %vm496 = vsmask.f32 256
      %vm497 = vsmask.f32 4368
      %vm498 = vmor %vm496, %vm497
      %v500 = vshrl.u32 %v448, 16
      %v502 = vrot.slane %v500, 7
      %v503 = vrot.slane %v502, 4
      %v505 = vshrl.u32 %v449, 16
      %v507 = vrot.slane %v505, 7
      %v508 = vshll.u32 %v449, 16
      %v510 = vor.u32 %v507, %v508
      %v511 = vsel %vm498, %v503, %v510
      %v512 = vrot.slane %v507, 4
      %v514 = vshrl.u32 %v450, 16
      %v516 = vrot.slane %v514, 7
      %v517 = vshll.u32 %v450, 16
      %v519 = vor.u32 %v516, %v517
      %v520 = vsel %vm498, %v512, %v519
      %v522 = vshrl.u32 %v451, 16
      %v524 = vrot.slane %v522, 7
      %v525 = vrot.slane %v524, 4
      %v527 = vshrl.u32 %v452, 16
      %v529 = vrot.slane %v527, 7
      %v530 = vshll.u32 %v452, 16
      %v532 = vor.u32 %v529, %v530
      %v533 = vsel %vm498, %v525, %v532
      %v534 = vrot.slane %v529, 4
      %v536 = vshrl.u32 %v453, 16
      %v538 = vrot.slane %v536, 7
      %v539 = vshll.u32 %v453, 16
      %v541 = vor.u32 %v538, %v539
      %v542 = vsel %vm498, %v534, %v541
      %v544 = vshrl.u32 %v454, 16
      %v546 = vrot.slane %v544, 7
      %v547 = vrot.slane %v546, 4
      %v549 = vshrl.u32 %v455, 16
      %v551 = vrot.slane %v549, 7
      %v552 = vshll.u32 %v455, 16
      %v554 = vor.u32 %v551, %v552
      %v555 = vsel %vm498, %v547, %v554
      %v556 = vrot.slane %v551, 4
      %v558 = vshrl.u32 %v456, 16
      %v560 = vrot.slane %v558, 7
      %v561 = vshll.u32 %v456, 16
      %v563 = vor.u32 %v560, %v561
      %v564 = vsel %vm498, %v556, %v563
      %v566 = vshrl.u32 %v457, 16
      %v568 = vrot.slane %v566, 7
      %v569 = vrot.slane %v568, 4
      %v571 = vshrl.u32 %v458, 16
      %v573 = vrot.slane %v571, 7
      %v574 = vshll.u32 %v458, 16
      %v576 = vor.u32 %v573, %v574
      %v577 = vsel %vm498, %v569, %v576
      %v578 = vrot.slane %v573, 4
      %v580 = vshrl.u32 %v459, 16
      %v582 = vrot.slane %v580, 7
      %v583 = vshll.u32 %v459, 16
      %v585 = vor.u32 %v582, %v583
      %v586 = vsel %vm498, %v578, %v585
      %v588 = vshrl.u32 %v460, 16
      %v590 = vrot.slane %v588, 7
      %v591 = vrot.slane %v590, 4
      %v593 = vshrl.u32 %v461, 16
      %v595 = vrot.slane %v593, 7
      %v596 = vshll.u32 %v461, 16
      %v598 = vor.u32 %v595, %v596
      %v599 = vsel %vm498, %v591, %v598
      %v600 = vrot.slane %v595, 4
      %v602 = vshrl.u32 %v462, 16
      %v604 = vrot.slane %v602, 7
      %v605 = vshll.u32 %v462, 16
      %v607 = vor.u32 %v604, %v605
      %v608 = vsel %vm498, %v600, %v607
      %v610 = vshrl.u32 %v463, 16
      %v612 = vrot.slane %v610, 7
      %v613 = vrot.slane %v612, 4
      %v615 = vshrl.u32 %v464, 16
      %v617 = vrot.slane %v615, 7
      %v618 = vshll.u32 %v464, 16
      %v620 = vor.u32 %v617, %v618
      %v621 = vsel %vm498, %v613, %v620
      %v622 = vrot.slane %v617, 4
      %v624 = vshrl.u32 %v465, 16
      %v626 = vrot.slane %v624, 7
      %v627 = vshll.u32 %v465, 16
      %v629 = vor.u32 %v626, %v627
      %v630 = vsel %vm498, %v622, %v629
      %v632 = vshrl.u32 %v466, 16
      %v634 = vrot.slane %v632, 7
      %v635 = vrot.slane %v634, 4
      %v637 = vshrl.u32 %v467, 16
      %v639 = vrot.slane %v637, 7
      %v640 = vshll.u32 %v467, 16
      %v642 = vor.u32 %v639, %v640
      %v643 = vsel %vm498, %v635, %v642
      %v644 = vrot.slane %v639, 4
      %v646 = vshrl.u32 %v468, 16
      %v648 = vrot.slane %v646, 7
      %v649 = vshll.u32 %v468, 16
      %v651 = vor.u32 %v648, %v649
      %v652 = vsel %vm498, %v644, %v651
      %v654 = vshrl.u32 %v469, 16
      %v656 = vrot.slane %v654, 7
      %v657 = vrot.slane %v656, 4
      %v659 = vshrl.u32 %v470, 16
      %v661 = vrot.slane %v659, 7
      %v662 = vshll.u32 %v470, 16
      %v664 = vor.u32 %v661, %v662
      %v665 = vsel %vm498, %v657, %v664
      %v666 = vrot.slane %v661, 4
      %v668 = vshrl.u32 %v471, 16
      %v670 = vrot.slane %v668, 7
      %v671 = vshll.u32 %v471, 16
      %v673 = vor.u32 %v670, %v671
      %v674 = vsel %vm498, %v666, %v673
      %v676 = vshrl.u32 %v472, 16
      %v678 = vrot.slane %v676, 7
      %v679 = vrot.slane %v678, 4
      %v681 = vshrl.u32 %v473, 16
      %v683 = vrot.slane %v681, 7
      %v684 = vshll.u32 %v473, 16
      %v686 = vor.u32 %v683, %v684
      %v687 = vsel %vm498, %v679, %v686
      %v688 = vrot.slane %v683, 4
      %v690 = vshrl.u32 %v474, 16
      %v692 = vrot.slane %v690, 7
      %v693 = vshll.u32 %v474, 16
      %v695 = vor.u32 %v692, %v693
      %v696 = vsel %vm498, %v688, %v695
      %v698 = vshrl.u32 %v475, 16
      %v700 = vrot.slane %v698, 7
      %v701 = vrot.slane %v700, 4
      %v703 = vshrl.u32 %v476, 16
      %v705 = vrot.slane %v703, 7
      %v706 = vshll.u32 %v476, 16
      %v708 = vor.u32 %v705, %v706
      %v709 = vsel %vm498, %v701, %v708
      %v710 = vrot.slane %v705, 4
      %v712 = vshrl.u32 %v477, 16
      %v714 = vrot.slane %v712, 7
      %v715 = vshll.u32 %v477, 16
      %v717 = vor.u32 %v714, %v715
      %v718 = vsel %vm498, %v710, %v717
      %v720 = vshrl.u32 %v478, 16
      %v722 = vrot.slane %v720, 7
      %v723 = vrot.slane %v722, 4
      %v725 = vshrl.u32 %v479, 16
      %v727 = vrot.slane %v725, 7
      %v728 = vshll.u32 %v479, 16
      %v730 = vor.u32 %v727, %v728
      %v731 = vsel %vm498, %v723, %v730
      %v732 = vrot.slane %v727, 4
      %v734 = vshrl.u32 %v480, 16
      %v736 = vrot.slane %v734, 7
      %v737 = vshll.u32 %v480, 16
      %v739 = vor.u32 %v736, %v737
      %v740 = vsel %vm498, %v732, %v739
      %v742 = vshrl.u32 %v481, 16
      %v744 = vrot.slane %v742, 7
      %v745 = vrot.slane %v744, 4
      %v747 = vshrl.u32 %v482, 16
      %v749 = vrot.slane %v747, 7
      %v750 = vshll.u32 %v482, 16
      %v752 = vor.u32 %v749, %v750
      %v753 = vsel %vm498, %v745, %v752
      %v754 = vrot.slane %v749, 4
      %v756 = vshrl.u32 %v483, 16
      %v758 = vrot.slane %v756, 7
      %v759 = vshll.u32 %v483, 16
      %v761 = vor.u32 %v758, %v759
      %v762 = vsel %vm498, %v754, %v761
      %v764 = vshrl.u32 %v484, 16
      %v766 = vrot.slane %v764, 7
      %v767 = vrot.slane %v766, 4
      %v769 = vshrl.u32 %v485, 16
      %v771 = vrot.slane %v769, 7
      %v772 = vshll.u32 %v485, 16
      %v774 = vor.u32 %v771, %v772
      %v775 = vsel %vm498, %v767, %v774
      %v776 = vrot.slane %v771, 4
      %v778 = vshrl.u32 %v486, 16
      %v780 = vrot.slane %v778, 7
      %v781 = vshll.u32 %v486, 16
      %v783 = vor.u32 %v780, %v781
      %v784 = vsel %vm498, %v776, %v783
      %v786 = vshrl.u32 %v487, 16
      %v788 = vrot.slane %v786, 7
      %v789 = vrot.slane %v788, 4
      %v791 = vshrl.u32 %v488, 16
      %v793 = vrot.slane %v791, 7
      %v794 = vshll.u32 %v488, 16
      %v796 = vor.u32 %v793, %v794
      %v797 = vsel %vm498, %v789, %v796
      %v798 = vrot.slane %v793, 4
      %v800 = vshrl.u32 %v489, 16
      %v802 = vrot.slane %v800, 7
      %v803 = vshll.u32 %v489, 16
      %v805 = vor.u32 %v802, %v803
      %v806 = vsel %vm498, %v798, %v805
      %v808 = vshrl.u32 %v490, 16
      %v810 = vrot.slane %v808, 7
      %v811 = vrot.slane %v810, 4
      %v813 = vshrl.u32 %v491, 16
      %v815 = vrot.slane %v813, 7
      %v816 = vshll.u32 %v491, 16
      %v818 = vor.u32 %v815, %v816
      %v819 = vsel %vm498, %v811, %v818
      %v820 = vrot.slane %v815, 4
      %v822 = vshrl.u32 %v492, 16
      %v824 = vrot.slane %v822, 7
      %v825 = vshll.u32 %v492, 16
      %v827 = vor.u32 %v824, %v825
      %v828 = vsel %vm498, %v820, %v827
      %v830 = vshrl.u32 %v493, 16
      %v832 = vrot.slane %v830, 7
      %v833 = vrot.slane %v832, 4
      %v835 = vshrl.u32 %v494, 16
      %v837 = vrot.slane %v835, 7
      %v838 = vshll.u32 %v494, 16
      %v840 = vor.u32 %v837, %v838
      %v841 = vsel %vm498, %v833, %v840
      %v842 = vrot.slane %v837, 4
      %v844 = vshrl.u32 %v495, 16
      %v846 = vrot.slane %v844, 7
      %v847 = vshll.u32 %v495, 16
      %v849 = vor.u32 %v846, %v847
      %v850 = vsel %vm498, %v842, %v849
      %v851 = vld [vmem:[%s1] sm:$0x3]
      %s852 = scalar_lea.vmem %s1, 2
      %v853 = vld [vmem:[%s852] sm:$0x3]
      %v886 = vunpack.c.l.b16 %v449
      %v887 = vunpack.c.l.b16 %v450
      %v888 = vunpack.c.l.b16 %v452
      %v889 = vunpack.c.l.b16 %v453
      %v890 = vunpack.c.l.b16 %v455
      %v891 = vunpack.c.l.b16 %v456
      %v892 = vunpack.c.l.b16 %v458
      %v893 = vunpack.c.l.b16 %v459
      %v894 = vunpack.c.l.b16 %v461
      %v895 = vunpack.c.l.b16 %v462
      %v896 = vunpack.c.l.b16 %v464
      %v897 = vunpack.c.l.b16 %v465
      %v898 = vunpack.c.l.b16 %v467
      %v899 = vunpack.c.l.b16 %v468
      %v900 = vunpack.c.l.b16 %v470
      %v901 = vunpack.c.l.b16 %v471
      %v902 = vunpack.c.l.b16 %v473
      %v903 = vunpack.c.l.b16 %v474
      %v904 = vunpack.c.l.b16 %v476
      %v905 = vunpack.c.l.b16 %v477
      %v906 = vunpack.c.l.b16 %v479
      %v907 = vunpack.c.l.b16 %v480
      %v908 = vunpack.c.l.b16 %v482
      %v909 = vunpack.c.l.b16 %v483
      %v910 = vunpack.c.l.b16 %v485
      %v911 = vunpack.c.l.b16 %v486
      %v912 = vunpack.c.l.b16 %v488
      %v913 = vunpack.c.l.b16 %v489
      %v914 = vunpack.c.l.b16 %v491
      %v915 = vunpack.c.l.b16 %v492
      %v916 = vunpack.c.l.b16 %v494
      %v917 = vunpack.c.l.b16 %v495
      %v918 = vpack.c.b16 %v887, %v886
      %v919 = vpack.c.b16 %v889, %v888
      %v920 = vpack.c.b16 %v891, %v890
      %v921 = vpack.c.b16 %v893, %v892
      %v922 = vpack.c.b16 %v895, %v894
      %v923 = vpack.c.b16 %v897, %v896
      %v924 = vpack.c.b16 %v899, %v898
      %v925 = vpack.c.b16 %v901, %v900
      %v926 = vpack.c.b16 %v903, %v902
      %v927 = vpack.c.b16 %v905, %v904
      %v928 = vpack.c.b16 %v907, %v906
      %v929 = vpack.c.b16 %v909, %v908
      %v930 = vpack.c.b16 %v911, %v910
      %v931 = vpack.c.b16 %v913, %v912
      %v932 = vpack.c.b16 %v915, %v914
      %v933 = vpack.c.b16 %v917, %v916
      %vm934 = vcmask 31744
      %v936 = vsel %vm934, %v918, 0
      %v939 = vsel %vm934, %v919, 0
      %v942 = vsel %vm934, %v920, 0
      %v945 = vsel %vm934, %v921, 0
      %v948 = vsel %vm934, %v922, 0
      %v951 = vsel %vm934, %v923, 0
      %v954 = vsel %vm934, %v924, 0
      %v957 = vsel %vm934, %v925, 0
      %v960 = vsel %vm934, %v926, 0
      %v963 = vsel %vm934, %v927, 0
      %v966 = vsel %vm934, %v928, 0
      %v969 = vsel %vm934, %v929, 0
      %v972 = vsel %vm934, %v930, 0
      %v975 = vsel %vm934, %v931, 0
      %v978 = vsel %vm934, %v932, 0
      %v981 = vsel %vm934, %v933, 0
      %vm983 = vcmask 1041408
      %v985 = vsel %vm983, %v853, 0
      %987 = vmatpush.bf16.msra.mxu0 0
      %988 = vmatpush.bf16.msra.mxu0 0
      %989 = vmatpush.bf16.msra.mxu0 0
      %990 = vmatpush.bf16.msra.mxu0 0
      %991 = vmatpush.bf16.msra.mxu0 0
      %992 = vmatpush.bf16.msra.mxu0 0
      %993 = vmatpush.bf16.msra.mxu0 0
      %994 = vmatpush.bf16.msra.mxu0 %v985
      %995 = vmatmul.bf16.gmra.mxu0 %v936
      %v996 = vpop.f32.mrf.mxu0
      %v997 = vadd.f32 0.0, %v996
      %v998 = vpop.f32.mrf.mxu0
      %v999 = vadd.f32 0.0, %v998
      %1000 = vmatmul.bf16.gmra.mxu0 %v939
      %v1001 = vpop.f32.mrf.mxu0
      %v1002 = vadd.f32 0.0, %v1001
      %v1003 = vpop.f32.mrf.mxu0
      %v1004 = vadd.f32 0.0, %v1003
      %1005 = vmatmul.bf16.gmra.mxu0 %v942
      %v1006 = vpop.f32.mrf.mxu0
      %v1007 = vadd.f32 0.0, %v1006
      %v1008 = vpop.f32.mrf.mxu0
      %v1009 = vadd.f32 0.0, %v1008
      %1010 = vmatmul.bf16.gmra.mxu0 %v945
      %v1011 = vpop.f32.mrf.mxu0
      %v1012 = vadd.f32 0.0, %v1011
      %v1013 = vpop.f32.mrf.mxu0
      %v1014 = vadd.f32 0.0, %v1013
      %1015 = vmatmul.bf16.gmra.mxu0 %v948
      %v1016 = vpop.f32.mrf.mxu0
      %v1017 = vadd.f32 0.0, %v1016
      %v1018 = vpop.f32.mrf.mxu0
      %v1019 = vadd.f32 0.0, %v1018
      %1020 = vmatmul.bf16.gmra.mxu0 %v951
      %v1021 = vpop.f32.mrf.mxu0
      %v1022 = vadd.f32 0.0, %v1021
      %v1023 = vpop.f32.mrf.mxu0
      %v1024 = vadd.f32 0.0, %v1023
      %1025 = vmatmul.bf16.gmra.mxu0 %v954
      %v1026 = vpop.f32.mrf.mxu0
      %v1027 = vadd.f32 0.0, %v1026
      %v1028 = vpop.f32.mrf.mxu0
      %v1029 = vadd.f32 0.0, %v1028
      %1030 = vmatmul.bf16.gmra.mxu0 %v957
      %v1031 = vpop.f32.mrf.mxu0
      %v1032 = vadd.f32 0.0, %v1031
      %v1033 = vpop.f32.mrf.mxu0
      %v1034 = vadd.f32 0.0, %v1033
      %1035 = vmatmul.bf16.gmra.mxu0 %v960
      %v1036 = vpop.f32.mrf.mxu0
      %v1037 = vadd.f32 0.0, %v1036
      %v1038 = vpop.f32.mrf.mxu0
      %v1039 = vadd.f32 0.0, %v1038
      %1040 = vmatmul.bf16.gmra.mxu0 %v963
      %v1041 = vpop.f32.mrf.mxu0
      %v1042 = vadd.f32 0.0, %v1041
      %v1043 = vpop.f32.mrf.mxu0
      %v1044 = vadd.f32 0.0, %v1043
      %1045 = vmatmul.bf16.gmra.mxu0 %v966
      %v1046 = vpop.f32.mrf.mxu0
      %v1047 = vadd.f32 0.0, %v1046
      %v1048 = vpop.f32.mrf.mxu0
      %v1049 = vadd.f32 0.0, %v1048
      %1050 = vmatmul.bf16.gmra.mxu0 %v969
      %v1051 = vpop.f32.mrf.mxu0
      %v1052 = vadd.f32 0.0, %v1051
      %v1053 = vpop.f32.mrf.mxu0
      %v1054 = vadd.f32 0.0, %v1053
      %1055 = vmatmul.bf16.gmra.mxu0 %v972
      %v1056 = vpop.f32.mrf.mxu0
      %v1057 = vadd.f32 0.0, %v1056
      %v1058 = vpop.f32.mrf.mxu0
      %v1059 = vadd.f32 0.0, %v1058
      %1060 = vmatmul.bf16.gmra.mxu0 %v975
      %v1061 = vpop.f32.mrf.mxu0
      %v1062 = vadd.f32 0.0, %v1061
      %v1063 = vpop.f32.mrf.mxu0
      %v1064 = vadd.f32 0.0, %v1063
      %1065 = vmatmul.bf16.gmra.mxu0 %v978
      %v1066 = vpop.f32.mrf.mxu0
      %v1067 = vadd.f32 0.0, %v1066
      %v1068 = vpop.f32.mrf.mxu0
      %v1069 = vadd.f32 0.0, %v1068
      %1070 = vmatmul.bf16.gmra.mxu0 %v981
      %v1071 = vpop.f32.mrf.mxu0
      %v1072 = vadd.f32 0.0, %v1071
      %v1073 = vpop.f32.mrf.mxu0
      %v1074 = vadd.f32 0.0, %v1073
      %1075 = vdwg.mxu0
      %v1076 = vunpack.c.l.b16 %v511
      %v1077 = vunpack.c.l.b16 %v520
      %v1078 = vunpack.c.l.b16 %v533
      %v1079 = vunpack.c.l.b16 %v542
      %v1080 = vunpack.c.l.b16 %v555
      %v1081 = vunpack.c.l.b16 %v564
      %v1082 = vunpack.c.l.b16 %v577
      %v1083 = vunpack.c.l.b16 %v586
      %v1084 = vunpack.c.l.b16 %v599
      %v1085 = vunpack.c.l.b16 %v608
      %v1086 = vunpack.c.l.b16 %v621
      %v1087 = vunpack.c.l.b16 %v630
      %v1088 = vunpack.c.l.b16 %v643
      %v1089 = vunpack.c.l.b16 %v652
      %v1090 = vunpack.c.l.b16 %v665
      %v1091 = vunpack.c.l.b16 %v674
      %v1092 = vunpack.c.l.b16 %v687
      %v1093 = vunpack.c.l.b16 %v696
      %v1094 = vunpack.c.l.b16 %v709
      %v1095 = vunpack.c.l.b16 %v718
      %v1096 = vunpack.c.l.b16 %v731
      %v1097 = vunpack.c.l.b16 %v740
      %v1098 = vunpack.c.l.b16 %v753
      %v1099 = vunpack.c.l.b16 %v762
      %v1100 = vunpack.c.l.b16 %v775
      %v1101 = vunpack.c.l.b16 %v784
      %v1102 = vunpack.c.l.b16 %v797
      %v1103 = vunpack.c.l.b16 %v806
      %v1104 = vunpack.c.l.b16 %v819
      %v1105 = vunpack.c.l.b16 %v828
      %v1106 = vunpack.c.l.b16 %v841
      %v1107 = vunpack.c.l.b16 %v850
      %v1108 = vpack.c.b16 %v1077, %v1076
      %v1109 = vpack.c.b16 %v1079, %v1078
      %v1110 = vpack.c.b16 %v1081, %v1080
      %v1111 = vpack.c.b16 %v1083, %v1082
      %v1112 = vpack.c.b16 %v1085, %v1084
      %v1113 = vpack.c.b16 %v1087, %v1086
      %v1114 = vpack.c.b16 %v1089, %v1088
      %v1115 = vpack.c.b16 %v1091, %v1090
      %v1116 = vpack.c.b16 %v1093, %v1092
      %v1117 = vpack.c.b16 %v1095, %v1094
      %v1118 = vpack.c.b16 %v1097, %v1096
      %v1119 = vpack.c.b16 %v1099, %v1098
      %v1120 = vpack.c.b16 %v1101, %v1100
      %v1121 = vpack.c.b16 %v1103, %v1102
      %v1122 = vpack.c.b16 %v1105, %v1104
      %v1123 = vpack.c.b16 %v1107, %v1106
      %v1125 = vsel %vm934, %v1108, 0
      %v1128 = vsel %vm934, %v1109, 0
      %v1131 = vsel %vm934, %v1110, 0
      %v1134 = vsel %vm934, %v1111, 0
      %v1137 = vsel %vm934, %v1112, 0
      %v1140 = vsel %vm934, %v1113, 0
      %v1143 = vsel %vm934, %v1114, 0
      %v1146 = vsel %vm934, %v1115, 0
      %v1149 = vsel %vm934, %v1116, 0
      %v1152 = vsel %vm934, %v1117, 0
      %v1155 = vsel %vm934, %v1118, 0
      %v1158 = vsel %vm934, %v1119, 0
      %v1161 = vsel %vm934, %v1120, 0
      %v1164 = vsel %vm934, %v1121, 0
      %v1167 = vsel %vm934, %v1122, 0
      %v1170 = vsel %vm934, %v1123, 0
      %v1173 = vsel %vm983, %v851, 0
      %1175 = vmatpush.bf16.msra.mxu0 0
      %1176 = vmatpush.bf16.msra.mxu0 0
      %1177 = vmatpush.bf16.msra.mxu0 0
      %1178 = vmatpush.bf16.msra.mxu0 0
      %1179 = vmatpush.bf16.msra.mxu0 0
      %1180 = vmatpush.bf16.msra.mxu0 0
      %1181 = vmatpush.bf16.msra.mxu0 0
      %1182 = vmatpush.bf16.msra.mxu0 %v1173
      %1183 = vmatmul.bf16.gmra.mxu0 %v1125
      %v1184 = vpop.f32.mrf.mxu0
      %v1185 = vadd.f32 %v997, %v1184
      %v1186 = vpop.f32.mrf.mxu0
      %v1187 = vadd.f32 %v999, %v1186
      %1188 = vmatmul.bf16.gmra.mxu0 %v1128
      %v1189 = vpop.f32.mrf.mxu0
      %v1190 = vadd.f32 %v1002, %v1189
      %v1191 = vpop.f32.mrf.mxu0
      %v1192 = vadd.f32 %v1004, %v1191
      %1193 = vmatmul.bf16.gmra.mxu0 %v1131
      %v1194 = vpop.f32.mrf.mxu0
      %v1195 = vadd.f32 %v1007, %v1194
      %v1196 = vpop.f32.mrf.mxu0
      %v1197 = vadd.f32 %v1009, %v1196
      %1198 = vmatmul.bf16.gmra.mxu0 %v1134
      %v1199 = vpop.f32.mrf.mxu0
      %v1200 = vadd.f32 %v1012, %v1199
      %v1201 = vpop.f32.mrf.mxu0
      %v1202 = vadd.f32 %v1014, %v1201
      %1203 = vmatmul.bf16.gmra.mxu0 %v1137
      %v1204 = vpop.f32.mrf.mxu0
      %v1205 = vadd.f32 %v1017, %v1204
      %v1206 = vpop.f32.mrf.mxu0
      %v1207 = vadd.f32 %v1019, %v1206
      %1208 = vmatmul.bf16.gmra.mxu0 %v1140
      %v1209 = vpop.f32.mrf.mxu0
      %v1210 = vadd.f32 %v1022, %v1209
      %v1211 = vpop.f32.mrf.mxu0
      %v1212 = vadd.f32 %v1024, %v1211
      %1213 = vmatmul.bf16.gmra.mxu0 %v1143
      %v1214 = vpop.f32.mrf.mxu0
      %v1215 = vadd.f32 %v1027, %v1214
      %v1216 = vpop.f32.mrf.mxu0
      %v1217 = vadd.f32 %v1029, %v1216
      %1218 = vmatmul.bf16.gmra.mxu0 %v1146
      %v1219 = vpop.f32.mrf.mxu0
      %v1220 = vadd.f32 %v1032, %v1219
      %v1221 = vpop.f32.mrf.mxu0
      %v1222 = vadd.f32 %v1034, %v1221
      %1223 = vmatmul.bf16.gmra.mxu0 %v1149
      %v1224 = vpop.f32.mrf.mxu0
      %v1225 = vadd.f32 %v1037, %v1224
      %v1226 = vpop.f32.mrf.mxu0
      %v1227 = vadd.f32 %v1039, %v1226
      %1228 = vmatmul.bf16.gmra.mxu0 %v1152
      %v1229 = vpop.f32.mrf.mxu0
      %v1230 = vadd.f32 %v1042, %v1229
      %v1231 = vpop.f32.mrf.mxu0
      %v1232 = vadd.f32 %v1044, %v1231
      %1233 = vmatmul.bf16.gmra.mxu0 %v1155
      %v1234 = vpop.f32.mrf.mxu0
      %v1235 = vadd.f32 %v1047, %v1234
      %v1236 = vpop.f32.mrf.mxu0
      %v1237 = vadd.f32 %v1049, %v1236
      %1238 = vmatmul.bf16.gmra.mxu0 %v1158
      %v1239 = vpop.f32.mrf.mxu0
      %v1240 = vadd.f32 %v1052, %v1239
      %v1241 = vpop.f32.mrf.mxu0
      %v1242 = vadd.f32 %v1054, %v1241
      %1243 = vmatmul.bf16.gmra.mxu0 %v1161
      %v1244 = vpop.f32.mrf.mxu0
      %v1245 = vadd.f32 %v1057, %v1244
      %v1246 = vpop.f32.mrf.mxu0
      %v1247 = vadd.f32 %v1059, %v1246
      %1248 = vmatmul.bf16.gmra.mxu0 %v1164
      %v1249 = vpop.f32.mrf.mxu0
      %v1250 = vadd.f32 %v1062, %v1249
      %v1251 = vpop.f32.mrf.mxu0
      %v1252 = vadd.f32 %v1064, %v1251
      %1253 = vmatmul.bf16.gmra.mxu0 %v1167
      %v1254 = vpop.f32.mrf.mxu0
      %v1255 = vadd.f32 %v1067, %v1254
      %v1256 = vpop.f32.mrf.mxu0
      %v1257 = vadd.f32 %v1069, %v1256
      %1258 = vmatmul.bf16.gmra.mxu0 %v1170
      %v1259 = vpop.f32.mrf.mxu0
      %v1260 = vadd.f32 %v1072, %v1259
      %v1261 = vpop.f32.mrf.mxu0
      %v1262 = vadd.f32 %v1074, %v1261
      %1263 = vdwg.mxu0
      %v1264 = vld [vmem:[%s447 + $0x8] sm:$0xf]
      %v1265 = vld [vmem:[%s447 + $0xc] sm:$0xf]
      %v1266 = vld [vmem:[%s447 + $0x10] sm:$0x1]
      %v1267 = vld [vmem:[%s447 + $0x20] sm:$0xf]
      %v1268 = vld [vmem:[%s447 + $0x24] sm:$0xf]
      %v1269 = vld [vmem:[%s447 + $0x28] sm:$0x1]
      %v1270 = vld [vmem:[%s447 + $0x38] sm:$0xf]
      %v1271 = vld [vmem:[%s447 + $0x3c] sm:$0xf]
      %v1272 = vld [vmem:[%s447 + $0x40] sm:$0x1]
      %v1273 = vld [vmem:[%s447 + $0x50] sm:$0xf]
      %v1274 = vld [vmem:[%s447 + $0x54] sm:$0xf]
      %v1275 = vld [vmem:[%s447 + $0x58] sm:$0x1]
      %v1276 = vld [vmem:[%s447 + $0x68] sm:$0xf]
      %v1277 = vld [vmem:[%s447 + $0x6c] sm:$0xf]
      %v1278 = vld [vmem:[%s447 + $0x70] sm:$0x1]
      %v1279 = vld [vmem:[%s447 + $0x80] sm:$0xf]
      %v1280 = vld [vmem:[%s447 + $0x84] sm:$0xf]
      %v1281 = vld [vmem:[%s447 + $0x88] sm:$0x1]
      %v1282 = vld [vmem:[%s447 + $0x98] sm:$0xf]
      %v1283 = vld [vmem:[%s447 + $0x9c] sm:$0xf]
      %v1284 = vld [vmem:[%s447 + $0xa0] sm:$0x1]
      %v1285 = vld [vmem:[%s447 + $0xb0] sm:$0xf]
      %v1286 = vld [vmem:[%s447 + $0xb4] sm:$0xf]
      %v1287 = vld [vmem:[%s447 + $0xb8] sm:$0x1]
      %v1288 = vld [vmem:[%s447 + $0xc8] sm:$0xf]
      %v1289 = vld [vmem:[%s447 + $0xcc] sm:$0xf]
      %v1290 = vld [vmem:[%s447 + $0xd0] sm:$0x1]
      %v1291 = vld [vmem:[%s447 + $0xe0] sm:$0xf]
      %v1292 = vld [vmem:[%s447 + $0xe4] sm:$0xf]
      %v1293 = vld [vmem:[%s447 + $0xe8] sm:$0x1]
      %v1294 = vld [vmem:[%s447 + $0xf8] sm:$0xf]
      %v1295 = vld [vmem:[%s447 + $0xfc] sm:$0xf]
      %v1296 = vld [vmem:[%s447 + $0x100] sm:$0x1]
      %v1297 = vld [vmem:[%s447 + $0x110] sm:$0xf]
      %v1298 = vld [vmem:[%s447 + $0x114] sm:$0xf]
      %v1299 = vld [vmem:[%s447 + $0x118] sm:$0x1]
      %v1300 = vld [vmem:[%s447 + $0x128] sm:$0xf]
      %v1301 = vld [vmem:[%s447 + $0x12c] sm:$0xf]
      %v1302 = vld [vmem:[%s447 + $0x130] sm:$0x1]
      %v1303 = vld [vmem:[%s447 + $0x140] sm:$0xf]
      %v1304 = vld [vmem:[%s447 + $0x144] sm:$0xf]
      %v1305 = vld [vmem:[%s447 + $0x148] sm:$0x1]
      %v1306 = vld [vmem:[%s447 + $0x158] sm:$0xf]
      %v1307 = vld [vmem:[%s447 + $0x15c] sm:$0xf]
      %v1308 = vld [vmem:[%s447 + $0x160] sm:$0x1]
      %v1309 = vld [vmem:[%s447 + $0x170] sm:$0xf]
      %v1310 = vld [vmem:[%s447 + $0x174] sm:$0xf]
      %v1311 = vld [vmem:[%s447 + $0x178] sm:$0x1]
      %vm1312 = vsmask.f32 3328
      %vm1313 = vsmask.f32 7440
      %vm1314 = vmor %vm1312, %vm1313
      %v1316 = vshrl.u32 %v1264, 16
      %v1318 = vrot.slane %v1316, 4
      %v1319 = vshll.u32 %v1264, 16
      %v1321 = vrot.slane %v1319, 5
      %v1322 = vor.u32 %v1318, %v1321
      %v1323 = vrot.slane %v1322, 4
      %v1325 = vshll.u32 %v1265, 16
      %v1327 = vrot.slane %v1325, 5
      %v1328 = vsel %vm1314, %v1323, %v1327
      %v1329 = vshrl.u32 %v1265, 16
      %v1331 = vrot.slane %v1329, 4
      %v1332 = vor.u32 %v1331, %v1327
      %v1333 = vrot.slane %v1332, 4
      %v1335 = vshll.u32 %v1266, 16
      %v1337 = vrot.slane %v1335, 5
      %v1338 = vsel %vm1314, %v1333, %v1337
      %v1340 = vshrl.u32 %v1267, 16
      %v1342 = vrot.slane %v1340, 4
      %v1343 = vshll.u32 %v1267, 16
      %v1345 = vrot.slane %v1343, 5
      %v1346 = vor.u32 %v1342, %v1345
      %v1347 = vrot.slane %v1346, 4
      %v1349 = vshll.u32 %v1268, 16
      %v1351 = vrot.slane %v1349, 5
      %v1352 = vsel %vm1314, %v1347, %v1351
      %v1353 = vshrl.u32 %v1268, 16
      %v1355 = vrot.slane %v1353, 4
      %v1356 = vor.u32 %v1355, %v1351
      %v1357 = vrot.slane %v1356, 4
      %v1359 = vshll.u32 %v1269, 16
      %v1361 = vrot.slane %v1359, 5
      %v1362 = vsel %vm1314, %v1357, %v1361
      %v1364 = vshrl.u32 %v1270, 16
      %v1366 = vrot.slane %v1364, 4
      %v1367 = vshll.u32 %v1270, 16
      %v1369 = vrot.slane %v1367, 5
      %v1370 = vor.u32 %v1366, %v1369
      %v1371 = vrot.slane %v1370, 4
      %v1373 = vshll.u32 %v1271, 16
      %v1375 = vrot.slane %v1373, 5
      %v1376 = vsel %vm1314, %v1371, %v1375
      %v1377 = vshrl.u32 %v1271, 16
      %v1379 = vrot.slane %v1377, 4
      %v1380 = vor.u32 %v1379, %v1375
      %v1381 = vrot.slane %v1380, 4
      %v1383 = vshll.u32 %v1272, 16
      %v1385 = vrot.slane %v1383, 5
      %v1386 = vsel %vm1314, %v1381, %v1385
      %v1388 = vshrl.u32 %v1273, 16
      %v1390 = vrot.slane %v1388, 4
      %v1391 = vshll.u32 %v1273, 16
      %v1393 = vrot.slane %v1391, 5
      %v1394 = vor.u32 %v1390, %v1393
      %v1395 = vrot.slane %v1394, 4
      %v1397 = vshll.u32 %v1274, 16
      %v1399 = vrot.slane %v1397, 5
      %v1400 = vsel %vm1314, %v1395, %v1399
      %v1401 = vshrl.u32 %v1274, 16
      %v1403 = vrot.slane %v1401, 4
      %v1404 = vor.u32 %v1403, %v1399
      %v1405 = vrot.slane %v1404, 4
      %v1407 = vshll.u32 %v1275, 16
      %v1409 = vrot.slane %v1407, 5
      %v1410 = vsel %vm1314, %v1405, %v1409
      %v1412 = vshrl.u32 %v1276, 16
      %v1414 = vrot.slane %v1412, 4
      %v1415 = vshll.u32 %v1276, 16
      %v1417 = vrot.slane %v1415, 5
      %v1418 = vor.u32 %v1414, %v1417
      %v1419 = vrot.slane %v1418, 4
      %v1421 = vshll.u32 %v1277, 16
      %v1423 = vrot.slane %v1421, 5
      %v1424 = vsel %vm1314, %v1419, %v1423
      %v1425 = vshrl.u32 %v1277, 16
      %v1427 = vrot.slane %v1425, 4
      %v1428 = vor.u32 %v1427, %v1423
      %v1429 = vrot.slane %v1428, 4
      %v1431 = vshll.u32 %v1278, 16
      %v1433 = vrot.slane %v1431, 5
      %v1434 = vsel %vm1314, %v1429, %v1433
      %v1436 = vshrl.u32 %v1279, 16
      %v1438 = vrot.slane %v1436, 4
      %v1439 = vshll.u32 %v1279, 16
      %v1441 = vrot.slane %v1439, 5
      %v1442 = vor.u32 %v1438, %v1441
      %v1443 = vrot.slane %v1442, 4
      %v1445 = vshll.u32 %v1280, 16
      %v1447 = vrot.slane %v1445, 5
      %v1448 = vsel %vm1314, %v1443, %v1447
      %v1449 = vshrl.u32 %v1280, 16
      %v1451 = vrot.slane %v1449, 4
      %v1452 = vor.u32 %v1451, %v1447
      %v1453 = vrot.slane %v1452, 4
      %v1455 = vshll.u32 %v1281, 16
      %v1457 = vrot.slane %v1455, 5
      %v1458 = vsel %vm1314, %v1453, %v1457
      %v1460 = vshrl.u32 %v1282, 16
      %v1462 = vrot.slane %v1460, 4
      %v1463 = vshll.u32 %v1282, 16
      %v1465 = vrot.slane %v1463, 5
      %v1466 = vor.u32 %v1462, %v1465
      %v1467 = vrot.slane %v1466, 4
      %v1469 = vshll.u32 %v1283, 16
      %v1471 = vrot.slane %v1469, 5
      %v1472 = vsel %vm1314, %v1467, %v1471
      %v1473 = vshrl.u32 %v1283, 16
      %v1475 = vrot.slane %v1473, 4
      %v1476 = vor.u32 %v1475, %v1471
      %v1477 = vrot.slane %v1476, 4
      %v1479 = vshll.u32 %v1284, 16
      %v1481 = vrot.slane %v1479, 5
      %v1482 = vsel %vm1314, %v1477, %v1481
      %v1484 = vshrl.u32 %v1285, 16
      %v1486 = vrot.slane %v1484, 4
      %v1487 = vshll.u32 %v1285, 16
      %v1489 = vrot.slane %v1487, 5
      %v1490 = vor.u32 %v1486, %v1489
      %v1491 = vrot.slane %v1490, 4
      %v1493 = vshll.u32 %v1286, 16
      %v1495 = vrot.slane %v1493, 5
      %v1496 = vsel %vm1314, %v1491, %v1495
      %v1497 = vshrl.u32 %v1286, 16
      %v1499 = vrot.slane %v1497, 4
      %v1500 = vor.u32 %v1499, %v1495
      %v1501 = vrot.slane %v1500, 4
      %v1503 = vshll.u32 %v1287, 16
      %v1505 = vrot.slane %v1503, 5
      %v1506 = vsel %vm1314, %v1501, %v1505
      %v1508 = vshrl.u32 %v1288, 16
      %v1510 = vrot.slane %v1508, 4
      %v1511 = vshll.u32 %v1288, 16
      %v1513 = vrot.slane %v1511, 5
      %v1514 = vor.u32 %v1510, %v1513
      %v1515 = vrot.slane %v1514, 4
      %v1517 = vshll.u32 %v1289, 16
      %v1519 = vrot.slane %v1517, 5
      %v1520 = vsel %vm1314, %v1515, %v1519
      %v1521 = vshrl.u32 %v1289, 16
      %v1523 = vrot.slane %v1521, 4
      %v1524 = vor.u32 %v1523, %v1519
      %v1525 = vrot.slane %v1524, 4
      %v1527 = vshll.u32 %v1290, 16
      %v1529 = vrot.slane %v1527, 5
      %v1530 = vsel %vm1314, %v1525, %v1529
      %v1532 = vshrl.u32 %v1291, 16
      %v1534 = vrot.slane %v1532, 4
      %v1535 = vshll.u32 %v1291, 16
      %v1537 = vrot.slane %v1535, 5
      %v1538 = vor.u32 %v1534, %v1537
      %v1539 = vrot.slane %v1538, 4
      %v1541 = vshll.u32 %v1292, 16
      %v1543 = vrot.slane %v1541, 5
      %v1544 = vsel %vm1314, %v1539, %v1543
      %v1545 = vshrl.u32 %v1292, 16
      %v1547 = vrot.slane %v1545, 4
      %v1548 = vor.u32 %v1547, %v1543
      %v1549 = vrot.slane %v1548, 4
      %v1551 = vshll.u32 %v1293, 16
      %v1553 = vrot.slane %v1551, 5
      %v1554 = vsel %vm1314, %v1549, %v1553
      %v1556 = vshrl.u32 %v1294, 16
      %v1558 = vrot.slane %v1556, 4
      %v1559 = vshll.u32 %v1294, 16
      %v1561 = vrot.slane %v1559, 5
      %v1562 = vor.u32 %v1558, %v1561
      %v1563 = vrot.slane %v1562, 4
      %v1565 = vshll.u32 %v1295, 16
      %v1567 = vrot.slane %v1565, 5
      %v1568 = vsel %vm1314, %v1563, %v1567
      %v1569 = vshrl.u32 %v1295, 16
      %v1571 = vrot.slane %v1569, 4
      %v1572 = vor.u32 %v1571, %v1567
      %v1573 = vrot.slane %v1572, 4
      %v1575 = vshll.u32 %v1296, 16
      %v1577 = vrot.slane %v1575, 5
      %v1578 = vsel %vm1314, %v1573, %v1577
      %v1580 = vshrl.u32 %v1297, 16
      %v1582 = vrot.slane %v1580, 4
      %v1583 = vshll.u32 %v1297, 16
      %v1585 = vrot.slane %v1583, 5
      %v1586 = vor.u32 %v1582, %v1585
      %v1587 = vrot.slane %v1586, 4
      %v1589 = vshll.u32 %v1298, 16
      %v1591 = vrot.slane %v1589, 5
      %v1592 = vsel %vm1314, %v1587, %v1591
      %v1593 = vshrl.u32 %v1298, 16
      %v1595 = vrot.slane %v1593, 4
      %v1596 = vor.u32 %v1595, %v1591
      %v1597 = vrot.slane %v1596, 4
      %v1599 = vshll.u32 %v1299, 16
      %v1601 = vrot.slane %v1599, 5
      %v1602 = vsel %vm1314, %v1597, %v1601
      %v1604 = vshrl.u32 %v1300, 16
      %v1606 = vrot.slane %v1604, 4
      %v1607 = vshll.u32 %v1300, 16
      %v1609 = vrot.slane %v1607, 5
      %v1610 = vor.u32 %v1606, %v1609
      %v1611 = vrot.slane %v1610, 4
      %v1613 = vshll.u32 %v1301, 16
      %v1615 = vrot.slane %v1613, 5
      %v1616 = vsel %vm1314, %v1611, %v1615
      %v1617 = vshrl.u32 %v1301, 16
      %v1619 = vrot.slane %v1617, 4
      %v1620 = vor.u32 %v1619, %v1615
      %v1621 = vrot.slane %v1620, 4
      %v1623 = vshll.u32 %v1302, 16
      %v1625 = vrot.slane %v1623, 5
      %v1626 = vsel %vm1314, %v1621, %v1625
      %v1628 = vshrl.u32 %v1303, 16
      %v1630 = vrot.slane %v1628, 4
      %v1631 = vshll.u32 %v1303, 16
      %v1633 = vrot.slane %v1631, 5
      %v1634 = vor.u32 %v1630, %v1633
      %v1635 = vrot.slane %v1634, 4
      %v1637 = vshll.u32 %v1304, 16
      %v1639 = vrot.slane %v1637, 5
      %v1640 = vsel %vm1314, %v1635, %v1639
      %v1641 = vshrl.u32 %v1304, 16
      %v1643 = vrot.slane %v1641, 4
      %v1644 = vor.u32 %v1643, %v1639
      %v1645 = vrot.slane %v1644, 4
      %v1647 = vshll.u32 %v1305, 16
      %v1649 = vrot.slane %v1647, 5
      %v1650 = vsel %vm1314, %v1645, %v1649
      %v1652 = vshrl.u32 %v1306, 16
      %v1654 = vrot.slane %v1652, 4
      %v1655 = vshll.u32 %v1306, 16
      %v1657 = vrot.slane %v1655, 5
      %v1658 = vor.u32 %v1654, %v1657
      %v1659 = vrot.slane %v1658, 4
      %v1661 = vshll.u32 %v1307, 16
      %v1663 = vrot.slane %v1661, 5
      %v1664 = vsel %vm1314, %v1659, %v1663
      %v1665 = vshrl.u32 %v1307, 16
      %v1667 = vrot.slane %v1665, 4
      %v1668 = vor.u32 %v1667, %v1663
      %v1669 = vrot.slane %v1668, 4
      %v1671 = vshll.u32 %v1308, 16
      %v1673 = vrot.slane %v1671, 5
      %v1674 = vsel %vm1314, %v1669, %v1673
      %v1676 = vshrl.u32 %v1309, 16
      %v1678 = vrot.slane %v1676, 4
      %v1679 = vshll.u32 %v1309, 16
      %v1681 = vrot.slane %v1679, 5
      %v1682 = vor.u32 %v1678, %v1681
      %v1683 = vrot.slane %v1682, 4
      %v1685 = vshll.u32 %v1310, 16
      %v1687 = vrot.slane %v1685, 5
      %v1688 = vsel %vm1314, %v1683, %v1687
      %v1689 = vshrl.u32 %v1310, 16
      %v1691 = vrot.slane %v1689, 4
      %v1692 = vor.u32 %v1691, %v1687
      %v1693 = vrot.slane %v1692, 4
      %v1695 = vshll.u32 %v1311, 16
      %v1697 = vrot.slane %v1695, 5
      %v1698 = vsel %vm1314, %v1693, %v1697
      %s1699 = scalar_lea.vmem %s1, 4
      %v1700 = vld [vmem:[%s1699] sm:$0x3]
      %v1701 = vunpack.c.l.b16 %v1328
      %v1702 = vunpack.c.l.b16 %v1338
      %v1703 = vunpack.c.l.b16 %v1352
      %v1704 = vunpack.c.l.b16 %v1362
      %v1705 = vunpack.c.l.b16 %v1376
      %v1706 = vunpack.c.l.b16 %v1386
      %v1707 = vunpack.c.l.b16 %v1400
      %v1708 = vunpack.c.l.b16 %v1410
      %v1709 = vunpack.c.l.b16 %v1424
      %v1710 = vunpack.c.l.b16 %v1434
      %v1711 = vunpack.c.l.b16 %v1448
      %v1712 = vunpack.c.l.b16 %v1458
      %v1713 = vunpack.c.l.b16 %v1472
      %v1714 = vunpack.c.l.b16 %v1482
      %v1715 = vunpack.c.l.b16 %v1496
      %v1716 = vunpack.c.l.b16 %v1506
      %v1717 = vunpack.c.l.b16 %v1520
      %v1718 = vunpack.c.l.b16 %v1530
      %v1719 = vunpack.c.l.b16 %v1544
      %v1720 = vunpack.c.l.b16 %v1554
      %v1721 = vunpack.c.l.b16 %v1568
      %v1722 = vunpack.c.l.b16 %v1578
      %v1723 = vunpack.c.l.b16 %v1592
      %v1724 = vunpack.c.l.b16 %v1602
      %v1725 = vunpack.c.l.b16 %v1616
      %v1726 = vunpack.c.l.b16 %v1626
      %v1727 = vunpack.c.l.b16 %v1640
      %v1728 = vunpack.c.l.b16 %v1650
      %v1729 = vunpack.c.l.b16 %v1664
      %v1730 = vunpack.c.l.b16 %v1674
      %v1731 = vunpack.c.l.b16 %v1688
      %v1732 = vunpack.c.l.b16 %v1698
      %v1733 = vpack.c.b16 %v1702, %v1701
      %v1734 = vpack.c.b16 %v1704, %v1703
      %v1735 = vpack.c.b16 %v1706, %v1705
      %v1736 = vpack.c.b16 %v1708, %v1707
      %v1737 = vpack.c.b16 %v1710, %v1709
      %v1738 = vpack.c.b16 %v1712, %v1711
      %v1739 = vpack.c.b16 %v1714, %v1713
      %v1740 = vpack.c.b16 %v1716, %v1715
      %v1741 = vpack.c.b16 %v1718, %v1717
      %v1742 = vpack.c.b16 %v1720, %v1719
      %v1743 = vpack.c.b16 %v1722, %v1721
      %v1744 = vpack.c.b16 %v1724, %v1723
      %v1745 = vpack.c.b16 %v1726, %v1725
      %v1746 = vpack.c.b16 %v1728, %v1727
      %v1747 = vpack.c.b16 %v1730, %v1729
      %v1748 = vpack.c.b16 %v1732, %v1731
      %v1750 = vsel %vm934, %v1733, 0
      %v1753 = vsel %vm934, %v1734, 0
      %v1756 = vsel %vm934, %v1735, 0
      %v1759 = vsel %vm934, %v1736, 0
      %v1762 = vsel %vm934, %v1737, 0
      %v1765 = vsel %vm934, %v1738, 0
      %v1768 = vsel %vm934, %v1739, 0
      %v1771 = vsel %vm934, %v1740, 0
      %v1774 = vsel %vm934, %v1741, 0
      %v1777 = vsel %vm934, %v1742, 0
      %v1780 = vsel %vm934, %v1743, 0
      %v1783 = vsel %vm934, %v1744, 0
      %v1786 = vsel %vm934, %v1745, 0
      %v1789 = vsel %vm934, %v1746, 0
      %v1792 = vsel %vm934, %v1747, 0
      %v1795 = vsel %vm934, %v1748, 0
      %v1798 = vsel %vm983, %v1700, 0
      %1800 = vmatpush.bf16.msra.mxu0 0
      %1801 = vmatpush.bf16.msra.mxu0 0
      %1802 = vmatpush.bf16.msra.mxu0 0
      %1803 = vmatpush.bf16.msra.mxu0 0
      %1804 = vmatpush.bf16.msra.mxu0 0
      %1805 = vmatpush.bf16.msra.mxu0 0
      %1806 = vmatpush.bf16.msra.mxu0 0
      %1807 = vmatpush.bf16.msra.mxu0 %v1798
      %1808 = vmatmul.bf16.gmra.mxu0 %v1750
      %v1809 = vpop.f32.mrf.mxu0
      %v1810 = vadd.f32 0.0, %v1809
      %v1811 = vpop.f32.mrf.mxu0
      %v1812 = vadd.f32 0.0, %v1811
      %1813 = vmatmul.bf16.gmra.mxu0 %v1753
      %v1814 = vpop.f32.mrf.mxu0
      %v1815 = vadd.f32 0.0, %v1814
      %v1816 = vpop.f32.mrf.mxu0
      %v1817 = vadd.f32 0.0, %v1816
      %1818 = vmatmul.bf16.gmra.mxu0 %v1756
      %v1819 = vpop.f32.mrf.mxu0
      %v1820 = vadd.f32 0.0, %v1819
      %v1821 = vpop.f32.mrf.mxu0
      %v1822 = vadd.f32 0.0, %v1821
      %1823 = vmatmul.bf16.gmra.mxu0 %v1759
      %v1824 = vpop.f32.mrf.mxu0
      %v1825 = vadd.f32 0.0, %v1824
      %v1826 = vpop.f32.mrf.mxu0
      %v1827 = vadd.f32 0.0, %v1826
      %1828 = vmatmul.bf16.gmra.mxu0 %v1762
      %v1829 = vpop.f32.mrf.mxu0
      %v1830 = vadd.f32 0.0, %v1829
      %v1831 = vpop.f32.mrf.mxu0
      %v1832 = vadd.f32 0.0, %v1831
      %1833 = vmatmul.bf16.gmra.mxu0 %v1765
      %v1834 = vpop.f32.mrf.mxu0
      %v1835 = vadd.f32 0.0, %v1834
      %v1836 = vpop.f32.mrf.mxu0
      %v1837 = vadd.f32 0.0, %v1836
      %1838 = vmatmul.bf16.gmra.mxu0 %v1768
      %v1839 = vpop.f32.mrf.mxu0
      %v1840 = vadd.f32 0.0, %v1839
      %v1841 = vpop.f32.mrf.mxu0
      %v1842 = vadd.f32 0.0, %v1841
      %1843 = vmatmul.bf16.gmra.mxu0 %v1771
      %v1844 = vpop.f32.mrf.mxu0
      %v1845 = vadd.f32 0.0, %v1844
      %v1846 = vpop.f32.mrf.mxu0
      %v1847 = vadd.f32 0.0, %v1846
      %1848 = vmatmul.bf16.gmra.mxu0 %v1774
      %v1849 = vpop.f32.mrf.mxu0
      %v1850 = vadd.f32 0.0, %v1849
      %v1851 = vpop.f32.mrf.mxu0
      %v1852 = vadd.f32 0.0, %v1851
      %1853 = vmatmul.bf16.gmra.mxu0 %v1777
      %v1854 = vpop.f32.mrf.mxu0
      %v1855 = vadd.f32 0.0, %v1854
      %v1856 = vpop.f32.mrf.mxu0
      %v1857 = vadd.f32 0.0, %v1856
      %1858 = vmatmul.bf16.gmra.mxu0 %v1780
      %v1859 = vpop.f32.mrf.mxu0
      %v1860 = vadd.f32 0.0, %v1859
      %v1861 = vpop.f32.mrf.mxu0
      %v1862 = vadd.f32 0.0, %v1861
      %1863 = vmatmul.bf16.gmra.mxu0 %v1783
      %v1864 = vpop.f32.mrf.mxu0
      %v1865 = vadd.f32 0.0, %v1864
      %v1866 = vpop.f32.mrf.mxu0
      %v1867 = vadd.f32 0.0, %v1866
      %1868 = vmatmul.bf16.gmra.mxu0 %v1786
      %v1869 = vpop.f32.mrf.mxu0
      %v1870 = vadd.f32 0.0, %v1869
      %v1871 = vpop.f32.mrf.mxu0
      %v1872 = vadd.f32 0.0, %v1871
      %1873 = vmatmul.bf16.gmra.mxu0 %v1789
      %v1874 = vpop.f32.mrf.mxu0
      %v1875 = vadd.f32 0.0, %v1874
      %v1876 = vpop.f32.mrf.mxu0
      %v1877 = vadd.f32 0.0, %v1876
      %1878 = vmatmul.bf16.gmra.mxu0 %v1792
      %v1879 = vpop.f32.mrf.mxu0
      %v1880 = vadd.f32 0.0, %v1879
      %v1881 = vpop.f32.mrf.mxu0
      %v1882 = vadd.f32 0.0, %v1881
      %1883 = vmatmul.bf16.gmra.mxu0 %v1795
      %v1884 = vpop.f32.mrf.mxu0
      %v1885 = vadd.f32 0.0, %v1884
      %v1886 = vpop.f32.mrf.mxu0
      %v1887 = vadd.f32 0.0, %v1886
      %1888 = vdwg.mxu0
      %v1889 = vadd.f32 %v1185, %v1810
      %v1890 = vadd.f32 %v1187, %v1812
      %v1891 = vadd.f32 %v1190, %v1815
      %v1892 = vadd.f32 %v1192, %v1817
      %v1893 = vadd.f32 %v1195, %v1820
      %v1894 = vadd.f32 %v1197, %v1822
      %v1895 = vadd.f32 %v1200, %v1825
      %v1896 = vadd.f32 %v1202, %v1827
      %v1897 = vadd.f32 %v1205, %v1830
      %v1898 = vadd.f32 %v1207, %v1832
      %v1899 = vadd.f32 %v1210, %v1835
      %v1900 = vadd.f32 %v1212, %v1837
      %v1901 = vadd.f32 %v1215, %v1840
      %v1902 = vadd.f32 %v1217, %v1842
      %v1903 = vadd.f32 %v1220, %v1845
      %v1904 = vadd.f32 %v1222, %v1847
      %v1905 = vadd.f32 %v1225, %v1850
      %v1906 = vadd.f32 %v1227, %v1852
      %v1907 = vadd.f32 %v1230, %v1855
      %v1908 = vadd.f32 %v1232, %v1857
      %v1909 = vadd.f32 %v1235, %v1860
      %v1910 = vadd.f32 %v1237, %v1862
      %v1911 = vadd.f32 %v1240, %v1865
      %v1912 = vadd.f32 %v1242, %v1867
      %v1913 = vadd.f32 %v1245, %v1870
      %v1914 = vadd.f32 %v1247, %v1872
      %v1915 = vadd.f32 %v1250, %v1875
      %v1916 = vadd.f32 %v1252, %v1877
      %v1917 = vadd.f32 %v1255, %v1880
      %v1918 = vadd.f32 %v1257, %v1882
      %v1919 = vadd.f32 %v1260, %v1885
      %v1920 = vadd.f32 %v1262, %v1887
      %s1921 = sadd.s32 %s444, 1
      %s1922 = smul.u32 %s1921, 6
      %s1923 = smul.addr %s1922, 4
      %s1924 = scalar_lea.vmem [#allocation2], %s1923
      %v1925 = vld [vmem:[%s1924 + $0x4] sm:$0x8]
      %v1926 = vld [vmem:[%s1924 + $0x8] sm:$0xf]
      %v1927 = vld [vmem:[%s1924 + $0xc] sm:$0xf]
      %v1928 = vld [vmem:[%s1924 + $0x1c] sm:$0x8]
      %v1929 = vld [vmem:[%s1924 + $0x20] sm:$0xf]
      %v1930 = vld [vmem:[%s1924 + $0x24] sm:$0xf]
      %v1931 = vld [vmem:[%s1924 + $0x34] sm:$0x8]
      %v1932 = vld [vmem:[%s1924 + $0x38] sm:$0xf]
      %v1933 = vld [vmem:[%s1924 + $0x3c] sm:$0xf]
      %v1934 = vld [vmem:[%s1924 + $0x4c] sm:$0x8]
      %v1935 = vld [vmem:[%s1924 + $0x50] sm:$0xf]
      %v1936 = vld [vmem:[%s1924 + $0x54] sm:$0xf]
      %v1937 = vld [vmem:[%s1924 + $0x64] sm:$0x8]
      %v1938 = vld [vmem:[%s1924 + $0x68] sm:$0xf]
      %v1939 = vld [vmem:[%s1924 + $0x6c] sm:$0xf]
      %v1940 = vld [vmem:[%s1924 + $0x7c] sm:$0x8]
      %v1941 = vld [vmem:[%s1924 + $0x80] sm:$0xf]
      %v1942 = vld [vmem:[%s1924 + $0x84] sm:$0xf]
      %v1943 = vld [vmem:[%s1924 + $0x94] sm:$0x8]
      %v1944 = vld [vmem:[%s1924 + $0x98] sm:$0xf]
      %v1945 = vld [vmem:[%s1924 + $0x9c] sm:$0xf]
      %v1946 = vld [vmem:[%s1924 + $0xac] sm:$0x8]
      %v1947 = vld [vmem:[%s1924 + $0xb0] sm:$0xf]
      %v1948 = vld [vmem:[%s1924 + $0xb4] sm:$0xf]
      %v1949 = vld [vmem:[%s1924 + $0xc4] sm:$0x8]
      %v1950 = vld [vmem:[%s1924 + $0xc8] sm:$0xf]
      %v1951 = vld [vmem:[%s1924 + $0xcc] sm:$0xf]
      %v1952 = vld [vmem:[%s1924 + $0xdc] sm:$0x8]
      %v1953 = vld [vmem:[%s1924 + $0xe0] sm:$0xf]
      %v1954 = vld [vmem:[%s1924 + $0xe4] sm:$0xf]
      %v1955 = vld [vmem:[%s1924 + $0xf4] sm:$0x8]
      %v1956 = vld [vmem:[%s1924 + $0xf8] sm:$0xf]
      %v1957 = vld [vmem:[%s1924 + $0xfc] sm:$0xf]
      %v1958 = vld [vmem:[%s1924 + $0x10c] sm:$0x8]
      %v1959 = vld [vmem:[%s1924 + $0x110] sm:$0xf]
      %v1960 = vld [vmem:[%s1924 + $0x114] sm:$0xf]
      %v1961 = vld [vmem:[%s1924 + $0x124] sm:$0x8]
      %v1962 = vld [vmem:[%s1924 + $0x128] sm:$0xf]
      %v1963 = vld [vmem:[%s1924 + $0x12c] sm:$0xf]
      %v1964 = vld [vmem:[%s1924 + $0x13c] sm:$0x8]
      %v1965 = vld [vmem:[%s1924 + $0x140] sm:$0xf]
      %v1966 = vld [vmem:[%s1924 + $0x144] sm:$0xf]
      %v1967 = vld [vmem:[%s1924 + $0x154] sm:$0x8]
      %v1968 = vld [vmem:[%s1924 + $0x158] sm:$0xf]
      %v1969 = vld [vmem:[%s1924 + $0x15c] sm:$0xf]
      %v1970 = vld [vmem:[%s1924 + $0x16c] sm:$0x8]
      %v1971 = vld [vmem:[%s1924 + $0x170] sm:$0xf]
      %v1972 = vld [vmem:[%s1924 + $0x174] sm:$0xf]
      %v1974 = vshrl.u32 %v1925, 16
      %v1976 = vrot.slane %v1974, 7
      %v1977 = vrot.slane %v1976, 4
      %v1979 = vshrl.u32 %v1926, 16
      %v1981 = vrot.slane %v1979, 7
      %v1982 = vshll.u32 %v1926, 16
      %v1984 = vor.u32 %v1981, %v1982
      %v1985 = vsel %vm498, %v1977, %v1984
      %v1986 = vrot.slane %v1981, 4
      %v1988 = vshrl.u32 %v1927, 16
      %v1990 = vrot.slane %v1988, 7
      %v1991 = vshll.u32 %v1927, 16
      %v1993 = vor.u32 %v1990, %v1991
      %v1994 = vsel %vm498, %v1986, %v1993
      %v1996 = vshrl.u32 %v1928, 16
      %v1998 = vrot.slane %v1996, 7
      %v1999 = vrot.slane %v1998, 4
      %v2001 = vshrl.u32 %v1929, 16
      %v2003 = vrot.slane %v2001, 7
      %v2004 = vshll.u32 %v1929, 16
      %v2006 = vor.u32 %v2003, %v2004
      %v2007 = vsel %vm498, %v1999, %v2006
      %v2008 = vrot.slane %v2003, 4
      %v2010 = vshrl.u32 %v1930, 16
      %v2012 = vrot.slane %v2010, 7
      %v2013 = vshll.u32 %v1930, 16
      %v2015 = vor.u32 %v2012, %v2013
      %v2016 = vsel %vm498, %v2008, %v2015
      %v2018 = vshrl.u32 %v1931, 16
      %v2020 = vrot.slane %v2018, 7
      %v2021 = vrot.slane %v2020, 4
      %v2023 = vshrl.u32 %v1932, 16
      %v2025 = vrot.slane %v2023, 7
      %v2026 = vshll.u32 %v1932, 16
      %v2028 = vor.u32 %v2025, %v2026
      %v2029 = vsel %vm498, %v2021, %v2028
      %v2030 = vrot.slane %v2025, 4
      %v2032 = vshrl.u32 %v1933, 16
      %v2034 = vrot.slane %v2032, 7
      %v2035 = vshll.u32 %v1933, 16
      %v2037 = vor.u32 %v2034, %v2035
      %v2038 = vsel %vm498, %v2030, %v2037
      %v2040 = vshrl.u32 %v1934, 16
      %v2042 = vrot.slane %v2040, 7
      %v2043 = vrot.slane %v2042, 4
      %v2045 = vshrl.u32 %v1935, 16
      %v2047 = vrot.slane %v2045, 7
      %v2048 = vshll.u32 %v1935, 16
      %v2050 = vor.u32 %v2047, %v2048
      %v2051 = vsel %vm498, %v2043, %v2050
      %v2052 = vrot.slane %v2047, 4
      %v2054 = vshrl.u32 %v1936, 16
      %v2056 = vrot.slane %v2054, 7
      %v2057 = vshll.u32 %v1936, 16
      %v2059 = vor.u32 %v2056, %v2057
      %v2060 = vsel %vm498, %v2052, %v2059
      %v2062 = vshrl.u32 %v1937, 16
      %v2064 = vrot.slane %v2062, 7
      %v2065 = vrot.slane %v2064, 4
      %v2067 = vshrl.u32 %v1938, 16
      %v2069 = vrot.slane %v2067, 7
      %v2070 = vshll.u32 %v1938, 16
      %v2072 = vor.u32 %v2069, %v2070
      %v2073 = vsel %vm498, %v2065, %v2072
      %v2074 = vrot.slane %v2069, 4
      %v2076 = vshrl.u32 %v1939, 16
      %v2078 = vrot.slane %v2076, 7
      %v2079 = vshll.u32 %v1939, 16
      %v2081 = vor.u32 %v2078, %v2079
      %v2082 = vsel %vm498, %v2074, %v2081
      %v2084 = vshrl.u32 %v1940, 16
      %v2086 = vrot.slane %v2084, 7
      %v2087 = vrot.slane %v2086, 4
      %v2089 = vshrl.u32 %v1941, 16
      %v2091 = vrot.slane %v2089, 7
      %v2092 = vshll.u32 %v1941, 16
      %v2094 = vor.u32 %v2091, %v2092
      %v2095 = vsel %vm498, %v2087, %v2094
      %v2096 = vrot.slane %v2091, 4
      %v2098 = vshrl.u32 %v1942, 16
      %v2100 = vrot.slane %v2098, 7
      %v2101 = vshll.u32 %v1942, 16
      %v2103 = vor.u32 %v2100, %v2101
      %v2104 = vsel %vm498, %v2096, %v2103
      %v2106 = vshrl.u32 %v1943, 16
      %v2108 = vrot.slane %v2106, 7
      %v2109 = vrot.slane %v2108, 4
      %v2111 = vshrl.u32 %v1944, 16
      %v2113 = vrot.slane %v2111, 7
      %v2114 = vshll.u32 %v1944, 16
      %v2116 = vor.u32 %v2113, %v2114
      %v2117 = vsel %vm498, %v2109, %v2116
      %v2118 = vrot.slane %v2113, 4
      %v2120 = vshrl.u32 %v1945, 16
      %v2122 = vrot.slane %v2120, 7
      %v2123 = vshll.u32 %v1945, 16
      %v2125 = vor.u32 %v2122, %v2123
      %v2126 = vsel %vm498, %v2118, %v2125
      %v2128 = vshrl.u32 %v1946, 16
      %v2130 = vrot.slane %v2128, 7
      %v2131 = vrot.slane %v2130, 4
      %v2133 = vshrl.u32 %v1947, 16
      %v2135 = vrot.slane %v2133, 7
      %v2136 = vshll.u32 %v1947, 16
      %v2138 = vor.u32 %v2135, %v2136
      %v2139 = vsel %vm498, %v2131, %v2138
      %v2140 = vrot.slane %v2135, 4
      %v2142 = vshrl.u32 %v1948, 16
      %v2144 = vrot.slane %v2142, 7
      %v2145 = vshll.u32 %v1948, 16
      %v2147 = vor.u32 %v2144, %v2145
      %v2148 = vsel %vm498, %v2140, %v2147
      %v2150 = vshrl.u32 %v1949, 16
      %v2152 = vrot.slane %v2150, 7
      %v2153 = vrot.slane %v2152, 4
      %v2155 = vshrl.u32 %v1950, 16
      %v2157 = vrot.slane %v2155, 7
      %v2158 = vshll.u32 %v1950, 16
      %v2160 = vor.u32 %v2157, %v2158
      %v2161 = vsel %vm498, %v2153, %v2160
      %v2162 = vrot.slane %v2157, 4
      %v2164 = vshrl.u32 %v1951, 16
      %v2166 = vrot.slane %v2164, 7
      %v2167 = vshll.u32 %v1951, 16
      %v2169 = vor.u32 %v2166, %v2167
      %v2170 = vsel %vm498, %v2162, %v2169
      %v2172 = vshrl.u32 %v1952, 16
      %v2174 = vrot.slane %v2172, 7
      %v2175 = vrot.slane %v2174, 4
      %v2177 = vshrl.u32 %v1953, 16
      %v2179 = vrot.slane %v2177, 7
      %v2180 = vshll.u32 %v1953, 16
      %v2182 = vor.u32 %v2179, %v2180
      %v2183 = vsel %vm498, %v2175, %v2182
      %v2184 = vrot.slane %v2179, 4
      %v2186 = vshrl.u32 %v1954, 16
      %v2188 = vrot.slane %v2186, 7
      %v2189 = vshll.u32 %v1954, 16
      %v2191 = vor.u32 %v2188, %v2189
      %v2192 = vsel %vm498, %v2184, %v2191
      %v2194 = vshrl.u32 %v1955, 16
      %v2196 = vrot.slane %v2194, 7
      %v2197 = vrot.slane %v2196, 4
      %v2199 = vshrl.u32 %v1956, 16
      %v2201 = vrot.slane %v2199, 7
      %v2202 = vshll.u32 %v1956, 16
      %v2204 = vor.u32 %v2201, %v2202
      %v2205 = vsel %vm498, %v2197, %v2204
      %v2206 = vrot.slane %v2201, 4
      %v2208 = vshrl.u32 %v1957, 16
      %v2210 = vrot.slane %v2208, 7
      %v2211 = vshll.u32 %v1957, 16
      %v2213 = vor.u32 %v2210, %v2211
      %v2214 = vsel %vm498, %v2206, %v2213
      %v2216 = vshrl.u32 %v1958, 16
      %v2218 = vrot.slane %v2216, 7
      %v2219 = vrot.slane %v2218, 4
      %v2221 = vshrl.u32 %v1959, 16
      %v2223 = vrot.slane %v2221, 7
      %v2224 = vshll.u32 %v1959, 16
      %v2226 = vor.u32 %v2223, %v2224
      %v2227 = vsel %vm498, %v2219, %v2226
      %v2228 = vrot.slane %v2223, 4
      %v2230 = vshrl.u32 %v1960, 16
      %v2232 = vrot.slane %v2230, 7
      %v2233 = vshll.u32 %v1960, 16
      %v2235 = vor.u32 %v2232, %v2233
      %v2236 = vsel %vm498, %v2228, %v2235
      %v2238 = vshrl.u32 %v1961, 16
      %v2240 = vrot.slane %v2238, 7
      %v2241 = vrot.slane %v2240, 4
      %v2243 = vshrl.u32 %v1962, 16
      %v2245 = vrot.slane %v2243, 7
      %v2246 = vshll.u32 %v1962, 16
      %v2248 = vor.u32 %v2245, %v2246
      %v2249 = vsel %vm498, %v2241, %v2248
      %v2250 = vrot.slane %v2245, 4
      %v2252 = vshrl.u32 %v1963, 16
      %v2254 = vrot.slane %v2252, 7
      %v2255 = vshll.u32 %v1963, 16
      %v2257 = vor.u32 %v2254, %v2255
      %v2258 = vsel %vm498, %v2250, %v2257
      %v2260 = vshrl.u32 %v1964, 16
      %v2262 = vrot.slane %v2260, 7
      %v2263 = vrot.slane %v2262, 4
      %v2265 = vshrl.u32 %v1965, 16
      %v2267 = vrot.slane %v2265, 7
      %v2268 = vshll.u32 %v1965, 16
      %v2270 = vor.u32 %v2267, %v2268
      %v2271 = vsel %vm498, %v2263, %v2270
      %v2272 = vrot.slane %v2267, 4
      %v2274 = vshrl.u32 %v1966, 16
      %v2276 = vrot.slane %v2274, 7
      %v2277 = vshll.u32 %v1966, 16
      %v2279 = vor.u32 %v2276, %v2277
      %v2280 = vsel %vm498, %v2272, %v2279
      %v2282 = vshrl.u32 %v1967, 16
      %v2284 = vrot.slane %v2282, 7
      %v2285 = vrot.slane %v2284, 4
      %v2287 = vshrl.u32 %v1968, 16
      %v2289 = vrot.slane %v2287, 7
      %v2290 = vshll.u32 %v1968, 16
      %v2292 = vor.u32 %v2289, %v2290
      %v2293 = vsel %vm498, %v2285, %v2292
      %v2294 = vrot.slane %v2289, 4
      %v2296 = vshrl.u32 %v1969, 16
      %v2298 = vrot.slane %v2296, 7
      %v2299 = vshll.u32 %v1969, 16
      %v2301 = vor.u32 %v2298, %v2299
      %v2302 = vsel %vm498, %v2294, %v2301
      %v2304 = vshrl.u32 %v1970, 16
      %v2306 = vrot.slane %v2304, 7
      %v2307 = vrot.slane %v2306, 4
      %v2309 = vshrl.u32 %v1971, 16
      %v2311 = vrot.slane %v2309, 7
      %v2312 = vshll.u32 %v1971, 16
      %v2314 = vor.u32 %v2311, %v2312
      %v2315 = vsel %vm498, %v2307, %v2314
      %v2316 = vrot.slane %v2311, 4
      %v2318 = vshrl.u32 %v1972, 16
      %v2320 = vrot.slane %v2318, 7
      %v2321 = vshll.u32 %v1972, 16
      %v2323 = vor.u32 %v2320, %v2321
      %v2324 = vsel %vm498, %v2316, %v2323
      %s2325 = scalar_lea.vmem %s1, 6
      %v2326 = vld [vmem:[%s2325] sm:$0x3]
      %v2327 = vunpack.c.l.b16 %v1985
      %v2328 = vunpack.c.l.b16 %v1994
      %v2329 = vunpack.c.l.b16 %v2007
      %v2330 = vunpack.c.l.b16 %v2016
      %v2331 = vunpack.c.l.b16 %v2029
      %v2332 = vunpack.c.l.b16 %v2038
      %v2333 = vunpack.c.l.b16 %v2051
      %v2334 = vunpack.c.l.b16 %v2060
      %v2335 = vunpack.c.l.b16 %v2073
      %v2336 = vunpack.c.l.b16 %v2082
      %v2337 = vunpack.c.l.b16 %v2095
      %v2338 = vunpack.c.l.b16 %v2104
      %v2339 = vunpack.c.l.b16 %v2117
      %v2340 = vunpack.c.l.b16 %v2126
      %v2341 = vunpack.c.l.b16 %v2139
      %v2342 = vunpack.c.l.b16 %v2148
      %v2343 = vunpack.c.l.b16 %v2161
      %v2344 = vunpack.c.l.b16 %v2170
      %v2345 = vunpack.c.l.b16 %v2183
      %v2346 = vunpack.c.l.b16 %v2192
      %v2347 = vunpack.c.l.b16 %v2205
      %v2348 = vunpack.c.l.b16 %v2214
      %v2349 = vunpack.c.l.b16 %v2227
      %v2350 = vunpack.c.l.b16 %v2236
      %v2351 = vunpack.c.l.b16 %v2249
      %v2352 = vunpack.c.l.b16 %v2258
      %v2353 = vunpack.c.l.b16 %v2271
      %v2354 = vunpack.c.l.b16 %v2280
      %v2355 = vunpack.c.l.b16 %v2293
      %v2356 = vunpack.c.l.b16 %v2302
      %v2357 = vunpack.c.l.b16 %v2315
      %v2358 = vunpack.c.l.b16 %v2324
      %v2359 = vpack.c.b16 %v2328, %v2327
      %v2360 = vpack.c.b16 %v2330, %v2329
      %v2361 = vpack.c.b16 %v2332, %v2331
      %v2362 = vpack.c.b16 %v2334, %v2333
      %v2363 = vpack.c.b16 %v2336, %v2335
      %v2364 = vpack.c.b16 %v2338, %v2337
      %v2365 = vpack.c.b16 %v2340, %v2339
      %v2366 = vpack.c.b16 %v2342, %v2341
      %v2367 = vpack.c.b16 %v2344, %v2343
      %v2368 = vpack.c.b16 %v2346, %v2345
      %v2369 = vpack.c.b16 %v2348, %v2347
      %v2370 = vpack.c.b16 %v2350, %v2349
      %v2371 = vpack.c.b16 %v2352, %v2351
      %v2372 = vpack.c.b16 %v2354, %v2353
      %v2373 = vpack.c.b16 %v2356, %v2355
      %v2374 = vpack.c.b16 %v2358, %v2357
      %v2376 = vsel %vm934, %v2359, 0
      %v2379 = vsel %vm934, %v2360, 0
      %v2382 = vsel %vm934, %v2361, 0
      %v2385 = vsel %vm934, %v2362, 0
      %v2388 = vsel %vm934, %v2363, 0
      %v2391 = vsel %vm934, %v2364, 0
      %v2394 = vsel %vm934, %v2365, 0
      %v2397 = vsel %vm934, %v2366, 0
      %v2400 = vsel %vm934, %v2367, 0
      %v2403 = vsel %vm934, %v2368, 0
      %v2406 = vsel %vm934, %v2369, 0
      %v2409 = vsel %vm934, %v2370, 0
      %v2412 = vsel %vm934, %v2371, 0
      %v2415 = vsel %vm934, %v2372, 0
      %v2418 = vsel %vm934, %v2373, 0
      %v2421 = vsel %vm934, %v2374, 0
      %v2424 = vsel %vm983, %v2326, 0
      %2426 = vmatpush.bf16.msra.mxu0 0
      %2427 = vmatpush.bf16.msra.mxu0 0
      %2428 = vmatpush.bf16.msra.mxu0 0
      %2429 = vmatpush.bf16.msra.mxu0 0
      %2430 = vmatpush.bf16.msra.mxu0 0
      %2431 = vmatpush.bf16.msra.mxu0 0
      %2432 = vmatpush.bf16.msra.mxu0 0
      %2433 = vmatpush.bf16.msra.mxu0 %v2424
      %2434 = vmatmul.bf16.gmra.mxu0 %v2376
      %v2435 = vpop.f32.mrf.mxu0
      %v2436 = vadd.f32 0.0, %v2435
      %v2437 = vpop.f32.mrf.mxu0
      %v2438 = vadd.f32 0.0, %v2437
      %2439 = vmatmul.bf16.gmra.mxu0 %v2379
      %v2440 = vpop.f32.mrf.mxu0
      %v2441 = vadd.f32 0.0, %v2440
      %v2442 = vpop.f32.mrf.mxu0
      %v2443 = vadd.f32 0.0, %v2442
      %2444 = vmatmul.bf16.gmra.mxu0 %v2382
      %v2445 = vpop.f32.mrf.mxu0
      %v2446 = vadd.f32 0.0, %v2445
      %v2447 = vpop.f32.mrf.mxu0
      %v2448 = vadd.f32 0.0, %v2447
      %2449 = vmatmul.bf16.gmra.mxu0 %v2385
      %v2450 = vpop.f32.mrf.mxu0
      %v2451 = vadd.f32 0.0, %v2450
      %v2452 = vpop.f32.mrf.mxu0
      %v2453 = vadd.f32 0.0, %v2452
      %2454 = vmatmul.bf16.gmra.mxu0 %v2388
      %v2455 = vpop.f32.mrf.mxu0
      %v2456 = vadd.f32 0.0, %v2455
      %v2457 = vpop.f32.mrf.mxu0
      %v2458 = vadd.f32 0.0, %v2457
      %2459 = vmatmul.bf16.gmra.mxu0 %v2391
      %v2460 = vpop.f32.mrf.mxu0
      %v2461 = vadd.f32 0.0, %v2460
      %v2462 = vpop.f32.mrf.mxu0
      %v2463 = vadd.f32 0.0, %v2462
      %2464 = vmatmul.bf16.gmra.mxu0 %v2394
      %v2465 = vpop.f32.mrf.mxu0
      %v2466 = vadd.f32 0.0, %v2465
      %v2467 = vpop.f32.mrf.mxu0
      %v2468 = vadd.f32 0.0, %v2467
      %2469 = vmatmul.bf16.gmra.mxu0 %v2397
      %v2470 = vpop.f32.mrf.mxu0
      %v2471 = vadd.f32 0.0, %v2470
      %v2472 = vpop.f32.mrf.mxu0
      %v2473 = vadd.f32 0.0, %v2472
      %2474 = vmatmul.bf16.gmra.mxu0 %v2400
      %v2475 = vpop.f32.mrf.mxu0
      %v2476 = vadd.f32 0.0, %v2475
      %v2477 = vpop.f32.mrf.mxu0
      %v2478 = vadd.f32 0.0, %v2477
      %2479 = vmatmul.bf16.gmra.mxu0 %v2403
      %v2480 = vpop.f32.mrf.mxu0
      %v2481 = vadd.f32 0.0, %v2480
      %v2482 = vpop.f32.mrf.mxu0
      %v2483 = vadd.f32 0.0, %v2482
      %2484 = vmatmul.bf16.gmra.mxu0 %v2406
      %v2485 = vpop.f32.mrf.mxu0
      %v2486 = vadd.f32 0.0, %v2485
      %v2487 = vpop.f32.mrf.mxu0
      %v2488 = vadd.f32 0.0, %v2487
      %2489 = vmatmul.bf16.gmra.mxu0 %v2409
      %v2490 = vpop.f32.mrf.mxu0
      %v2491 = vadd.f32 0.0, %v2490
      %v2492 = vpop.f32.mrf.mxu0
      %v2493 = vadd.f32 0.0, %v2492
      %2494 = vmatmul.bf16.gmra.mxu0 %v2412
      %v2495 = vpop.f32.mrf.mxu0
      %v2496 = vadd.f32 0.0, %v2495
      %v2497 = vpop.f32.mrf.mxu0
      %v2498 = vadd.f32 0.0, %v2497
      %2499 = vmatmul.bf16.gmra.mxu0 %v2415
      %v2500 = vpop.f32.mrf.mxu0
      %v2501 = vadd.f32 0.0, %v2500
      %v2502 = vpop.f32.mrf.mxu0
      %v2503 = vadd.f32 0.0, %v2502
      %2504 = vmatmul.bf16.gmra.mxu0 %v2418
      %v2505 = vpop.f32.mrf.mxu0
      %v2506 = vadd.f32 0.0, %v2505
      %v2507 = vpop.f32.mrf.mxu0
      %v2508 = vadd.f32 0.0, %v2507
      %2509 = vmatmul.bf16.gmra.mxu0 %v2421
      %v2510 = vpop.f32.mrf.mxu0
      %v2511 = vadd.f32 0.0, %v2510
      %v2512 = vpop.f32.mrf.mxu0
      %v2513 = vadd.f32 0.0, %v2512
      %2514 = vdwg.mxu0
      %v2515 = vadd.f32 %v1889, %v2436
      %v2516 = vadd.f32 %v1890, %v2438
      %v2517 = vadd.f32 %v1891, %v2441
      %v2518 = vadd.f32 %v1892, %v2443
      %v2519 = vadd.f32 %v1893, %v2446
      %v2520 = vadd.f32 %v1894, %v2448
      %v2521 = vadd.f32 %v1895, %v2451
      %v2522 = vadd.f32 %v1896, %v2453
      %v2523 = vadd.f32 %v1897, %v2456
      %v2524 = vadd.f32 %v1898, %v2458
      %v2525 = vadd.f32 %v1899, %v2461
      %v2526 = vadd.f32 %v1900, %v2463
      %v2527 = vadd.f32 %v1901, %v2466
      %v2528 = vadd.f32 %v1902, %v2468
      %v2529 = vadd.f32 %v1903, %v2471
      %v2530 = vadd.f32 %v1904, %v2473
      %v2531 = vadd.f32 %v1905, %v2476
      %v2532 = vadd.f32 %v1906, %v2478
      %v2533 = vadd.f32 %v1907, %v2481
      %v2534 = vadd.f32 %v1908, %v2483
      %v2535 = vadd.f32 %v1909, %v2486
      %v2536 = vadd.f32 %v1910, %v2488
      %v2537 = vadd.f32 %v1911, %v2491
      %v2538 = vadd.f32 %v1912, %v2493
      %v2539 = vadd.f32 %v1913, %v2496
      %v2540 = vadd.f32 %v1914, %v2498
      %v2541 = vadd.f32 %v1915, %v2501
      %v2542 = vadd.f32 %v1916, %v2503
      %v2543 = vadd.f32 %v1917, %v2506
      %v2544 = vadd.f32 %v1918, %v2508
      %v2545 = vadd.f32 %v1919, %v2511
      %v2546 = vadd.f32 %v1920, %v2513
      %s2547 = scalar_lea.vmem %s1, 8
      %v2548 = vld [vmem:[%s2547] sm:$0x3]
      %v2581 = vunpack.c.l.b16 %v1926
      %v2582 = vunpack.c.l.b16 %v1927
      %v2583 = vunpack.c.l.b16 %v1929
      %v2584 = vunpack.c.l.b16 %v1930
      %v2585 = vunpack.c.l.b16 %v1932
      %v2586 = vunpack.c.l.b16 %v1933
      %v2587 = vunpack.c.l.b16 %v1935
      %v2588 = vunpack.c.l.b16 %v1936
      %v2589 = vunpack.c.l.b16 %v1938
      %v2590 = vunpack.c.l.b16 %v1939
      %v2591 = vunpack.c.l.b16 %v1941
      %v2592 = vunpack.c.l.b16 %v1942
      %v2593 = vunpack.c.l.b16 %v1944
      %v2594 = vunpack.c.l.b16 %v1945
      %v2595 = vunpack.c.l.b16 %v1947
      %v2596 = vunpack.c.l.b16 %v1948
      %v2597 = vunpack.c.l.b16 %v1950
      %v2598 = vunpack.c.l.b16 %v1951
      %v2599 = vunpack.c.l.b16 %v1953
      %v2600 = vunpack.c.l.b16 %v1954
      %v2601 = vunpack.c.l.b16 %v1956
      %v2602 = vunpack.c.l.b16 %v1957
      %v2603 = vunpack.c.l.b16 %v1959
      %v2604 = vunpack.c.l.b16 %v1960
      %v2605 = vunpack.c.l.b16 %v1962
      %v2606 = vunpack.c.l.b16 %v1963
      %v2607 = vunpack.c.l.b16 %v1965
      %v2608 = vunpack.c.l.b16 %v1966
      %v2609 = vunpack.c.l.b16 %v1968
      %v2610 = vunpack.c.l.b16 %v1969
      %v2611 = vunpack.c.l.b16 %v1971
      %v2612 = vunpack.c.l.b16 %v1972
      %v2613 = vpack.c.b16 %v2582, %v2581
      %v2614 = vpack.c.b16 %v2584, %v2583
      %v2615 = vpack.c.b16 %v2586, %v2585
      %v2616 = vpack.c.b16 %v2588, %v2587
      %v2617 = vpack.c.b16 %v2590, %v2589
      %v2618 = vpack.c.b16 %v2592, %v2591
      %v2619 = vpack.c.b16 %v2594, %v2593
      %v2620 = vpack.c.b16 %v2596, %v2595
      %v2621 = vpack.c.b16 %v2598, %v2597
      %v2622 = vpack.c.b16 %v2600, %v2599
      %v2623 = vpack.c.b16 %v2602, %v2601
      %v2624 = vpack.c.b16 %v2604, %v2603
      %v2625 = vpack.c.b16 %v2606, %v2605
      %v2626 = vpack.c.b16 %v2608, %v2607
      %v2627 = vpack.c.b16 %v2610, %v2609
      %v2628 = vpack.c.b16 %v2612, %v2611
      %v2630 = vsel %vm934, %v2613, 0
      %v2633 = vsel %vm934, %v2614, 0
      %v2636 = vsel %vm934, %v2615, 0
      %v2639 = vsel %vm934, %v2616, 0
      %v2642 = vsel %vm934, %v2617, 0
      %v2645 = vsel %vm934, %v2618, 0
      %v2648 = vsel %vm934, %v2619, 0
      %v2651 = vsel %vm934, %v2620, 0
      %v2654 = vsel %vm934, %v2621, 0
      %v2657 = vsel %vm934, %v2622, 0
      %v2660 = vsel %vm934, %v2623, 0
      %v2663 = vsel %vm934, %v2624, 0
      %v2666 = vsel %vm934, %v2625, 0
      %v2669 = vsel %vm934, %v2626, 0
      %v2672 = vsel %vm934, %v2627, 0
      %v2675 = vsel %vm934, %v2628, 0
      %v2678 = vsel %vm983, %v2548, 0
      %2680 = vmatpush.bf16.msra.mxu0 0
      %2681 = vmatpush.bf16.msra.mxu0 0
      %2682 = vmatpush.bf16.msra.mxu0 0
      %2683 = vmatpush.bf16.msra.mxu0 0
      %2684 = vmatpush.bf16.msra.mxu0 0
      %2685 = vmatpush.bf16.msra.mxu0 0
      %2686 = vmatpush.bf16.msra.mxu0 0
      %2687 = vmatpush.bf16.msra.mxu0 %v2678
      %2688 = vmatmul.bf16.gmra.mxu0 %v2630
      %v2689 = vpop.f32.mrf.mxu0
      %v2690 = vadd.f32 0.0, %v2689
      %v2691 = vpop.f32.mrf.mxu0
      %v2692 = vadd.f32 0.0, %v2691
      %2693 = vmatmul.bf16.gmra.mxu0 %v2633
      %v2694 = vpop.f32.mrf.mxu0
      %v2695 = vadd.f32 0.0, %v2694
      %v2696 = vpop.f32.mrf.mxu0
      %v2697 = vadd.f32 0.0, %v2696
      %2698 = vmatmul.bf16.gmra.mxu0 %v2636
      %v2699 = vpop.f32.mrf.mxu0
      %v2700 = vadd.f32 0.0, %v2699
      %v2701 = vpop.f32.mrf.mxu0
      %v2702 = vadd.f32 0.0, %v2701
      %2703 = vmatmul.bf16.gmra.mxu0 %v2639
      %v2704 = vpop.f32.mrf.mxu0
      %v2705 = vadd.f32 0.0, %v2704
      %v2706 = vpop.f32.mrf.mxu0
      %v2707 = vadd.f32 0.0, %v2706
      %2708 = vmatmul.bf16.gmra.mxu0 %v2642
      %v2709 = vpop.f32.mrf.mxu0
      %v2710 = vadd.f32 0.0, %v2709
      %v2711 = vpop.f32.mrf.mxu0
      %v2712 = vadd.f32 0.0, %v2711
      %2713 = vmatmul.bf16.gmra.mxu0 %v2645
      %v2714 = vpop.f32.mrf.mxu0
      %v2715 = vadd.f32 0.0, %v2714
      %v2716 = vpop.f32.mrf.mxu0
      %v2717 = vadd.f32 0.0, %v2716
      %2718 = vmatmul.bf16.gmra.mxu0 %v2648
      %v2719 = vpop.f32.mrf.mxu0
      %v2720 = vadd.f32 0.0, %v2719
      %v2721 = vpop.f32.mrf.mxu0
      %v2722 = vadd.f32 0.0, %v2721
      %2723 = vmatmul.bf16.gmra.mxu0 %v2651
      %v2724 = vpop.f32.mrf.mxu0
      %v2725 = vadd.f32 0.0, %v2724
      %v2726 = vpop.f32.mrf.mxu0
      %v2727 = vadd.f32 0.0, %v2726
      %2728 = vmatmul.bf16.gmra.mxu0 %v2654
      %v2729 = vpop.f32.mrf.mxu0
      %v2730 = vadd.f32 0.0, %v2729
      %v2731 = vpop.f32.mrf.mxu0
      %v2732 = vadd.f32 0.0, %v2731
      %2733 = vmatmul.bf16.gmra.mxu0 %v2657
      %v2734 = vpop.f32.mrf.mxu0
      %v2735 = vadd.f32 0.0, %v2734
      %v2736 = vpop.f32.mrf.mxu0
      %v2737 = vadd.f32 0.0, %v2736
      %2738 = vmatmul.bf16.gmra.mxu0 %v2660
      %v2739 = vpop.f32.mrf.mxu0
      %v2740 = vadd.f32 0.0, %v2739
      %v2741 = vpop.f32.mrf.mxu0
      %v2742 = vadd.f32 0.0, %v2741
      %2743 = vmatmul.bf16.gmra.mxu0 %v2663
      %v2744 = vpop.f32.mrf.mxu0
      %v2745 = vadd.f32 0.0, %v2744
      %v2746 = vpop.f32.mrf.mxu0
      %v2747 = vadd.f32 0.0, %v2746
      %2748 = vmatmul.bf16.gmra.mxu0 %v2666
      %v2749 = vpop.f32.mrf.mxu0
      %v2750 = vadd.f32 0.0, %v2749
      %v2751 = vpop.f32.mrf.mxu0
      %v2752 = vadd.f32 0.0, %v2751
      %2753 = vmatmul.bf16.gmra.mxu0 %v2669
      %v2754 = vpop.f32.mrf.mxu0
      %v2755 = vadd.f32 0.0, %v2754
      %v2756 = vpop.f32.mrf.mxu0
      %v2757 = vadd.f32 0.0, %v2756
      %2758 = vmatmul.bf16.gmra.mxu0 %v2672
      %v2759 = vpop.f32.mrf.mxu0
      %v2760 = vadd.f32 0.0, %v2759
      %v2761 = vpop.f32.mrf.mxu0
      %v2762 = vadd.f32 0.0, %v2761
      %2763 = vmatmul.bf16.gmra.mxu0 %v2675
      %v2764 = vpop.f32.mrf.mxu0
      %v2765 = vadd.f32 0.0, %v2764
      %v2766 = vpop.f32.mrf.mxu0
      %v2767 = vadd.f32 0.0, %v2766
      %2768 = vdwg.mxu0
      %v2769 = vadd.f32 %v2515, %v2690
      %v2770 = vadd.f32 %v2516, %v2692
      %v2771 = vadd.f32 %v2517, %v2695
      %v2772 = vadd.f32 %v2518, %v2697
      %v2773 = vadd.f32 %v2519, %v2700
      %v2774 = vadd.f32 %v2520, %v2702
      %v2775 = vadd.f32 %v2521, %v2705
      %v2776 = vadd.f32 %v2522, %v2707
      %v2777 = vadd.f32 %v2523, %v2710
      %v2778 = vadd.f32 %v2524, %v2712
      %v2779 = vadd.f32 %v2525, %v2715
      %v2780 = vadd.f32 %v2526, %v2717
      %v2781 = vadd.f32 %v2527, %v2720
      %v2782 = vadd.f32 %v2528, %v2722
      %v2783 = vadd.f32 %v2529, %v2725
      %v2784 = vadd.f32 %v2530, %v2727
      %v2785 = vadd.f32 %v2531, %v2730
      %v2786 = vadd.f32 %v2532, %v2732
      %v2787 = vadd.f32 %v2533, %v2735
      %v2788 = vadd.f32 %v2534, %v2737
      %v2789 = vadd.f32 %v2535, %v2740
      %v2790 = vadd.f32 %v2536, %v2742
      %v2791 = vadd.f32 %v2537, %v2745
      %v2792 = vadd.f32 %v2538, %v2747
      %v2793 = vadd.f32 %v2539, %v2750
      %v2794 = vadd.f32 %v2540, %v2752
      %v2795 = vadd.f32 %v2541, %v2755
      %v2796 = vadd.f32 %v2542, %v2757
      %v2797 = vadd.f32 %v2543, %v2760
      %v2798 = vadd.f32 %v2544, %v2762
      %v2799 = vadd.f32 %v2545, %v2765
      %v2800 = vadd.f32 %v2546, %v2767
      %v2801 = vld [vmem:[%s1924 + $0x8] sm:$0xf]
      %v2802 = vld [vmem:[%s1924 + $0xc] sm:$0xf]
      %v2803 = vld [vmem:[%s1924 + $0x10] sm:$0x1]
      %v2804 = vld [vmem:[%s1924 + $0x20] sm:$0xf]
      %v2805 = vld [vmem:[%s1924 + $0x24] sm:$0xf]
      %v2806 = vld [vmem:[%s1924 + $0x28] sm:$0x1]
      %v2807 = vld [vmem:[%s1924 + $0x38] sm:$0xf]
      %v2808 = vld [vmem:[%s1924 + $0x3c] sm:$0xf]
      %v2809 = vld [vmem:[%s1924 + $0x40] sm:$0x1]
      %v2810 = vld [vmem:[%s1924 + $0x50] sm:$0xf]
      %v2811 = vld [vmem:[%s1924 + $0x54] sm:$0xf]
      %v2812 = vld [vmem:[%s1924 + $0x58] sm:$0x1]
      %v2813 = vld [vmem:[%s1924 + $0x68] sm:$0xf]
      %v2814 = vld [vmem:[%s1924 + $0x6c] sm:$0xf]
      %v2815 = vld [vmem:[%s1924 + $0x70] sm:$0x1]
      %v2816 = vld [vmem:[%s1924 + $0x80] sm:$0xf]
      %v2817 = vld [vmem:[%s1924 + $0x84] sm:$0xf]
      %v2818 = vld [vmem:[%s1924 + $0x88] sm:$0x1]
      %v2819 = vld [vmem:[%s1924 + $0x98] sm:$0xf]
      %v2820 = vld [vmem:[%s1924 + $0x9c] sm:$0xf]
      %v2821 = vld [vmem:[%s1924 + $0xa0] sm:$0x1]
      %v2822 = vld [vmem:[%s1924 + $0xb0] sm:$0xf]
      %v2823 = vld [vmem:[%s1924 + $0xb4] sm:$0xf]
      %v2824 = vld [vmem:[%s1924 + $0xb8] sm:$0x1]
      %v2825 = vld [vmem:[%s1924 + $0xc8] sm:$0xf]
      %v2826 = vld [vmem:[%s1924 + $0xcc] sm:$0xf]
      %v2827 = vld [vmem:[%s1924 + $0xd0] sm:$0x1]
      %v2828 = vld [vmem:[%s1924 + $0xe0] sm:$0xf]
      %v2829 = vld [vmem:[%s1924 + $0xe4] sm:$0xf]
      %v2830 = vld [vmem:[%s1924 + $0xe8] sm:$0x1]
      %v2831 = vld [vmem:[%s1924 + $0xf8] sm:$0xf]
      %v2832 = vld [vmem:[%s1924 + $0xfc] sm:$0xf]
      %v2833 = vld [vmem:[%s1924 + $0x100] sm:$0x1]
      %v2834 = vld [vmem:[%s1924 + $0x110] sm:$0xf]
      %v2835 = vld [vmem:[%s1924 + $0x114] sm:$0xf]
      %v2836 = vld [vmem:[%s1924 + $0x118] sm:$0x1]
      %v2837 = vld [vmem:[%s1924 + $0x128] sm:$0xf]
      %v2838 = vld [vmem:[%s1924 + $0x12c] sm:$0xf]
      %v2839 = vld [vmem:[%s1924 + $0x130] sm:$0x1]
      %v2840 = vld [vmem:[%s1924 + $0x140] sm:$0xf]
      %v2841 = vld [vmem:[%s1924 + $0x144] sm:$0xf]
      %v2842 = vld [vmem:[%s1924 + $0x148] sm:$0x1]
      %v2843 = vld [vmem:[%s1924 + $0x158] sm:$0xf]
      %v2844 = vld [vmem:[%s1924 + $0x15c] sm:$0xf]
      %v2845 = vld [vmem:[%s1924 + $0x160] sm:$0x1]
      %v2846 = vld [vmem:[%s1924 + $0x170] sm:$0xf]
      %v2847 = vld [vmem:[%s1924 + $0x174] sm:$0xf]
      %v2848 = vld [vmem:[%s1924 + $0x178] sm:$0x1]
      %v2850 = vshrl.u32 %v2801, 16
      %v2852 = vrot.slane %v2850, 4
      %v2853 = vshll.u32 %v2801, 16
      %v2855 = vrot.slane %v2853, 5
      %v2856 = vor.u32 %v2852, %v2855
      %v2857 = vrot.slane %v2856, 4
      %v2859 = vshll.u32 %v2802, 16
      %v2861 = vrot.slane %v2859, 5
      %v2862 = vsel %vm1314, %v2857, %v2861
      %v2863 = vshrl.u32 %v2802, 16
      %v2865 = vrot.slane %v2863, 4
      %v2866 = vor.u32 %v2865, %v2861
      %v2867 = vrot.slane %v2866, 4
      %v2869 = vshll.u32 %v2803, 16
      %v2871 = vrot.slane %v2869, 5
      %v2872 = vsel %vm1314, %v2867, %v2871
      %v2874 = vshrl.u32 %v2804, 16
      %v2876 = vrot.slane %v2874, 4
      %v2877 = vshll.u32 %v2804, 16
      %v2879 = vrot.slane %v2877, 5
      %v2880 = vor.u32 %v2876, %v2879
      %v2881 = vrot.slane %v2880, 4
      %v2883 = vshll.u32 %v2805, 16
      %v2885 = vrot.slane %v2883, 5
      %v2886 = vsel %vm1314, %v2881, %v2885
      %v2887 = vshrl.u32 %v2805, 16
      %v2889 = vrot.slane %v2887, 4
      %v2890 = vor.u32 %v2889, %v2885
      %v2891 = vrot.slane %v2890, 4
      %v2893 = vshll.u32 %v2806, 16
      %v2895 = vrot.slane %v2893, 5
      %v2896 = vsel %vm1314, %v2891, %v2895
      %v2898 = vshrl.u32 %v2807, 16
      %v2900 = vrot.slane %v2898, 4
      %v2901 = vshll.u32 %v2807, 16
      %v2903 = vrot.slane %v2901, 5
      %v2904 = vor.u32 %v2900, %v2903
      %v2905 = vrot.slane %v2904, 4
      %v2907 = vshll.u32 %v2808, 16
      %v2909 = vrot.slane %v2907, 5
      %v2910 = vsel %vm1314, %v2905, %v2909
      %v2911 = vshrl.u32 %v2808, 16
      %v2913 = vrot.slane %v2911, 4
      %v2914 = vor.u32 %v2913, %v2909
      %v2915 = vrot.slane %v2914, 4
      %v2917 = vshll.u32 %v2809, 16
      %v2919 = vrot.slane %v2917, 5
      %v2920 = vsel %vm1314, %v2915, %v2919
      %v2922 = vshrl.u32 %v2810, 16
      %v2924 = vrot.slane %v2922, 4
      %v2925 = vshll.u32 %v2810, 16
      %v2927 = vrot.slane %v2925, 5
      %v2928 = vor.u32 %v2924, %v2927
      %v2929 = vrot.slane %v2928, 4
      %v2931 = vshll.u32 %v2811, 16
      %v2933 = vrot.slane %v2931, 5
      %v2934 = vsel %vm1314, %v2929, %v2933
      %v2935 = vshrl.u32 %v2811, 16
      %v2937 = vrot.slane %v2935, 4
      %v2938 = vor.u32 %v2937, %v2933
      %v2939 = vrot.slane %v2938, 4
      %v2941 = vshll.u32 %v2812, 16
      %v2943 = vrot.slane %v2941, 5
      %v2944 = vsel %vm1314, %v2939, %v2943
      %v2946 = vshrl.u32 %v2813, 16
      %v2948 = vrot.slane %v2946, 4
      %v2949 = vshll.u32 %v2813, 16
      %v2951 = vrot.slane %v2949, 5
      %v2952 = vor.u32 %v2948, %v2951
      %v2953 = vrot.slane %v2952, 4
      %v2955 = vshll.u32 %v2814, 16
      %v2957 = vrot.slane %v2955, 5
      %v2958 = vsel %vm1314, %v2953, %v2957
      %v2959 = vshrl.u32 %v2814, 16
      %v2961 = vrot.slane %v2959, 4
      %v2962 = vor.u32 %v2961, %v2957
      %v2963 = vrot.slane %v2962, 4
      %v2965 = vshll.u32 %v2815, 16
      %v2967 = vrot.slane %v2965, 5
      %v2968 = vsel %vm1314, %v2963, %v2967
      %v2970 = vshrl.u32 %v2816, 16
      %v2972 = vrot.slane %v2970, 4
      %v2973 = vshll.u32 %v2816, 16
      %v2975 = vrot.slane %v2973, 5
      %v2976 = vor.u32 %v2972, %v2975
      %v2977 = vrot.slane %v2976, 4
      %v2979 = vshll.u32 %v2817, 16
      %v2981 = vrot.slane %v2979, 5
      %v2982 = vsel %vm1314, %v2977, %v2981
      %v2983 = vshrl.u32 %v2817, 16
      %v2985 = vrot.slane %v2983, 4
      %v2986 = vor.u32 %v2985, %v2981
      %v2987 = vrot.slane %v2986, 4
      %v2989 = vshll.u32 %v2818, 16
      %v2991 = vrot.slane %v2989, 5
      %v2992 = vsel %vm1314, %v2987, %v2991
      %v2994 = vshrl.u32 %v2819, 16
      %v2996 = vrot.slane %v2994, 4
      %v2997 = vshll.u32 %v2819, 16
      %v2999 = vrot.slane %v2997, 5
      %v3000 = vor.u32 %v2996, %v2999
      %v3001 = vrot.slane %v3000, 4
      %v3003 = vshll.u32 %v2820, 16
      %v3005 = vrot.slane %v3003, 5
      %v3006 = vsel %vm1314, %v3001, %v3005
      %v3007 = vshrl.u32 %v2820, 16
      %v3009 = vrot.slane %v3007, 4
      %v3010 = vor.u32 %v3009, %v3005
      %v3011 = vrot.slane %v3010, 4
      %v3013 = vshll.u32 %v2821, 16
      %v3015 = vrot.slane %v3013, 5
      %v3016 = vsel %vm1314, %v3011, %v3015
      %v3018 = vshrl.u32 %v2822, 16
      %v3020 = vrot.slane %v3018, 4
      %v3021 = vshll.u32 %v2822, 16
      %v3023 = vrot.slane %v3021, 5
      %v3024 = vor.u32 %v3020, %v3023
      %v3025 = vrot.slane %v3024, 4
      %v3027 = vshll.u32 %v2823, 16
      %v3029 = vrot.slane %v3027, 5
      %v3030 = vsel %vm1314, %v3025, %v3029
      %v3031 = vshrl.u32 %v2823, 16
      %v3033 = vrot.slane %v3031, 4
      %v3034 = vor.u32 %v3033, %v3029
      %v3035 = vrot.slane %v3034, 4
      %v3037 = vshll.u32 %v2824, 16
      %v3039 = vrot.slane %v3037, 5
      %v3040 = vsel %vm1314, %v3035, %v3039
      %v3042 = vshrl.u32 %v2825, 16
      %v3044 = vrot.slane %v3042, 4
      %v3045 = vshll.u32 %v2825, 16
      %v3047 = vrot.slane %v3045, 5
      %v3048 = vor.u32 %v3044, %v3047
      %v3049 = vrot.slane %v3048, 4
      %v3051 = vshll.u32 %v2826, 16
      %v3053 = vrot.slane %v3051, 5
      %v3054 = vsel %vm1314, %v3049, %v3053
      %v3055 = vshrl.u32 %v2826, 16
      %v3057 = vrot.slane %v3055, 4
      %v3058 = vor.u32 %v3057, %v3053
      %v3059 = vrot.slane %v3058, 4
      %v3061 = vshll.u32 %v2827, 16
      %v3063 = vrot.slane %v3061, 5
      %v3064 = vsel %vm1314, %v3059, %v3063
      %v3066 = vshrl.u32 %v2828, 16
      %v3068 = vrot.slane %v3066, 4
      %v3069 = vshll.u32 %v2828, 16
      %v3071 = vrot.slane %v3069, 5
      %v3072 = vor.u32 %v3068, %v3071
      %v3073 = vrot.slane %v3072, 4
      %v3075 = vshll.u32 %v2829, 16
      %v3077 = vrot.slane %v3075, 5
      %v3078 = vsel %vm1314, %v3073, %v3077
      %v3079 = vshrl.u32 %v2829, 16
      %v3081 = vrot.slane %v3079, 4
      %v3082 = vor.u32 %v3081, %v3077
      %v3083 = vrot.slane %v3082, 4
      %v3085 = vshll.u32 %v2830, 16
      %v3087 = vrot.slane %v3085, 5
      %v3088 = vsel %vm1314, %v3083, %v3087
      %v3090 = vshrl.u32 %v2831, 16
      %v3092 = vrot.slane %v3090, 4
      %v3093 = vshll.u32 %v2831, 16
      %v3095 = vrot.slane %v3093, 5
      %v3096 = vor.u32 %v3092, %v3095
      %v3097 = vrot.slane %v3096, 4
      %v3099 = vshll.u32 %v2832, 16
      %v3101 = vrot.slane %v3099, 5
      %v3102 = vsel %vm1314, %v3097, %v3101
      %v3103 = vshrl.u32 %v2832, 16
      %v3105 = vrot.slane %v3103, 4
      %v3106 = vor.u32 %v3105, %v3101
      %v3107 = vrot.slane %v3106, 4
      %v3109 = vshll.u32 %v2833, 16
      %v3111 = vrot.slane %v3109, 5
      %v3112 = vsel %vm1314, %v3107, %v3111
      %v3114 = vshrl.u32 %v2834, 16
      %v3116 = vrot.slane %v3114, 4
      %v3117 = vshll.u32 %v2834, 16
      %v3119 = vrot.slane %v3117, 5
      %v3120 = vor.u32 %v3116, %v3119
      %v3121 = vrot.slane %v3120, 4
      %v3123 = vshll.u32 %v2835, 16
      %v3125 = vrot.slane %v3123, 5
      %v3126 = vsel %vm1314, %v3121, %v3125
      %v3127 = vshrl.u32 %v2835, 16
      %v3129 = vrot.slane %v3127, 4
      %v3130 = vor.u32 %v3129, %v3125
      %v3131 = vrot.slane %v3130, 4
      %v3133 = vshll.u32 %v2836, 16
      %v3135 = vrot.slane %v3133, 5
      %v3136 = vsel %vm1314, %v3131, %v3135
      %v3138 = vshrl.u32 %v2837, 16
      %v3140 = vrot.slane %v3138, 4
      %v3141 = vshll.u32 %v2837, 16
      %v3143 = vrot.slane %v3141, 5
      %v3144 = vor.u32 %v3140, %v3143
      %v3145 = vrot.slane %v3144, 4
      %v3147 = vshll.u32 %v2838, 16
      %v3149 = vrot.slane %v3147, 5
      %v3150 = vsel %vm1314, %v3145, %v3149
      %v3151 = vshrl.u32 %v2838, 16
      %v3153 = vrot.slane %v3151, 4
      %v3154 = vor.u32 %v3153, %v3149
      %v3155 = vrot.slane %v3154, 4
      %v3157 = vshll.u32 %v2839, 16
      %v3159 = vrot.slane %v3157, 5
      %v3160 = vsel %vm1314, %v3155, %v3159
      %v3162 = vshrl.u32 %v2840, 16
      %v3164 = vrot.slane %v3162, 4
      %v3165 = vshll.u32 %v2840, 16
      %v3167 = vrot.slane %v3165, 5
      %v3168 = vor.u32 %v3164, %v3167
      %v3169 = vrot.slane %v3168, 4
      %v3171 = vshll.u32 %v2841, 16
      %v3173 = vrot.slane %v3171, 5
      %v3174 = vsel %vm1314, %v3169, %v3173
      %v3175 = vshrl.u32 %v2841, 16
      %v3177 = vrot.slane %v3175, 4
      %v3178 = vor.u32 %v3177, %v3173
      %v3179 = vrot.slane %v3178, 4
      %v3181 = vshll.u32 %v2842, 16
      %v3183 = vrot.slane %v3181, 5
      %v3184 = vsel %vm1314, %v3179, %v3183
      %v3186 = vshrl.u32 %v2843, 16
      %v3188 = vrot.slane %v3186, 4
      %v3189 = vshll.u32 %v2843, 16
      %v3191 = vrot.slane %v3189, 5
      %v3192 = vor.u32 %v3188, %v3191
      %v3193 = vrot.slane %v3192, 4
      %v3195 = vshll.u32 %v2844, 16
      %v3197 = vrot.slane %v3195, 5
      %v3198 = vsel %vm1314, %v3193, %v3197
      %v3199 = vshrl.u32 %v2844, 16
      %v3201 = vrot.slane %v3199, 4
      %v3202 = vor.u32 %v3201, %v3197
      %v3203 = vrot.slane %v3202, 4
      %v3205 = vshll.u32 %v2845, 16
      %v3207 = vrot.slane %v3205, 5
      %v3208 = vsel %vm1314, %v3203, %v3207
      %v3210 = vshrl.u32 %v2846, 16
      %v3212 = vrot.slane %v3210, 4
      %v3213 = vshll.u32 %v2846, 16
      %v3215 = vrot.slane %v3213, 5
      %v3216 = vor.u32 %v3212, %v3215
      %v3217 = vrot.slane %v3216, 4
      %v3219 = vshll.u32 %v2847, 16
      %v3221 = vrot.slane %v3219, 5
      %v3222 = vsel %vm1314, %v3217, %v3221
      %v3223 = vshrl.u32 %v2847, 16
      %v3225 = vrot.slane %v3223, 4
      %v3226 = vor.u32 %v3225, %v3221
      %v3227 = vrot.slane %v3226, 4
      %v3229 = vshll.u32 %v2848, 16
      %v3231 = vrot.slane %v3229, 5
      %v3232 = vsel %vm1314, %v3227, %v3231
      %s3233 = scalar_lea.vmem %s1, 10
      %v3234 = vld [vmem:[%s3233] sm:$0x3]
      %v3235 = vunpack.c.l.b16 %v2862
      %v3236 = vunpack.c.l.b16 %v2872
      %v3237 = vunpack.c.l.b16 %v2886
      %v3238 = vunpack.c.l.b16 %v2896
      %v3239 = vunpack.c.l.b16 %v2910
      %v3240 = vunpack.c.l.b16 %v2920
      %v3241 = vunpack.c.l.b16 %v2934
      %v3242 = vunpack.c.l.b16 %v2944
      %v3243 = vunpack.c.l.b16 %v2958
      %v3244 = vunpack.c.l.b16 %v2968
      %v3245 = vunpack.c.l.b16 %v2982
      %v3246 = vunpack.c.l.b16 %v2992
      %v3247 = vunpack.c.l.b16 %v3006
      %v3248 = vunpack.c.l.b16 %v3016
      %v3249 = vunpack.c.l.b16 %v3030
      %v3250 = vunpack.c.l.b16 %v3040
      %v3251 = vunpack.c.l.b16 %v3054
      %v3252 = vunpack.c.l.b16 %v3064
      %v3253 = vunpack.c.l.b16 %v3078
      %v3254 = vunpack.c.l.b16 %v3088
      %v3255 = vunpack.c.l.b16 %v3102
      %v3256 = vunpack.c.l.b16 %v3112
      %v3257 = vunpack.c.l.b16 %v3126
      %v3258 = vunpack.c.l.b16 %v3136
      %v3259 = vunpack.c.l.b16 %v3150
      %v3260 = vunpack.c.l.b16 %v3160
      %v3261 = vunpack.c.l.b16 %v3174
      %v3262 = vunpack.c.l.b16 %v3184
      %v3263 = vunpack.c.l.b16 %v3198
      %v3264 = vunpack.c.l.b16 %v3208
      %v3265 = vunpack.c.l.b16 %v3222
      %v3266 = vunpack.c.l.b16 %v3232
      %v3267 = vpack.c.b16 %v3236, %v3235
      %v3268 = vpack.c.b16 %v3238, %v3237
      %v3269 = vpack.c.b16 %v3240, %v3239
      %v3270 = vpack.c.b16 %v3242, %v3241
      %v3271 = vpack.c.b16 %v3244, %v3243
      %v3272 = vpack.c.b16 %v3246, %v3245
      %v3273 = vpack.c.b16 %v3248, %v3247
      %v3274 = vpack.c.b16 %v3250, %v3249
      %v3275 = vpack.c.b16 %v3252, %v3251
      %v3276 = vpack.c.b16 %v3254, %v3253
      %v3277 = vpack.c.b16 %v3256, %v3255
      %v3278 = vpack.c.b16 %v3258, %v3257
      %v3279 = vpack.c.b16 %v3260, %v3259
      %v3280 = vpack.c.b16 %v3262, %v3261
      %v3281 = vpack.c.b16 %v3264, %v3263
      %v3282 = vpack.c.b16 %v3266, %v3265
      %v3284 = vsel %vm934, %v3267, 0
      %v3287 = vsel %vm934, %v3268, 0
      %v3290 = vsel %vm934, %v3269, 0
      %v3293 = vsel %vm934, %v3270, 0
      %v3296 = vsel %vm934, %v3271, 0
      %v3299 = vsel %vm934, %v3272, 0
      %v3302 = vsel %vm934, %v3273, 0
      %v3305 = vsel %vm934, %v3274, 0
      %v3308 = vsel %vm934, %v3275, 0
      %v3311 = vsel %vm934, %v3276, 0
      %v3314 = vsel %vm934, %v3277, 0
      %v3317 = vsel %vm934, %v3278, 0
      %v3320 = vsel %vm934, %v3279, 0
      %v3323 = vsel %vm934, %v3280, 0
      %v3326 = vsel %vm934, %v3281, 0
      %v3329 = vsel %vm934, %v3282, 0
      %v3332 = vsel %vm983, %v3234, 0
      %3334 = vmatpush.bf16.msra.mxu0 0
      %3335 = vmatpush.bf16.msra.mxu0 0
      %3336 = vmatpush.bf16.msra.mxu0 0
      %3337 = vmatpush.bf16.msra.mxu0 0
      %3338 = vmatpush.bf16.msra.mxu0 0
      %3339 = vmatpush.bf16.msra.mxu0 0
      %3340 = vmatpush.bf16.msra.mxu0 0
      %3341 = vmatpush.bf16.msra.mxu0 %v3332
      %3342 = vmatmul.bf16.gmra.mxu0 %v3284
      %v3343 = vpop.f32.mrf.mxu0
      %v3344 = vadd.f32 0.0, %v3343
      %v3345 = vpop.f32.mrf.mxu0
      %v3346 = vadd.f32 0.0, %v3345
      %3347 = vmatmul.bf16.gmra.mxu0 %v3287
      %v3348 = vpop.f32.mrf.mxu0
      %v3349 = vadd.f32 0.0, %v3348
      %v3350 = vpop.f32.mrf.mxu0
      %v3351 = vadd.f32 0.0, %v3350
      %3352 = vmatmul.bf16.gmra.mxu0 %v3290
      %v3353 = vpop.f32.mrf.mxu0
      %v3354 = vadd.f32 0.0, %v3353
      %v3355 = vpop.f32.mrf.mxu0
      %v3356 = vadd.f32 0.0, %v3355
      %3357 = vmatmul.bf16.gmra.mxu0 %v3293
      %v3358 = vpop.f32.mrf.mxu0
      %v3359 = vadd.f32 0.0, %v3358
      %v3360 = vpop.f32.mrf.mxu0
      %v3361 = vadd.f32 0.0, %v3360
      %3362 = vmatmul.bf16.gmra.mxu0 %v3296
      %v3363 = vpop.f32.mrf.mxu0
      %v3364 = vadd.f32 0.0, %v3363
      %v3365 = vpop.f32.mrf.mxu0
      %v3366 = vadd.f32 0.0, %v3365
      %3367 = vmatmul.bf16.gmra.mxu0 %v3299
      %v3368 = vpop.f32.mrf.mxu0
      %v3369 = vadd.f32 0.0, %v3368
      %v3370 = vpop.f32.mrf.mxu0
      %v3371 = vadd.f32 0.0, %v3370
      %3372 = vmatmul.bf16.gmra.mxu0 %v3302
      %v3373 = vpop.f32.mrf.mxu0
      %v3374 = vadd.f32 0.0, %v3373
      %v3375 = vpop.f32.mrf.mxu0
      %v3376 = vadd.f32 0.0, %v3375
      %3377 = vmatmul.bf16.gmra.mxu0 %v3305
      %v3378 = vpop.f32.mrf.mxu0
      %v3379 = vadd.f32 0.0, %v3378
      %v3380 = vpop.f32.mrf.mxu0
      %v3381 = vadd.f32 0.0, %v3380
      %3382 = vmatmul.bf16.gmra.mxu0 %v3308
      %v3383 = vpop.f32.mrf.mxu0
      %v3384 = vadd.f32 0.0, %v3383
      %v3385 = vpop.f32.mrf.mxu0
      %v3386 = vadd.f32 0.0, %v3385
      %3387 = vmatmul.bf16.gmra.mxu0 %v3311
      %v3388 = vpop.f32.mrf.mxu0
      %v3389 = vadd.f32 0.0, %v3388
      %v3390 = vpop.f32.mrf.mxu0
      %v3391 = vadd.f32 0.0, %v3390
      %3392 = vmatmul.bf16.gmra.mxu0 %v3314
      %v3393 = vpop.f32.mrf.mxu0
      %v3394 = vadd.f32 0.0, %v3393
      %v3395 = vpop.f32.mrf.mxu0
      %v3396 = vadd.f32 0.0, %v3395
      %3397 = vmatmul.bf16.gmra.mxu0 %v3317
      %v3398 = vpop.f32.mrf.mxu0
      %v3399 = vadd.f32 0.0, %v3398
      %v3400 = vpop.f32.mrf.mxu0
      %v3401 = vadd.f32 0.0, %v3400
      %3402 = vmatmul.bf16.gmra.mxu0 %v3320
      %v3403 = vpop.f32.mrf.mxu0
      %v3404 = vadd.f32 0.0, %v3403
      %v3405 = vpop.f32.mrf.mxu0
      %v3406 = vadd.f32 0.0, %v3405
      %3407 = vmatmul.bf16.gmra.mxu0 %v3323
      %v3408 = vpop.f32.mrf.mxu0
      %v3409 = vadd.f32 0.0, %v3408
      %v3410 = vpop.f32.mrf.mxu0
      %v3411 = vadd.f32 0.0, %v3410
      %3412 = vmatmul.bf16.gmra.mxu0 %v3326
      %v3413 = vpop.f32.mrf.mxu0
      %v3414 = vadd.f32 0.0, %v3413
      %v3415 = vpop.f32.mrf.mxu0
      %v3416 = vadd.f32 0.0, %v3415
      %3417 = vmatmul.bf16.gmra.mxu0 %v3329
      %v3418 = vpop.f32.mrf.mxu0
      %v3419 = vadd.f32 0.0, %v3418
      %v3420 = vpop.f32.mrf.mxu0
      %v3421 = vadd.f32 0.0, %v3420
      %3422 = vdwg.mxu0
      %v3423 = vadd.f32 %v2769, %v3344
      %v3424 = vadd.f32 %v2770, %v3346
      %v3425 = vadd.f32 %v2771, %v3349
      %v3426 = vadd.f32 %v2772, %v3351
      %v3427 = vadd.f32 %v2773, %v3354
      %v3428 = vadd.f32 %v2774, %v3356
      %v3429 = vadd.f32 %v2775, %v3359
      %v3430 = vadd.f32 %v2776, %v3361
      %v3431 = vadd.f32 %v2777, %v3364
      %v3432 = vadd.f32 %v2778, %v3366
      %v3433 = vadd.f32 %v2779, %v3369
      %v3434 = vadd.f32 %v2780, %v3371
      %v3435 = vadd.f32 %v2781, %v3374
      %v3436 = vadd.f32 %v2782, %v3376
      %v3437 = vadd.f32 %v2783, %v3379
      %v3438 = vadd.f32 %v2784, %v3381
      %v3439 = vadd.f32 %v2785, %v3384
      %v3440 = vadd.f32 %v2786, %v3386
      %v3441 = vadd.f32 %v2787, %v3389
      %v3442 = vadd.f32 %v2788, %v3391
      %v3443 = vadd.f32 %v2789, %v3394
      %v3444 = vadd.f32 %v2790, %v3396
      %v3445 = vadd.f32 %v2791, %v3399
      %v3446 = vadd.f32 %v2792, %v3401
      %v3447 = vadd.f32 %v2793, %v3404
      %v3448 = vadd.f32 %v2794, %v3406
      %v3449 = vadd.f32 %v2795, %v3409
      %v3450 = vadd.f32 %v2796, %v3411
      %v3451 = vadd.f32 %v2797, %v3414
      %v3452 = vadd.f32 %v2798, %v3416
      %v3453 = vadd.f32 %v2799, %v3419
      %v3454 = vadd.f32 %v2800, %v3421
      %s3455 = sadd.s32 %s444, 2
      %s3456 = smul.u32 %s3455, 6
      %s3457 = smul.addr %s3456, 4
      %s3458 = scalar_lea.vmem [#allocation2], %s3457
      %v3459 = vld [vmem:[%s3458 + $0x4] sm:$0x8]
      %v3460 = vld [vmem:[%s3458 + $0x8] sm:$0xf]
      %v3461 = vld [vmem:[%s3458 + $0xc] sm:$0xf]
      %v3462 = vld [vmem:[%s3458 + $0x1c] sm:$0x8]
      %v3463 = vld [vmem:[%s3458 + $0x20] sm:$0xf]
      %v3464 = vld [vmem:[%s3458 + $0x24] sm:$0xf]
      %v3465 = vld [vmem:[%s3458 + $0x34] sm:$0x8]
      %v3466 = vld [vmem:[%s3458 + $0x38] sm:$0xf]
      %v3467 = vld [vmem:[%s3458 + $0x3c] sm:$0xf]
      %v3468 = vld [vmem:[%s3458 + $0x4c] sm:$0x8]
      %v3469 = vld [vmem:[%s3458 + $0x50] sm:$0xf]
      %v3470 = vld [vmem:[%s3458 + $0x54] sm:$0xf]
      %v3471 = vld [vmem:[%s3458 + $0x64] sm:$0x8]
      %v3472 = vld [vmem:[%s3458 + $0x68] sm:$0xf]
      %v3473 = vld [vmem:[%s3458 + $0x6c] sm:$0xf]
      %v3474 = vld [vmem:[%s3458 + $0x7c] sm:$0x8]
      %v3475 = vld [vmem:[%s3458 + $0x80] sm:$0xf]
      %v3476 = vld [vmem:[%s3458 + $0x84] sm:$0xf]
      %v3477 = vld [vmem:[%s3458 + $0x94] sm:$0x8]
      %v3478 = vld [vmem:[%s3458 + $0x98] sm:$0xf]
      %v3479 = vld [vmem:[%s3458 + $0x9c] sm:$0xf]
      %v3480 = vld [vmem:[%s3458 + $0xac] sm:$0x8]
      %v3481 = vld [vmem:[%s3458 + $0xb0] sm:$0xf]
      %v3482 = vld [vmem:[%s3458 + $0xb4] sm:$0xf]
      %v3483 = vld [vmem:[%s3458 + $0xc4] sm:$0x8]
      %v3484 = vld [vmem:[%s3458 + $0xc8] sm:$0xf]
      %v3485 = vld [vmem:[%s3458 + $0xcc] sm:$0xf]
      %v3486 = vld [vmem:[%s3458 + $0xdc] sm:$0x8]
      %v3487 = vld [vmem:[%s3458 + $0xe0] sm:$0xf]
      %v3488 = vld [vmem:[%s3458 + $0xe4] sm:$0xf]
      %v3489 = vld [vmem:[%s3458 + $0xf4] sm:$0x8]
      %v3490 = vld [vmem:[%s3458 + $0xf8] sm:$0xf]
      %v3491 = vld [vmem:[%s3458 + $0xfc] sm:$0xf]
      %v3492 = vld [vmem:[%s3458 + $0x10c] sm:$0x8]
      %v3493 = vld [vmem:[%s3458 + $0x110] sm:$0xf]
      %v3494 = vld [vmem:[%s3458 + $0x114] sm:$0xf]
      %v3495 = vld [vmem:[%s3458 + $0x124] sm:$0x8]
      %v3496 = vld [vmem:[%s3458 + $0x128] sm:$0xf]
      %v3497 = vld [vmem:[%s3458 + $0x12c] sm:$0xf]
      %v3498 = vld [vmem:[%s3458 + $0x13c] sm:$0x8]
      %v3499 = vld [vmem:[%s3458 + $0x140] sm:$0xf]
      %v3500 = vld [vmem:[%s3458 + $0x144] sm:$0xf]
      %v3501 = vld [vmem:[%s3458 + $0x154] sm:$0x8]
      %v3502 = vld [vmem:[%s3458 + $0x158] sm:$0xf]
      %v3503 = vld [vmem:[%s3458 + $0x15c] sm:$0xf]
      %v3504 = vld [vmem:[%s3458 + $0x16c] sm:$0x8]
      %v3505 = vld [vmem:[%s3458 + $0x170] sm:$0xf]
      %v3506 = vld [vmem:[%s3458 + $0x174] sm:$0xf]
      %v3508 = vshrl.u32 %v3459, 16
      %v3510 = vrot.slane %v3508, 7
      %v3511 = vrot.slane %v3510, 4
      %v3513 = vshrl.u32 %v3460, 16
      %v3515 = vrot.slane %v3513, 7
      %v3516 = vshll.u32 %v3460, 16
      %v3518 = vor.u32 %v3515, %v3516
      %v3519 = vsel %vm498, %v3511, %v3518
      %v3520 = vrot.slane %v3515, 4
      %v3522 = vshrl.u32 %v3461, 16
      %v3524 = vrot.slane %v3522, 7
      %v3525 = vshll.u32 %v3461, 16
      %v3527 = vor.u32 %v3524, %v3525
      %v3528 = vsel %vm498, %v3520, %v3527
      %v3530 = vshrl.u32 %v3462, 16
      %v3532 = vrot.slane %v3530, 7
      %v3533 = vrot.slane %v3532, 4
      %v3535 = vshrl.u32 %v3463, 16
      %v3537 = vrot.slane %v3535, 7
      %v3538 = vshll.u32 %v3463, 16
      %v3540 = vor.u32 %v3537, %v3538
      %v3541 = vsel %vm498, %v3533, %v3540
      %v3542 = vrot.slane %v3537, 4
      %v3544 = vshrl.u32 %v3464, 16
      %v3546 = vrot.slane %v3544, 7
      %v3547 = vshll.u32 %v3464, 16
      %v3549 = vor.u32 %v3546, %v3547
      %v3550 = vsel %vm498, %v3542, %v3549
      %v3552 = vshrl.u32 %v3465, 16
      %v3554 = vrot.slane %v3552, 7
      %v3555 = vrot.slane %v3554, 4
      %v3557 = vshrl.u32 %v3466, 16
      %v3559 = vrot.slane %v3557, 7
      %v3560 = vshll.u32 %v3466, 16
      %v3562 = vor.u32 %v3559, %v3560
      %v3563 = vsel %vm498, %v3555, %v3562
      %v3564 = vrot.slane %v3559, 4
      %v3566 = vshrl.u32 %v3467, 16
      %v3568 = vrot.slane %v3566, 7
      %v3569 = vshll.u32 %v3467, 16
      %v3571 = vor.u32 %v3568, %v3569
      %v3572 = vsel %vm498, %v3564, %v3571
      %v3574 = vshrl.u32 %v3468, 16
      %v3576 = vrot.slane %v3574, 7
      %v3577 = vrot.slane %v3576, 4
      %v3579 = vshrl.u32 %v3469, 16
      %v3581 = vrot.slane %v3579, 7
      %v3582 = vshll.u32 %v3469, 16
      %v3584 = vor.u32 %v3581, %v3582
      %v3585 = vsel %vm498, %v3577, %v3584
      %v3586 = vrot.slane %v3581, 4
      %v3588 = vshrl.u32 %v3470, 16
      %v3590 = vrot.slane %v3588, 7
      %v3591 = vshll.u32 %v3470, 16
      %v3593 = vor.u32 %v3590, %v3591
      %v3594 = vsel %vm498, %v3586, %v3593
      %v3596 = vshrl.u32 %v3471, 16
      %v3598 = vrot.slane %v3596, 7
      %v3599 = vrot.slane %v3598, 4
      %v3601 = vshrl.u32 %v3472, 16
      %v3603 = vrot.slane %v3601, 7
      %v3604 = vshll.u32 %v3472, 16
      %v3606 = vor.u32 %v3603, %v3604
      %v3607 = vsel %vm498, %v3599, %v3606
      %v3608 = vrot.slane %v3603, 4
      %v3610 = vshrl.u32 %v3473, 16
      %v3612 = vrot.slane %v3610, 7
      %v3613 = vshll.u32 %v3473, 16
      %v3615 = vor.u32 %v3612, %v3613
      %v3616 = vsel %vm498, %v3608, %v3615
      %v3618 = vshrl.u32 %v3474, 16
      %v3620 = vrot.slane %v3618, 7
      %v3621 = vrot.slane %v3620, 4
      %v3623 = vshrl.u32 %v3475, 16
      %v3625 = vrot.slane %v3623, 7
      %v3626 = vshll.u32 %v3475, 16
      %v3628 = vor.u32 %v3625, %v3626
      %v3629 = vsel %vm498, %v3621, %v3628
      %v3630 = vrot.slane %v3625, 4
      %v3632 = vshrl.u32 %v3476, 16
      %v3634 = vrot.slane %v3632, 7
      %v3635 = vshll.u32 %v3476, 16
      %v3637 = vor.u32 %v3634, %v3635
      %v3638 = vsel %vm498, %v3630, %v3637
      %v3640 = vshrl.u32 %v3477, 16
      %v3642 = vrot.slane %v3640, 7
      %v3643 = vrot.slane %v3642, 4
      %v3645 = vshrl.u32 %v3478, 16
      %v3647 = vrot.slane %v3645, 7
      %v3648 = vshll.u32 %v3478, 16
      %v3650 = vor.u32 %v3647, %v3648
      %v3651 = vsel %vm498, %v3643, %v3650
      %v3652 = vrot.slane %v3647, 4
      %v3654 = vshrl.u32 %v3479, 16
      %v3656 = vrot.slane %v3654, 7
      %v3657 = vshll.u32 %v3479, 16
      %v3659 = vor.u32 %v3656, %v3657
      %v3660 = vsel %vm498, %v3652, %v3659
      %v3662 = vshrl.u32 %v3480, 16
      %v3664 = vrot.slane %v3662, 7
      %v3665 = vrot.slane %v3664, 4
      %v3667 = vshrl.u32 %v3481, 16
      %v3669 = vrot.slane %v3667, 7
      %v3670 = vshll.u32 %v3481, 16
      %v3672 = vor.u32 %v3669, %v3670
      %v3673 = vsel %vm498, %v3665, %v3672
      %v3674 = vrot.slane %v3669, 4
      %v3676 = vshrl.u32 %v3482, 16
      %v3678 = vrot.slane %v3676, 7
      %v3679 = vshll.u32 %v3482, 16
      %v3681 = vor.u32 %v3678, %v3679
      %v3682 = vsel %vm498, %v3674, %v3681
      %v3684 = vshrl.u32 %v3483, 16
      %v3686 = vrot.slane %v3684, 7
      %v3687 = vrot.slane %v3686, 4
      %v3689 = vshrl.u32 %v3484, 16
      %v3691 = vrot.slane %v3689, 7
      %v3692 = vshll.u32 %v3484, 16
      %v3694 = vor.u32 %v3691, %v3692
      %v3695 = vsel %vm498, %v3687, %v3694
      %v3696 = vrot.slane %v3691, 4
      %v3698 = vshrl.u32 %v3485, 16
      %v3700 = vrot.slane %v3698, 7
      %v3701 = vshll.u32 %v3485, 16
      %v3703 = vor.u32 %v3700, %v3701
      %v3704 = vsel %vm498, %v3696, %v3703
      %v3706 = vshrl.u32 %v3486, 16
      %v3708 = vrot.slane %v3706, 7
      %v3709 = vrot.slane %v3708, 4
      %v3711 = vshrl.u32 %v3487, 16
      %v3713 = vrot.slane %v3711, 7
      %v3714 = vshll.u32 %v3487, 16
      %v3716 = vor.u32 %v3713, %v3714
      %v3717 = vsel %vm498, %v3709, %v3716
      %v3718 = vrot.slane %v3713, 4
      %v3720 = vshrl.u32 %v3488, 16
      %v3722 = vrot.slane %v3720, 7
      %v3723 = vshll.u32 %v3488, 16
      %v3725 = vor.u32 %v3722, %v3723
      %v3726 = vsel %vm498, %v3718, %v3725
      %v3728 = vshrl.u32 %v3489, 16
      %v3730 = vrot.slane %v3728, 7
      %v3731 = vrot.slane %v3730, 4
      %v3733 = vshrl.u32 %v3490, 16
      %v3735 = vrot.slane %v3733, 7
      %v3736 = vshll.u32 %v3490, 16
      %v3738 = vor.u32 %v3735, %v3736
      %v3739 = vsel %vm498, %v3731, %v3738
      %v3740 = vrot.slane %v3735, 4
      %v3742 = vshrl.u32 %v3491, 16
      %v3744 = vrot.slane %v3742, 7
      %v3745 = vshll.u32 %v3491, 16
      %v3747 = vor.u32 %v3744, %v3745
      %v3748 = vsel %vm498, %v3740, %v3747
      %v3750 = vshrl.u32 %v3492, 16
      %v3752 = vrot.slane %v3750, 7
      %v3753 = vrot.slane %v3752, 4
      %v3755 = vshrl.u32 %v3493, 16
      %v3757 = vrot.slane %v3755, 7
      %v3758 = vshll.u32 %v3493, 16
      %v3760 = vor.u32 %v3757, %v3758
      %v3761 = vsel %vm498, %v3753, %v3760
      %v3762 = vrot.slane %v3757, 4
      %v3764 = vshrl.u32 %v3494, 16
      %v3766 = vrot.slane %v3764, 7
      %v3767 = vshll.u32 %v3494, 16
      %v3769 = vor.u32 %v3766, %v3767
      %v3770 = vsel %vm498, %v3762, %v3769
      %v3772 = vshrl.u32 %v3495, 16
      %v3774 = vrot.slane %v3772, 7
      %v3775 = vrot.slane %v3774, 4
      %v3777 = vshrl.u32 %v3496, 16
      %v3779 = vrot.slane %v3777, 7
      %v3780 = vshll.u32 %v3496, 16
      %v3782 = vor.u32 %v3779, %v3780
      %v3783 = vsel %vm498, %v3775, %v3782
      %v3784 = vrot.slane %v3779, 4
      %v3786 = vshrl.u32 %v3497, 16
      %v3788 = vrot.slane %v3786, 7
      %v3789 = vshll.u32 %v3497, 16
      %v3791 = vor.u32 %v3788, %v3789
      %v3792 = vsel %vm498, %v3784, %v3791
      %v3794 = vshrl.u32 %v3498, 16
      %v3796 = vrot.slane %v3794, 7
      %v3797 = vrot.slane %v3796, 4
      %v3799 = vshrl.u32 %v3499, 16
      %v3801 = vrot.slane %v3799, 7
      %v3802 = vshll.u32 %v3499, 16
      %v3804 = vor.u32 %v3801, %v3802
      %v3805 = vsel %vm498, %v3797, %v3804
      %v3806 = vrot.slane %v3801, 4
      %v3808 = vshrl.u32 %v3500, 16
      %v3810 = vrot.slane %v3808, 7
      %v3811 = vshll.u32 %v3500, 16
      %v3813 = vor.u32 %v3810, %v3811
      %v3814 = vsel %vm498, %v3806, %v3813
      %v3816 = vshrl.u32 %v3501, 16
      %v3818 = vrot.slane %v3816, 7
      %v3819 = vrot.slane %v3818, 4
      %v3821 = vshrl.u32 %v3502, 16
      %v3823 = vrot.slane %v3821, 7
      %v3824 = vshll.u32 %v3502, 16
      %v3826 = vor.u32 %v3823, %v3824
      %v3827 = vsel %vm498, %v3819, %v3826
      %v3828 = vrot.slane %v3823, 4
      %v3830 = vshrl.u32 %v3503, 16
      %v3832 = vrot.slane %v3830, 7
      %v3833 = vshll.u32 %v3503, 16
      %v3835 = vor.u32 %v3832, %v3833
      %v3836 = vsel %vm498, %v3828, %v3835
      %v3838 = vshrl.u32 %v3504, 16
      %v3840 = vrot.slane %v3838, 7
      %v3841 = vrot.slane %v3840, 4
      %v3843 = vshrl.u32 %v3505, 16
      %v3845 = vrot.slane %v3843, 7
      %v3846 = vshll.u32 %v3505, 16
      %v3848 = vor.u32 %v3845, %v3846
      %v3849 = vsel %vm498, %v3841, %v3848
      %v3850 = vrot.slane %v3845, 4
      %v3852 = vshrl.u32 %v3506, 16
      %v3854 = vrot.slane %v3852, 7
      %v3855 = vshll.u32 %v3506, 16
      %v3857 = vor.u32 %v3854, %v3855
      %v3858 = vsel %vm498, %v3850, %v3857
      %s3859 = scalar_lea.vmem %s1, 12
      %v3860 = vld [vmem:[%s3859] sm:$0x3]
      %v3861 = vunpack.c.l.b16 %v3519
      %v3862 = vunpack.c.l.b16 %v3528
      %v3863 = vunpack.c.l.b16 %v3541
      %v3864 = vunpack.c.l.b16 %v3550
      %v3865 = vunpack.c.l.b16 %v3563
      %v3866 = vunpack.c.l.b16 %v3572
      %v3867 = vunpack.c.l.b16 %v3585
      %v3868 = vunpack.c.l.b16 %v3594
      %v3869 = vunpack.c.l.b16 %v3607
      %v3870 = vunpack.c.l.b16 %v3616
      %v3871 = vunpack.c.l.b16 %v3629
      %v3872 = vunpack.c.l.b16 %v3638
      %v3873 = vunpack.c.l.b16 %v3651
      %v3874 = vunpack.c.l.b16 %v3660
      %v3875 = vunpack.c.l.b16 %v3673
      %v3876 = vunpack.c.l.b16 %v3682
      %v3877 = vunpack.c.l.b16 %v3695
      %v3878 = vunpack.c.l.b16 %v3704
      %v3879 = vunpack.c.l.b16 %v3717
      %v3880 = vunpack.c.l.b16 %v3726
      %v3881 = vunpack.c.l.b16 %v3739
      %v3882 = vunpack.c.l.b16 %v3748
      %v3883 = vunpack.c.l.b16 %v3761
      %v3884 = vunpack.c.l.b16 %v3770
      %v3885 = vunpack.c.l.b16 %v3783
      %v3886 = vunpack.c.l.b16 %v3792
      %v3887 = vunpack.c.l.b16 %v3805
      %v3888 = vunpack.c.l.b16 %v3814
      %v3889 = vunpack.c.l.b16 %v3827
      %v3890 = vunpack.c.l.b16 %v3836
      %v3891 = vunpack.c.l.b16 %v3849
      %v3892 = vunpack.c.l.b16 %v3858
      %v3893 = vpack.c.b16 %v3862, %v3861
      %v3894 = vpack.c.b16 %v3864, %v3863
      %v3895 = vpack.c.b16 %v3866, %v3865
      %v3896 = vpack.c.b16 %v3868, %v3867
      %v3897 = vpack.c.b16 %v3870, %v3869
      %v3898 = vpack.c.b16 %v3872, %v3871
      %v3899 = vpack.c.b16 %v3874, %v3873
      %v3900 = vpack.c.b16 %v3876, %v3875
      %v3901 = vpack.c.b16 %v3878, %v3877
      %v3902 = vpack.c.b16 %v3880, %v3879
      %v3903 = vpack.c.b16 %v3882, %v3881
      %v3904 = vpack.c.b16 %v3884, %v3883
      %v3905 = vpack.c.b16 %v3886, %v3885
      %v3906 = vpack.c.b16 %v3888, %v3887
      %v3907 = vpack.c.b16 %v3890, %v3889
      %v3908 = vpack.c.b16 %v3892, %v3891
      %v3910 = vsel %vm934, %v3893, 0
      %v3913 = vsel %vm934, %v3894, 0
      %v3916 = vsel %vm934, %v3895, 0
      %v3919 = vsel %vm934, %v3896, 0
      %v3922 = vsel %vm934, %v3897, 0
      %v3925 = vsel %vm934, %v3898, 0
      %v3928 = vsel %vm934, %v3899, 0
      %v3931 = vsel %vm934, %v3900, 0
      %v3934 = vsel %vm934, %v3901, 0
      %v3937 = vsel %vm934, %v3902, 0
      %v3940 = vsel %vm934, %v3903, 0
      %v3943 = vsel %vm934, %v3904, 0
      %v3946 = vsel %vm934, %v3905, 0
      %v3949 = vsel %vm934, %v3906, 0
      %v3952 = vsel %vm934, %v3907, 0
      %v3955 = vsel %vm934, %v3908, 0
      %v3958 = vsel %vm983, %v3860, 0
      %3960 = vmatpush.bf16.msra.mxu0 0
      %3961 = vmatpush.bf16.msra.mxu0 0
      %3962 = vmatpush.bf16.msra.mxu0 0
      %3963 = vmatpush.bf16.msra.mxu0 0
      %3964 = vmatpush.bf16.msra.mxu0 0
      %3965 = vmatpush.bf16.msra.mxu0 0
      %3966 = vmatpush.bf16.msra.mxu0 0
      %3967 = vmatpush.bf16.msra.mxu0 %v3958
      %3968 = vmatmul.bf16.gmra.mxu0 %v3910
      %v3969 = vpop.f32.mrf.mxu0
      %v3970 = vadd.f32 0.0, %v3969
      %v3971 = vpop.f32.mrf.mxu0
      %v3972 = vadd.f32 0.0, %v3971
      %3973 = vmatmul.bf16.gmra.mxu0 %v3913
      %v3974 = vpop.f32.mrf.mxu0
      %v3975 = vadd.f32 0.0, %v3974
      %v3976 = vpop.f32.mrf.mxu0
      %v3977 = vadd.f32 0.0, %v3976
      %3978 = vmatmul.bf16.gmra.mxu0 %v3916
      %v3979 = vpop.f32.mrf.mxu0
      %v3980 = vadd.f32 0.0, %v3979
      %v3981 = vpop.f32.mrf.mxu0
      %v3982 = vadd.f32 0.0, %v3981
      %3983 = vmatmul.bf16.gmra.mxu0 %v3919
      %v3984 = vpop.f32.mrf.mxu0
      %v3985 = vadd.f32 0.0, %v3984
      %v3986 = vpop.f32.mrf.mxu0
      %v3987 = vadd.f32 0.0, %v3986
      %3988 = vmatmul.bf16.gmra.mxu0 %v3922
      %v3989 = vpop.f32.mrf.mxu0
      %v3990 = vadd.f32 0.0, %v3989
      %v3991 = vpop.f32.mrf.mxu0
      %v3992 = vadd.f32 0.0, %v3991
      %3993 = vmatmul.bf16.gmra.mxu0 %v3925
      %v3994 = vpop.f32.mrf.mxu0
      %v3995 = vadd.f32 0.0, %v3994
      %v3996 = vpop.f32.mrf.mxu0
      %v3997 = vadd.f32 0.0, %v3996
      %3998 = vmatmul.bf16.gmra.mxu0 %v3928
      %v3999 = vpop.f32.mrf.mxu0
      %v4000 = vadd.f32 0.0, %v3999
      %v4001 = vpop.f32.mrf.mxu0
      %v4002 = vadd.f32 0.0, %v4001
      %4003 = vmatmul.bf16.gmra.mxu0 %v3931
      %v4004 = vpop.f32.mrf.mxu0
      %v4005 = vadd.f32 0.0, %v4004
      %v4006 = vpop.f32.mrf.mxu0
      %v4007 = vadd.f32 0.0, %v4006
      %4008 = vmatmul.bf16.gmra.mxu0 %v3934
      %v4009 = vpop.f32.mrf.mxu0
      %v4010 = vadd.f32 0.0, %v4009
      %v4011 = vpop.f32.mrf.mxu0
      %v4012 = vadd.f32 0.0, %v4011
      %4013 = vmatmul.bf16.gmra.mxu0 %v3937
      %v4014 = vpop.f32.mrf.mxu0
      %v4015 = vadd.f32 0.0, %v4014
      %v4016 = vpop.f32.mrf.mxu0
      %v4017 = vadd.f32 0.0, %v4016
      %4018 = vmatmul.bf16.gmra.mxu0 %v3940
      %v4019 = vpop.f32.mrf.mxu0
      %v4020 = vadd.f32 0.0, %v4019
      %v4021 = vpop.f32.mrf.mxu0
      %v4022 = vadd.f32 0.0, %v4021
      %4023 = vmatmul.bf16.gmra.mxu0 %v3943
      %v4024 = vpop.f32.mrf.mxu0
      %v4025 = vadd.f32 0.0, %v4024
      %v4026 = vpop.f32.mrf.mxu0
      %v4027 = vadd.f32 0.0, %v4026
      %4028 = vmatmul.bf16.gmra.mxu0 %v3946
      %v4029 = vpop.f32.mrf.mxu0
      %v4030 = vadd.f32 0.0, %v4029
      %v4031 = vpop.f32.mrf.mxu0
      %v4032 = vadd.f32 0.0, %v4031
      %4033 = vmatmul.bf16.gmra.mxu0 %v3949
      %v4034 = vpop.f32.mrf.mxu0
      %v4035 = vadd.f32 0.0, %v4034
      %v4036 = vpop.f32.mrf.mxu0
      %v4037 = vadd.f32 0.0, %v4036
      %4038 = vmatmul.bf16.gmra.mxu0 %v3952
      %v4039 = vpop.f32.mrf.mxu0
      %v4040 = vadd.f32 0.0, %v4039
      %v4041 = vpop.f32.mrf.mxu0
      %v4042 = vadd.f32 0.0, %v4041
      %4043 = vmatmul.bf16.gmra.mxu0 %v3955
      %v4044 = vpop.f32.mrf.mxu0
      %v4045 = vadd.f32 0.0, %v4044
      %v4046 = vpop.f32.mrf.mxu0
      %v4047 = vadd.f32 0.0, %v4046
      %4048 = vdwg.mxu0
      %v4049 = vadd.f32 %v3423, %v3970
      %v4050 = vadd.f32 %v3424, %v3972
      %v4051 = vadd.f32 %v3425, %v3975
      %v4052 = vadd.f32 %v3426, %v3977
      %v4053 = vadd.f32 %v3427, %v3980
      %v4054 = vadd.f32 %v3428, %v3982
      %v4055 = vadd.f32 %v3429, %v3985
      %v4056 = vadd.f32 %v3430, %v3987
      %v4057 = vadd.f32 %v3431, %v3990
      %v4058 = vadd.f32 %v3432, %v3992
      %v4059 = vadd.f32 %v3433, %v3995
      %v4060 = vadd.f32 %v3434, %v3997
      %v4061 = vadd.f32 %v3435, %v4000
      %v4062 = vadd.f32 %v3436, %v4002
      %v4063 = vadd.f32 %v3437, %v4005
      %v4064 = vadd.f32 %v3438, %v4007
      %v4065 = vadd.f32 %v3439, %v4010
      %v4066 = vadd.f32 %v3440, %v4012
      %v4067 = vadd.f32 %v3441, %v4015
      %v4068 = vadd.f32 %v3442, %v4017
      %v4069 = vadd.f32 %v3443, %v4020
      %v4070 = vadd.f32 %v3444, %v4022
      %v4071 = vadd.f32 %v3445, %v4025
      %v4072 = vadd.f32 %v3446, %v4027
      %v4073 = vadd.f32 %v3447, %v4030
      %v4074 = vadd.f32 %v3448, %v4032
      %v4075 = vadd.f32 %v3449, %v4035
      %v4076 = vadd.f32 %v3450, %v4037
      %v4077 = vadd.f32 %v3451, %v4040
      %v4078 = vadd.f32 %v3452, %v4042
      %v4079 = vadd.f32 %v3453, %v4045
      %v4080 = vadd.f32 %v3454, %v4047
      %s4081 = scalar_lea.vmem %s1, 14
      %v4082 = vld [vmem:[%s4081] sm:$0x3]
      %v4115 = vunpack.c.l.b16 %v3460
      %v4116 = vunpack.c.l.b16 %v3461
      %v4117 = vunpack.c.l.b16 %v3463
      %v4118 = vunpack.c.l.b16 %v3464
      %v4119 = vunpack.c.l.b16 %v3466
      %v4120 = vunpack.c.l.b16 %v3467
      %v4121 = vunpack.c.l.b16 %v3469
      %v4122 = vunpack.c.l.b16 %v3470
      %v4123 = vunpack.c.l.b16 %v3472
      %v4124 = vunpack.c.l.b16 %v3473
      %v4125 = vunpack.c.l.b16 %v3475
      %v4126 = vunpack.c.l.b16 %v3476
      %v4127 = vunpack.c.l.b16 %v3478
      %v4128 = vunpack.c.l.b16 %v3479
      %v4129 = vunpack.c.l.b16 %v3481
      %v4130 = vunpack.c.l.b16 %v3482
      %v4131 = vunpack.c.l.b16 %v3484
      %v4132 = vunpack.c.l.b16 %v3485
      %v4133 = vunpack.c.l.b16 %v3487
      %v4134 = vunpack.c.l.b16 %v3488
      %v4135 = vunpack.c.l.b16 %v3490
      %v4136 = vunpack.c.l.b16 %v3491
      %v4137 = vunpack.c.l.b16 %v3493
      %v4138 = vunpack.c.l.b16 %v3494
      %v4139 = vunpack.c.l.b16 %v3496
      %v4140 = vunpack.c.l.b16 %v3497
      %v4141 = vunpack.c.l.b16 %v3499
      %v4142 = vunpack.c.l.b16 %v3500
      %v4143 = vunpack.c.l.b16 %v3502
      %v4144 = vunpack.c.l.b16 %v3503
      %v4145 = vunpack.c.l.b16 %v3505
      %v4146 = vunpack.c.l.b16 %v3506
      %v4147 = vpack.c.b16 %v4116, %v4115
      %v4148 = vpack.c.b16 %v4118, %v4117
      %v4149 = vpack.c.b16 %v4120, %v4119
      %v4150 = vpack.c.b16 %v4122, %v4121
      %v4151 = vpack.c.b16 %v4124, %v4123
      %v4152 = vpack.c.b16 %v4126, %v4125
      %v4153 = vpack.c.b16 %v4128, %v4127
      %v4154 = vpack.c.b16 %v4130, %v4129
      %v4155 = vpack.c.b16 %v4132, %v4131
      %v4156 = vpack.c.b16 %v4134, %v4133
      %v4157 = vpack.c.b16 %v4136, %v4135
      %v4158 = vpack.c.b16 %v4138, %v4137
      %v4159 = vpack.c.b16 %v4140, %v4139
      %v4160 = vpack.c.b16 %v4142, %v4141
      %v4161 = vpack.c.b16 %v4144, %v4143
      %v4162 = vpack.c.b16 %v4146, %v4145
      %v4164 = vsel %vm934, %v4147, 0
      %v4167 = vsel %vm934, %v4148, 0
      %v4170 = vsel %vm934, %v4149, 0
      %v4173 = vsel %vm934, %v4150, 0
      %v4176 = vsel %vm934, %v4151, 0
      %v4179 = vsel %vm934, %v4152, 0
      %v4182 = vsel %vm934, %v4153, 0
      %v4185 = vsel %vm934, %v4154, 0
      %v4188 = vsel %vm934, %v4155, 0
      %v4191 = vsel %vm934, %v4156, 0
      %v4194 = vsel %vm934, %v4157, 0
      %v4197 = vsel %vm934, %v4158, 0
      %v4200 = vsel %vm934, %v4159, 0
      %v4203 = vsel %vm934, %v4160, 0
      %v4206 = vsel %vm934, %v4161, 0
      %v4209 = vsel %vm934, %v4162, 0
      %v4212 = vsel %vm983, %v4082, 0
      %4214 = vmatpush.bf16.msra.mxu0 0
      %4215 = vmatpush.bf16.msra.mxu0 0
      %4216 = vmatpush.bf16.msra.mxu0 0
      %4217 = vmatpush.bf16.msra.mxu0 0
      %4218 = vmatpush.bf16.msra.mxu0 0
      %4219 = vmatpush.bf16.msra.mxu0 0
      %4220 = vmatpush.bf16.msra.mxu0 0
      %4221 = vmatpush.bf16.msra.mxu0 %v4212
      %4222 = vmatmul.bf16.gmra.mxu0 %v4164
      %v4223 = vpop.f32.mrf.mxu0
      %v4224 = vadd.f32 0.0, %v4223
      %v4225 = vpop.f32.mrf.mxu0
      %v4226 = vadd.f32 0.0, %v4225
      %4227 = vmatmul.bf16.gmra.mxu0 %v4167
      %v4228 = vpop.f32.mrf.mxu0
      %v4229 = vadd.f32 0.0, %v4228
      %v4230 = vpop.f32.mrf.mxu0
      %v4231 = vadd.f32 0.0, %v4230
      %4232 = vmatmul.bf16.gmra.mxu0 %v4170
      %v4233 = vpop.f32.mrf.mxu0
      %v4234 = vadd.f32 0.0, %v4233
      %v4235 = vpop.f32.mrf.mxu0
      %v4236 = vadd.f32 0.0, %v4235
      %4237 = vmatmul.bf16.gmra.mxu0 %v4173
      %v4238 = vpop.f32.mrf.mxu0
      %v4239 = vadd.f32 0.0, %v4238
      %v4240 = vpop.f32.mrf.mxu0
      %v4241 = vadd.f32 0.0, %v4240
      %4242 = vmatmul.bf16.gmra.mxu0 %v4176
      %v4243 = vpop.f32.mrf.mxu0
      %v4244 = vadd.f32 0.0, %v4243
      %v4245 = vpop.f32.mrf.mxu0
      %v4246 = vadd.f32 0.0, %v4245
      %4247 = vmatmul.bf16.gmra.mxu0 %v4179
      %v4248 = vpop.f32.mrf.mxu0
      %v4249 = vadd.f32 0.0, %v4248
      %v4250 = vpop.f32.mrf.mxu0
      %v4251 = vadd.f32 0.0, %v4250
      %4252 = vmatmul.bf16.gmra.mxu0 %v4182
      %v4253 = vpop.f32.mrf.mxu0
      %v4254 = vadd.f32 0.0, %v4253
      %v4255 = vpop.f32.mrf.mxu0
      %v4256 = vadd.f32 0.0, %v4255
      %4257 = vmatmul.bf16.gmra.mxu0 %v4185
      %v4258 = vpop.f32.mrf.mxu0
      %v4259 = vadd.f32 0.0, %v4258
      %v4260 = vpop.f32.mrf.mxu0
      %v4261 = vadd.f32 0.0, %v4260
      %4262 = vmatmul.bf16.gmra.mxu0 %v4188
      %v4263 = vpop.f32.mrf.mxu0
      %v4264 = vadd.f32 0.0, %v4263
      %v4265 = vpop.f32.mrf.mxu0
      %v4266 = vadd.f32 0.0, %v4265
      %4267 = vmatmul.bf16.gmra.mxu0 %v4191
      %v4268 = vpop.f32.mrf.mxu0
      %v4269 = vadd.f32 0.0, %v4268
      %v4270 = vpop.f32.mrf.mxu0
      %v4271 = vadd.f32 0.0, %v4270
      %4272 = vmatmul.bf16.gmra.mxu0 %v4194
      %v4273 = vpop.f32.mrf.mxu0
      %v4274 = vadd.f32 0.0, %v4273
      %v4275 = vpop.f32.mrf.mxu0
      %v4276 = vadd.f32 0.0, %v4275
      %4277 = vmatmul.bf16.gmra.mxu0 %v4197
      %v4278 = vpop.f32.mrf.mxu0
      %v4279 = vadd.f32 0.0, %v4278
      %v4280 = vpop.f32.mrf.mxu0
      %v4281 = vadd.f32 0.0, %v4280
      %4282 = vmatmul.bf16.gmra.mxu0 %v4200
      %v4283 = vpop.f32.mrf.mxu0
      %v4284 = vadd.f32 0.0, %v4283
      %v4285 = vpop.f32.mrf.mxu0
      %v4286 = vadd.f32 0.0, %v4285
      %4287 = vmatmul.bf16.gmra.mxu0 %v4203
      %v4288 = vpop.f32.mrf.mxu0
      %v4289 = vadd.f32 0.0, %v4288
      %v4290 = vpop.f32.mrf.mxu0
      %v4291 = vadd.f32 0.0, %v4290
      %4292 = vmatmul.bf16.gmra.mxu0 %v4206
      %v4293 = vpop.f32.mrf.mxu0
      %v4294 = vadd.f32 0.0, %v4293
      %v4295 = vpop.f32.mrf.mxu0
      %v4296 = vadd.f32 0.0, %v4295
      %4297 = vmatmul.bf16.gmra.mxu0 %v4209
      %v4298 = vpop.f32.mrf.mxu0
      %v4299 = vadd.f32 0.0, %v4298
      %v4300 = vpop.f32.mrf.mxu0
      %v4301 = vadd.f32 0.0, %v4300
      %4302 = vdwg.mxu0
      %v4303 = vadd.f32 %v4049, %v4224
      %v4304 = vadd.f32 %v4050, %v4226
      %v4305 = vadd.f32 %v4051, %v4229
      %v4306 = vadd.f32 %v4052, %v4231
      %v4307 = vadd.f32 %v4053, %v4234
      %v4308 = vadd.f32 %v4054, %v4236
      %v4309 = vadd.f32 %v4055, %v4239
      %v4310 = vadd.f32 %v4056, %v4241
      %v4311 = vadd.f32 %v4057, %v4244
      %v4312 = vadd.f32 %v4058, %v4246
      %v4313 = vadd.f32 %v4059, %v4249
      %v4314 = vadd.f32 %v4060, %v4251
      %v4315 = vadd.f32 %v4061, %v4254
      %v4316 = vadd.f32 %v4062, %v4256
      %v4317 = vadd.f32 %v4063, %v4259
      %v4318 = vadd.f32 %v4064, %v4261
      %v4319 = vadd.f32 %v4065, %v4264
      %v4320 = vadd.f32 %v4066, %v4266
      %v4321 = vadd.f32 %v4067, %v4269
      %v4322 = vadd.f32 %v4068, %v4271
      %v4323 = vadd.f32 %v4069, %v4274
      %v4324 = vadd.f32 %v4070, %v4276
      %v4325 = vadd.f32 %v4071, %v4279
      %v4326 = vadd.f32 %v4072, %v4281
      %v4327 = vadd.f32 %v4073, %v4284
      %v4328 = vadd.f32 %v4074, %v4286
      %v4329 = vadd.f32 %v4075, %v4289
      %v4330 = vadd.f32 %v4076, %v4291
      %v4331 = vadd.f32 %v4077, %v4294
      %v4332 = vadd.f32 %v4078, %v4296
      %v4333 = vadd.f32 %v4079, %v4299
      %v4334 = vadd.f32 %v4080, %v4301
      %v4335 = vld [vmem:[%s3458 + $0x8] sm:$0xf]
      %v4336 = vld [vmem:[%s3458 + $0xc] sm:$0xf]
      %v4337 = vld [vmem:[%s3458 + $0x10] sm:$0x1]
      %v4338 = vld [vmem:[%s3458 + $0x20] sm:$0xf]
      %v4339 = vld [vmem:[%s3458 + $0x24] sm:$0xf]
      %v4340 = vld [vmem:[%s3458 + $0x28] sm:$0x1]
      %v4341 = vld [vmem:[%s3458 + $0x38] sm:$0xf]
      %v4342 = vld [vmem:[%s3458 + $0x3c] sm:$0xf]
      %v4343 = vld [vmem:[%s3458 + $0x40] sm:$0x1]
      %v4344 = vld [vmem:[%s3458 + $0x50] sm:$0xf]
      %v4345 = vld [vmem:[%s3458 + $0x54] sm:$0xf]
      %v4346 = vld [vmem:[%s3458 + $0x58] sm:$0x1]
      %v4347 = vld [vmem:[%s3458 + $0x68] sm:$0xf]
      %v4348 = vld [vmem:[%s3458 + $0x6c] sm:$0xf]
      %v4349 = vld [vmem:[%s3458 + $0x70] sm:$0x1]
      %v4350 = vld [vmem:[%s3458 + $0x80] sm:$0xf]
      %v4351 = vld [vmem:[%s3458 + $0x84] sm:$0xf]
      %v4352 = vld [vmem:[%s3458 + $0x88] sm:$0x1]
      %v4353 = vld [vmem:[%s3458 + $0x98] sm:$0xf]
      %v4354 = vld [vmem:[%s3458 + $0x9c] sm:$0xf]
      %v4355 = vld [vmem:[%s3458 + $0xa0] sm:$0x1]
      %v4356 = vld [vmem:[%s3458 + $0xb0] sm:$0xf]
      %v4357 = vld [vmem:[%s3458 + $0xb4] sm:$0xf]
      %v4358 = vld [vmem:[%s3458 + $0xb8] sm:$0x1]
      %v4359 = vld [vmem:[%s3458 + $0xc8] sm:$0xf]
      %v4360 = vld [vmem:[%s3458 + $0xcc] sm:$0xf]
      %v4361 = vld [vmem:[%s3458 + $0xd0] sm:$0x1]
      %v4362 = vld [vmem:[%s3458 + $0xe0] sm:$0xf]
      %v4363 = vld [vmem:[%s3458 + $0xe4] sm:$0xf]
      %v4364 = vld [vmem:[%s3458 + $0xe8] sm:$0x1]
      %v4365 = vld [vmem:[%s3458 + $0xf8] sm:$0xf]
      %v4366 = vld [vmem:[%s3458 + $0xfc] sm:$0xf]
      %v4367 = vld [vmem:[%s3458 + $0x100] sm:$0x1]
      %v4368 = vld [vmem:[%s3458 + $0x110] sm:$0xf]
      %v4369 = vld [vmem:[%s3458 + $0x114] sm:$0xf]
      %v4370 = vld [vmem:[%s3458 + $0x118] sm:$0x1]
      %v4371 = vld [vmem:[%s3458 + $0x128] sm:$0xf]
      %v4372 = vld [vmem:[%s3458 + $0x12c] sm:$0xf]
      %v4373 = vld [vmem:[%s3458 + $0x130] sm:$0x1]
      %v4374 = vld [vmem:[%s3458 + $0x140] sm:$0xf]
      %v4375 = vld [vmem:[%s3458 + $0x144] sm:$0xf]
      %v4376 = vld [vmem:[%s3458 + $0x148] sm:$0x1]
      %v4377 = vld [vmem:[%s3458 + $0x158] sm:$0xf]
      %v4378 = vld [vmem:[%s3458 + $0x15c] sm:$0xf]
      %v4379 = vld [vmem:[%s3458 + $0x160] sm:$0x1]
      %v4380 = vld [vmem:[%s3458 + $0x170] sm:$0xf]
      %v4381 = vld [vmem:[%s3458 + $0x174] sm:$0xf]
      %v4382 = vld [vmem:[%s3458 + $0x178] sm:$0x1]
      %v4384 = vshrl.u32 %v4335, 16
      %v4386 = vrot.slane %v4384, 4
      %v4387 = vshll.u32 %v4335, 16
      %v4389 = vrot.slane %v4387, 5
      %v4390 = vor.u32 %v4386, %v4389
      %v4391 = vrot.slane %v4390, 4
      %v4393 = vshll.u32 %v4336, 16
      %v4395 = vrot.slane %v4393, 5
      %v4396 = vsel %vm1314, %v4391, %v4395
      %v4397 = vshrl.u32 %v4336, 16
      %v4399 = vrot.slane %v4397, 4
      %v4400 = vor.u32 %v4399, %v4395
      %v4401 = vrot.slane %v4400, 4
      %v4403 = vshll.u32 %v4337, 16
      %v4405 = vrot.slane %v4403, 5
      %v4406 = vsel %vm1314, %v4401, %v4405
      %v4408 = vshrl.u32 %v4338, 16
      %v4410 = vrot.slane %v4408, 4
      %v4411 = vshll.u32 %v4338, 16
      %v4413 = vrot.slane %v4411, 5
      %v4414 = vor.u32 %v4410, %v4413
      %v4415 = vrot.slane %v4414, 4
      %v4417 = vshll.u32 %v4339, 16
      %v4419 = vrot.slane %v4417, 5
      %v4420 = vsel %vm1314, %v4415, %v4419
      %v4421 = vshrl.u32 %v4339, 16
      %v4423 = vrot.slane %v4421, 4
      %v4424 = vor.u32 %v4423, %v4419
      %v4425 = vrot.slane %v4424, 4
      %v4427 = vshll.u32 %v4340, 16
      %v4429 = vrot.slane %v4427, 5
      %v4430 = vsel %vm1314, %v4425, %v4429
      %v4432 = vshrl.u32 %v4341, 16
      %v4434 = vrot.slane %v4432, 4
      %v4435 = vshll.u32 %v4341, 16
      %v4437 = vrot.slane %v4435, 5
      %v4438 = vor.u32 %v4434, %v4437
      %v4439 = vrot.slane %v4438, 4
      %v4441 = vshll.u32 %v4342, 16
      %v4443 = vrot.slane %v4441, 5
      %v4444 = vsel %vm1314, %v4439, %v4443
      %v4445 = vshrl.u32 %v4342, 16
      %v4447 = vrot.slane %v4445, 4
      %v4448 = vor.u32 %v4447, %v4443
      %v4449 = vrot.slane %v4448, 4
      %v4451 = vshll.u32 %v4343, 16
      %v4453 = vrot.slane %v4451, 5
      %v4454 = vsel %vm1314, %v4449, %v4453
      %v4456 = vshrl.u32 %v4344, 16
      %v4458 = vrot.slane %v4456, 4
      %v4459 = vshll.u32 %v4344, 16
      %v4461 = vrot.slane %v4459, 5
      %v4462 = vor.u32 %v4458, %v4461
      %v4463 = vrot.slane %v4462, 4
      %v4465 = vshll.u32 %v4345, 16
      %v4467 = vrot.slane %v4465, 5
      %v4468 = vsel %vm1314, %v4463, %v4467
      %v4469 = vshrl.u32 %v4345, 16
      %v4471 = vrot.slane %v4469, 4
      %v4472 = vor.u32 %v4471, %v4467
      %v4473 = vrot.slane %v4472, 4
      %v4475 = vshll.u32 %v4346, 16
      %v4477 = vrot.slane %v4475, 5
      %v4478 = vsel %vm1314, %v4473, %v4477
      %v4480 = vshrl.u32 %v4347, 16
      %v4482 = vrot.slane %v4480, 4
      %v4483 = vshll.u32 %v4347, 16
      %v4485 = vrot.slane %v4483, 5
      %v4486 = vor.u32 %v4482, %v4485
      %v4487 = vrot.slane %v4486, 4
      %v4489 = vshll.u32 %v4348, 16
      %v4491 = vrot.slane %v4489, 5
      %v4492 = vsel %vm1314, %v4487, %v4491
      %v4493 = vshrl.u32 %v4348, 16
      %v4495 = vrot.slane %v4493, 4
      %v4496 = vor.u32 %v4495, %v4491
      %v4497 = vrot.slane %v4496, 4
      %v4499 = vshll.u32 %v4349, 16
      %v4501 = vrot.slane %v4499, 5
      %v4502 = vsel %vm1314, %v4497, %v4501
      %v4504 = vshrl.u32 %v4350, 16
      %v4506 = vrot.slane %v4504, 4
      %v4507 = vshll.u32 %v4350, 16
      %v4509 = vrot.slane %v4507, 5
      %v4510 = vor.u32 %v4506, %v4509
      %v4511 = vrot.slane %v4510, 4
      %v4513 = vshll.u32 %v4351, 16
      %v4515 = vrot.slane %v4513, 5
      %v4516 = vsel %vm1314, %v4511, %v4515
      %v4517 = vshrl.u32 %v4351, 16
      %v4519 = vrot.slane %v4517, 4
      %v4520 = vor.u32 %v4519, %v4515
      %v4521 = vrot.slane %v4520, 4
      %v4523 = vshll.u32 %v4352, 16
      %v4525 = vrot.slane %v4523, 5
      %v4526 = vsel %vm1314, %v4521, %v4525
      %v4528 = vshrl.u32 %v4353, 16
      %v4530 = vrot.slane %v4528, 4
      %v4531 = vshll.u32 %v4353, 16
      %v4533 = vrot.slane %v4531, 5
      %v4534 = vor.u32 %v4530, %v4533
      %v4535 = vrot.slane %v4534, 4
      %v4537 = vshll.u32 %v4354, 16
      %v4539 = vrot.slane %v4537, 5
      %v4540 = vsel %vm1314, %v4535, %v4539
      %v4541 = vshrl.u32 %v4354, 16
      %v4543 = vrot.slane %v4541, 4
      %v4544 = vor.u32 %v4543, %v4539
      %v4545 = vrot.slane %v4544, 4
      %v4547 = vshll.u32 %v4355, 16
      %v4549 = vrot.slane %v4547, 5
      %v4550 = vsel %vm1314, %v4545, %v4549
      %v4552 = vshrl.u32 %v4356, 16
      %v4554 = vrot.slane %v4552, 4
      %v4555 = vshll.u32 %v4356, 16
      %v4557 = vrot.slane %v4555, 5
      %v4558 = vor.u32 %v4554, %v4557
      %v4559 = vrot.slane %v4558, 4
      %v4561 = vshll.u32 %v4357, 16
      %v4563 = vrot.slane %v4561, 5
      %v4564 = vsel %vm1314, %v4559, %v4563
      %v4565 = vshrl.u32 %v4357, 16
      %v4567 = vrot.slane %v4565, 4
      %v4568 = vor.u32 %v4567, %v4563
      %v4569 = vrot.slane %v4568, 4
      %v4571 = vshll.u32 %v4358, 16
      %v4573 = vrot.slane %v4571, 5
      %v4574 = vsel %vm1314, %v4569, %v4573
      %v4576 = vshrl.u32 %v4359, 16
      %v4578 = vrot.slane %v4576, 4
      %v4579 = vshll.u32 %v4359, 16
      %v4581 = vrot.slane %v4579, 5
      %v4582 = vor.u32 %v4578, %v4581
      %v4583 = vrot.slane %v4582, 4
      %v4585 = vshll.u32 %v4360, 16
      %v4587 = vrot.slane %v4585, 5
      %v4588 = vsel %vm1314, %v4583, %v4587
      %v4589 = vshrl.u32 %v4360, 16
      %v4591 = vrot.slane %v4589, 4
      %v4592 = vor.u32 %v4591, %v4587
      %v4593 = vrot.slane %v4592, 4
      %v4595 = vshll.u32 %v4361, 16
      %v4597 = vrot.slane %v4595, 5
      %v4598 = vsel %vm1314, %v4593, %v4597
      %v4600 = vshrl.u32 %v4362, 16
      %v4602 = vrot.slane %v4600, 4
      %v4603 = vshll.u32 %v4362, 16
      %v4605 = vrot.slane %v4603, 5
      %v4606 = vor.u32 %v4602, %v4605
      %v4607 = vrot.slane %v4606, 4
      %v4609 = vshll.u32 %v4363, 16
      %v4611 = vrot.slane %v4609, 5
      %v4612 = vsel %vm1314, %v4607, %v4611
      %v4613 = vshrl.u32 %v4363, 16
      %v4615 = vrot.slane %v4613, 4
      %v4616 = vor.u32 %v4615, %v4611
      %v4617 = vrot.slane %v4616, 4
      %v4619 = vshll.u32 %v4364, 16
      %v4621 = vrot.slane %v4619, 5
      %v4622 = vsel %vm1314, %v4617, %v4621
      %v4624 = vshrl.u32 %v4365, 16
      %v4626 = vrot.slane %v4624, 4
      %v4627 = vshll.u32 %v4365, 16
      %v4629 = vrot.slane %v4627, 5
      %v4630 = vor.u32 %v4626, %v4629
      %v4631 = vrot.slane %v4630, 4
      %v4633 = vshll.u32 %v4366, 16
      %v4635 = vrot.slane %v4633, 5
      %v4636 = vsel %vm1314, %v4631, %v4635
      %v4637 = vshrl.u32 %v4366, 16
      %v4639 = vrot.slane %v4637, 4
      %v4640 = vor.u32 %v4639, %v4635
      %v4641 = vrot.slane %v4640, 4
      %v4643 = vshll.u32 %v4367, 16
      %v4645 = vrot.slane %v4643, 5
      %v4646 = vsel %vm1314, %v4641, %v4645
      %v4648 = vshrl.u32 %v4368, 16
      %v4650 = vrot.slane %v4648, 4
      %v4651 = vshll.u32 %v4368, 16
      %v4653 = vrot.slane %v4651, 5
      %v4654 = vor.u32 %v4650, %v4653
      %v4655 = vrot.slane %v4654, 4
      %v4657 = vshll.u32 %v4369, 16
      %v4659 = vrot.slane %v4657, 5
      %v4660 = vsel %vm1314, %v4655, %v4659
      %v4661 = vshrl.u32 %v4369, 16
      %v4663 = vrot.slane %v4661, 4
      %v4664 = vor.u32 %v4663, %v4659
      %v4665 = vrot.slane %v4664, 4
      %v4667 = vshll.u32 %v4370, 16
      %v4669 = vrot.slane %v4667, 5
      %v4670 = vsel %vm1314, %v4665, %v4669
      %v4672 = vshrl.u32 %v4371, 16
      %v4674 = vrot.slane %v4672, 4
      %v4675 = vshll.u32 %v4371, 16
      %v4677 = vrot.slane %v4675, 5
      %v4678 = vor.u32 %v4674, %v4677
      %v4679 = vrot.slane %v4678, 4
      %v4681 = vshll.u32 %v4372, 16
      %v4683 = vrot.slane %v4681, 5
      %v4684 = vsel %vm1314, %v4679, %v4683
      %v4685 = vshrl.u32 %v4372, 16
      %v4687 = vrot.slane %v4685, 4
      %v4688 = vor.u32 %v4687, %v4683
      %v4689 = vrot.slane %v4688, 4
      %v4691 = vshll.u32 %v4373, 16
      %v4693 = vrot.slane %v4691, 5
      %v4694 = vsel %vm1314, %v4689, %v4693
      %v4696 = vshrl.u32 %v4374, 16
      %v4698 = vrot.slane %v4696, 4
      %v4699 = vshll.u32 %v4374, 16
      %v4701 = vrot.slane %v4699, 5
      %v4702 = vor.u32 %v4698, %v4701
      %v4703 = vrot.slane %v4702, 4
      %v4705 = vshll.u32 %v4375, 16
      %v4707 = vrot.slane %v4705, 5
      %v4708 = vsel %vm1314, %v4703, %v4707
      %v4709 = vshrl.u32 %v4375, 16
      %v4711 = vrot.slane %v4709, 4
      %v4712 = vor.u32 %v4711, %v4707
      %v4713 = vrot.slane %v4712, 4
      %v4715 = vshll.u32 %v4376, 16
      %v4717 = vrot.slane %v4715, 5
      %v4718 = vsel %vm1314, %v4713, %v4717
      %v4720 = vshrl.u32 %v4377, 16
      %v4722 = vrot.slane %v4720, 4
      %v4723 = vshll.u32 %v4377, 16
      %v4725 = vrot.slane %v4723, 5
      %v4726 = vor.u32 %v4722, %v4725
      %v4727 = vrot.slane %v4726, 4
      %v4729 = vshll.u32 %v4378, 16
      %v4731 = vrot.slane %v4729, 5
      %v4732 = vsel %vm1314, %v4727, %v4731
      %v4733 = vshrl.u32 %v4378, 16
      %v4735 = vrot.slane %v4733, 4
      %v4736 = vor.u32 %v4735, %v4731
      %v4737 = vrot.slane %v4736, 4
      %v4739 = vshll.u32 %v4379, 16
      %v4741 = vrot.slane %v4739, 5
      %v4742 = vsel %vm1314, %v4737, %v4741
      %v4744 = vshrl.u32 %v4380, 16
      %v4746 = vrot.slane %v4744, 4
      %v4747 = vshll.u32 %v4380, 16
      %v4749 = vrot.slane %v4747, 5
      %v4750 = vor.u32 %v4746, %v4749
      %v4751 = vrot.slane %v4750, 4
      %v4753 = vshll.u32 %v4381, 16
      %v4755 = vrot.slane %v4753, 5
      %v4756 = vsel %vm1314, %v4751, %v4755
      %v4757 = vshrl.u32 %v4381, 16
      %v4759 = vrot.slane %v4757, 4
      %v4760 = vor.u32 %v4759, %v4755
      %v4761 = vrot.slane %v4760, 4
      %v4763 = vshll.u32 %v4382, 16
      %v4765 = vrot.slane %v4763, 5
      %v4766 = vsel %vm1314, %v4761, %v4765
      %s4767 = scalar_lea.vmem %s1, 16
      %v4768 = vld [vmem:[%s4767] sm:$0x3]
      %v4769 = vunpack.c.l.b16 %v4396
      %v4770 = vunpack.c.l.b16 %v4406
      %v4771 = vunpack.c.l.b16 %v4420
      %v4772 = vunpack.c.l.b16 %v4430
      %v4773 = vunpack.c.l.b16 %v4444
      %v4774 = vunpack.c.l.b16 %v4454
      %v4775 = vunpack.c.l.b16 %v4468
      %v4776 = vunpack.c.l.b16 %v4478
      %v4777 = vunpack.c.l.b16 %v4492
      %v4778 = vunpack.c.l.b16 %v4502
      %v4779 = vunpack.c.l.b16 %v4516
      %v4780 = vunpack.c.l.b16 %v4526
      %v4781 = vunpack.c.l.b16 %v4540
      %v4782 = vunpack.c.l.b16 %v4550
      %v4783 = vunpack.c.l.b16 %v4564
      %v4784 = vunpack.c.l.b16 %v4574
      %v4785 = vunpack.c.l.b16 %v4588
      %v4786 = vunpack.c.l.b16 %v4598
      %v4787 = vunpack.c.l.b16 %v4612
      %v4788 = vunpack.c.l.b16 %v4622
      %v4789 = vunpack.c.l.b16 %v4636
      %v4790 = vunpack.c.l.b16 %v4646
      %v4791 = vunpack.c.l.b16 %v4660
      %v4792 = vunpack.c.l.b16 %v4670
      %v4793 = vunpack.c.l.b16 %v4684
      %v4794 = vunpack.c.l.b16 %v4694
      %v4795 = vunpack.c.l.b16 %v4708
      %v4796 = vunpack.c.l.b16 %v4718
      %v4797 = vunpack.c.l.b16 %v4732
      %v4798 = vunpack.c.l.b16 %v4742
      %v4799 = vunpack.c.l.b16 %v4756
      %v4800 = vunpack.c.l.b16 %v4766
      %v4801 = vpack.c.b16 %v4770, %v4769
      %v4802 = vpack.c.b16 %v4772, %v4771
      %v4803 = vpack.c.b16 %v4774, %v4773
      %v4804 = vpack.c.b16 %v4776, %v4775
      %v4805 = vpack.c.b16 %v4778, %v4777
      %v4806 = vpack.c.b16 %v4780, %v4779
      %v4807 = vpack.c.b16 %v4782, %v4781
      %v4808 = vpack.c.b16 %v4784, %v4783
      %v4809 = vpack.c.b16 %v4786, %v4785
      %v4810 = vpack.c.b16 %v4788, %v4787
      %v4811 = vpack.c.b16 %v4790, %v4789
      %v4812 = vpack.c.b16 %v4792, %v4791
      %v4813 = vpack.c.b16 %v4794, %v4793
      %v4814 = vpack.c.b16 %v4796, %v4795
      %v4815 = vpack.c.b16 %v4798, %v4797
      %v4816 = vpack.c.b16 %v4800, %v4799
      %v4818 = vsel %vm934, %v4801, 0
      %v4821 = vsel %vm934, %v4802, 0
      %v4824 = vsel %vm934, %v4803, 0
      %v4827 = vsel %vm934, %v4804, 0
      %v4830 = vsel %vm934, %v4805, 0
      %v4833 = vsel %vm934, %v4806, 0
      %v4836 = vsel %vm934, %v4807, 0
      %v4839 = vsel %vm934, %v4808, 0
      %v4842 = vsel %vm934, %v4809, 0
      %v4845 = vsel %vm934, %v4810, 0
      %v4848 = vsel %vm934, %v4811, 0
      %v4851 = vsel %vm934, %v4812, 0
      %v4854 = vsel %vm934, %v4813, 0
      %v4857 = vsel %vm934, %v4814, 0
      %v4860 = vsel %vm934, %v4815, 0
      %v4863 = vsel %vm934, %v4816, 0
      %v4866 = vsel %vm983, %v4768, 0
      %4868 = vmatpush.bf16.msra.mxu0 0
      %4869 = vmatpush.bf16.msra.mxu0 0
      %4870 = vmatpush.bf16.msra.mxu0 0
      %4871 = vmatpush.bf16.msra.mxu0 0
      %4872 = vmatpush.bf16.msra.mxu0 0
      %4873 = vmatpush.bf16.msra.mxu0 0
      %4874 = vmatpush.bf16.msra.mxu0 0
      %4875 = vmatpush.bf16.msra.mxu0 %v4866
      %4876 = vmatmul.bf16.gmra.mxu0 %v4818
      %v4877 = vpop.f32.mrf.mxu0
      %v4878 = vadd.f32 0.0, %v4877
      %v4879 = vpop.f32.mrf.mxu0
      %v4880 = vadd.f32 0.0, %v4879
      %4881 = vmatmul.bf16.gmra.mxu0 %v4821
      %v4882 = vpop.f32.mrf.mxu0
      %v4883 = vadd.f32 0.0, %v4882
      %v4884 = vpop.f32.mrf.mxu0
      %v4885 = vadd.f32 0.0, %v4884
      %4886 = vmatmul.bf16.gmra.mxu0 %v4824
      %v4887 = vpop.f32.mrf.mxu0
      %v4888 = vadd.f32 0.0, %v4887
      %v4889 = vpop.f32.mrf.mxu0
      %v4890 = vadd.f32 0.0, %v4889
      %4891 = vmatmul.bf16.gmra.mxu0 %v4827
      %v4892 = vpop.f32.mrf.mxu0
      %v4893 = vadd.f32 0.0, %v4892
      %v4894 = vpop.f32.mrf.mxu0
      %v4895 = vadd.f32 0.0, %v4894
      %4896 = vmatmul.bf16.gmra.mxu0 %v4830
      %v4897 = vpop.f32.mrf.mxu0
      %v4898 = vadd.f32 0.0, %v4897
      %v4899 = vpop.f32.mrf.mxu0
      %v4900 = vadd.f32 0.0, %v4899
      %4901 = vmatmul.bf16.gmra.mxu0 %v4833
      %v4902 = vpop.f32.mrf.mxu0
      %v4903 = vadd.f32 0.0, %v4902
      %v4904 = vpop.f32.mrf.mxu0
      %v4905 = vadd.f32 0.0, %v4904
      %4906 = vmatmul.bf16.gmra.mxu0 %v4836
      %v4907 = vpop.f32.mrf.mxu0
      %v4908 = vadd.f32 0.0, %v4907
      %v4909 = vpop.f32.mrf.mxu0
      %v4910 = vadd.f32 0.0, %v4909
      %4911 = vmatmul.bf16.gmra.mxu0 %v4839
      %v4912 = vpop.f32.mrf.mxu0
      %v4913 = vadd.f32 0.0, %v4912
      %v4914 = vpop.f32.mrf.mxu0
      %v4915 = vadd.f32 0.0, %v4914
      %4916 = vmatmul.bf16.gmra.mxu0 %v4842
      %v4917 = vpop.f32.mrf.mxu0
      %v4918 = vadd.f32 0.0, %v4917
      %v4919 = vpop.f32.mrf.mxu0
      %v4920 = vadd.f32 0.0, %v4919
      %4921 = vmatmul.bf16.gmra.mxu0 %v4845
      %v4922 = vpop.f32.mrf.mxu0
      %v4923 = vadd.f32 0.0, %v4922
      %v4924 = vpop.f32.mrf.mxu0
      %v4925 = vadd.f32 0.0, %v4924
      %4926 = vmatmul.bf16.gmra.mxu0 %v4848
      %v4927 = vpop.f32.mrf.mxu0
      %v4928 = vadd.f32 0.0, %v4927
      %v4929 = vpop.f32.mrf.mxu0
      %v4930 = vadd.f32 0.0, %v4929
      %4931 = vmatmul.bf16.gmra.mxu0 %v4851
      %v4932 = vpop.f32.mrf.mxu0
      %v4933 = vadd.f32 0.0, %v4932
      %v4934 = vpop.f32.mrf.mxu0
      %v4935 = vadd.f32 0.0, %v4934
      %4936 = vmatmul.bf16.gmra.mxu0 %v4854
      %v4937 = vpop.f32.mrf.mxu0
      %v4938 = vadd.f32 0.0, %v4937
      %v4939 = vpop.f32.mrf.mxu0
      %v4940 = vadd.f32 0.0, %v4939
      %4941 = vmatmul.bf16.gmra.mxu0 %v4857
      %v4942 = vpop.f32.mrf.mxu0
      %v4943 = vadd.f32 0.0, %v4942
      %v4944 = vpop.f32.mrf.mxu0
      %v4945 = vadd.f32 0.0, %v4944
      %4946 = vmatmul.bf16.gmra.mxu0 %v4860
      %v4947 = vpop.f32.mrf.mxu0
      %v4948 = vadd.f32 0.0, %v4947
      %v4949 = vpop.f32.mrf.mxu0
      %v4950 = vadd.f32 0.0, %v4949
      %4951 = vmatmul.bf16.gmra.mxu0 %v4863
      %v4952 = vpop.f32.mrf.mxu0
      %v4953 = vadd.f32 0.0, %v4952
      %v4954 = vpop.f32.mrf.mxu0
      %v4955 = vadd.f32 0.0, %v4954
      %4956 = vdwg.mxu0
      %v4957 = vadd.f32 %v4303, %v4878
      %v4958 = vadd.f32 %v4304, %v4880
      %v4959 = vadd.f32 %v4305, %v4883
      %v4960 = vadd.f32 %v4306, %v4885
      %v4961 = vadd.f32 %v4307, %v4888
      %v4962 = vadd.f32 %v4308, %v4890
      %v4963 = vadd.f32 %v4309, %v4893
      %v4964 = vadd.f32 %v4310, %v4895
      %v4965 = vadd.f32 %v4311, %v4898
      %v4966 = vadd.f32 %v4312, %v4900
      %v4967 = vadd.f32 %v4313, %v4903
      %v4968 = vadd.f32 %v4314, %v4905
      %v4969 = vadd.f32 %v4315, %v4908
      %v4970 = vadd.f32 %v4316, %v4910
      %v4971 = vadd.f32 %v4317, %v4913
      %v4972 = vadd.f32 %v4318, %v4915
      %v4973 = vadd.f32 %v4319, %v4918
      %v4974 = vadd.f32 %v4320, %v4920
      %v4975 = vadd.f32 %v4321, %v4923
      %v4976 = vadd.f32 %v4322, %v4925
      %v4977 = vadd.f32 %v4323, %v4928
      %v4978 = vadd.f32 %v4324, %v4930
      %v4979 = vadd.f32 %v4325, %v4933
      %v4980 = vadd.f32 %v4326, %v4935
      %v4981 = vadd.f32 %v4327, %v4938
      %v4982 = vadd.f32 %v4328, %v4940
      %v4983 = vadd.f32 %v4329, %v4943
      %v4984 = vadd.f32 %v4330, %v4945
      %v4985 = vadd.f32 %v4331, %v4948
      %v4986 = vadd.f32 %v4332, %v4950
      %v4987 = vadd.f32 %v4333, %v4953
      %v4988 = vadd.f32 %v4334, %v4955
      %v4989 = vld [vmem:[%s2] sm:$0x1]
      %v4991 = vperm.slane %v4989, 0
      %v4993 = vadd.f32 %v4957, %v4991
      %v4994 = vadd.f32 %v4958, %v4991
      %v4995 = vadd.f32 %v4959, %v4991
      %v4996 = vadd.f32 %v4960, %v4991
      %v4997 = vadd.f32 %v4961, %v4991
      %v4998 = vadd.f32 %v4962, %v4991
      %v4999 = vadd.f32 %v4963, %v4991
      %v5000 = vadd.f32 %v4964, %v4991
      %v5001 = vadd.f32 %v4965, %v4991
      %v5002 = vadd.f32 %v4966, %v4991
      %v5003 = vadd.f32 %v4967, %v4991
      %v5004 = vadd.f32 %v4968, %v4991
      %v5005 = vadd.f32 %v4969, %v4991
      %v5006 = vadd.f32 %v4970, %v4991
      %v5007 = vadd.f32 %v4971, %v4991
      %v5008 = vadd.f32 %v4972, %v4991
      %v5009 = vadd.f32 %v4973, %v4991
      %v5010 = vadd.f32 %v4974, %v4991
      %v5011 = vadd.f32 %v4975, %v4991
      %v5012 = vadd.f32 %v4976, %v4991
      %v5013 = vadd.f32 %v4977, %v4991
      %v5014 = vadd.f32 %v4978, %v4991
      %v5015 = vadd.f32 %v4979, %v4991
      %v5016 = vadd.f32 %v4980, %v4991
      %v5017 = vadd.f32 %v4981, %v4991
      %v5018 = vadd.f32 %v4982, %v4991
      %v5019 = vadd.f32 %v4983, %v4991
      %v5020 = vadd.f32 %v4984, %v4991
      %v5021 = vadd.f32 %v4985, %v4991
      %v5022 = vadd.f32 %v4986, %v4991
      %v5023 = vadd.f32 %v4987, %v4991
      %v5024 = vadd.f32 %v4988, %v4991
      %v5025 = vpack.c.bf16 %v4993, %v4993
      %v5026 = vpack.c.bf16 %v4994, %v4994
      %v5027 = vpack.c.bf16 %v4995, %v4995
      %v5028 = vpack.c.bf16 %v4996, %v4996
      %v5029 = vpack.c.bf16 %v4997, %v4997
      %v5030 = vpack.c.bf16 %v4998, %v4998
      %v5031 = vpack.c.bf16 %v4999, %v4999
      %v5032 = vpack.c.bf16 %v5000, %v5000
      %v5033 = vpack.c.bf16 %v5001, %v5001
      %v5034 = vpack.c.bf16 %v5002, %v5002
      %v5035 = vpack.c.bf16 %v5003, %v5003
      %v5036 = vpack.c.bf16 %v5004, %v5004
      %v5037 = vpack.c.bf16 %v5005, %v5005
      %v5038 = vpack.c.bf16 %v5006, %v5006
      %v5039 = vpack.c.bf16 %v5007, %v5007
      %v5040 = vpack.c.bf16 %v5008, %v5008
      %v5041 = vpack.c.bf16 %v5009, %v5009
      %v5042 = vpack.c.bf16 %v5010, %v5010
      %v5043 = vpack.c.bf16 %v5011, %v5011
      %v5044 = vpack.c.bf16 %v5012, %v5012
      %v5045 = vpack.c.bf16 %v5013, %v5013
      %v5046 = vpack.c.bf16 %v5014, %v5014
      %v5047 = vpack.c.bf16 %v5015, %v5015
      %v5048 = vpack.c.bf16 %v5016, %v5016
      %v5049 = vpack.c.bf16 %v5017, %v5017
      %v5050 = vpack.c.bf16 %v5018, %v5018
      %v5051 = vpack.c.bf16 %v5019, %v5019
      %v5052 = vpack.c.bf16 %v5020, %v5020
      %v5053 = vpack.c.bf16 %v5021, %v5021
      %v5054 = vpack.c.bf16 %v5022, %v5022
      %v5055 = vpack.c.bf16 %v5023, %v5023
      %v5056 = vpack.c.bf16 %v5024, %v5024
      %vm5057 = vcmask 257024
      %5058 = vst.msk [vmem:[%s287] sm:$0xf] %vm5057, %v5025
      %5059 = vst.msk [vmem:[%s287 + $0x4] sm:$0xf] %vm5057, %v5026
      %5060 = vst.msk [vmem:[%s287 + $0x8] sm:$0xf] %vm5057, %v5027
      %5061 = vst.msk [vmem:[%s287 + $0xc] sm:$0xf] %vm5057, %v5028
      %5062 = vst.msk [vmem:[%s287 + $0x10] sm:$0xf] %vm5057, %v5029
      %5063 = vst.msk [vmem:[%s287 + $0x14] sm:$0xf] %vm5057, %v5030
      %5064 = vst.msk [vmem:[%s287 + $0x18] sm:$0xf] %vm5057, %v5031
      %5065 = vst.msk [vmem:[%s287 + $0x1c] sm:$0xf] %vm5057, %v5032
      %5066 = vst.msk [vmem:[%s287 + $0x20] sm:$0xf] %vm5057, %v5033
      %5067 = vst.msk [vmem:[%s287 + $0x24] sm:$0xf] %vm5057, %v5034
      %5068 = vst.msk [vmem:[%s287 + $0x28] sm:$0xf] %vm5057, %v5035
      %5069 = vst.msk [vmem:[%s287 + $0x2c] sm:$0xf] %vm5057, %v5036
      %5070 = vst.msk [vmem:[%s287 + $0x30] sm:$0xf] %vm5057, %v5037
      %5071 = vst.msk [vmem:[%s287 + $0x34] sm:$0xf] %vm5057, %v5038
      %5072 = vst.msk [vmem:[%s287 + $0x38] sm:$0xf] %vm5057, %v5039
      %5073 = vst.msk [vmem:[%s287 + $0x3c] sm:$0xf] %vm5057, %v5040
      %5074 = vst.msk [vmem:[%s287 + $0x40] sm:$0xf] %vm5057, %v5041
      %5075 = vst.msk [vmem:[%s287 + $0x44] sm:$0xf] %vm5057, %v5042
      %5076 = vst.msk [vmem:[%s287 + $0x48] sm:$0xf] %vm5057, %v5043
      %5077 = vst.msk [vmem:[%s287 + $0x4c] sm:$0xf] %vm5057, %v5044
      %5078 = vst.msk [vmem:[%s287 + $0x50] sm:$0xf] %vm5057, %v5045
      %5079 = vst.msk [vmem:[%s287 + $0x54] sm:$0xf] %vm5057, %v5046
      %5080 = vst.msk [vmem:[%s287 + $0x58] sm:$0xf] %vm5057, %v5047
      %5081 = vst.msk [vmem:[%s287 + $0x5c] sm:$0xf] %vm5057, %v5048
      %5082 = vst.msk [vmem:[%s287 + $0x60] sm:$0xf] %vm5057, %v5049
      %5083 = vst.msk [vmem:[%s287 + $0x64] sm:$0xf] %vm5057, %v5050
      %5084 = vst.msk [vmem:[%s287 + $0x68] sm:$0xf] %vm5057, %v5051
      %5085 = vst.msk [vmem:[%s287 + $0x6c] sm:$0xf] %vm5057, %v5052
      %5086 = vst.msk [vmem:[%s287 + $0x70] sm:$0xf] %vm5057, %v5053
      %5087 = vst.msk [vmem:[%s287 + $0x74] sm:$0xf] %vm5057, %v5054
      %5088 = vst.msk [vmem:[%s287 + $0x78] sm:$0xf] %vm5057, %v5055
      %5089 = vst.msk [vmem:[%s287 + $0x7c] sm:$0xf] %vm5057, %v5056
      %v5090 = vunpack.c.l.bf16 %v5025
      %v5091 = vunpack.c.l.bf16 %v5026
      %v5092 = vunpack.c.l.bf16 %v5027
      %v5093 = vunpack.c.l.bf16 %v5028
      %v5094 = vunpack.c.l.bf16 %v5029
      %v5095 = vunpack.c.l.bf16 %v5030
      %v5096 = vunpack.c.l.bf16 %v5031
      %v5097 = vunpack.c.l.bf16 %v5032
      %v5098 = vunpack.c.l.bf16 %v5033
      %v5099 = vunpack.c.l.bf16 %v5034
      %v5100 = vunpack.c.l.bf16 %v5035
      %v5101 = vunpack.c.l.bf16 %v5036
      %v5102 = vunpack.c.l.bf16 %v5037
      %v5103 = vunpack.c.l.bf16 %v5038
      %v5104 = vunpack.c.l.bf16 %v5039
      %v5105 = vunpack.c.l.bf16 %v5040
      %v5106 = vunpack.c.l.bf16 %v5041
      %v5107 = vunpack.c.l.bf16 %v5042
      %v5108 = vunpack.c.l.bf16 %v5043
      %v5109 = vunpack.c.l.bf16 %v5044
      %v5110 = vunpack.c.l.bf16 %v5045
      %v5111 = vunpack.c.l.bf16 %v5046
      %v5112 = vunpack.c.l.bf16 %v5047
      %v5113 = vunpack.c.l.bf16 %v5048
      %v5114 = vunpack.c.l.bf16 %v5049
      %v5115 = vunpack.c.l.bf16 %v5050
      %v5116 = vunpack.c.l.bf16 %v5051
      %v5117 = vunpack.c.l.bf16 %v5052
      %v5118 = vunpack.c.l.bf16 %v5053
      %v5119 = vunpack.c.l.bf16 %v5054
      %v5120 = vunpack.c.l.bf16 %v5055
      %v5121 = vunpack.c.l.bf16 %v5056
      %vm5122 = vcmask 261120
      %v5123 = vsel %vm5122, %v5090, 0.0
      %v5124 = vsel %vm5122, %v5091, 0.0
      %v5125 = vadd.f32 %v5123, %v5124
      %v5126 = vsel %vm5122, %v5092, 0.0
      %v5127 = vadd.f32 %v5125, %v5126
      %v5128 = vsel %vm5122, %v5093, 0.0
      %v5129 = vadd.f32 %v5127, %v5128
      %v5130 = vsel %vm5122, %v5094, 0.0
      %v5131 = vadd.f32 %v5129, %v5130
      %v5132 = vsel %vm5122, %v5095, 0.0
      %v5133 = vadd.f32 %v5131, %v5132
      %v5134 = vsel %vm5122, %v5096, 0.0
      %v5135 = vadd.f32 %v5133, %v5134
      %v5136 = vsel %vm5122, %v5097, 0.0
      %v5137 = vadd.f32 %v5135, %v5136
      %v5138 = vsel %vm5122, %v5098, 0.0
      %v5139 = vadd.f32 %v5137, %v5138
      %v5140 = vsel %vm5122, %v5099, 0.0
      %v5141 = vadd.f32 %v5139, %v5140
      %v5142 = vsel %vm5122, %v5100, 0.0
      %v5143 = vadd.f32 %v5141, %v5142
      %v5144 = vsel %vm5122, %v5101, 0.0
      %v5145 = vadd.f32 %v5143, %v5144
      %v5146 = vsel %vm5122, %v5102, 0.0
      %v5147 = vadd.f32 %v5145, %v5146
      %v5148 = vsel %vm5122, %v5103, 0.0
      %v5149 = vadd.f32 %v5147, %v5148
      %v5150 = vsel %vm5122, %v5104, 0.0
      %v5151 = vadd.f32 %v5149, %v5150
      %v5152 = vsel %vm5122, %v5105, 0.0
      %v5153 = vadd.f32 %v5151, %v5152
      %v5154 = vsel %vm5122, %v5106, 0.0
      %v5155 = vadd.f32 %v5153, %v5154
      %v5156 = vsel %vm5122, %v5107, 0.0
      %v5157 = vadd.f32 %v5155, %v5156
      %v5158 = vsel %vm5122, %v5108, 0.0
      %v5159 = vadd.f32 %v5157, %v5158
      %v5160 = vsel %vm5122, %v5109, 0.0
      %v5161 = vadd.f32 %v5159, %v5160
      %v5162 = vsel %vm5122, %v5110, 0.0
      %v5163 = vadd.f32 %v5161, %v5162
      %v5164 = vsel %vm5122, %v5111, 0.0
      %v5165 = vadd.f32 %v5163, %v5164
      %v5166 = vsel %vm5122, %v5112, 0.0
      %v5167 = vadd.f32 %v5165, %v5166
      %v5168 = vsel %vm5122, %v5113, 0.0
      %v5169 = vadd.f32 %v5167, %v5168
      %v5170 = vsel %vm5122, %v5114, 0.0
      %v5171 = vadd.f32 %v5169, %v5170
      %v5172 = vsel %vm5122, %v5115, 0.0
      %v5173 = vadd.f32 %v5171, %v5172
      %v5174 = vsel %vm5122, %v5116, 0.0
      %v5175 = vadd.f32 %v5173, %v5174
      %v5176 = vsel %vm5122, %v5117, 0.0
      %v5177 = vadd.f32 %v5175, %v5176
      %v5178 = vsel %vm5122, %v5118, 0.0
      %v5179 = vadd.f32 %v5177, %v5178
      %v5180 = vsel %vm5122, %v5119, 0.0
      %v5181 = vadd.f32 %v5179, %v5180
      %v5182 = vsel %vm5122, %v5120, 0.0
      %v5183 = vadd.f32 %v5181, %v5182
      %v5184 = vsel %vm5122, %v5121, 0.0
      %v5185 = vadd.f32 %v5183, %v5184
      %v5186 = vrot.slane %v5185, 4
      %v5187 = vadd.f32 %v5185, %v5186
      %v5188 = vrot.slane %v5187, 2
      %v5189 = vadd.f32 %v5187, %v5188
      %v5190 = vrot.slane %v5189, 1
      %v5191 = vadd.f32 %v5189, %v5190
      %v5192 = vmul.f32 %v5191, 0.00390625
      %v5193 = vsub.f32 %v5090, %v5192
      %v5194 = vsub.f32 %v5091, %v5192
      %v5195 = vsub.f32 %v5092, %v5192
      %v5196 = vsub.f32 %v5093, %v5192
      %v5197 = vsub.f32 %v5094, %v5192
      %v5198 = vsub.f32 %v5095, %v5192
      %v5199 = vsub.f32 %v5096, %v5192
      %v5200 = vsub.f32 %v5097, %v5192
      %v5201 = vsub.f32 %v5098, %v5192
      %v5202 = vsub.f32 %v5099, %v5192
      %v5203 = vsub.f32 %v5100, %v5192
      %v5204 = vsub.f32 %v5101, %v5192
      %v5205 = vsub.f32 %v5102, %v5192
      %v5206 = vsub.f32 %v5103, %v5192
      %v5207 = vsub.f32 %v5104, %v5192
      %v5208 = vsub.f32 %v5105, %v5192
      %v5209 = vsub.f32 %v5106, %v5192
      %v5210 = vsub.f32 %v5107, %v5192
      %v5211 = vsub.f32 %v5108, %v5192
      %v5212 = vsub.f32 %v5109, %v5192
      %v5213 = vsub.f32 %v5110, %v5192
      %v5214 = vsub.f32 %v5111, %v5192
      %v5215 = vsub.f32 %v5112, %v5192
      %v5216 = vsub.f32 %v5113, %v5192
      %v5217 = vsub.f32 %v5114, %v5192
      %v5218 = vsub.f32 %v5115, %v5192
      %v5219 = vsub.f32 %v5116, %v5192
      %v5220 = vsub.f32 %v5117, %v5192
      %v5221 = vsub.f32 %v5118, %v5192
      %v5222 = vsub.f32 %v5119, %v5192
      %v5223 = vsub.f32 %v5120, %v5192
      %v5224 = vsub.f32 %v5121, %v5192
      %v5225 = vmul.f32 %v5193, %v5193
      %v5226 = vmul.f32 %v5194, %v5194
      %v5227 = vmul.f32 %v5195, %v5195
      %v5228 = vmul.f32 %v5196, %v5196
      %v5229 = vmul.f32 %v5197, %v5197
      %v5230 = vmul.f32 %v5198, %v5198
      %v5231 = vmul.f32 %v5199, %v5199
      %v5232 = vmul.f32 %v5200, %v5200
      %v5233 = vmul.f32 %v5201, %v5201
      %v5234 = vmul.f32 %v5202, %v5202
      %v5235 = vmul.f32 %v5203, %v5203
      %v5236 = vmul.f32 %v5204, %v5204
      %v5237 = vmul.f32 %v5205, %v5205
      %v5238 = vmul.f32 %v5206, %v5206
      %v5239 = vmul.f32 %v5207, %v5207
      %v5240 = vmul.f32 %v5208, %v5208
      %v5241 = vmul.f32 %v5209, %v5209
      %v5242 = vmul.f32 %v5210, %v5210
      %v5243 = vmul.f32 %v5211, %v5211
      %v5244 = vmul.f32 %v5212, %v5212
      %v5245 = vmul.f32 %v5213, %v5213
      %v5246 = vmul.f32 %v5214, %v5214
      %v5247 = vmul.f32 %v5215, %v5215
      %v5248 = vmul.f32 %v5216, %v5216
      %v5249 = vmul.f32 %v5217, %v5217
      %v5250 = vmul.f32 %v5218, %v5218
      %v5251 = vmul.f32 %v5219, %v5219
      %v5252 = vmul.f32 %v5220, %v5220
      %v5253 = vmul.f32 %v5221, %v5221
      %v5254 = vmul.f32 %v5222, %v5222
      %v5255 = vmul.f32 %v5223, %v5223
      %v5256 = vmul.f32 %v5224, %v5224
      %v5257 = vsel %vm5122, %v5225, 0.0
      %v5258 = vsel %vm5122, %v5226, 0.0
      %v5259 = vadd.f32 %v5257, %v5258
      %v5260 = vsel %vm5122, %v5227, 0.0
      %v5261 = vadd.f32 %v5259, %v5260
      %v5262 = vsel %vm5122, %v5228, 0.0
      %v5263 = vadd.f32 %v5261, %v5262
      %v5264 = vsel %vm5122, %v5229, 0.0
      %v5265 = vadd.f32 %v5263, %v5264
      %v5266 = vsel %vm5122, %v5230, 0.0
      %v5267 = vadd.f32 %v5265, %v5266
      %v5268 = vsel %vm5122, %v5231, 0.0
      %v5269 = vadd.f32 %v5267, %v5268
      %v5270 = vsel %vm5122, %v5232, 0.0
      %v5271 = vadd.f32 %v5269, %v5270
      %v5272 = vsel %vm5122, %v5233, 0.0
      %v5273 = vadd.f32 %v5271, %v5272
      %v5274 = vsel %vm5122, %v5234, 0.0
      %v5275 = vadd.f32 %v5273, %v5274
      %v5276 = vsel %vm5122, %v5235, 0.0
      %v5277 = vadd.f32 %v5275, %v5276
      %v5278 = vsel %vm5122, %v5236, 0.0
      %v5279 = vadd.f32 %v5277, %v5278
      %v5280 = vsel %vm5122, %v5237, 0.0
      %v5281 = vadd.f32 %v5279, %v5280
      %v5282 = vsel %vm5122, %v5238, 0.0
      %v5283 = vadd.f32 %v5281, %v5282
      %v5284 = vsel %vm5122, %v5239, 0.0
      %v5285 = vadd.f32 %v5283, %v5284
      %v5286 = vsel %vm5122, %v5240, 0.0
      %v5287 = vadd.f32 %v5285, %v5286
      %v5288 = vsel %vm5122, %v5241, 0.0
      %v5289 = vadd.f32 %v5287, %v5288
      %v5290 = vsel %vm5122, %v5242, 0.0
      %v5291 = vadd.f32 %v5289, %v5290
      %v5292 = vsel %vm5122, %v5243, 0.0
      %v5293 = vadd.f32 %v5291, %v5292
      %v5294 = vsel %vm5122, %v5244, 0.0
      %v5295 = vadd.f32 %v5293, %v5294
      %v5296 = vsel %vm5122, %v5245, 0.0
      %v5297 = vadd.f32 %v5295, %v5296
      %v5298 = vsel %vm5122, %v5246, 0.0
      %v5299 = vadd.f32 %v5297, %v5298
      %v5300 = vsel %vm5122, %v5247, 0.0
      %v5301 = vadd.f32 %v5299, %v5300
      %v5302 = vsel %vm5122, %v5248, 0.0
      %v5303 = vadd.f32 %v5301, %v5302
      %v5304 = vsel %vm5122, %v5249, 0.0
      %v5305 = vadd.f32 %v5303, %v5304
      %v5306 = vsel %vm5122, %v5250, 0.0
      %v5307 = vadd.f32 %v5305, %v5306
      %v5308 = vsel %vm5122, %v5251, 0.0
      %v5309 = vadd.f32 %v5307, %v5308
      %v5310 = vsel %vm5122, %v5252, 0.0
      %v5311 = vadd.f32 %v5309, %v5310
      %v5312 = vsel %vm5122, %v5253, 0.0
      %v5313 = vadd.f32 %v5311, %v5312
      %v5314 = vsel %vm5122, %v5254, 0.0
      %v5315 = vadd.f32 %v5313, %v5314
      %v5316 = vsel %vm5122, %v5255, 0.0
      %v5317 = vadd.f32 %v5315, %v5316
      %v5318 = vsel %vm5122, %v5256, 0.0
      %v5319 = vadd.f32 %v5317, %v5318
      %v5320 = vrot.slane %v5319, 4
      %v5321 = vadd.f32 %v5319, %v5320
      %v5322 = vrot.slane %v5321, 2
      %v5323 = vadd.f32 %v5321, %v5322
      %v5324 = vrot.slane %v5323, 1
      %v5325 = vadd.f32 %v5323, %v5324
      %vm5326 = vcmask 1040384
      %v5327 = vsel %vm5326, %v5191, %v5325
      %vm5328 = vcmask 254976
      %5329 = vst.msk [vmem:[%s295] sm:$0x3] %vm5328, %v5327
      %s5330 = smul.u32 16, %s23
      %p5331 = scmp.lt.s32.totalorder %s22, 1
      %s5332 = scalar_select %p5331, %s22, 1
      %p5333 = scmp.lt.s32.totalorder %s5330, 15
      %s5334 = scalar_select %p5333, %s5330, 15
      %s5335 = smul.addr %s5334, 2
      %s5336 = smul.addr %s5332, 32
      %s5337 = sadd.s32 %s5335, %s5336
      %s5338 = smul.addr %s5337, 4
      %s5339 = scalar_lea.vmem %s5, %s5338
      %p5340 = scmp.lt.s32.totalorder %s22, 1
      %s5341 = scalar_select %p5340, %s22, 1
      %p5342 = scmp.lt.s32.totalorder %s23, 0
      %s5343 = scalar_select %p5342, %s23, 0
      %s5344 = sadd.s32 %s5343, %s5341
      %s5345 = smul.addr %s5344, 2
      %s5346 = scalar_lea.vmem %s6, %s5345
      // Predicated region
      $region45: #{double_conv_forward.3} parent=39 // pred_check
        %p5347 = pneg %p160
      $region46: #{double_conv_forward.3} parent=39 // pred_check_branch
        %5349 = sbr.rel (%p5347) target = $region48
      $region47: #{double_conv_forward.3} parent=39 // pred_region
        %s5350 = smul.u32 16, %s23
      $region48: #{double_conv_forward.3} parent=39 // pred_fallthru
        _
      // Predicated region
      $region49: #{double_conv_forward.3} parent=39 // pred_check
        %p5351 = pneg %p188
      $region50: #{double_conv_forward.3} parent=39 // pred_check_branch
        %5353 = sbr.rel (%p5351) target = $region52
      $region51: #{double_conv_forward.3} parent=39 // pred_region
        _
      $region52: #{double_conv_forward.3} parent=39 // pred_fallthru
        _
    $region40: #{double_conv_forward.3} parent=5 // pred_fallthru
      _
    %p5354 = scmp.le.s32.totalorder 2, %s13
    // Predicated region
    $region53: #{double_conv_forward.3} parent=5 // pred_check
      %p5355 = pneg %p5354
    $region54: #{double_conv_forward.3} parent=5 // pred_check_branch
      %5357 = sbr.rel (%p5355) target = $region56
    $region55: #{double_conv_forward.3} parent=5 // pred_region
      %s5358 = ssub.s32 %s13, 2
      // Predicated region
      $region57: #{double_conv_forward.3} parent=55 // pred_check
        %p5359 = pneg %p166
      $region58: #{double_conv_forward.3} parent=55 // pred_check_branch
        %5361 = sbr.rel (%p5359) target = $region60
      $region59: #{double_conv_forward.3} parent=55 // pred_region
        %s5362 = smul.u32 16, %s25
        %p5363 = scmp.lt.s32.totalorder %s24, 1
        %s5364 = scalar_select %p5363, %s24, 1
        %p5365 = scmp.lt.s32.totalorder %s5362, 15
        %s5366 = scalar_select %p5365, %s5362, 15
        %s5367 = smul.addr %s5366, 2
        %s5368 = smul.addr %s5364, 32
        %s5369 = sadd.s32 %s5367, %s5368
        %s5370 = smul.addr %s5369, 4
        %s5371 = scalar_lea.vmem %s5, %s5370
      $region60: #{double_conv_forward.3} parent=55 // pred_fallthru
        _
      // Predicated region
      $region61: #{double_conv_forward.3} parent=55 // pred_check
        %p5372 = pneg %p194
      $region62: #{double_conv_forward.3} parent=55 // pred_check_branch
        %5374 = sbr.rel (%p5372) target = $region64
      $region63: #{double_conv_forward.3} parent=55 // pred_region
        %p5375 = scmp.lt.s32.totalorder %s24, 1
        %s5376 = scalar_select %p5375, %s24, 1
        %p5377 = scmp.lt.s32.totalorder %s25, 0
        %s5378 = scalar_select %p5377, %s25, 0
        %s5379 = sadd.s32 %s5378, %s5376
        %s5380 = smul.addr %s5379, 2
        %s5381 = scalar_lea.vmem %s6, %s5380
      $region64: #{double_conv_forward.3} parent=55 // pred_fallthru
        _
    $region56: #{double_conv_forward.3} parent=5 // pred_fallthru
      _
  $region6: #{double_conv_forward.3} parent=0 // loop_footer
    %s17 = sadd.s32 1, %s13
  $region7: #{double_conv_forward.3} parent=0 // loop_footer_branch
    %12 = sbr.rel target = $region3
  $region8: #{double_conv_forward.3} parent=0 // loop_exit
    _

// kernel: double_conv_forward.4
$region0: #{double_conv_forward.4}
  #allocation0 [shape = 'u32[]', space=smem, size = 0x4, offset = 0x4, fixed_abs, tag = 'smem constant byte address 0x4 - core index']
  #allocation1 [shape = 'u32[72,128]{1,0:T(1,128)}', space=vmem, size = 0x9000, scoped, tag = 'internal scratch']
  #allocation2 [shape = 'bf16[1,18,48,32]{3,2,1,0:T(8,128)(2,1)}', space=vmem, size = 0x36000, scoped, tag = 'scratch operand']
  %s0 = inlined_call_operand.vmem [shape: bf16[2,16,16,32], index: 0, kind: input, shape index: {}]
  %s1 = inlined_call_operand.vmem [shape: bf16[9,32,32], index: 1, kind: input, shape index: {}]
  %s2 = inlined_call_operand.vmem [shape: f32[1,32], index: 2, kind: input, shape index: {}]
  %s3 = inlined_call_operand.vmem [shape: f32[1,32], index: 3, kind: input, shape index: {}]
  %s4 = inlined_call_operand.vmem [shape: f32[1,32], index: 4, kind: input, shape index: {}]
  %s5 = inlined_call_operand.vmem [shape: bf16[2,16,16,32], index: 5, kind: output, shape index: {0}]
  %s6 = inlined_call_operand.vmem [shape: f32[2,1,2,32], index: 6, kind: output, shape index: {1}]
  %7 = xla_tuple %s5, %s6
  %s8 = sld [smem:[#allocation0]]
  $region65: #{double_conv_forward.4} parent=0
    _
  %s10 = ssub.s32 1, %s8
  %s11 = scalar_select 0, %s10, %s8
  loop: start=0, step=1, limit=4
  $region2: #{double_conv_forward.4} parent=0 // loop_pre_header
    _
  $region3: #{double_conv_forward.4} parent=0 // loop_header
    %s13 = sphi 0, %s17
    %p14 = scmp.ge.s32.totalorder %s13, 4
    %s20 = sphi 0, %s32
    %s21 = sphi 0, %s28
    %s22 = sphi 0, %s20
    %s23 = sphi 0, %s21
    %s24 = sphi 0, %s22
    %s25 = sphi 0, %s23
    %s35 = sphi 0, %s37
    %s38 = sphi 0, %s35
    %s39 = sphi 0, %s38
    %s55 = sphi 0, %s39
    %s59 = sphi 0, %s59
    %s61 = sphi 0, %s59
    %s62 = sphi 0, %s61
    %s76 = sphi 0, %s62
    %s80 = sphi 0, %s80
    %s82 = sphi 0, %s80
    %s83 = sphi 0, %s82
    %s97 = sphi 0, %s83
    %s101 = sphi 0, %s101
    %s103 = sphi 0, %s101
    %s104 = sphi 0, %s103
    %s118 = sphi 0, %s104
    %s122 = sphi 0, %s122
    %s124 = sphi 0, %s122
    %s125 = sphi 0, %s124
    %s139 = sphi 0, %s125
    %s147 = sphi 0, %s149
    %s150 = sphi 0, %s147
    %s151 = sphi 0, %s150
    %s167 = sphi 0, %s151
    %s175 = sphi 0, %s177
    %s178 = sphi 0, %s175
    %s179 = sphi 0, %s178
    %s195 = sphi 0, %s179
  $region4: #{double_conv_forward.4} parent=0 // loop_header_branch
    %16 = sbr.rel (%p14) target = $region8
  $region5: #{double_conv_forward.4} parent=0 // loop_body
    %s18 = ssub.s32 %s13, 1
    %s19 = ssub.s32 %s13, 2
    %s26 = sadd.s32 1, %s21
    %p27 = scmp.ge.s32.totalorder %s26, 1
    %s28 = scalar_select %p27, 0, %s26
    %s29 = sadd.s32 1, %s20
    %s30 = scalar_select %p27, %s29, %s20
    %p31 = scmp.ge.s32.totalorder %s30, 2
    %s32 = scalar_select %p31, 0, %s30
    %s33 = ssub.s32 %s20, %s32
    %p34 = scmp.eq.s32.totalorder %s33, 0
    %s36 = sadd.s32 %s35, 1
    %s37 = scalar_select %p34, %s35, %s36
    %p40 = pneg %p34
    %p41 = scmp.eq.s32.totalorder %s13, 1
    %p42 = por %p40, %p41
    %p43 = scmp.ne.s32.totalorder %s35, %s38
    %p44 = scmp.eq.s32.totalorder %s13, 0
    %p45 = por %p43, %p44
    %p46 = scmp.ne.s32.totalorder %s35, %s38
    %p47 = scmp.eq.s32.totalorder %s18, 1
    %p48 = por %p46, %p47
    %p49 = scmp.ne.s32.totalorder %s38, %s39
    %p50 = scmp.eq.s32.totalorder %s18, 0
    %p51 = por %p49, %p50
    %p52 = scmp.ne.s32.totalorder %s38, %s39
    %p53 = scmp.eq.s32.totalorder %s19, 1
    %p54 = por %p52, %p53
    %p56 = scmp.ne.s32.totalorder %s39, %s55
    %p57 = scmp.eq.s32.totalorder %s19, 0
    %p58 = por %p56, %p57
    %s60 = sadd.s32 %s59, 1
    %p63 = scmp.eq.s32.totalorder %s13, 1
    %p64 = scmp.ne.s32.totalorder %s59, %s61
    %p65 = scmp.eq.s32.totalorder %s13, 0
    %p66 = por %p64, %p65
    %p67 = scmp.ne.s32.totalorder %s59, %s61
    %p68 = scmp.eq.s32.totalorder %s18, 1
    %p69 = por %p67, %p68
    %p70 = scmp.ne.s32.totalorder %s61, %s62
    %p71 = scmp.eq.s32.totalorder %s18, 0
    %p72 = por %p70, %p71
    %p73 = scmp.ne.s32.totalorder %s61, %s62
    %p74 = scmp.eq.s32.totalorder %s19, 1
    %p75 = por %p73, %p74
    %p77 = scmp.ne.s32.totalorder %s62, %s76
    %p78 = scmp.eq.s32.totalorder %s19, 0
    %p79 = por %p77, %p78
    %s81 = sadd.s32 %s80, 1
    %p84 = scmp.eq.s32.totalorder %s13, 1
    %p85 = scmp.ne.s32.totalorder %s80, %s82
    %p86 = scmp.eq.s32.totalorder %s13, 0
    %p87 = por %p85, %p86
    %p88 = scmp.ne.s32.totalorder %s80, %s82
    %p89 = scmp.eq.s32.totalorder %s18, 1
    %p90 = por %p88, %p89
    %p91 = scmp.ne.s32.totalorder %s82, %s83
    %p92 = scmp.eq.s32.totalorder %s18, 0
    %p93 = por %p91, %p92
    %p94 = scmp.ne.s32.totalorder %s82, %s83
    %p95 = scmp.eq.s32.totalorder %s19, 1
    %p96 = por %p94, %p95
    %p98 = scmp.ne.s32.totalorder %s83, %s97
    %p99 = scmp.eq.s32.totalorder %s19, 0
    %p100 = por %p98, %p99
    %s102 = sadd.s32 %s101, 1
    %p105 = scmp.eq.s32.totalorder %s13, 1
    %p106 = scmp.ne.s32.totalorder %s101, %s103
    %p107 = scmp.eq.s32.totalorder %s13, 0
    %p108 = por %p106, %p107
    %p109 = scmp.ne.s32.totalorder %s101, %s103
    %p110 = scmp.eq.s32.totalorder %s18, 1
    %p111 = por %p109, %p110
    %p112 = scmp.ne.s32.totalorder %s103, %s104
    %p113 = scmp.eq.s32.totalorder %s18, 0
    %p114 = por %p112, %p113
    %p115 = scmp.ne.s32.totalorder %s103, %s104
    %p116 = scmp.eq.s32.totalorder %s19, 1
    %p117 = por %p115, %p116
    %p119 = scmp.ne.s32.totalorder %s104, %s118
    %p120 = scmp.eq.s32.totalorder %s19, 0
    %p121 = por %p119, %p120
    %s123 = sadd.s32 %s122, 1
    %p126 = scmp.eq.s32.totalorder %s13, 1
    %p127 = scmp.ne.s32.totalorder %s122, %s124
    %p128 = scmp.eq.s32.totalorder %s13, 0
    %p129 = por %p127, %p128
    %p130 = scmp.ne.s32.totalorder %s122, %s124
    %p131 = scmp.eq.s32.totalorder %s18, 1
    %p132 = por %p130, %p131
    %p133 = scmp.ne.s32.totalorder %s124, %s125
    %p134 = scmp.eq.s32.totalorder %s18, 0
    %p135 = por %p133, %p134
    %p136 = scmp.ne.s32.totalorder %s124, %s125
    %p137 = scmp.eq.s32.totalorder %s19, 1
    %p138 = por %p136, %p137
    %p140 = scmp.ne.s32.totalorder %s125, %s139
    %p141 = scmp.eq.s32.totalorder %s19, 0
    %p142 = por %p140, %p141
    %s143 = ssub.s32 %s20, %s32
    %s144 = ssub.s32 %s21, %s28
    %s145 = sor.u32 %s143, %s144
    %p146 = scmp.eq.s32.totalorder %s145, 0
    %s148 = sadd.s32 %s147, 1
    %s149 = scalar_select %p146, %s147, %s148
    %p152 = pneg %p146
    %p153 = scmp.eq.s32.totalorder %s13, 1
    %p154 = por %p152, %p153
    %p155 = scmp.ne.s32.totalorder %s147, %s150
    %p156 = scmp.eq.s32.totalorder %s13, 0
    %p157 = por %p155, %p156
    %p158 = scmp.ne.s32.totalorder %s147, %s150
    %p159 = scmp.eq.s32.totalorder %s18, 1
    %p160 = por %p158, %p159
    %p161 = scmp.ne.s32.totalorder %s150, %s151
    %p162 = scmp.eq.s32.totalorder %s18, 0
    %p163 = por %p161, %p162
    %p164 = scmp.ne.s32.totalorder %s150, %s151
    %p165 = scmp.eq.s32.totalorder %s19, 1
    %p166 = por %p164, %p165
    %p168 = scmp.ne.s32.totalorder %s151, %s167
    %p169 = scmp.eq.s32.totalorder %s19, 0
    %p170 = por %p168, %p169
    %s171 = ssub.s32 %s20, %s32
    %s172 = ssub.s32 %s21, %s28
    %s173 = sor.u32 %s171, %s172
    %p174 = scmp.eq.s32.totalorder %s173, 0
    %s176 = sadd.s32 %s175, 1
    %s177 = scalar_select %p174, %s175, %s176
    %p180 = pneg %p174
    %p181 = scmp.eq.s32.totalorder %s13, 1
    %p182 = por %p180, %p181
    %p183 = scmp.ne.s32.totalorder %s175, %s178
    %p184 = scmp.eq.s32.totalorder %s13, 0
    %p185 = por %p183, %p184
    %p186 = scmp.ne.s32.totalorder %s175, %s178
    %p187 = scmp.eq.s32.totalorder %s18, 1
    %p188 = por %p186, %p187
    %p189 = scmp.ne.s32.totalorder %s178, %s179
    %p190 = scmp.eq.s32.totalorder %s18, 0
    %p191 = por %p189, %p190
    %p192 = scmp.ne.s32.totalorder %s178, %s179
    %p193 = scmp.eq.s32.totalorder %s19, 1
    %p194 = por %p192, %p193
    %p196 = scmp.ne.s32.totalorder %s179, %s195
    %p197 = scmp.eq.s32.totalorder %s19, 0
    %p198 = por %p196, %p197
    %p199 = scmp.le.s32.totalorder 1, %s13
    %p200 = scmp.lt.s32.totalorder %s13, 3
    %p201 = pnand %p199, %p200
    %p202 = pneg %p201
    // Predicated region
    $region9: #{double_conv_forward.4} parent=5 // pred_check
      _
    $region10: #{double_conv_forward.4} parent=5 // pred_check_branch
      %204 = sbr.rel (%p201) target = $region12
    $region11: #{double_conv_forward.4} parent=5 // pred_region
      %s205 = ssub.s32 %s13, 1
      // Predicated region
      $region13: #{double_conv_forward.4} parent=11 // pred_check
        %p206 = pneg %p72
      $region14: #{double_conv_forward.4} parent=11 // pred_check_branch
        %208 = sbr.rel (%p206) target = $region16
      $region15: #{double_conv_forward.4} parent=11 // pred_region
        _
      $region16: #{double_conv_forward.4} parent=11 // pred_fallthru
        _
      // Predicated region
      $region17: #{double_conv_forward.4} parent=11 // pred_check
        %p209 = pneg %p93
      $region18: #{double_conv_forward.4} parent=11 // pred_check_branch
        %211 = sbr.rel (%p209) target = $region20
      $region19: #{double_conv_forward.4} parent=11 // pred_region
        _
      $region20: #{double_conv_forward.4} parent=11 // pred_fallthru
        _
      // Predicated region
      $region21: #{double_conv_forward.4} parent=11 // pred_check
        %p212 = pneg %p114
      $region22: #{double_conv_forward.4} parent=11 // pred_check_branch
        %214 = sbr.rel (%p212) target = $region24
      $region23: #{double_conv_forward.4} parent=11 // pred_region
        _
      $region24: #{double_conv_forward.4} parent=11 // pred_fallthru
        _
      // Predicated region
      $region25: #{double_conv_forward.4} parent=11 // pred_check
        %p215 = pneg %p135
      $region26: #{double_conv_forward.4} parent=11 // pred_check_branch
        %217 = sbr.rel (%p215) target = $region28
      $region27: #{double_conv_forward.4} parent=11 // pred_region
        _
      $region28: #{double_conv_forward.4} parent=11 // pred_fallthru
        _
    $region12: #{double_conv_forward.4} parent=5 // pred_fallthru
      _
    %p218 = scmp.lt.s32.totalorder %s13, 2
    // Predicated region
    $region29: #{double_conv_forward.4} parent=5 // pred_check
      %p219 = pneg %p218
    $region30: #{double_conv_forward.4} parent=5 // pred_check_branch
      %221 = sbr.rel (%p219) target = $region32
    $region31: #{double_conv_forward.4} parent=5 // pred_region
      // Predicated region
      $region33: #{double_conv_forward.4} parent=31 // pred_check
        %p222 = pneg %p45
      $region34: #{double_conv_forward.4} parent=31 // pred_check_branch
        %224 = sbr.rel (%p222) target = $region36
      $region35: #{double_conv_forward.4} parent=31 // pred_region
        %p225 = scmp.lt.s32.totalorder %s20, 1
        %s226 = scalar_select %p225, %s20, 1
        %s227 = smul.addr %s226, 32
        %s228 = smul.addr %s227, 4
        %s229 = scalar_lea.vmem %s0, %s228
      $region36: #{double_conv_forward.4} parent=31 // pred_fallthru
        _
    $region32: #{double_conv_forward.4} parent=5 // pred_fallthru
      _
    %p230 = scmp.le.s32.totalorder 1, %s13
    %p231 = scmp.lt.s32.totalorder %s13, 3
    %p232 = pnand %p230, %p231
    %p233 = pneg %p232
    // Predicated region
    $region37: #{double_conv_forward.4} parent=5 // pred_check
      _
    $region38: #{double_conv_forward.4} parent=5 // pred_check_branch
      %235 = sbr.rel (%p232) target = $region40
    $region39: #{double_conv_forward.4} parent=5 // pred_region
      %s236 = ssub.s32 %s13, 1
      %p237 = scmp.lt.s32.totalorder %s22, 1
      %s238 = scalar_select %p237, %s22, 1
      %s239 = smul.addr %s238, 32
      %s240 = smul.addr %s239, 4
      %s241 = scalar_lea.vmem %s0, %s240
      %p242 = pneg %p51
      %p243 = pneg %p48
      %p244 = pneg %p72
      %p245 = pneg %p69
      %p246 = pneg %p93
      %p247 = pneg %p90
      %p248 = pneg %p114
      %p249 = pneg %p111
      %p250 = pneg %p135
      %p251 = pneg %p132
      %p252 = pneg %p163
      %p253 = pneg %p160
      %s254 = smul.u32 16, %s23
      %p255 = scmp.lt.s32.totalorder %s22, 1
      %s256 = scalar_select %p255, %s22, 1
      %p257 = scmp.lt.s32.totalorder %s254, 15
      %s258 = scalar_select %p257, %s254, 15
      %s259 = smul.addr %s258, 2
      %s260 = smul.addr %s256, 32
      %s261 = sadd.s32 %s259, %s260
      %s262 = smul.addr %s261, 4
      %s263 = scalar_lea.vmem %s5, %s262
      %p264 = pneg %p191
      %p265 = pneg %p188
      %p266 = scmp.lt.s32.totalorder %s22, 1
      %s267 = scalar_select %p266, %s22, 1
      %p268 = scmp.lt.s32.totalorder %s23, 0
      %s269 = scalar_select %p268, %s23, 0
      %s270 = sadd.s32 %s269, %s267
      %s271 = smul.addr %s270, 2
      %s272 = scalar_lea.vmem %s6, %s271
      %p273 = scmp.lt.s32.totalorder %s22, 1
      %s274 = scalar_select %p273, %s22, 1
      %s275 = smul.addr %s274, 32
      %s276 = smul.addr %s275, 4
      %s277 = scalar_lea.vmem %s0, %s276
      %s278 = smul.u32 16, %s23
      %p279 = scmp.lt.s32.totalorder %s22, 1
      %s280 = scalar_select %p279, %s22, 1
      %p281 = scmp.lt.s32.totalorder %s278, 15
      %s282 = scalar_select %p281, %s278, 15
      %s283 = smul.addr %s282, 2
      %s284 = smul.addr %s280, 32
      %s285 = sadd.s32 %s283, %s284
      %s286 = smul.addr %s285, 4
      %s287 = scalar_lea.vmem %s5, %s286
      %s288 = smul.u32 16, %s23
      %p289 = scmp.lt.s32.totalorder %s22, 1
      %s290 = scalar_select %p289, %s22, 1
      %p291 = scmp.lt.s32.totalorder %s23, 0
      %s292 = scalar_select %p291, %s23, 0
      %s293 = sadd.s32 %s292, %s290
      %s294 = smul.addr %s293, 2
      %s295 = scalar_lea.vmem %s6, %s294
      %p297 = scmp.eq.s32.totalorder %s23, 0
      // Predicated region
      $region41: #{double_conv_forward.4} parent=39 // pred_check
        %p298 = pneg %p297
      $region42: #{double_conv_forward.4} parent=39 // pred_check_branch
        %300 = sbr.rel (%p298) target = $region44
      $region43: #{double_conv_forward.4} parent=39 // pred_region
        %vm301 = vcmask 257024
        %302 = vst.msk [vmem:[#allocation2] sm:$0xf] %vm301, 0
        %303 = vst.msk [vmem:[#allocation2 + $0x4] sm:$0xf] %vm301, 0
        %304 = vst.msk [vmem:[#allocation2 + $0x18] sm:$0xf] %vm301, 0
        %305 = vst.msk [vmem:[#allocation2 + $0x1c] sm:$0xf] %vm301, 0
        %306 = vst.msk [vmem:[#allocation2 + $0x30] sm:$0xf] %vm301, 0
        %307 = vst.msk [vmem:[#allocation2 + $0x34] sm:$0xf] %vm301, 0
        %308 = vst.msk [vmem:[#allocation2 + $0x48] sm:$0xf] %vm301, 0
        %309 = vst.msk [vmem:[#allocation2 + $0x4c] sm:$0xf] %vm301, 0
        %310 = vst.msk [vmem:[#allocation2 + $0x60] sm:$0xf] %vm301, 0
        %311 = vst.msk [vmem:[#allocation2 + $0x64] sm:$0xf] %vm301, 0
        %312 = vst.msk [vmem:[#allocation2 + $0x78] sm:$0xf] %vm301, 0
        %313 = vst.msk [vmem:[#allocation2 + $0x7c] sm:$0xf] %vm301, 0
        %314 = vst.msk [vmem:[#allocation2 + $0x90] sm:$0xf] %vm301, 0
        %315 = vst.msk [vmem:[#allocation2 + $0x94] sm:$0xf] %vm301, 0
        %316 = vst.msk [vmem:[#allocation2 + $0xa8] sm:$0xf] %vm301, 0
        %317 = vst.msk [vmem:[#allocation2 + $0xac] sm:$0xf] %vm301, 0
        %318 = vst.msk [vmem:[#allocation2 + $0xc0] sm:$0xf] %vm301, 0
        %319 = vst.msk [vmem:[#allocation2 + $0xc4] sm:$0xf] %vm301, 0
        %320 = vst.msk [vmem:[#allocation2 + $0xd8] sm:$0xf] %vm301, 0
        %321 = vst.msk [vmem:[#allocation2 + $0xdc] sm:$0xf] %vm301, 0
        %322 = vst.msk [vmem:[#allocation2 + $0xf0] sm:$0xf] %vm301, 0
        %323 = vst.msk [vmem:[#allocation2 + $0xf4] sm:$0xf] %vm301, 0
        %324 = vst.msk [vmem:[#allocation2 + $0x108] sm:$0xf] %vm301, 0
        %325 = vst.msk [vmem:[#allocation2 + $0x10c] sm:$0xf] %vm301, 0
        %326 = vst.msk [vmem:[#allocation2 + $0x120] sm:$0xf] %vm301, 0
        %327 = vst.msk [vmem:[#allocation2 + $0x124] sm:$0xf] %vm301, 0
        %328 = vst.msk [vmem:[#allocation2 + $0x138] sm:$0xf] %vm301, 0
        %329 = vst.msk [vmem:[#allocation2 + $0x13c] sm:$0xf] %vm301, 0
        %330 = vst.msk [vmem:[#allocation2 + $0x150] sm:$0xf] %vm301, 0
        %331 = vst.msk [vmem:[#allocation2 + $0x154] sm:$0xf] %vm301, 0
        %332 = vst.msk [vmem:[#allocation2 + $0x168] sm:$0xf] %vm301, 0
        %333 = vst.msk [vmem:[#allocation2 + $0x16c] sm:$0xf] %vm301, 0
        %334 = vst.msk [vmem:[#allocation2 + $0x180] sm:$0xf] %vm301, 0
        %335 = vst.msk [vmem:[#allocation2 + $0x184] sm:$0xf] %vm301, 0
        %336 = vst.msk [vmem:[#allocation2 + $0x198] sm:$0xf] %vm301, 0
        %337 = vst.msk [vmem:[#allocation2 + $0x19c] sm:$0xf] %vm301, 0
        %338 = vst.msk [vmem:[#allocation2 + $0x10] sm:$0xf] %vm301, 0
        %339 = vst.msk [vmem:[#allocation2 + $0x14] sm:$0xf] %vm301, 0
        %340 = vst.msk [vmem:[#allocation2 + $0x28] sm:$0xf] %vm301, 0
        %341 = vst.msk [vmem:[#allocation2 + $0x2c] sm:$0xf] %vm301, 0
        %342 = vst.msk [vmem:[#allocation2 + $0x40] sm:$0xf] %vm301, 0
        %343 = vst.msk [vmem:[#allocation2 + $0x44] sm:$0xf] %vm301, 0
        %344 = vst.msk [vmem:[#allocation2 + $0x58] sm:$0xf] %vm301, 0
        %345 = vst.msk [vmem:[#allocation2 + $0x5c] sm:$0xf] %vm301, 0
        %346 = vst.msk [vmem:[#allocation2 + $0x70] sm:$0xf] %vm301, 0
        %347 = vst.msk [vmem:[#allocation2 + $0x74] sm:$0xf] %vm301, 0
        %348 = vst.msk [vmem:[#allocation2 + $0x88] sm:$0xf] %vm301, 0
        %349 = vst.msk [vmem:[#allocation2 + $0x8c] sm:$0xf] %vm301, 0
        %350 = vst.msk [vmem:[#allocation2 + $0xa0] sm:$0xf] %vm301, 0
        %351 = vst.msk [vmem:[#allocation2 + $0xa4] sm:$0xf] %vm301, 0
        %352 = vst.msk [vmem:[#allocation2 + $0xb8] sm:$0xf] %vm301, 0
        %353 = vst.msk [vmem:[#allocation2 + $0xbc] sm:$0xf] %vm301, 0
        %354 = vst.msk [vmem:[#allocation2 + $0xd0] sm:$0xf] %vm301, 0
        %355 = vst.msk [vmem:[#allocation2 + $0xd4] sm:$0xf] %vm301, 0
        %356 = vst.msk [vmem:[#allocation2 + $0xe8] sm:$0xf] %vm301, 0
        %357 = vst.msk [vmem:[#allocation2 + $0xec] sm:$0xf] %vm301, 0
        %358 = vst.msk [vmem:[#allocation2 + $0x100] sm:$0xf] %vm301, 0
        %359 = vst.msk [vmem:[#allocation2 + $0x104] sm:$0xf] %vm301, 0
        %360 = vst.msk [vmem:[#allocation2 + $0x118] sm:$0xf] %vm301, 0
        %361 = vst.msk [vmem:[#allocation2 + $0x11c] sm:$0xf] %vm301, 0
        %362 = vst.msk [vmem:[#allocation2 + $0x130] sm:$0xf] %vm301, 0
        %363 = vst.msk [vmem:[#allocation2 + $0x134] sm:$0xf] %vm301, 0
        %364 = vst.msk [vmem:[#allocation2 + $0x148] sm:$0xf] %vm301, 0
        %365 = vst.msk [vmem:[#allocation2 + $0x14c] sm:$0xf] %vm301, 0
        %366 = vst.msk [vmem:[#allocation2 + $0x160] sm:$0xf] %vm301, 0
        %367 = vst.msk [vmem:[#allocation2 + $0x164] sm:$0xf] %vm301, 0
        %368 = vst.msk [vmem:[#allocation2 + $0x178] sm:$0xf] %vm301, 0
        %369 = vst.msk [vmem:[#allocation2 + $0x17c] sm:$0xf] %vm301, 0
        %370 = vst.msk [vmem:[#allocation2 + $0x190] sm:$0xf] %vm301, 0
        %371 = vst.msk [vmem:[#allocation2 + $0x194] sm:$0xf] %vm301, 0
        %372 = vst.msk [vmem:[#allocation2 + $0x1a8] sm:$0xf] %vm301, 0
        %373 = vst.msk [vmem:[#allocation2 + $0x1ac] sm:$0xf] %vm301, 0
        %374 = vst.msk [vmem:[#allocation2 + $0x8] sm:$0xf] %vm301, 0
        %375 = vst.msk [vmem:[#allocation2 + $0xc] sm:$0xf] %vm301, 0
        %s376 = scalar_lea.vmem [#allocation2], 408
        %377 = vst.msk [vmem:[%s376 + $0x8] sm:$0xf] %vm301, 0
        %378 = vst.msk [vmem:[%s376 + $0xc] sm:$0xf] %vm301, 0
        %v379 = vld [vmem:[%s277] sm:$0xf]
        %v380 = vld [vmem:[%s277 + $0x4] sm:$0xf]
        %v381 = vld [vmem:[%s277 + $0x8] sm:$0xf]
        %v382 = vld [vmem:[%s277 + $0xc] sm:$0xf]
        %v383 = vld [vmem:[%s277 + $0x10] sm:$0xf]
        %v384 = vld [vmem:[%s277 + $0x14] sm:$0xf]
        %v385 = vld [vmem:[%s277 + $0x18] sm:$0xf]
        %v386 = vld [vmem:[%s277 + $0x1c] sm:$0xf]
        %v387 = vld [vmem:[%s277 + $0x20] sm:$0xf]
        %v388 = vld [vmem:[%s277 + $0x24] sm:$0xf]
        %v389 = vld [vmem:[%s277 + $0x28] sm:$0xf]
        %v390 = vld [vmem:[%s277 + $0x2c] sm:$0xf]
        %v391 = vld [vmem:[%s277 + $0x30] sm:$0xf]
        %v392 = vld [vmem:[%s277 + $0x34] sm:$0xf]
        %v393 = vld [vmem:[%s277 + $0x38] sm:$0xf]
        %v394 = vld [vmem:[%s277 + $0x3c] sm:$0xf]
        %v395 = vld [vmem:[%s277 + $0x40] sm:$0xf]
        %v396 = vld [vmem:[%s277 + $0x44] sm:$0xf]
        %v397 = vld [vmem:[%s277 + $0x48] sm:$0xf]
        %v398 = vld [vmem:[%s277 + $0x4c] sm:$0xf]
        %v399 = vld [vmem:[%s277 + $0x50] sm:$0xf]
        %v400 = vld [vmem:[%s277 + $0x54] sm:$0xf]
        %v401 = vld [vmem:[%s277 + $0x58] sm:$0xf]
        %v402 = vld [vmem:[%s277 + $0x5c] sm:$0xf]
        %v403 = vld [vmem:[%s277 + $0x60] sm:$0xf]
        %v404 = vld [vmem:[%s277 + $0x64] sm:$0xf]
        %v405 = vld [vmem:[%s277 + $0x68] sm:$0xf]
        %v406 = vld [vmem:[%s277 + $0x6c] sm:$0xf]
        %v407 = vld [vmem:[%s277 + $0x70] sm:$0xf]
        %v408 = vld [vmem:[%s277 + $0x74] sm:$0xf]
        %v409 = vld [vmem:[%s277 + $0x78] sm:$0xf]
        %v410 = vld [vmem:[%s277 + $0x7c] sm:$0xf]
        %v411 = vunpack.c.l.bf16 %v379
        %v412 = vunpack.c.l.bf16 %v380
        %v413 = vunpack.c.l.bf16 %v381
        %v414 = vunpack.c.l.bf16 %v382
        %v415 = vunpack.c.l.bf16 %v383
        %v416 = vunpack.c.l.bf16 %v384
        %v417 = vunpack.c.l.bf16 %v385
        %v418 = vunpack.c.l.bf16 %v386
        %v419 = vunpack.c.l.bf16 %v387
        %v420 = vunpack.c.l.bf16 %v388
        %v421 = vunpack.c.l.bf16 %v389
        %v422 = vunpack.c.l.bf16 %v390
        %v423 = vunpack.c.l.bf16 %v391
        %v424 = vunpack.c.l.bf16 %v392
        %v425 = vunpack.c.l.bf16 %v393
        %v426 = vunpack.c.l.bf16 %v394
        %v427 = vunpack.c.l.bf16 %v395
        %v428 = vunpack.c.l.bf16 %v396
        %v429 = vunpack.c.l.bf16 %v397
        %v430 = vunpack.c.l.bf16 %v398
        %v431 = vunpack.c.l.bf16 %v399
        %v432 = vunpack.c.l.bf16 %v400
        %v433 = vunpack.c.l.bf16 %v401
        %v434 = vunpack.c.l.bf16 %v402
        %v435 = vunpack.c.l.bf16 %v403
        %v436 = vunpack.c.l.bf16 %v404
        %v437 = vunpack.c.l.bf16 %v405
        %v438 = vunpack.c.l.bf16 %v406
        %v439 = vunpack.c.l.bf16 %v407
        %v440 = vunpack.c.l.bf16 %v408
        %v441 = vunpack.c.l.bf16 %v409
        %v442 = vunpack.c.l.bf16 %v410
        %v443 = vld [vmem:[%s3] sm:$0x1]
        %v445 = vperm.slane %v443, 0
        %v447 = vmul.f32 %v411, %v445
        %v448 = vmul.f32 %v412, %v445
        %v449 = vmul.f32 %v413, %v445
        %v450 = vmul.f32 %v414, %v445
        %v451 = vmul.f32 %v415, %v445
        %v452 = vmul.f32 %v416, %v445
        %v453 = vmul.f32 %v417, %v445
        %v454 = vmul.f32 %v418, %v445
        %v455 = vmul.f32 %v419, %v445
        %v456 = vmul.f32 %v420, %v445
        %v457 = vmul.f32 %v421, %v445
        %v458 = vmul.f32 %v422, %v445
        %v459 = vmul.f32 %v423, %v445
        %v460 = vmul.f32 %v424, %v445
        %v461 = vmul.f32 %v425, %v445
        %v462 = vmul.f32 %v426, %v445
        %v463 = vmul.f32 %v427, %v445
        %v464 = vmul.f32 %v428, %v445
        %v465 = vmul.f32 %v429, %v445
        %v466 = vmul.f32 %v430, %v445
        %v467 = vmul.f32 %v431, %v445
        %v468 = vmul.f32 %v432, %v445
        %v469 = vmul.f32 %v433, %v445
        %v470 = vmul.f32 %v434, %v445
        %v471 = vmul.f32 %v435, %v445
        %v472 = vmul.f32 %v436, %v445
        %v473 = vmul.f32 %v437, %v445
        %v474 = vmul.f32 %v438, %v445
        %v475 = vmul.f32 %v439, %v445
        %v476 = vmul.f32 %v440, %v445
        %v477 = vmul.f32 %v441, %v445
        %v478 = vmul.f32 %v442, %v445
        %v479 = vld [vmem:[%s4] sm:$0x1]
        %v481 = vperm.slane %v479, 0
        %v483 = vadd.f32 %v447, %v481
        %v484 = vadd.f32 %v448, %v481
        %v485 = vadd.f32 %v449, %v481
        %v486 = vadd.f32 %v450, %v481
        %v487 = vadd.f32 %v451, %v481
        %v488 = vadd.f32 %v452, %v481
        %v489 = vadd.f32 %v453, %v481
        %v490 = vadd.f32 %v454, %v481
        %v491 = vadd.f32 %v455, %v481
        %v492 = vadd.f32 %v456, %v481
        %v493 = vadd.f32 %v457, %v481
        %v494 = vadd.f32 %v458, %v481
        %v495 = vadd.f32 %v459, %v481
        %v496 = vadd.f32 %v460, %v481
        %v497 = vadd.f32 %v461, %v481
        %v498 = vadd.f32 %v462, %v481
        %v499 = vadd.f32 %v463, %v481
        %v500 = vadd.f32 %v464, %v481
        %v501 = vadd.f32 %v465, %v481
        %v502 = vadd.f32 %v466, %v481
        %v503 = vadd.f32 %v467, %v481
        %v504 = vadd.f32 %v468, %v481
        %v505 = vadd.f32 %v469, %v481
        %v506 = vadd.f32 %v470, %v481
        %v507 = vadd.f32 %v471, %v481
        %v508 = vadd.f32 %v472, %v481
        %v509 = vadd.f32 %v473, %v481
        %v510 = vadd.f32 %v474, %v481
        %v511 = vadd.f32 %v475, %v481
        %v512 = vadd.f32 %v476, %v481
        %v513 = vadd.f32 %v477, %v481
        %v514 = vadd.f32 %v478, %v481
        %v515 = vmax.f32 %v483, 0.0
        %v516 = vmax.f32 %v484, 0.0
        %v517 = vmax.f32 %v485, 0.0
        %v518 = vmax.f32 %v486, 0.0
        %v519 = vmax.f32 %v487, 0.0
        %v520 = vmax.f32 %v488, 0.0
        %v521 = vmax.f32 %v489, 0.0
        %v522 = vmax.f32 %v490, 0.0
        %v523 = vmax.f32 %v491, 0.0
        %v524 = vmax.f32 %v492, 0.0
        %v525 = vmax.f32 %v493, 0.0
        %v526 = vmax.f32 %v494, 0.0
        %v527 = vmax.f32 %v495, 0.0
        %v528 = vmax.f32 %v496, 0.0
        %v529 = vmax.f32 %v497, 0.0
        %v530 = vmax.f32 %v498, 0.0
        %v531 = vmax.f32 %v499, 0.0
        %v532 = vmax.f32 %v500, 0.0
        %v533 = vmax.f32 %v501, 0.0
        %v534 = vmax.f32 %v502, 0.0
        %v535 = vmax.f32 %v503, 0.0
        %v536 = vmax.f32 %v504, 0.0
        %v537 = vmax.f32 %v505, 0.0
        %v538 = vmax.f32 %v506, 0.0
        %v539 = vmax.f32 %v507, 0.0
        %v540 = vmax.f32 %v508, 0.0
        %v541 = vmax.f32 %v509, 0.0
        %v542 = vmax.f32 %v510, 0.0
        %v543 = vmax.f32 %v511, 0.0
        %v544 = vmax.f32 %v512, 0.0
        %v545 = vmax.f32 %v513, 0.0
        %v546 = vmax.f32 %v514, 0.0
        %v547 = vpack.c.bf16 %v515, %v515
        %v548 = vpack.c.bf16 %v516, %v516
        %v549 = vpack.c.bf16 %v517, %v517
        %v550 = vpack.c.bf16 %v518, %v518
        %v551 = vpack.c.bf16 %v519, %v519
        %v552 = vpack.c.bf16 %v520, %v520
        %v553 = vpack.c.bf16 %v521, %v521
        %v554 = vpack.c.bf16 %v522, %v522
        %v555 = vpack.c.bf16 %v523, %v523
        %v556 = vpack.c.bf16 %v524, %v524
        %v557 = vpack.c.bf16 %v525, %v525
        %v558 = vpack.c.bf16 %v526, %v526
        %v559 = vpack.c.bf16 %v527, %v527
        %v560 = vpack.c.bf16 %v528, %v528
        %v561 = vpack.c.bf16 %v529, %v529
        %v562 = vpack.c.bf16 %v530, %v530
        %v563 = vpack.c.bf16 %v531, %v531
        %v564 = vpack.c.bf16 %v532, %v532
        %v565 = vpack.c.bf16 %v533, %v533
        %v566 = vpack.c.bf16 %v534, %v534
        %v567 = vpack.c.bf16 %v535, %v535
        %v568 = vpack.c.bf16 %v536, %v536
        %v569 = vpack.c.bf16 %v537, %v537
        %v570 = vpack.c.bf16 %v538, %v538
        %v571 = vpack.c.bf16 %v539, %v539
        %v572 = vpack.c.bf16 %v540, %v540
        %v573 = vpack.c.bf16 %v541, %v541
        %v574 = vpack.c.bf16 %v542, %v542
        %v575 = vpack.c.bf16 %v543, %v543
        %v576 = vpack.c.bf16 %v544, %v544
        %v577 = vpack.c.bf16 %v545, %v545
        %v578 = vpack.c.bf16 %v546, %v546
        %s579 = scalar_lea.vmem [#allocation2], 24
        %580 = vst.msk [vmem:[%s579 + $0x8] sm:$0xf] %vm301, %v547
        %581 = vst.msk [vmem:[%s579 + $0xc] sm:$0xf] %vm301, %v548
        %582 = vst.msk [vmem:[%s579 + $0x20] sm:$0xf] %vm301, %v549
        %583 = vst.msk [vmem:[%s579 + $0x24] sm:$0xf] %vm301, %v550
        %584 = vst.msk [vmem:[%s579 + $0x38] sm:$0xf] %vm301, %v551
        %585 = vst.msk [vmem:[%s579 + $0x3c] sm:$0xf] %vm301, %v552
        %586 = vst.msk [vmem:[%s579 + $0x50] sm:$0xf] %vm301, %v553
        %587 = vst.msk [vmem:[%s579 + $0x54] sm:$0xf] %vm301, %v554
        %588 = vst.msk [vmem:[%s579 + $0x68] sm:$0xf] %vm301, %v555
        %589 = vst.msk [vmem:[%s579 + $0x6c] sm:$0xf] %vm301, %v556
        %590 = vst.msk [vmem:[%s579 + $0x80] sm:$0xf] %vm301, %v557
        %591 = vst.msk [vmem:[%s579 + $0x84] sm:$0xf] %vm301, %v558
        %592 = vst.msk [vmem:[%s579 + $0x98] sm:$0xf] %vm301, %v559
        %593 = vst.msk [vmem:[%s579 + $0x9c] sm:$0xf] %vm301, %v560
        %594 = vst.msk [vmem:[%s579 + $0xb0] sm:$0xf] %vm301, %v561
        %595 = vst.msk [vmem:[%s579 + $0xb4] sm:$0xf] %vm301, %v562
        %596 = vst.msk [vmem:[%s579 + $0xc8] sm:$0xf] %vm301, %v563
        %597 = vst.msk [vmem:[%s579 + $0xcc] sm:$0xf] %vm301, %v564
        %598 = vst.msk [vmem:[%s579 + $0xe0] sm:$0xf] %vm301, %v565
        %599 = vst.msk [vmem:[%s579 + $0xe4] sm:$0xf] %vm301, %v566
        %600 = vst.msk [vmem:[%s579 + $0xf8] sm:$0xf] %vm301, %v567
        %601 = vst.msk [vmem:[%s579 + $0xfc] sm:$0xf] %vm301, %v568
        %602 = vst.msk [vmem:[%s579 + $0x110] sm:$0xf] %vm301, %v569
        %603 = vst.msk [vmem:[%s579 + $0x114] sm:$0xf] %vm301, %v570
        %604 = vst.msk [vmem:[%s579 + $0x128] sm:$0xf] %vm301, %v571
        %605 = vst.msk [vmem:[%s579 + $0x12c] sm:$0xf] %vm301, %v572
        %606 = vst.msk [vmem:[%s579 + $0x140] sm:$0xf] %vm301, %v573
        %607 = vst.msk [vmem:[%s579 + $0x144] sm:$0xf] %vm301, %v574
        %608 = vst.msk [vmem:[%s579 + $0x158] sm:$0xf] %vm301, %v575
        %609 = vst.msk [vmem:[%s579 + $0x15c] sm:$0xf] %vm301, %v576
        %610 = vst.msk [vmem:[%s579 + $0x170] sm:$0xf] %vm301, %v577
        %611 = vst.msk [vmem:[%s579 + $0x174] sm:$0xf] %vm301, %v578
      $region44: #{double_conv_forward.4} parent=39 // pred_fallthru
        _
      %s612 = smul.u32 %s23, 16
      %s613 = smul.u32 %s612, 6
      %s614 = smul.addr %s613, 4
      %s615 = scalar_lea.vmem [#allocation2], %s614
      %v616 = vld [vmem:[%s615 + $0x4] sm:$0x8]
      %v617 = vld [vmem:[%s615 + $0x8] sm:$0xf]
      %v618 = vld [vmem:[%s615 + $0xc] sm:$0xf]
      %v619 = vld [vmem:[%s615 + $0x1c] sm:$0x8]
      %v620 = vld [vmem:[%s615 + $0x20] sm:$0xf]
      %v621 = vld [vmem:[%s615 + $0x24] sm:$0xf]
      %v622 = vld [vmem:[%s615 + $0x34] sm:$0x8]
      %v623 = vld [vmem:[%s615 + $0x38] sm:$0xf]
      %v624 = vld [vmem:[%s615 + $0x3c] sm:$0xf]
      %v625 = vld [vmem:[%s615 + $0x4c] sm:$0x8]
      %v626 = vld [vmem:[%s615 + $0x50] sm:$0xf]
      %v627 = vld [vmem:[%s615 + $0x54] sm:$0xf]
      %v628 = vld [vmem:[%s615 + $0x64] sm:$0x8]
      %v629 = vld [vmem:[%s615 + $0x68] sm:$0xf]
      %v630 = vld [vmem:[%s615 + $0x6c] sm:$0xf]
      %v631 = vld [vmem:[%s615 + $0x7c] sm:$0x8]
      %v632 = vld [vmem:[%s615 + $0x80] sm:$0xf]
      %v633 = vld [vmem:[%s615 + $0x84] sm:$0xf]
      %v634 = vld [vmem:[%s615 + $0x94] sm:$0x8]
      %v635 = vld [vmem:[%s615 + $0x98] sm:$0xf]
      %v636 = vld [vmem:[%s615 + $0x9c] sm:$0xf]
      %v637 = vld [vmem:[%s615 + $0xac] sm:$0x8]
      %v638 = vld [vmem:[%s615 + $0xb0] sm:$0xf]
      %v639 = vld [vmem:[%s615 + $0xb4] sm:$0xf]
      %v640 = vld [vmem:[%s615 + $0xc4] sm:$0x8]
      %v641 = vld [vmem:[%s615 + $0xc8] sm:$0xf]
      %v642 = vld [vmem:[%s615 + $0xcc] sm:$0xf]
      %v643 = vld [vmem:[%s615 + $0xdc] sm:$0x8]
      %v644 = vld [vmem:[%s615 + $0xe0] sm:$0xf]
      %v645 = vld [vmem:[%s615 + $0xe4] sm:$0xf]
      %v646 = vld [vmem:[%s615 + $0xf4] sm:$0x8]
      %v647 = vld [vmem:[%s615 + $0xf8] sm:$0xf]
      %v648 = vld [vmem:[%s615 + $0xfc] sm:$0xf]
      %v649 = vld [vmem:[%s615 + $0x10c] sm:$0x8]
      %v650 = vld [vmem:[%s615 + $0x110] sm:$0xf]
      %v651 = vld [vmem:[%s615 + $0x114] sm:$0xf]
      %v652 = vld [vmem:[%s615 + $0x124] sm:$0x8]
      %v653 = vld [vmem:[%s615 + $0x128] sm:$0xf]
      %v654 = vld [vmem:[%s615 + $0x12c] sm:$0xf]
      %v655 = vld [vmem:[%s615 + $0x13c] sm:$0x8]
      %v656 = vld [vmem:[%s615 + $0x140] sm:$0xf]
      %v657 = vld [vmem:[%s615 + $0x144] sm:$0xf]
      %v658 = vld [vmem:[%s615 + $0x154] sm:$0x8]
      %v659 = vld [vmem:[%s615 + $0x158] sm:$0xf]
      %v660 = vld [vmem:[%s615 + $0x15c] sm:$0xf]
      %v661 = vld [vmem:[%s615 + $0x16c] sm:$0x8]
      %v662 = vld [vmem:[%s615 + $0x170] sm:$0xf]
      %v663 = vld [vmem:[%s615 + $0x174] sm:$0xf]
      %vm664 = vsmask.f32 256
      %vm665 = vsmask.f32 4368
      %vm666 = vmor %vm664, %vm665
      %v668 = vshrl.u32 %v616, 16
      %v670 = vrot.slane %v668, 7
      %v671 = vrot.slane %v670, 4
      %v673 = vshrl.u32 %v617, 16
      %v675 = vrot.slane %v673, 7
      %v676 = vshll.u32 %v617, 16
      %v678 = vor.u32 %v675, %v676
      %v679 = vsel %vm666, %v671, %v678
      %v680 = vrot.slane %v675, 4
      %v682 = vshrl.u32 %v618, 16
      %v684 = vrot.slane %v682, 7
      %v685 = vshll.u32 %v618, 16
      %v687 = vor.u32 %v684, %v685
      %v688 = vsel %vm666, %v680, %v687
      %v690 = vshrl.u32 %v619, 16
      %v692 = vrot.slane %v690, 7
      %v693 = vrot.slane %v692, 4
      %v695 = vshrl.u32 %v620, 16
      %v697 = vrot.slane %v695, 7
      %v698 = vshll.u32 %v620, 16
      %v700 = vor.u32 %v697, %v698
      %v701 = vsel %vm666, %v693, %v700
      %v702 = vrot.slane %v697, 4
      %v704 = vshrl.u32 %v621, 16
      %v706 = vrot.slane %v704, 7
      %v707 = vshll.u32 %v621, 16
      %v709 = vor.u32 %v706, %v707
      %v710 = vsel %vm666, %v702, %v709
      %v712 = vshrl.u32 %v622, 16
      %v714 = vrot.slane %v712, 7
      %v715 = vrot.slane %v714, 4
      %v717 = vshrl.u32 %v623, 16
      %v719 = vrot.slane %v717, 7
      %v720 = vshll.u32 %v623, 16
      %v722 = vor.u32 %v719, %v720
      %v723 = vsel %vm666, %v715, %v722
      %v724 = vrot.slane %v719, 4
      %v726 = vshrl.u32 %v624, 16
      %v728 = vrot.slane %v726, 7
      %v729 = vshll.u32 %v624, 16
      %v731 = vor.u32 %v728, %v729
      %v732 = vsel %vm666, %v724, %v731
      %v734 = vshrl.u32 %v625, 16
      %v736 = vrot.slane %v734, 7
      %v737 = vrot.slane %v736, 4
      %v739 = vshrl.u32 %v626, 16
      %v741 = vrot.slane %v739, 7
      %v742 = vshll.u32 %v626, 16
      %v744 = vor.u32 %v741, %v742
      %v745 = vsel %vm666, %v737, %v744
      %v746 = vrot.slane %v741, 4
      %v748 = vshrl.u32 %v627, 16
      %v750 = vrot.slane %v748, 7
      %v751 = vshll.u32 %v627, 16
      %v753 = vor.u32 %v750, %v751
      %v754 = vsel %vm666, %v746, %v753
      %v756 = vshrl.u32 %v628, 16
      %v758 = vrot.slane %v756, 7
      %v759 = vrot.slane %v758, 4
      %v761 = vshrl.u32 %v629, 16
      %v763 = vrot.slane %v761, 7
      %v764 = vshll.u32 %v629, 16
      %v766 = vor.u32 %v763, %v764
      %v767 = vsel %vm666, %v759, %v766
      %v768 = vrot.slane %v763, 4
      %v770 = vshrl.u32 %v630, 16
      %v772 = vrot.slane %v770, 7
      %v773 = vshll.u32 %v630, 16
      %v775 = vor.u32 %v772, %v773
      %v776 = vsel %vm666, %v768, %v775
      %v778 = vshrl.u32 %v631, 16
      %v780 = vrot.slane %v778, 7
      %v781 = vrot.slane %v780, 4
      %v783 = vshrl.u32 %v632, 16
      %v785 = vrot.slane %v783, 7
      %v786 = vshll.u32 %v632, 16
      %v788 = vor.u32 %v785, %v786
      %v789 = vsel %vm666, %v781, %v788
      %v790 = vrot.slane %v785, 4
      %v792 = vshrl.u32 %v633, 16
      %v794 = vrot.slane %v792, 7
      %v795 = vshll.u32 %v633, 16
      %v797 = vor.u32 %v794, %v795
      %v798 = vsel %vm666, %v790, %v797
      %v800 = vshrl.u32 %v634, 16
      %v802 = vrot.slane %v800, 7
      %v803 = vrot.slane %v802, 4
      %v805 = vshrl.u32 %v635, 16
      %v807 = vrot.slane %v805, 7
      %v808 = vshll.u32 %v635, 16
      %v810 = vor.u32 %v807, %v808
      %v811 = vsel %vm666, %v803, %v810
      %v812 = vrot.slane %v807, 4
      %v814 = vshrl.u32 %v636, 16
      %v816 = vrot.slane %v814, 7
      %v817 = vshll.u32 %v636, 16
      %v819 = vor.u32 %v816, %v817
      %v820 = vsel %vm666, %v812, %v819
      %v822 = vshrl.u32 %v637, 16
      %v824 = vrot.slane %v822, 7
      %v825 = vrot.slane %v824, 4
      %v827 = vshrl.u32 %v638, 16
      %v829 = vrot.slane %v827, 7
      %v830 = vshll.u32 %v638, 16
      %v832 = vor.u32 %v829, %v830
      %v833 = vsel %vm666, %v825, %v832
      %v834 = vrot.slane %v829, 4
      %v836 = vshrl.u32 %v639, 16
      %v838 = vrot.slane %v836, 7
      %v839 = vshll.u32 %v639, 16
      %v841 = vor.u32 %v838, %v839
      %v842 = vsel %vm666, %v834, %v841
      %v844 = vshrl.u32 %v640, 16
      %v846 = vrot.slane %v844, 7
      %v847 = vrot.slane %v846, 4
      %v849 = vshrl.u32 %v641, 16
      %v851 = vrot.slane %v849, 7
      %v852 = vshll.u32 %v641, 16
      %v854 = vor.u32 %v851, %v852
      %v855 = vsel %vm666, %v847, %v854
      %v856 = vrot.slane %v851, 4
      %v858 = vshrl.u32 %v642, 16
      %v860 = vrot.slane %v858, 7
      %v861 = vshll.u32 %v642, 16
      %v863 = vor.u32 %v860, %v861
      %v864 = vsel %vm666, %v856, %v863
      %v866 = vshrl.u32 %v643, 16
      %v868 = vrot.slane %v866, 7
      %v869 = vrot.slane %v868, 4
      %v871 = vshrl.u32 %v644, 16
      %v873 = vrot.slane %v871, 7
      %v874 = vshll.u32 %v644, 16
      %v876 = vor.u32 %v873, %v874
      %v877 = vsel %vm666, %v869, %v876
      %v878 = vrot.slane %v873, 4
      %v880 = vshrl.u32 %v645, 16
      %v882 = vrot.slane %v880, 7
      %v883 = vshll.u32 %v645, 16
      %v885 = vor.u32 %v882, %v883
      %v886 = vsel %vm666, %v878, %v885
      %v888 = vshrl.u32 %v646, 16
      %v890 = vrot.slane %v888, 7
      %v891 = vrot.slane %v890, 4
      %v893 = vshrl.u32 %v647, 16
      %v895 = vrot.slane %v893, 7
      %v896 = vshll.u32 %v647, 16
      %v898 = vor.u32 %v895, %v896
      %v899 = vsel %vm666, %v891, %v898
      %v900 = vrot.slane %v895, 4
      %v902 = vshrl.u32 %v648, 16
      %v904 = vrot.slane %v902, 7
      %v905 = vshll.u32 %v648, 16
      %v907 = vor.u32 %v904, %v905
      %v908 = vsel %vm666, %v900, %v907
      %v910 = vshrl.u32 %v649, 16
      %v912 = vrot.slane %v910, 7
      %v913 = vrot.slane %v912, 4
      %v915 = vshrl.u32 %v650, 16
      %v917 = vrot.slane %v915, 7
      %v918 = vshll.u32 %v650, 16
      %v920 = vor.u32 %v917, %v918
      %v921 = vsel %vm666, %v913, %v920
      %v922 = vrot.slane %v917, 4
      %v924 = vshrl.u32 %v651, 16
      %v926 = vrot.slane %v924, 7
      %v927 = vshll.u32 %v651, 16
      %v929 = vor.u32 %v926, %v927
      %v930 = vsel %vm666, %v922, %v929
      %v932 = vshrl.u32 %v652, 16
      %v934 = vrot.slane %v932, 7
      %v935 = vrot.slane %v934, 4
      %v937 = vshrl.u32 %v653, 16
      %v939 = vrot.slane %v937, 7
      %v940 = vshll.u32 %v653, 16
      %v942 = vor.u32 %v939, %v940
      %v943 = vsel %vm666, %v935, %v942
      %v944 = vrot.slane %v939, 4
      %v946 = vshrl.u32 %v654, 16
      %v948 = vrot.slane %v946, 7
      %v949 = vshll.u32 %v654, 16
      %v951 = vor.u32 %v948, %v949
      %v952 = vsel %vm666, %v944, %v951
      %v954 = vshrl.u32 %v655, 16
      %v956 = vrot.slane %v954, 7
      %v957 = vrot.slane %v956, 4
      %v959 = vshrl.u32 %v656, 16
      %v961 = vrot.slane %v959, 7
      %v962 = vshll.u32 %v656, 16
      %v964 = vor.u32 %v961, %v962
      %v965 = vsel %vm666, %v957, %v964
      %v966 = vrot.slane %v961, 4
      %v968 = vshrl.u32 %v657, 16
      %v970 = vrot.slane %v968, 7
      %v971 = vshll.u32 %v657, 16
      %v973 = vor.u32 %v970, %v971
      %v974 = vsel %vm666, %v966, %v973
      %v976 = vshrl.u32 %v658, 16
      %v978 = vrot.slane %v976, 7
      %v979 = vrot.slane %v978, 4
      %v981 = vshrl.u32 %v659, 16
      %v983 = vrot.slane %v981, 7
      %v984 = vshll.u32 %v659, 16
      %v986 = vor.u32 %v983, %v984
      %v987 = vsel %vm666, %v979, %v986
      %v988 = vrot.slane %v983, 4
      %v990 = vshrl.u32 %v660, 16
      %v992 = vrot.slane %v990, 7
      %v993 = vshll.u32 %v660, 16
      %v995 = vor.u32 %v992, %v993
      %v996 = vsel %vm666, %v988, %v995
      %v998 = vshrl.u32 %v661, 16
      %v1000 = vrot.slane %v998, 7
      %v1001 = vrot.slane %v1000, 4
      %v1003 = vshrl.u32 %v662, 16
      %v1005 = vrot.slane %v1003, 7
      %v1006 = vshll.u32 %v662, 16
      %v1008 = vor.u32 %v1005, %v1006
      %v1009 = vsel %vm666, %v1001, %v1008
      %v1010 = vrot.slane %v1005, 4
      %v1012 = vshrl.u32 %v663, 16
      %v1014 = vrot.slane %v1012, 7
      %v1015 = vshll.u32 %v663, 16
      %v1017 = vor.u32 %v1014, %v1015
      %v1018 = vsel %vm666, %v1010, %v1017
      %v1019 = vld [vmem:[%s1] sm:$0xf]
      %v1020 = vld [vmem:[%s1 + $0x4] sm:$0xf]
      %v1021 = vld [vmem:[%s1 + $0x8] sm:$0xf]
      %v1022 = vld [vmem:[%s1 + $0xc] sm:$0xf]
      %s1023 = scalar_lea.vmem %s1, 16
      %v1024 = vld [vmem:[%s1023] sm:$0xf]
      %v1025 = vld [vmem:[%s1023 + $0x4] sm:$0xf]
      %v1026 = vld [vmem:[%s1023 + $0x8] sm:$0xf]
      %v1027 = vld [vmem:[%s1023 + $0xc] sm:$0xf]
      %v1060 = vunpack.c.l.b16 %v617
      %v1061 = vunpack.c.l.b16 %v618
      %v1062 = vunpack.c.l.b16 %v620
      %v1063 = vunpack.c.l.b16 %v621
      %v1064 = vunpack.c.l.b16 %v623
      %v1065 = vunpack.c.l.b16 %v624
      %v1066 = vunpack.c.l.b16 %v626
      %v1067 = vunpack.c.l.b16 %v627
      %v1068 = vunpack.c.l.b16 %v629
      %v1069 = vunpack.c.l.b16 %v630
      %v1070 = vunpack.c.l.b16 %v632
      %v1071 = vunpack.c.l.b16 %v633
      %v1072 = vunpack.c.l.b16 %v635
      %v1073 = vunpack.c.l.b16 %v636
      %v1074 = vunpack.c.l.b16 %v638
      %v1075 = vunpack.c.l.b16 %v639
      %v1076 = vunpack.c.l.b16 %v641
      %v1077 = vunpack.c.l.b16 %v642
      %v1078 = vunpack.c.l.b16 %v644
      %v1079 = vunpack.c.l.b16 %v645
      %v1080 = vunpack.c.l.b16 %v647
      %v1081 = vunpack.c.l.b16 %v648
      %v1082 = vunpack.c.l.b16 %v650
      %v1083 = vunpack.c.l.b16 %v651
      %v1084 = vunpack.c.l.b16 %v653
      %v1085 = vunpack.c.l.b16 %v654
      %v1086 = vunpack.c.l.b16 %v656
      %v1087 = vunpack.c.l.b16 %v657
      %v1088 = vunpack.c.l.b16 %v659
      %v1089 = vunpack.c.l.b16 %v660
      %v1090 = vunpack.c.l.b16 %v662
      %v1091 = vunpack.c.l.b16 %v663
      %v1092 = vpack.c.b16 %v1061, %v1060
      %v1093 = vpack.c.b16 %v1063, %v1062
      %v1094 = vpack.c.b16 %v1065, %v1064
      %v1095 = vpack.c.b16 %v1067, %v1066
      %v1096 = vpack.c.b16 %v1069, %v1068
      %v1097 = vpack.c.b16 %v1071, %v1070
      %v1098 = vpack.c.b16 %v1073, %v1072
      %v1099 = vpack.c.b16 %v1075, %v1074
      %v1100 = vpack.c.b16 %v1077, %v1076
      %v1101 = vpack.c.b16 %v1079, %v1078
      %v1102 = vpack.c.b16 %v1081, %v1080
      %v1103 = vpack.c.b16 %v1083, %v1082
      %v1104 = vpack.c.b16 %v1085, %v1084
      %v1105 = vpack.c.b16 %v1087, %v1086
      %v1106 = vpack.c.b16 %v1089, %v1088
      %v1107 = vpack.c.b16 %v1091, %v1090
      %v1112 = vunpack.c.l.b16 %v1024
      %v1113 = vunpack.c.l.b16 %v1025
      %v1114 = vunpack.c.l.b16 %v1026
      %v1115 = vunpack.c.l.b16 %v1027
      %v1116 = vpack.c.b16 %v1113, %v1112
      %v1117 = vpack.c.b16 %v1115, %v1114
      %vm1120 = vcmask 261120
      %v1122 = vsel %vm1120, %v1092, 0
      %v1125 = vsel %vm1120, %v1093, 0
      %v1128 = vsel %vm1120, %v1094, 0
      %v1131 = vsel %vm1120, %v1095, 0
      %v1134 = vsel %vm1120, %v1096, 0
      %v1137 = vsel %vm1120, %v1097, 0
      %v1140 = vsel %vm1120, %v1098, 0
      %v1143 = vsel %vm1120, %v1099, 0
      %v1146 = vsel %vm1120, %v1100, 0
      %v1149 = vsel %vm1120, %v1101, 0
      %v1152 = vsel %vm1120, %v1102, 0
      %v1155 = vsel %vm1120, %v1103, 0
      %v1158 = vsel %vm1120, %v1104, 0
      %v1161 = vsel %vm1120, %v1105, 0
      %v1164 = vsel %vm1120, %v1106, 0
      %v1167 = vsel %vm1120, %v1107, 0
      %1169 = vmatpush.bf16.msra.mxu0 0
      %1170 = vmatpush.bf16.msra.mxu0 0
      %1171 = vmatpush.bf16.msra.mxu0 0
      %1172 = vmatpush.bf16.msra.mxu0 0
      %1173 = vmatpush.bf16.msra.mxu0 0
      %1174 = vmatpush.bf16.msra.mxu0 0
      %1175 = vmatpush.bf16.msra.mxu0 %v1117
      %1176 = vmatpush.bf16.msra.mxu0 %v1116
      %1177 = vmatmul.bf16.gmra.mxu0 %v1122
      %v1178 = vpop.f32.mrf.mxu0
      %v1179 = vadd.f32 0.0, %v1178
      %v1180 = vpop.f32.mrf.mxu0
      %v1181 = vadd.f32 0.0, %v1180
      %1182 = vmatmul.bf16.gmra.mxu0 %v1125
      %v1183 = vpop.f32.mrf.mxu0
      %v1184 = vadd.f32 0.0, %v1183
      %v1185 = vpop.f32.mrf.mxu0
      %v1186 = vadd.f32 0.0, %v1185
      %1187 = vmatmul.bf16.gmra.mxu0 %v1128
      %v1188 = vpop.f32.mrf.mxu0
      %v1189 = vadd.f32 0.0, %v1188
      %v1190 = vpop.f32.mrf.mxu0
      %v1191 = vadd.f32 0.0, %v1190
      %1192 = vmatmul.bf16.gmra.mxu0 %v1131
      %v1193 = vpop.f32.mrf.mxu0
      %v1194 = vadd.f32 0.0, %v1193
      %v1195 = vpop.f32.mrf.mxu0
      %v1196 = vadd.f32 0.0, %v1195
      %1197 = vmatmul.bf16.gmra.mxu0 %v1134
      %v1198 = vpop.f32.mrf.mxu0
      %v1199 = vadd.f32 0.0, %v1198
      %v1200 = vpop.f32.mrf.mxu0
      %v1201 = vadd.f32 0.0, %v1200
      %1202 = vmatmul.bf16.gmra.mxu0 %v1137
      %v1203 = vpop.f32.mrf.mxu0
      %v1204 = vadd.f32 0.0, %v1203
      %v1205 = vpop.f32.mrf.mxu0
      %v1206 = vadd.f32 0.0, %v1205
      %1207 = vmatmul.bf16.gmra.mxu0 %v1140
      %v1208 = vpop.f32.mrf.mxu0
      %v1209 = vadd.f32 0.0, %v1208
      %v1210 = vpop.f32.mrf.mxu0
      %v1211 = vadd.f32 0.0, %v1210
      %1212 = vmatmul.bf16.gmra.mxu0 %v1143
      %v1213 = vpop.f32.mrf.mxu0
      %v1214 = vadd.f32 0.0, %v1213
      %v1215 = vpop.f32.mrf.mxu0
      %v1216 = vadd.f32 0.0, %v1215
      %1217 = vmatmul.bf16.gmra.mxu0 %v1146
      %v1218 = vpop.f32.mrf.mxu0
      %v1219 = vadd.f32 0.0, %v1218
      %v1220 = vpop.f32.mrf.mxu0
      %v1221 = vadd.f32 0.0, %v1220
      %1222 = vmatmul.bf16.gmra.mxu0 %v1149
      %v1223 = vpop.f32.mrf.mxu0
      %v1224 = vadd.f32 0.0, %v1223
      %v1225 = vpop.f32.mrf.mxu0
      %v1226 = vadd.f32 0.0, %v1225
      %1227 = vmatmul.bf16.gmra.mxu0 %v1152
      %v1228 = vpop.f32.mrf.mxu0
      %v1229 = vadd.f32 0.0, %v1228
      %v1230 = vpop.f32.mrf.mxu0
      %v1231 = vadd.f32 0.0, %v1230
      %1232 = vmatmul.bf16.gmra.mxu0 %v1155
      %v1233 = vpop.f32.mrf.mxu0
      %v1234 = vadd.f32 0.0, %v1233
      %v1235 = vpop.f32.mrf.mxu0
      %v1236 = vadd.f32 0.0, %v1235
      %1237 = vmatmul.bf16.gmra.mxu0 %v1158
      %v1238 = vpop.f32.mrf.mxu0
      %v1239 = vadd.f32 0.0, %v1238
      %v1240 = vpop.f32.mrf.mxu0
      %v1241 = vadd.f32 0.0, %v1240
      %1242 = vmatmul.bf16.gmra.mxu0 %v1161
      %v1243 = vpop.f32.mrf.mxu0
      %v1244 = vadd.f32 0.0, %v1243
      %v1245 = vpop.f32.mrf.mxu0
      %v1246 = vadd.f32 0.0, %v1245
      %1247 = vmatmul.bf16.gmra.mxu0 %v1164
      %v1248 = vpop.f32.mrf.mxu0
      %v1249 = vadd.f32 0.0, %v1248
      %v1250 = vpop.f32.mrf.mxu0
      %v1251 = vadd.f32 0.0, %v1250
      %1252 = vmatmul.bf16.gmra.mxu0 %v1167
      %v1253 = vpop.f32.mrf.mxu0
      %v1254 = vadd.f32 0.0, %v1253
      %v1255 = vpop.f32.mrf.mxu0
      %v1256 = vadd.f32 0.0, %v1255
      %1257 = vdwg.mxu0
      %v1258 = vunpack.c.l.b16 %v679
      %v1259 = vunpack.c.l.b16 %v688
      %v1260 = vunpack.c.l.b16 %v701
      %v1261 = vunpack.c.l.b16 %v710
      %v1262 = vunpack.c.l.b16 %v723
      %v1263 = vunpack.c.l.b16 %v732
      %v1264 = vunpack.c.l.b16 %v745
      %v1265 = vunpack.c.l.b16 %v754
      %v1266 = vunpack.c.l.b16 %v767
      %v1267 = vunpack.c.l.b16 %v776
      %v1268 = vunpack.c.l.b16 %v789
      %v1269 = vunpack.c.l.b16 %v798
      %v1270 = vunpack.c.l.b16 %v811
      %v1271 = vunpack.c.l.b16 %v820
      %v1272 = vunpack.c.l.b16 %v833
      %v1273 = vunpack.c.l.b16 %v842
      %v1274 = vunpack.c.l.b16 %v855
      %v1275 = vunpack.c.l.b16 %v864
      %v1276 = vunpack.c.l.b16 %v877
      %v1277 = vunpack.c.l.b16 %v886
      %v1278 = vunpack.c.l.b16 %v899
      %v1279 = vunpack.c.l.b16 %v908
      %v1280 = vunpack.c.l.b16 %v921
      %v1281 = vunpack.c.l.b16 %v930
      %v1282 = vunpack.c.l.b16 %v943
      %v1283 = vunpack.c.l.b16 %v952
      %v1284 = vunpack.c.l.b16 %v965
      %v1285 = vunpack.c.l.b16 %v974
      %v1286 = vunpack.c.l.b16 %v987
      %v1287 = vunpack.c.l.b16 %v996
      %v1288 = vunpack.c.l.b16 %v1009
      %v1289 = vunpack.c.l.b16 %v1018
      %v1290 = vpack.c.b16 %v1259, %v1258
      %v1291 = vpack.c.b16 %v1261, %v1260
      %v1292 = vpack.c.b16 %v1263, %v1262
      %v1293 = vpack.c.b16 %v1265, %v1264
      %v1294 = vpack.c.b16 %v1267, %v1266
      %v1295 = vpack.c.b16 %v1269, %v1268
      %v1296 = vpack.c.b16 %v1271, %v1270
      %v1297 = vpack.c.b16 %v1273, %v1272
      %v1298 = vpack.c.b16 %v1275, %v1274
      %v1299 = vpack.c.b16 %v1277, %v1276
      %v1300 = vpack.c.b16 %v1279, %v1278
      %v1301 = vpack.c.b16 %v1281, %v1280
      %v1302 = vpack.c.b16 %v1283, %v1282
      %v1303 = vpack.c.b16 %v1285, %v1284
      %v1304 = vpack.c.b16 %v1287, %v1286
      %v1305 = vpack.c.b16 %v1289, %v1288
      %v1310 = vunpack.c.l.b16 %v1019
      %v1311 = vunpack.c.l.b16 %v1020
      %v1312 = vunpack.c.l.b16 %v1021
      %v1313 = vunpack.c.l.b16 %v1022
      %v1314 = vpack.c.b16 %v1311, %v1310
      %v1315 = vpack.c.b16 %v1313, %v1312
      %v1319 = vsel %vm1120, %v1290, 0
      %v1322 = vsel %vm1120, %v1291, 0
      %v1325 = vsel %vm1120, %v1292, 0
      %v1328 = vsel %vm1120, %v1293, 0
      %v1331 = vsel %vm1120, %v1294, 0
      %v1334 = vsel %vm1120, %v1295, 0
      %v1337 = vsel %vm1120, %v1296, 0
      %v1340 = vsel %vm1120, %v1297, 0
      %v1343 = vsel %vm1120, %v1298, 0
      %v1346 = vsel %vm1120, %v1299, 0
      %v1349 = vsel %vm1120, %v1300, 0
      %v1352 = vsel %vm1120, %v1301, 0
      %v1355 = vsel %vm1120, %v1302, 0
      %v1358 = vsel %vm1120, %v1303, 0
      %v1361 = vsel %vm1120, %v1304, 0
      %v1364 = vsel %vm1120, %v1305, 0
      %1366 = vmatpush.bf16.msra.mxu0 0
      %1367 = vmatpush.bf16.msra.mxu0 0
      %1368 = vmatpush.bf16.msra.mxu0 0
      %1369 = vmatpush.bf16.msra.mxu0 0
      %1370 = vmatpush.bf16.msra.mxu0 0
      %1371 = vmatpush.bf16.msra.mxu0 0
      %1372 = vmatpush.bf16.msra.mxu0 %v1315
      %1373 = vmatpush.bf16.msra.mxu0 %v1314
      %1374 = vmatmul.bf16.gmra.mxu0 %v1319
      %v1375 = vpop.f32.mrf.mxu0
      %v1376 = vadd.f32 %v1179, %v1375
      %v1377 = vpop.f32.mrf.mxu0
      %v1378 = vadd.f32 %v1181, %v1377
      %1379 = vmatmul.bf16.gmra.mxu0 %v1322
      %v1380 = vpop.f32.mrf.mxu0
      %v1381 = vadd.f32 %v1184, %v1380
      %v1382 = vpop.f32.mrf.mxu0
      %v1383 = vadd.f32 %v1186, %v1382
      %1384 = vmatmul.bf16.gmra.mxu0 %v1325
      %v1385 = vpop.f32.mrf.mxu0
      %v1386 = vadd.f32 %v1189, %v1385
      %v1387 = vpop.f32.mrf.mxu0
      %v1388 = vadd.f32 %v1191, %v1387
      %1389 = vmatmul.bf16.gmra.mxu0 %v1328
      %v1390 = vpop.f32.mrf.mxu0
      %v1391 = vadd.f32 %v1194, %v1390
      %v1392 = vpop.f32.mrf.mxu0
      %v1393 = vadd.f32 %v1196, %v1392
      %1394 = vmatmul.bf16.gmra.mxu0 %v1331
      %v1395 = vpop.f32.mrf.mxu0
      %v1396 = vadd.f32 %v1199, %v1395
      %v1397 = vpop.f32.mrf.mxu0
      %v1398 = vadd.f32 %v1201, %v1397
      %1399 = vmatmul.bf16.gmra.mxu0 %v1334
      %v1400 = vpop.f32.mrf.mxu0
      %v1401 = vadd.f32 %v1204, %v1400
      %v1402 = vpop.f32.mrf.mxu0
      %v1403 = vadd.f32 %v1206, %v1402
      %1404 = vmatmul.bf16.gmra.mxu0 %v1337
      %v1405 = vpop.f32.mrf.mxu0
      %v1406 = vadd.f32 %v1209, %v1405
      %v1407 = vpop.f32.mrf.mxu0
      %v1408 = vadd.f32 %v1211, %v1407
      %1409 = vmatmul.bf16.gmra.mxu0 %v1340
      %v1410 = vpop.f32.mrf.mxu0
      %v1411 = vadd.f32 %v1214, %v1410
      %v1412 = vpop.f32.mrf.mxu0
      %v1413 = vadd.f32 %v1216, %v1412
      %1414 = vmatmul.bf16.gmra.mxu0 %v1343
      %v1415 = vpop.f32.mrf.mxu0
      %v1416 = vadd.f32 %v1219, %v1415
      %v1417 = vpop.f32.mrf.mxu0
      %v1418 = vadd.f32 %v1221, %v1417
      %1419 = vmatmul.bf16.gmra.mxu0 %v1346
      %v1420 = vpop.f32.mrf.mxu0
      %v1421 = vadd.f32 %v1224, %v1420
      %v1422 = vpop.f32.mrf.mxu0
      %v1423 = vadd.f32 %v1226, %v1422
      %1424 = vmatmul.bf16.gmra.mxu0 %v1349
      %v1425 = vpop.f32.mrf.mxu0
      %v1426 = vadd.f32 %v1229, %v1425
      %v1427 = vpop.f32.mrf.mxu0
      %v1428 = vadd.f32 %v1231, %v1427
      %1429 = vmatmul.bf16.gmra.mxu0 %v1352
      %v1430 = vpop.f32.mrf.mxu0
      %v1431 = vadd.f32 %v1234, %v1430
      %v1432 = vpop.f32.mrf.mxu0
      %v1433 = vadd.f32 %v1236, %v1432
      %1434 = vmatmul.bf16.gmra.mxu0 %v1355
      %v1435 = vpop.f32.mrf.mxu0
      %v1436 = vadd.f32 %v1239, %v1435
      %v1437 = vpop.f32.mrf.mxu0
      %v1438 = vadd.f32 %v1241, %v1437
      %1439 = vmatmul.bf16.gmra.mxu0 %v1358
      %v1440 = vpop.f32.mrf.mxu0
      %v1441 = vadd.f32 %v1244, %v1440
      %v1442 = vpop.f32.mrf.mxu0
      %v1443 = vadd.f32 %v1246, %v1442
      %1444 = vmatmul.bf16.gmra.mxu0 %v1361
      %v1445 = vpop.f32.mrf.mxu0
      %v1446 = vadd.f32 %v1249, %v1445
      %v1447 = vpop.f32.mrf.mxu0
      %v1448 = vadd.f32 %v1251, %v1447
      %1449 = vmatmul.bf16.gmra.mxu0 %v1364
      %v1450 = vpop.f32.mrf.mxu0
      %v1451 = vadd.f32 %v1254, %v1450
      %v1452 = vpop.f32.mrf.mxu0
      %v1453 = vadd.f32 %v1256, %v1452
      %1454 = vdwg.mxu0
      %v1455 = vld [vmem:[%s615 + $0x8] sm:$0xf]
      %v1456 = vld [vmem:[%s615 + $0xc] sm:$0xf]
      %v1457 = vld [vmem:[%s615 + $0x10] sm:$0x1]
      %v1458 = vld [vmem:[%s615 + $0x20] sm:$0xf]
      %v1459 = vld [vmem:[%s615 + $0x24] sm:$0xf]
      %v1460 = vld [vmem:[%s615 + $0x28] sm:$0x1]
      %v1461 = vld [vmem:[%s615 + $0x38] sm:$0xf]
      %v1462 = vld [vmem:[%s615 + $0x3c] sm:$0xf]
      %v1463 = vld [vmem:[%s615 + $0x40] sm:$0x1]
      %v1464 = vld [vmem:[%s615 + $0x50] sm:$0xf]
      %v1465 = vld [vmem:[%s615 + $0x54] sm:$0xf]
      %v1466 = vld [vmem:[%s615 + $0x58] sm:$0x1]
      %v1467 = vld [vmem:[%s615 + $0x68] sm:$0xf]
      %v1468 = vld [vmem:[%s615 + $0x6c] sm:$0xf]
      %v1469 = vld [vmem:[%s615 + $0x70] sm:$0x1]
      %v1470 = vld [vmem:[%s615 + $0x80] sm:$0xf]
      %v1471 = vld [vmem:[%s615 + $0x84] sm:$0xf]
      %v1472 = vld [vmem:[%s615 + $0x88] sm:$0x1]
      %v1473 = vld [vmem:[%s615 + $0x98] sm:$0xf]
      %v1474 = vld [vmem:[%s615 + $0x9c] sm:$0xf]
      %v1475 = vld [vmem:[%s615 + $0xa0] sm:$0x1]
      %v1476 = vld [vmem:[%s615 + $0xb0] sm:$0xf]
      %v1477 = vld [vmem:[%s615 + $0xb4] sm:$0xf]
      %v1478 = vld [vmem:[%s615 + $0xb8] sm:$0x1]
      %v1479 = vld [vmem:[%s615 + $0xc8] sm:$0xf]
      %v1480 = vld [vmem:[%s615 + $0xcc] sm:$0xf]
      %v1481 = vld [vmem:[%s615 + $0xd0] sm:$0x1]
      %v1482 = vld [vmem:[%s615 + $0xe0] sm:$0xf]
      %v1483 = vld [vmem:[%s615 + $0xe4] sm:$0xf]
      %v1484 = vld [vmem:[%s615 + $0xe8] sm:$0x1]
      %v1485 = vld [vmem:[%s615 + $0xf8] sm:$0xf]
      %v1486 = vld [vmem:[%s615 + $0xfc] sm:$0xf]
      %v1487 = vld [vmem:[%s615 + $0x100] sm:$0x1]
      %v1488 = vld [vmem:[%s615 + $0x110] sm:$0xf]
      %v1489 = vld [vmem:[%s615 + $0x114] sm:$0xf]
      %v1490 = vld [vmem:[%s615 + $0x118] sm:$0x1]
      %v1491 = vld [vmem:[%s615 + $0x128] sm:$0xf]
      %v1492 = vld [vmem:[%s615 + $0x12c] sm:$0xf]
      %v1493 = vld [vmem:[%s615 + $0x130] sm:$0x1]
      %v1494 = vld [vmem:[%s615 + $0x140] sm:$0xf]
      %v1495 = vld [vmem:[%s615 + $0x144] sm:$0xf]
      %v1496 = vld [vmem:[%s615 + $0x148] sm:$0x1]
      %v1497 = vld [vmem:[%s615 + $0x158] sm:$0xf]
      %v1498 = vld [vmem:[%s615 + $0x15c] sm:$0xf]
      %v1499 = vld [vmem:[%s615 + $0x160] sm:$0x1]
      %v1500 = vld [vmem:[%s615 + $0x170] sm:$0xf]
      %v1501 = vld [vmem:[%s615 + $0x174] sm:$0xf]
      %v1502 = vld [vmem:[%s615 + $0x178] sm:$0x1]
      %vm1503 = vsmask.f32 3328
      %vm1504 = vsmask.f32 7440
      %vm1505 = vmor %vm1503, %vm1504
      %v1507 = vshrl.u32 %v1455, 16
      %v1509 = vrot.slane %v1507, 4
      %v1510 = vshll.u32 %v1455, 16
      %v1512 = vrot.slane %v1510, 5
      %v1513 = vor.u32 %v1509, %v1512
      %v1514 = vrot.slane %v1513, 4
      %v1516 = vshll.u32 %v1456, 16
      %v1518 = vrot.slane %v1516, 5
      %v1519 = vsel %vm1505, %v1514, %v1518
      %v1520 = vshrl.u32 %v1456, 16
      %v1522 = vrot.slane %v1520, 4
      %v1523 = vor.u32 %v1522, %v1518
      %v1524 = vrot.slane %v1523, 4
      %v1526 = vshll.u32 %v1457, 16
      %v1528 = vrot.slane %v1526, 5
      %v1529 = vsel %vm1505, %v1524, %v1528
      %v1531 = vshrl.u32 %v1458, 16
      %v1533 = vrot.slane %v1531, 4
      %v1534 = vshll.u32 %v1458, 16
      %v1536 = vrot.slane %v1534, 5
      %v1537 = vor.u32 %v1533, %v1536
      %v1538 = vrot.slane %v1537, 4
      %v1540 = vshll.u32 %v1459, 16
      %v1542 = vrot.slane %v1540, 5
      %v1543 = vsel %vm1505, %v1538, %v1542
      %v1544 = vshrl.u32 %v1459, 16
      %v1546 = vrot.slane %v1544, 4
      %v1547 = vor.u32 %v1546, %v1542
      %v1548 = vrot.slane %v1547, 4
      %v1550 = vshll.u32 %v1460, 16
      %v1552 = vrot.slane %v1550, 5
      %v1553 = vsel %vm1505, %v1548, %v1552
      %v1555 = vshrl.u32 %v1461, 16
      %v1557 = vrot.slane %v1555, 4
      %v1558 = vshll.u32 %v1461, 16
      %v1560 = vrot.slane %v1558, 5
      %v1561 = vor.u32 %v1557, %v1560
      %v1562 = vrot.slane %v1561, 4
      %v1564 = vshll.u32 %v1462, 16
      %v1566 = vrot.slane %v1564, 5
      %v1567 = vsel %vm1505, %v1562, %v1566
      %v1568 = vshrl.u32 %v1462, 16
      %v1570 = vrot.slane %v1568, 4
      %v1571 = vor.u32 %v1570, %v1566
      %v1572 = vrot.slane %v1571, 4
      %v1574 = vshll.u32 %v1463, 16
      %v1576 = vrot.slane %v1574, 5
      %v1577 = vsel %vm1505, %v1572, %v1576
      %v1579 = vshrl.u32 %v1464, 16
      %v1581 = vrot.slane %v1579, 4
      %v1582 = vshll.u32 %v1464, 16
      %v1584 = vrot.slane %v1582, 5
      %v1585 = vor.u32 %v1581, %v1584
      %v1586 = vrot.slane %v1585, 4
      %v1588 = vshll.u32 %v1465, 16
      %v1590 = vrot.slane %v1588, 5
      %v1591 = vsel %vm1505, %v1586, %v1590
      %v1592 = vshrl.u32 %v1465, 16
      %v1594 = vrot.slane %v1592, 4
      %v1595 = vor.u32 %v1594, %v1590
      %v1596 = vrot.slane %v1595, 4
      %v1598 = vshll.u32 %v1466, 16
      %v1600 = vrot.slane %v1598, 5
      %v1601 = vsel %vm1505, %v1596, %v1600
      %v1603 = vshrl.u32 %v1467, 16
      %v1605 = vrot.slane %v1603, 4
      %v1606 = vshll.u32 %v1467, 16
      %v1608 = vrot.slane %v1606, 5
      %v1609 = vor.u32 %v1605, %v1608
      %v1610 = vrot.slane %v1609, 4
      %v1612 = vshll.u32 %v1468, 16
      %v1614 = vrot.slane %v1612, 5
      %v1615 = vsel %vm1505, %v1610, %v1614
      %v1616 = vshrl.u32 %v1468, 16
      %v1618 = vrot.slane %v1616, 4
      %v1619 = vor.u32 %v1618, %v1614
      %v1620 = vrot.slane %v1619, 4
      %v1622 = vshll.u32 %v1469, 16
      %v1624 = vrot.slane %v1622, 5
      %v1625 = vsel %vm1505, %v1620, %v1624
      %v1627 = vshrl.u32 %v1470, 16
      %v1629 = vrot.slane %v1627, 4
      %v1630 = vshll.u32 %v1470, 16
      %v1632 = vrot.slane %v1630, 5
      %v1633 = vor.u32 %v1629, %v1632
      %v1634 = vrot.slane %v1633, 4
      %v1636 = vshll.u32 %v1471, 16
      %v1638 = vrot.slane %v1636, 5
      %v1639 = vsel %vm1505, %v1634, %v1638
      %v1640 = vshrl.u32 %v1471, 16
      %v1642 = vrot.slane %v1640, 4
      %v1643 = vor.u32 %v1642, %v1638
      %v1644 = vrot.slane %v1643, 4
      %v1646 = vshll.u32 %v1472, 16
      %v1648 = vrot.slane %v1646, 5
      %v1649 = vsel %vm1505, %v1644, %v1648
      %v1651 = vshrl.u32 %v1473, 16
      %v1653 = vrot.slane %v1651, 4
      %v1654 = vshll.u32 %v1473, 16
      %v1656 = vrot.slane %v1654, 5
      %v1657 = vor.u32 %v1653, %v1656
      %v1658 = vrot.slane %v1657, 4
      %v1660 = vshll.u32 %v1474, 16
      %v1662 = vrot.slane %v1660, 5
      %v1663 = vsel %vm1505, %v1658, %v1662
      %v1664 = vshrl.u32 %v1474, 16
      %v1666 = vrot.slane %v1664, 4
      %v1667 = vor.u32 %v1666, %v1662
      %v1668 = vrot.slane %v1667, 4
      %v1670 = vshll.u32 %v1475, 16
      %v1672 = vrot.slane %v1670, 5
      %v1673 = vsel %vm1505, %v1668, %v1672
      %v1675 = vshrl.u32 %v1476, 16
      %v1677 = vrot.slane %v1675, 4
      %v1678 = vshll.u32 %v1476, 16
      %v1680 = vrot.slane %v1678, 5
      %v1681 = vor.u32 %v1677, %v1680
      %v1682 = vrot.slane %v1681, 4
      %v1684 = vshll.u32 %v1477, 16
      %v1686 = vrot.slane %v1684, 5
      %v1687 = vsel %vm1505, %v1682, %v1686
      %v1688 = vshrl.u32 %v1477, 16
      %v1690 = vrot.slane %v1688, 4
      %v1691 = vor.u32 %v1690, %v1686
      %v1692 = vrot.slane %v1691, 4
      %v1694 = vshll.u32 %v1478, 16
      %v1696 = vrot.slane %v1694, 5
      %v1697 = vsel %vm1505, %v1692, %v1696
      %v1699 = vshrl.u32 %v1479, 16
      %v1701 = vrot.slane %v1699, 4
      %v1702 = vshll.u32 %v1479, 16
      %v1704 = vrot.slane %v1702, 5
      %v1705 = vor.u32 %v1701, %v1704
      %v1706 = vrot.slane %v1705, 4
      %v1708 = vshll.u32 %v1480, 16
      %v1710 = vrot.slane %v1708, 5
      %v1711 = vsel %vm1505, %v1706, %v1710
      %v1712 = vshrl.u32 %v1480, 16
      %v1714 = vrot.slane %v1712, 4
      %v1715 = vor.u32 %v1714, %v1710
      %v1716 = vrot.slane %v1715, 4
      %v1718 = vshll.u32 %v1481, 16
      %v1720 = vrot.slane %v1718, 5
      %v1721 = vsel %vm1505, %v1716, %v1720
      %v1723 = vshrl.u32 %v1482, 16
      %v1725 = vrot.slane %v1723, 4
      %v1726 = vshll.u32 %v1482, 16
      %v1728 = vrot.slane %v1726, 5
      %v1729 = vor.u32 %v1725, %v1728
      %v1730 = vrot.slane %v1729, 4
      %v1732 = vshll.u32 %v1483, 16
      %v1734 = vrot.slane %v1732, 5
      %v1735 = vsel %vm1505, %v1730, %v1734
      %v1736 = vshrl.u32 %v1483, 16
      %v1738 = vrot.slane %v1736, 4
      %v1739 = vor.u32 %v1738, %v1734
      %v1740 = vrot.slane %v1739, 4
      %v1742 = vshll.u32 %v1484, 16
      %v1744 = vrot.slane %v1742, 5
      %v1745 = vsel %vm1505, %v1740, %v1744
      %v1747 = vshrl.u32 %v1485, 16
      %v1749 = vrot.slane %v1747, 4
      %v1750 = vshll.u32 %v1485, 16
      %v1752 = vrot.slane %v1750, 5
      %v1753 = vor.u32 %v1749, %v1752
      %v1754 = vrot.slane %v1753, 4
      %v1756 = vshll.u32 %v1486, 16
      %v1758 = vrot.slane %v1756, 5
      %v1759 = vsel %vm1505, %v1754, %v1758
      %v1760 = vshrl.u32 %v1486, 16
      %v1762 = vrot.slane %v1760, 4
      %v1763 = vor.u32 %v1762, %v1758
      %v1764 = vrot.slane %v1763, 4
      %v1766 = vshll.u32 %v1487, 16
      %v1768 = vrot.slane %v1766, 5
      %v1769 = vsel %vm1505, %v1764, %v1768
      %v1771 = vshrl.u32 %v1488, 16
      %v1773 = vrot.slane %v1771, 4
      %v1774 = vshll.u32 %v1488, 16
      %v1776 = vrot.slane %v1774, 5
      %v1777 = vor.u32 %v1773, %v1776
      %v1778 = vrot.slane %v1777, 4
      %v1780 = vshll.u32 %v1489, 16
      %v1782 = vrot.slane %v1780, 5
      %v1783 = vsel %vm1505, %v1778, %v1782
      %v1784 = vshrl.u32 %v1489, 16
      %v1786 = vrot.slane %v1784, 4
      %v1787 = vor.u32 %v1786, %v1782
      %v1788 = vrot.slane %v1787, 4
      %v1790 = vshll.u32 %v1490, 16
      %v1792 = vrot.slane %v1790, 5
      %v1793 = vsel %vm1505, %v1788, %v1792
      %v1795 = vshrl.u32 %v1491, 16
      %v1797 = vrot.slane %v1795, 4
      %v1798 = vshll.u32 %v1491, 16
      %v1800 = vrot.slane %v1798, 5
      %v1801 = vor.u32 %v1797, %v1800
      %v1802 = vrot.slane %v1801, 4
      %v1804 = vshll.u32 %v1492, 16
      %v1806 = vrot.slane %v1804, 5
      %v1807 = vsel %vm1505, %v1802, %v1806
      %v1808 = vshrl.u32 %v1492, 16
      %v1810 = vrot.slane %v1808, 4
      %v1811 = vor.u32 %v1810, %v1806
      %v1812 = vrot.slane %v1811, 4
      %v1814 = vshll.u32 %v1493, 16
      %v1816 = vrot.slane %v1814, 5
      %v1817 = vsel %vm1505, %v1812, %v1816
      %v1819 = vshrl.u32 %v1494, 16
      %v1821 = vrot.slane %v1819, 4
      %v1822 = vshll.u32 %v1494, 16
      %v1824 = vrot.slane %v1822, 5
      %v1825 = vor.u32 %v1821, %v1824
      %v1826 = vrot.slane %v1825, 4
      %v1828 = vshll.u32 %v1495, 16
      %v1830 = vrot.slane %v1828, 5
      %v1831 = vsel %vm1505, %v1826, %v1830
      %v1832 = vshrl.u32 %v1495, 16
      %v1834 = vrot.slane %v1832, 4
      %v1835 = vor.u32 %v1834, %v1830
      %v1836 = vrot.slane %v1835, 4
      %v1838 = vshll.u32 %v1496, 16
      %v1840 = vrot.slane %v1838, 5
      %v1841 = vsel %vm1505, %v1836, %v1840
      %v1843 = vshrl.u32 %v1497, 16
      %v1845 = vrot.slane %v1843, 4
      %v1846 = vshll.u32 %v1497, 16
      %v1848 = vrot.slane %v1846, 5
      %v1849 = vor.u32 %v1845, %v1848
      %v1850 = vrot.slane %v1849, 4
      %v1852 = vshll.u32 %v1498, 16
      %v1854 = vrot.slane %v1852, 5
      %v1855 = vsel %vm1505, %v1850, %v1854
      %v1856 = vshrl.u32 %v1498, 16
      %v1858 = vrot.slane %v1856, 4
      %v1859 = vor.u32 %v1858, %v1854
      %v1860 = vrot.slane %v1859, 4
      %v1862 = vshll.u32 %v1499, 16
      %v1864 = vrot.slane %v1862, 5
      %v1865 = vsel %vm1505, %v1860, %v1864
      %v1867 = vshrl.u32 %v1500, 16
      %v1869 = vrot.slane %v1867, 4
      %v1870 = vshll.u32 %v1500, 16
      %v1872 = vrot.slane %v1870, 5
      %v1873 = vor.u32 %v1869, %v1872
      %v1874 = vrot.slane %v1873, 4
      %v1876 = vshll.u32 %v1501, 16
      %v1878 = vrot.slane %v1876, 5
      %v1879 = vsel %vm1505, %v1874, %v1878
      %v1880 = vshrl.u32 %v1501, 16
      %v1882 = vrot.slane %v1880, 4
      %v1883 = vor.u32 %v1882, %v1878
      %v1884 = vrot.slane %v1883, 4
      %v1886 = vshll.u32 %v1502, 16
      %v1888 = vrot.slane %v1886, 5
      %v1889 = vsel %vm1505, %v1884, %v1888
      %s1890 = scalar_lea.vmem %s1, 32
      %v1891 = vld [vmem:[%s1890] sm:$0xf]
      %v1892 = vld [vmem:[%s1890 + $0x4] sm:$0xf]
      %v1893 = vld [vmem:[%s1890 + $0x8] sm:$0xf]
      %v1894 = vld [vmem:[%s1890 + $0xc] sm:$0xf]
      %v1895 = vunpack.c.l.b16 %v1519
      %v1896 = vunpack.c.l.b16 %v1529
      %v1897 = vunpack.c.l.b16 %v1543
      %v1898 = vunpack.c.l.b16 %v1553
      %v1899 = vunpack.c.l.b16 %v1567
      %v1900 = vunpack.c.l.b16 %v1577
      %v1901 = vunpack.c.l.b16 %v1591
      %v1902 = vunpack.c.l.b16 %v1601
      %v1903 = vunpack.c.l.b16 %v1615
      %v1904 = vunpack.c.l.b16 %v1625
      %v1905 = vunpack.c.l.b16 %v1639
      %v1906 = vunpack.c.l.b16 %v1649
      %v1907 = vunpack.c.l.b16 %v1663
      %v1908 = vunpack.c.l.b16 %v1673
      %v1909 = vunpack.c.l.b16 %v1687
      %v1910 = vunpack.c.l.b16 %v1697
      %v1911 = vunpack.c.l.b16 %v1711
      %v1912 = vunpack.c.l.b16 %v1721
      %v1913 = vunpack.c.l.b16 %v1735
      %v1914 = vunpack.c.l.b16 %v1745
      %v1915 = vunpack.c.l.b16 %v1759
      %v1916 = vunpack.c.l.b16 %v1769
      %v1917 = vunpack.c.l.b16 %v1783
      %v1918 = vunpack.c.l.b16 %v1793
      %v1919 = vunpack.c.l.b16 %v1807
      %v1920 = vunpack.c.l.b16 %v1817
      %v1921 = vunpack.c.l.b16 %v1831
      %v1922 = vunpack.c.l.b16 %v1841
      %v1923 = vunpack.c.l.b16 %v1855
      %v1924 = vunpack.c.l.b16 %v1865
      %v1925 = vunpack.c.l.b16 %v1879
      %v1926 = vunpack.c.l.b16 %v1889
      %v1927 = vpack.c.b16 %v1896, %v1895
      %v1928 = vpack.c.b16 %v1898, %v1897
      %v1929 = vpack.c.b16 %v1900, %v1899
      %v1930 = vpack.c.b16 %v1902, %v1901
      %v1931 = vpack.c.b16 %v1904, %v1903
      %v1932 = vpack.c.b16 %v1906, %v1905
      %v1933 = vpack.c.b16 %v1908, %v1907
      %v1934 = vpack.c.b16 %v1910, %v1909
      %v1935 = vpack.c.b16 %v1912, %v1911
      %v1936 = vpack.c.b16 %v1914, %v1913
      %v1937 = vpack.c.b16 %v1916, %v1915
      %v1938 = vpack.c.b16 %v1918, %v1917
      %v1939 = vpack.c.b16 %v1920, %v1919
      %v1940 = vpack.c.b16 %v1922, %v1921
      %v1941 = vpack.c.b16 %v1924, %v1923
      %v1942 = vpack.c.b16 %v1926, %v1925
      %v1947 = vunpack.c.l.b16 %v1891
      %v1948 = vunpack.c.l.b16 %v1892
      %v1949 = vunpack.c.l.b16 %v1893
      %v1950 = vunpack.c.l.b16 %v1894
      %v1951 = vpack.c.b16 %v1948, %v1947
      %v1952 = vpack.c.b16 %v1950, %v1949
      %v1956 = vsel %vm1120, %v1927, 0
      %v1959 = vsel %vm1120, %v1928, 0
      %v1962 = vsel %vm1120, %v1929, 0
      %v1965 = vsel %vm1120, %v1930, 0
      %v1968 = vsel %vm1120, %v1931, 0
      %v1971 = vsel %vm1120, %v1932, 0
      %v1974 = vsel %vm1120, %v1933, 0
      %v1977 = vsel %vm1120, %v1934, 0
      %v1980 = vsel %vm1120, %v1935, 0
      %v1983 = vsel %vm1120, %v1936, 0
      %v1986 = vsel %vm1120, %v1937, 0
      %v1989 = vsel %vm1120, %v1938, 0
      %v1992 = vsel %vm1120, %v1939, 0
      %v1995 = vsel %vm1120, %v1940, 0
      %v1998 = vsel %vm1120, %v1941, 0
      %v2001 = vsel %vm1120, %v1942, 0
      %2003 = vmatpush.bf16.msra.mxu0 0
      %2004 = vmatpush.bf16.msra.mxu0 0
      %2005 = vmatpush.bf16.msra.mxu0 0
      %2006 = vmatpush.bf16.msra.mxu0 0
      %2007 = vmatpush.bf16.msra.mxu0 0
      %2008 = vmatpush.bf16.msra.mxu0 0
      %2009 = vmatpush.bf16.msra.mxu0 %v1952
      %2010 = vmatpush.bf16.msra.mxu0 %v1951
      %2011 = vmatmul.bf16.gmra.mxu0 %v1956
      %v2012 = vpop.f32.mrf.mxu0
      %v2013 = vadd.f32 0.0, %v2012
      %v2014 = vpop.f32.mrf.mxu0
      %v2015 = vadd.f32 0.0, %v2014
      %2016 = vmatmul.bf16.gmra.mxu0 %v1959
      %v2017 = vpop.f32.mrf.mxu0
      %v2018 = vadd.f32 0.0, %v2017
      %v2019 = vpop.f32.mrf.mxu0
      %v2020 = vadd.f32 0.0, %v2019
      %2021 = vmatmul.bf16.gmra.mxu0 %v1962
      %v2022 = vpop.f32.mrf.mxu0
      %v2023 = vadd.f32 0.0, %v2022
      %v2024 = vpop.f32.mrf.mxu0
      %v2025 = vadd.f32 0.0, %v2024
      %2026 = vmatmul.bf16.gmra.mxu0 %v1965
      %v2027 = vpop.f32.mrf.mxu0
      %v2028 = vadd.f32 0.0, %v2027
      %v2029 = vpop.f32.mrf.mxu0
      %v2030 = vadd.f32 0.0, %v2029
      %2031 = vmatmul.bf16.gmra.mxu0 %v1968
      %v2032 = vpop.f32.mrf.mxu0
      %v2033 = vadd.f32 0.0, %v2032
      %v2034 = vpop.f32.mrf.mxu0
      %v2035 = vadd.f32 0.0, %v2034
      %2036 = vmatmul.bf16.gmra.mxu0 %v1971
      %v2037 = vpop.f32.mrf.mxu0
      %v2038 = vadd.f32 0.0, %v2037
      %v2039 = vpop.f32.mrf.mxu0
      %v2040 = vadd.f32 0.0, %v2039
      %2041 = vmatmul.bf16.gmra.mxu0 %v1974
      %v2042 = vpop.f32.mrf.mxu0
      %v2043 = vadd.f32 0.0, %v2042
      %v2044 = vpop.f32.mrf.mxu0
      %v2045 = vadd.f32 0.0, %v2044
      %2046 = vmatmul.bf16.gmra.mxu0 %v1977
      %v2047 = vpop.f32.mrf.mxu0
      %v2048 = vadd.f32 0.0, %v2047
      %v2049 = vpop.f32.mrf.mxu0
      %v2050 = vadd.f32 0.0, %v2049
      %2051 = vmatmul.bf16.gmra.mxu0 %v1980
      %v2052 = vpop.f32.mrf.mxu0
      %v2053 = vadd.f32 0.0, %v2052
      %v2054 = vpop.f32.mrf.mxu0
      %v2055 = vadd.f32 0.0, %v2054
      %2056 = vmatmul.bf16.gmra.mxu0 %v1983
      %v2057 = vpop.f32.mrf.mxu0
      %v2058 = vadd.f32 0.0, %v2057
      %v2059 = vpop.f32.mrf.mxu0
      %v2060 = vadd.f32 0.0, %v2059
      %2061 = vmatmul.bf16.gmra.mxu0 %v1986
      %v2062 = vpop.f32.mrf.mxu0
      %v2063 = vadd.f32 0.0, %v2062
      %v2064 = vpop.f32.mrf.mxu0
      %v2065 = vadd.f32 0.0, %v2064
      %2066 = vmatmul.bf16.gmra.mxu0 %v1989
      %v2067 = vpop.f32.mrf.mxu0
      %v2068 = vadd.f32 0.0, %v2067
      %v2069 = vpop.f32.mrf.mxu0
      %v2070 = vadd.f32 0.0, %v2069
      %2071 = vmatmul.bf16.gmra.mxu0 %v1992
      %v2072 = vpop.f32.mrf.mxu0
      %v2073 = vadd.f32 0.0, %v2072
      %v2074 = vpop.f32.mrf.mxu0
      %v2075 = vadd.f32 0.0, %v2074
      %2076 = vmatmul.bf16.gmra.mxu0 %v1995
      %v2077 = vpop.f32.mrf.mxu0
      %v2078 = vadd.f32 0.0, %v2077
      %v2079 = vpop.f32.mrf.mxu0
      %v2080 = vadd.f32 0.0, %v2079
      %2081 = vmatmul.bf16.gmra.mxu0 %v1998
      %v2082 = vpop.f32.mrf.mxu0
      %v2083 = vadd.f32 0.0, %v2082
      %v2084 = vpop.f32.mrf.mxu0
      %v2085 = vadd.f32 0.0, %v2084
      %2086 = vmatmul.bf16.gmra.mxu0 %v2001
      %v2087 = vpop.f32.mrf.mxu0
      %v2088 = vadd.f32 0.0, %v2087
      %v2089 = vpop.f32.mrf.mxu0
      %v2090 = vadd.f32 0.0, %v2089
      %2091 = vdwg.mxu0
      %v2092 = vadd.f32 %v1376, %v2013
      %v2093 = vadd.f32 %v1378, %v2015
      %v2094 = vadd.f32 %v1381, %v2018
      %v2095 = vadd.f32 %v1383, %v2020
      %v2096 = vadd.f32 %v1386, %v2023
      %v2097 = vadd.f32 %v1388, %v2025
      %v2098 = vadd.f32 %v1391, %v2028
      %v2099 = vadd.f32 %v1393, %v2030
      %v2100 = vadd.f32 %v1396, %v2033
      %v2101 = vadd.f32 %v1398, %v2035
      %v2102 = vadd.f32 %v1401, %v2038
      %v2103 = vadd.f32 %v1403, %v2040
      %v2104 = vadd.f32 %v1406, %v2043
      %v2105 = vadd.f32 %v1408, %v2045
      %v2106 = vadd.f32 %v1411, %v2048
      %v2107 = vadd.f32 %v1413, %v2050
      %v2108 = vadd.f32 %v1416, %v2053
      %v2109 = vadd.f32 %v1418, %v2055
      %v2110 = vadd.f32 %v1421, %v2058
      %v2111 = vadd.f32 %v1423, %v2060
      %v2112 = vadd.f32 %v1426, %v2063
      %v2113 = vadd.f32 %v1428, %v2065
      %v2114 = vadd.f32 %v1431, %v2068
      %v2115 = vadd.f32 %v1433, %v2070
      %v2116 = vadd.f32 %v1436, %v2073
      %v2117 = vadd.f32 %v1438, %v2075
      %v2118 = vadd.f32 %v1441, %v2078
      %v2119 = vadd.f32 %v1443, %v2080
      %v2120 = vadd.f32 %v1446, %v2083
      %v2121 = vadd.f32 %v1448, %v2085
      %v2122 = vadd.f32 %v1451, %v2088
      %v2123 = vadd.f32 %v1453, %v2090
      %s2124 = sadd.s32 %s612, 1
      %s2125 = smul.u32 %s2124, 6
      %s2126 = smul.addr %s2125, 4
      %s2127 = scalar_lea.vmem [#allocation2], %s2126
      %v2128 = vld [vmem:[%s2127 + $0x4] sm:$0x8]
      %v2129 = vld [vmem:[%s2127 + $0x8] sm:$0xf]
      %v2130 = vld [vmem:[%s2127 + $0xc] sm:$0xf]
      %v2131 = vld [vmem:[%s2127 + $0x1c] sm:$0x8]
      %v2132 = vld [vmem:[%s2127 + $0x20] sm:$0xf]
      %v2133 = vld [vmem:[%s2127 + $0x24] sm:$0xf]
      %v2134 = vld [vmem:[%s2127 + $0x34] sm:$0x8]
      %v2135 = vld [vmem:[%s2127 + $0x38] sm:$0xf]
      %v2136 = vld [vmem:[%s2127 + $0x3c] sm:$0xf]
      %v2137 = vld [vmem:[%s2127 + $0x4c] sm:$0x8]
      %v2138 = vld [vmem:[%s2127 + $0x50] sm:$0xf]
      %v2139 = vld [vmem:[%s2127 + $0x54] sm:$0xf]
      %v2140 = vld [vmem:[%s2127 + $0x64] sm:$0x8]
      %v2141 = vld [vmem:[%s2127 + $0x68] sm:$0xf]
      %v2142 = vld [vmem:[%s2127 + $0x6c] sm:$0xf]
      %v2143 = vld [vmem:[%s2127 + $0x7c] sm:$0x8]
      %v2144 = vld [vmem:[%s2127 + $0x80] sm:$0xf]
      %v2145 = vld [vmem:[%s2127 + $0x84] sm:$0xf]
      %v2146 = vld [vmem:[%s2127 + $0x94] sm:$0x8]
      %v2147 = vld [vmem:[%s2127 + $0x98] sm:$0xf]
      %v2148 = vld [vmem:[%s2127 + $0x9c] sm:$0xf]
      %v2149 = vld [vmem:[%s2127 + $0xac] sm:$0x8]
      %v2150 = vld [vmem:[%s2127 + $0xb0] sm:$0xf]
      %v2151 = vld [vmem:[%s2127 + $0xb4] sm:$0xf]
      %v2152 = vld [vmem:[%s2127 + $0xc4] sm:$0x8]
      %v2153 = vld [vmem:[%s2127 + $0xc8] sm:$0xf]
      %v2154 = vld [vmem:[%s2127 + $0xcc] sm:$0xf]
      %v2155 = vld [vmem:[%s2127 + $0xdc] sm:$0x8]
      %v2156 = vld [vmem:[%s2127 + $0xe0] sm:$0xf]
      %v2157 = vld [vmem:[%s2127 + $0xe4] sm:$0xf]
      %v2158 = vld [vmem:[%s2127 + $0xf4] sm:$0x8]
      %v2159 = vld [vmem:[%s2127 + $0xf8] sm:$0xf]
      %v2160 = vld [vmem:[%s2127 + $0xfc] sm:$0xf]
      %v2161 = vld [vmem:[%s2127 + $0x10c] sm:$0x8]
      %v2162 = vld [vmem:[%s2127 + $0x110] sm:$0xf]
      %v2163 = vld [vmem:[%s2127 + $0x114] sm:$0xf]
      %v2164 = vld [vmem:[%s2127 + $0x124] sm:$0x8]
      %v2165 = vld [vmem:[%s2127 + $0x128] sm:$0xf]
      %v2166 = vld [vmem:[%s2127 + $0x12c] sm:$0xf]
      %v2167 = vld [vmem:[%s2127 + $0x13c] sm:$0x8]
      %v2168 = vld [vmem:[%s2127 + $0x140] sm:$0xf]
      %v2169 = vld [vmem:[%s2127 + $0x144] sm:$0xf]
      %v2170 = vld [vmem:[%s2127 + $0x154] sm:$0x8]
      %v2171 = vld [vmem:[%s2127 + $0x158] sm:$0xf]
      %v2172 = vld [vmem:[%s2127 + $0x15c] sm:$0xf]
      %v2173 = vld [vmem:[%s2127 + $0x16c] sm:$0x8]
      %v2174 = vld [vmem:[%s2127 + $0x170] sm:$0xf]
      %v2175 = vld [vmem:[%s2127 + $0x174] sm:$0xf]
      %v2177 = vshrl.u32 %v2128, 16
      %v2179 = vrot.slane %v2177, 7
      %v2180 = vrot.slane %v2179, 4
      %v2182 = vshrl.u32 %v2129, 16
      %v2184 = vrot.slane %v2182, 7
      %v2185 = vshll.u32 %v2129, 16
      %v2187 = vor.u32 %v2184, %v2185
      %v2188 = vsel %vm666, %v2180, %v2187
      %v2189 = vrot.slane %v2184, 4
      %v2191 = vshrl.u32 %v2130, 16
      %v2193 = vrot.slane %v2191, 7
      %v2194 = vshll.u32 %v2130, 16
      %v2196 = vor.u32 %v2193, %v2194
      %v2197 = vsel %vm666, %v2189, %v2196
      %v2199 = vshrl.u32 %v2131, 16
      %v2201 = vrot.slane %v2199, 7
      %v2202 = vrot.slane %v2201, 4
      %v2204 = vshrl.u32 %v2132, 16
      %v2206 = vrot.slane %v2204, 7
      %v2207 = vshll.u32 %v2132, 16
      %v2209 = vor.u32 %v2206, %v2207
      %v2210 = vsel %vm666, %v2202, %v2209
      %v2211 = vrot.slane %v2206, 4
      %v2213 = vshrl.u32 %v2133, 16
      %v2215 = vrot.slane %v2213, 7
      %v2216 = vshll.u32 %v2133, 16
      %v2218 = vor.u32 %v2215, %v2216
      %v2219 = vsel %vm666, %v2211, %v2218
      %v2221 = vshrl.u32 %v2134, 16
      %v2223 = vrot.slane %v2221, 7
      %v2224 = vrot.slane %v2223, 4
      %v2226 = vshrl.u32 %v2135, 16
      %v2228 = vrot.slane %v2226, 7
      %v2229 = vshll.u32 %v2135, 16
      %v2231 = vor.u32 %v2228, %v2229
      %v2232 = vsel %vm666, %v2224, %v2231
      %v2233 = vrot.slane %v2228, 4
      %v2235 = vshrl.u32 %v2136, 16
      %v2237 = vrot.slane %v2235, 7
      %v2238 = vshll.u32 %v2136, 16
      %v2240 = vor.u32 %v2237, %v2238
      %v2241 = vsel %vm666, %v2233, %v2240
      %v2243 = vshrl.u32 %v2137, 16
      %v2245 = vrot.slane %v2243, 7
      %v2246 = vrot.slane %v2245, 4
      %v2248 = vshrl.u32 %v2138, 16
      %v2250 = vrot.slane %v2248, 7
      %v2251 = vshll.u32 %v2138, 16
      %v2253 = vor.u32 %v2250, %v2251
      %v2254 = vsel %vm666, %v2246, %v2253
      %v2255 = vrot.slane %v2250, 4
      %v2257 = vshrl.u32 %v2139, 16
      %v2259 = vrot.slane %v2257, 7
      %v2260 = vshll.u32 %v2139, 16
      %v2262 = vor.u32 %v2259, %v2260
      %v2263 = vsel %vm666, %v2255, %v2262
      %v2265 = vshrl.u32 %v2140, 16
      %v2267 = vrot.slane %v2265, 7
      %v2268 = vrot.slane %v2267, 4
      %v2270 = vshrl.u32 %v2141, 16
      %v2272 = vrot.slane %v2270, 7
      %v2273 = vshll.u32 %v2141, 16
      %v2275 = vor.u32 %v2272, %v2273
      %v2276 = vsel %vm666, %v2268, %v2275
      %v2277 = vrot.slane %v2272, 4
      %v2279 = vshrl.u32 %v2142, 16
      %v2281 = vrot.slane %v2279, 7
      %v2282 = vshll.u32 %v2142, 16
      %v2284 = vor.u32 %v2281, %v2282
      %v2285 = vsel %vm666, %v2277, %v2284
      %v2287 = vshrl.u32 %v2143, 16
      %v2289 = vrot.slane %v2287, 7
      %v2290 = vrot.slane %v2289, 4
      %v2292 = vshrl.u32 %v2144, 16
      %v2294 = vrot.slane %v2292, 7
      %v2295 = vshll.u32 %v2144, 16
      %v2297 = vor.u32 %v2294, %v2295
      %v2298 = vsel %vm666, %v2290, %v2297
      %v2299 = vrot.slane %v2294, 4
      %v2301 = vshrl.u32 %v2145, 16
      %v2303 = vrot.slane %v2301, 7
      %v2304 = vshll.u32 %v2145, 16
      %v2306 = vor.u32 %v2303, %v2304
      %v2307 = vsel %vm666, %v2299, %v2306
      %v2309 = vshrl.u32 %v2146, 16
      %v2311 = vrot.slane %v2309, 7
      %v2312 = vrot.slane %v2311, 4
      %v2314 = vshrl.u32 %v2147, 16
      %v2316 = vrot.slane %v2314, 7
      %v2317 = vshll.u32 %v2147, 16
      %v2319 = vor.u32 %v2316, %v2317
      %v2320 = vsel %vm666, %v2312, %v2319
      %v2321 = vrot.slane %v2316, 4
      %v2323 = vshrl.u32 %v2148, 16
      %v2325 = vrot.slane %v2323, 7
      %v2326 = vshll.u32 %v2148, 16
      %v2328 = vor.u32 %v2325, %v2326
      %v2329 = vsel %vm666, %v2321, %v2328
      %v2331 = vshrl.u32 %v2149, 16
      %v2333 = vrot.slane %v2331, 7
      %v2334 = vrot.slane %v2333, 4
      %v2336 = vshrl.u32 %v2150, 16
      %v2338 = vrot.slane %v2336, 7
      %v2339 = vshll.u32 %v2150, 16
      %v2341 = vor.u32 %v2338, %v2339
      %v2342 = vsel %vm666, %v2334, %v2341
      %v2343 = vrot.slane %v2338, 4
      %v2345 = vshrl.u32 %v2151, 16
      %v2347 = vrot.slane %v2345, 7
      %v2348 = vshll.u32 %v2151, 16
      %v2350 = vor.u32 %v2347, %v2348
      %v2351 = vsel %vm666, %v2343, %v2350
      %v2353 = vshrl.u32 %v2152, 16
      %v2355 = vrot.slane %v2353, 7
      %v2356 = vrot.slane %v2355, 4
      %v2358 = vshrl.u32 %v2153, 16
      %v2360 = vrot.slane %v2358, 7
      %v2361 = vshll.u32 %v2153, 16
      %v2363 = vor.u32 %v2360, %v2361
      %v2364 = vsel %vm666, %v2356, %v2363
      %v2365 = vrot.slane %v2360, 4
      %v2367 = vshrl.u32 %v2154, 16
      %v2369 = vrot.slane %v2367, 7
      %v2370 = vshll.u32 %v2154, 16
      %v2372 = vor.u32 %v2369, %v2370
      %v2373 = vsel %vm666, %v2365, %v2372
      %v2375 = vshrl.u32 %v2155, 16
      %v2377 = vrot.slane %v2375, 7
      %v2378 = vrot.slane %v2377, 4
      %v2380 = vshrl.u32 %v2156, 16
      %v2382 = vrot.slane %v2380, 7
      %v2383 = vshll.u32 %v2156, 16
      %v2385 = vor.u32 %v2382, %v2383
      %v2386 = vsel %vm666, %v2378, %v2385
      %v2387 = vrot.slane %v2382, 4
      %v2389 = vshrl.u32 %v2157, 16
      %v2391 = vrot.slane %v2389, 7
      %v2392 = vshll.u32 %v2157, 16
      %v2394 = vor.u32 %v2391, %v2392
      %v2395 = vsel %vm666, %v2387, %v2394
      %v2397 = vshrl.u32 %v2158, 16
      %v2399 = vrot.slane %v2397, 7
      %v2400 = vrot.slane %v2399, 4
      %v2402 = vshrl.u32 %v2159, 16
      %v2404 = vrot.slane %v2402, 7
      %v2405 = vshll.u32 %v2159, 16
      %v2407 = vor.u32 %v2404, %v2405
      %v2408 = vsel %vm666, %v2400, %v2407
      %v2409 = vrot.slane %v2404, 4
      %v2411 = vshrl.u32 %v2160, 16
      %v2413 = vrot.slane %v2411, 7
      %v2414 = vshll.u32 %v2160, 16
      %v2416 = vor.u32 %v2413, %v2414
      %v2417 = vsel %vm666, %v2409, %v2416
      %v2419 = vshrl.u32 %v2161, 16
      %v2421 = vrot.slane %v2419, 7
      %v2422 = vrot.slane %v2421, 4
      %v2424 = vshrl.u32 %v2162, 16
      %v2426 = vrot.slane %v2424, 7
      %v2427 = vshll.u32 %v2162, 16
      %v2429 = vor.u32 %v2426, %v2427
      %v2430 = vsel %vm666, %v2422, %v2429
      %v2431 = vrot.slane %v2426, 4
      %v2433 = vshrl.u32 %v2163, 16
      %v2435 = vrot.slane %v2433, 7
      %v2436 = vshll.u32 %v2163, 16
      %v2438 = vor.u32 %v2435, %v2436
      %v2439 = vsel %vm666, %v2431, %v2438
      %v2441 = vshrl.u32 %v2164, 16
      %v2443 = vrot.slane %v2441, 7
      %v2444 = vrot.slane %v2443, 4
      %v2446 = vshrl.u32 %v2165, 16
      %v2448 = vrot.slane %v2446, 7
      %v2449 = vshll.u32 %v2165, 16
      %v2451 = vor.u32 %v2448, %v2449
      %v2452 = vsel %vm666, %v2444, %v2451
      %v2453 = vrot.slane %v2448, 4
      %v2455 = vshrl.u32 %v2166, 16
      %v2457 = vrot.slane %v2455, 7
      %v2458 = vshll.u32 %v2166, 16
      %v2460 = vor.u32 %v2457, %v2458
      %v2461 = vsel %vm666, %v2453, %v2460
      %v2463 = vshrl.u32 %v2167, 16
      %v2465 = vrot.slane %v2463, 7
      %v2466 = vrot.slane %v2465, 4
      %v2468 = vshrl.u32 %v2168, 16
      %v2470 = vrot.slane %v2468, 7
      %v2471 = vshll.u32 %v2168, 16
      %v2473 = vor.u32 %v2470, %v2471
      %v2474 = vsel %vm666, %v2466, %v2473
      %v2475 = vrot.slane %v2470, 4
      %v2477 = vshrl.u32 %v2169, 16
      %v2479 = vrot.slane %v2477, 7
      %v2480 = vshll.u32 %v2169, 16
      %v2482 = vor.u32 %v2479, %v2480
      %v2483 = vsel %vm666, %v2475, %v2482
      %v2485 = vshrl.u32 %v2170, 16
      %v2487 = vrot.slane %v2485, 7
      %v2488 = vrot.slane %v2487, 4
      %v2490 = vshrl.u32 %v2171, 16
      %v2492 = vrot.slane %v2490, 7
      %v2493 = vshll.u32 %v2171, 16
      %v2495 = vor.u32 %v2492, %v2493
      %v2496 = vsel %vm666, %v2488, %v2495
      %v2497 = vrot.slane %v2492, 4
      %v2499 = vshrl.u32 %v2172, 16
      %v2501 = vrot.slane %v2499, 7
      %v2502 = vshll.u32 %v2172, 16
      %v2504 = vor.u32 %v2501, %v2502
      %v2505 = vsel %vm666, %v2497, %v2504
      %v2507 = vshrl.u32 %v2173, 16
      %v2509 = vrot.slane %v2507, 7
      %v2510 = vrot.slane %v2509, 4
      %v2512 = vshrl.u32 %v2174, 16
      %v2514 = vrot.slane %v2512, 7
      %v2515 = vshll.u32 %v2174, 16
      %v2517 = vor.u32 %v2514, %v2515
      %v2518 = vsel %vm666, %v2510, %v2517
      %v2519 = vrot.slane %v2514, 4
      %v2521 = vshrl.u32 %v2175, 16
      %v2523 = vrot.slane %v2521, 7
      %v2524 = vshll.u32 %v2175, 16
      %v2526 = vor.u32 %v2523, %v2524
      %v2527 = vsel %vm666, %v2519, %v2526
      %s2528 = scalar_lea.vmem %s1, 48
      %v2529 = vld [vmem:[%s2528] sm:$0xf]
      %v2530 = vld [vmem:[%s2528 + $0x4] sm:$0xf]
      %v2531 = vld [vmem:[%s2528 + $0x8] sm:$0xf]
      %v2532 = vld [vmem:[%s2528 + $0xc] sm:$0xf]
      %v2533 = vunpack.c.l.b16 %v2188
      %v2534 = vunpack.c.l.b16 %v2197
      %v2535 = vunpack.c.l.b16 %v2210
      %v2536 = vunpack.c.l.b16 %v2219
      %v2537 = vunpack.c.l.b16 %v2232
      %v2538 = vunpack.c.l.b16 %v2241
      %v2539 = vunpack.c.l.b16 %v2254
      %v2540 = vunpack.c.l.b16 %v2263
      %v2541 = vunpack.c.l.b16 %v2276
      %v2542 = vunpack.c.l.b16 %v2285
      %v2543 = vunpack.c.l.b16 %v2298
      %v2544 = vunpack.c.l.b16 %v2307
      %v2545 = vunpack.c.l.b16 %v2320
      %v2546 = vunpack.c.l.b16 %v2329
      %v2547 = vunpack.c.l.b16 %v2342
      %v2548 = vunpack.c.l.b16 %v2351
      %v2549 = vunpack.c.l.b16 %v2364
      %v2550 = vunpack.c.l.b16 %v2373
      %v2551 = vunpack.c.l.b16 %v2386
      %v2552 = vunpack.c.l.b16 %v2395
      %v2553 = vunpack.c.l.b16 %v2408
      %v2554 = vunpack.c.l.b16 %v2417
      %v2555 = vunpack.c.l.b16 %v2430
      %v2556 = vunpack.c.l.b16 %v2439
      %v2557 = vunpack.c.l.b16 %v2452
      %v2558 = vunpack.c.l.b16 %v2461
      %v2559 = vunpack.c.l.b16 %v2474
      %v2560 = vunpack.c.l.b16 %v2483
      %v2561 = vunpack.c.l.b16 %v2496
      %v2562 = vunpack.c.l.b16 %v2505
      %v2563 = vunpack.c.l.b16 %v2518
      %v2564 = vunpack.c.l.b16 %v2527
      %v2565 = vpack.c.b16 %v2534, %v2533
      %v2566 = vpack.c.b16 %v2536, %v2535
      %v2567 = vpack.c.b16 %v2538, %v2537
      %v2568 = vpack.c.b16 %v2540, %v2539
      %v2569 = vpack.c.b16 %v2542, %v2541
      %v2570 = vpack.c.b16 %v2544, %v2543
      %v2571 = vpack.c.b16 %v2546, %v2545
      %v2572 = vpack.c.b16 %v2548, %v2547
      %v2573 = vpack.c.b16 %v2550, %v2549
      %v2574 = vpack.c.b16 %v2552, %v2551
      %v2575 = vpack.c.b16 %v2554, %v2553
      %v2576 = vpack.c.b16 %v2556, %v2555
      %v2577 = vpack.c.b16 %v2558, %v2557
      %v2578 = vpack.c.b16 %v2560, %v2559
      %v2579 = vpack.c.b16 %v2562, %v2561
      %v2580 = vpack.c.b16 %v2564, %v2563
      %v2585 = vunpack.c.l.b16 %v2529
      %v2586 = vunpack.c.l.b16 %v2530
      %v2587 = vunpack.c.l.b16 %v2531
      %v2588 = vunpack.c.l.b16 %v2532
      %v2589 = vpack.c.b16 %v2586, %v2585
      %v2590 = vpack.c.b16 %v2588, %v2587
      %v2594 = vsel %vm1120, %v2565, 0
      %v2597 = vsel %vm1120, %v2566, 0
      %v2600 = vsel %vm1120, %v2567, 0
      %v2603 = vsel %vm1120, %v2568, 0
      %v2606 = vsel %vm1120, %v2569, 0
      %v2609 = vsel %vm1120, %v2570, 0
      %v2612 = vsel %vm1120, %v2571, 0
      %v2615 = vsel %vm1120, %v2572, 0
      %v2618 = vsel %vm1120, %v2573, 0
      %v2621 = vsel %vm1120, %v2574, 0
      %v2624 = vsel %vm1120, %v2575, 0
      %v2627 = vsel %vm1120, %v2576, 0
      %v2630 = vsel %vm1120, %v2577, 0
      %v2633 = vsel %vm1120, %v2578, 0
      %v2636 = vsel %vm1120, %v2579, 0
      %v2639 = vsel %vm1120, %v2580, 0
      %2641 = vmatpush.bf16.msra.mxu0 0
      %2642 = vmatpush.bf16.msra.mxu0 0
      %2643 = vmatpush.bf16.msra.mxu0 0
      %2644 = vmatpush.bf16.msra.mxu0 0
      %2645 = vmatpush.bf16.msra.mxu0 0
      %2646 = vmatpush.bf16.msra.mxu0 0
      %2647 = vmatpush.bf16.msra.mxu0 %v2590
      %2648 = vmatpush.bf16.msra.mxu0 %v2589
      %2649 = vmatmul.bf16.gmra.mxu0 %v2594
      %v2650 = vpop.f32.mrf.mxu0
      %v2651 = vadd.f32 0.0, %v2650
      %v2652 = vpop.f32.mrf.mxu0
      %v2653 = vadd.f32 0.0, %v2652
      %2654 = vmatmul.bf16.gmra.mxu0 %v2597
      %v2655 = vpop.f32.mrf.mxu0
      %v2656 = vadd.f32 0.0, %v2655
      %v2657 = vpop.f32.mrf.mxu0
      %v2658 = vadd.f32 0.0, %v2657
      %2659 = vmatmul.bf16.gmra.mxu0 %v2600
      %v2660 = vpop.f32.mrf.mxu0
      %v2661 = vadd.f32 0.0, %v2660
      %v2662 = vpop.f32.mrf.mxu0
      %v2663 = vadd.f32 0.0, %v2662
      %2664 = vmatmul.bf16.gmra.mxu0 %v2603
      %v2665 = vpop.f32.mrf.mxu0
      %v2666 = vadd.f32 0.0, %v2665
      %v2667 = vpop.f32.mrf.mxu0
      %v2668 = vadd.f32 0.0, %v2667
      %2669 = vmatmul.bf16.gmra.mxu0 %v2606
      %v2670 = vpop.f32.mrf.mxu0
      %v2671 = vadd.f32 0.0, %v2670
      %v2672 = vpop.f32.mrf.mxu0
      %v2673 = vadd.f32 0.0, %v2672
      %2674 = vmatmul.bf16.gmra.mxu0 %v2609
      %v2675 = vpop.f32.mrf.mxu0
      %v2676 = vadd.f32 0.0, %v2675
      %v2677 = vpop.f32.mrf.mxu0
      %v2678 = vadd.f32 0.0, %v2677
      %2679 = vmatmul.bf16.gmra.mxu0 %v2612
      %v2680 = vpop.f32.mrf.mxu0
      %v2681 = vadd.f32 0.0, %v2680
      %v2682 = vpop.f32.mrf.mxu0
      %v2683 = vadd.f32 0.0, %v2682
      %2684 = vmatmul.bf16.gmra.mxu0 %v2615
      %v2685 = vpop.f32.mrf.mxu0
      %v2686 = vadd.f32 0.0, %v2685
      %v2687 = vpop.f32.mrf.mxu0
      %v2688 = vadd.f32 0.0, %v2687
      %2689 = vmatmul.bf16.gmra.mxu0 %v2618
      %v2690 = vpop.f32.mrf.mxu0
      %v2691 = vadd.f32 0.0, %v2690
      %v2692 = vpop.f32.mrf.mxu0
      %v2693 = vadd.f32 0.0, %v2692
      %2694 = vmatmul.bf16.gmra.mxu0 %v2621
      %v2695 = vpop.f32.mrf.mxu0
      %v2696 = vadd.f32 0.0, %v2695
      %v2697 = vpop.f32.mrf.mxu0
      %v2698 = vadd.f32 0.0, %v2697
      %2699 = vmatmul.bf16.gmra.mxu0 %v2624
      %v2700 = vpop.f32.mrf.mxu0
      %v2701 = vadd.f32 0.0, %v2700
      %v2702 = vpop.f32.mrf.mxu0
      %v2703 = vadd.f32 0.0, %v2702
      %2704 = vmatmul.bf16.gmra.mxu0 %v2627
      %v2705 = vpop.f32.mrf.mxu0
      %v2706 = vadd.f32 0.0, %v2705
      %v2707 = vpop.f32.mrf.mxu0
      %v2708 = vadd.f32 0.0, %v2707
      %2709 = vmatmul.bf16.gmra.mxu0 %v2630
      %v2710 = vpop.f32.mrf.mxu0
      %v2711 = vadd.f32 0.0, %v2710
      %v2712 = vpop.f32.mrf.mxu0
      %v2713 = vadd.f32 0.0, %v2712
      %2714 = vmatmul.bf16.gmra.mxu0 %v2633
      %v2715 = vpop.f32.mrf.mxu0
      %v2716 = vadd.f32 0.0, %v2715
      %v2717 = vpop.f32.mrf.mxu0
      %v2718 = vadd.f32 0.0, %v2717
      %2719 = vmatmul.bf16.gmra.mxu0 %v2636
      %v2720 = vpop.f32.mrf.mxu0
      %v2721 = vadd.f32 0.0, %v2720
      %v2722 = vpop.f32.mrf.mxu0
      %v2723 = vadd.f32 0.0, %v2722
      %2724 = vmatmul.bf16.gmra.mxu0 %v2639
      %v2725 = vpop.f32.mrf.mxu0
      %v2726 = vadd.f32 0.0, %v2725
      %v2727 = vpop.f32.mrf.mxu0
      %v2728 = vadd.f32 0.0, %v2727
      %2729 = vdwg.mxu0
      %v2730 = vadd.f32 %v2092, %v2651
      %v2731 = vadd.f32 %v2093, %v2653
      %v2732 = vadd.f32 %v2094, %v2656
      %v2733 = vadd.f32 %v2095, %v2658
      %v2734 = vadd.f32 %v2096, %v2661
      %v2735 = vadd.f32 %v2097, %v2663
      %v2736 = vadd.f32 %v2098, %v2666
      %v2737 = vadd.f32 %v2099, %v2668
      %v2738 = vadd.f32 %v2100, %v2671
      %v2739 = vadd.f32 %v2101, %v2673
      %v2740 = vadd.f32 %v2102, %v2676
      %v2741 = vadd.f32 %v2103, %v2678
      %v2742 = vadd.f32 %v2104, %v2681
      %v2743 = vadd.f32 %v2105, %v2683
      %v2744 = vadd.f32 %v2106, %v2686
      %v2745 = vadd.f32 %v2107, %v2688
      %v2746 = vadd.f32 %v2108, %v2691
      %v2747 = vadd.f32 %v2109, %v2693
      %v2748 = vadd.f32 %v2110, %v2696
      %v2749 = vadd.f32 %v2111, %v2698
      %v2750 = vadd.f32 %v2112, %v2701
      %v2751 = vadd.f32 %v2113, %v2703
      %v2752 = vadd.f32 %v2114, %v2706
      %v2753 = vadd.f32 %v2115, %v2708
      %v2754 = vadd.f32 %v2116, %v2711
      %v2755 = vadd.f32 %v2117, %v2713
      %v2756 = vadd.f32 %v2118, %v2716
      %v2757 = vadd.f32 %v2119, %v2718
      %v2758 = vadd.f32 %v2120, %v2721
      %v2759 = vadd.f32 %v2121, %v2723
      %v2760 = vadd.f32 %v2122, %v2726
      %v2761 = vadd.f32 %v2123, %v2728
      %s2762 = scalar_lea.vmem %s1, 64
      %v2763 = vld [vmem:[%s2762] sm:$0xf]
      %v2764 = vld [vmem:[%s2762 + $0x4] sm:$0xf]
      %v2765 = vld [vmem:[%s2762 + $0x8] sm:$0xf]
      %v2766 = vld [vmem:[%s2762 + $0xc] sm:$0xf]
      %v2799 = vunpack.c.l.b16 %v2129
      %v2800 = vunpack.c.l.b16 %v2130
      %v2801 = vunpack.c.l.b16 %v2132
      %v2802 = vunpack.c.l.b16 %v2133
      %v2803 = vunpack.c.l.b16 %v2135
      %v2804 = vunpack.c.l.b16 %v2136
      %v2805 = vunpack.c.l.b16 %v2138
      %v2806 = vunpack.c.l.b16 %v2139
      %v2807 = vunpack.c.l.b16 %v2141
      %v2808 = vunpack.c.l.b16 %v2142
      %v2809 = vunpack.c.l.b16 %v2144
      %v2810 = vunpack.c.l.b16 %v2145
      %v2811 = vunpack.c.l.b16 %v2147
      %v2812 = vunpack.c.l.b16 %v2148
      %v2813 = vunpack.c.l.b16 %v2150
      %v2814 = vunpack.c.l.b16 %v2151
      %v2815 = vunpack.c.l.b16 %v2153
      %v2816 = vunpack.c.l.b16 %v2154
      %v2817 = vunpack.c.l.b16 %v2156
      %v2818 = vunpack.c.l.b16 %v2157
      %v2819 = vunpack.c.l.b16 %v2159
      %v2820 = vunpack.c.l.b16 %v2160
      %v2821 = vunpack.c.l.b16 %v2162
      %v2822 = vunpack.c.l.b16 %v2163
      %v2823 = vunpack.c.l.b16 %v2165
      %v2824 = vunpack.c.l.b16 %v2166
      %v2825 = vunpack.c.l.b16 %v2168
      %v2826 = vunpack.c.l.b16 %v2169
      %v2827 = vunpack.c.l.b16 %v2171
      %v2828 = vunpack.c.l.b16 %v2172
      %v2829 = vunpack.c.l.b16 %v2174
      %v2830 = vunpack.c.l.b16 %v2175
      %v2831 = vpack.c.b16 %v2800, %v2799
      %v2832 = vpack.c.b16 %v2802, %v2801
      %v2833 = vpack.c.b16 %v2804, %v2803
      %v2834 = vpack.c.b16 %v2806, %v2805
      %v2835 = vpack.c.b16 %v2808, %v2807
      %v2836 = vpack.c.b16 %v2810, %v2809
      %v2837 = vpack.c.b16 %v2812, %v2811
      %v2838 = vpack.c.b16 %v2814, %v2813
      %v2839 = vpack.c.b16 %v2816, %v2815
      %v2840 = vpack.c.b16 %v2818, %v2817
      %v2841 = vpack.c.b16 %v2820, %v2819
      %v2842 = vpack.c.b16 %v2822, %v2821
      %v2843 = vpack.c.b16 %v2824, %v2823
      %v2844 = vpack.c.b16 %v2826, %v2825
      %v2845 = vpack.c.b16 %v2828, %v2827
      %v2846 = vpack.c.b16 %v2830, %v2829
      %v2851 = vunpack.c.l.b16 %v2763
      %v2852 = vunpack.c.l.b16 %v2764
      %v2853 = vunpack.c.l.b16 %v2765
      %v2854 = vunpack.c.l.b16 %v2766
      %v2855 = vpack.c.b16 %v2852, %v2851
      %v2856 = vpack.c.b16 %v2854, %v2853
      %v2860 = vsel %vm1120, %v2831, 0
      %v2863 = vsel %vm1120, %v2832, 0
      %v2866 = vsel %vm1120, %v2833, 0
      %v2869 = vsel %vm1120, %v2834, 0
      %v2872 = vsel %vm1120, %v2835, 0
      %v2875 = vsel %vm1120, %v2836, 0
      %v2878 = vsel %vm1120, %v2837, 0
      %v2881 = vsel %vm1120, %v2838, 0
      %v2884 = vsel %vm1120, %v2839, 0
      %v2887 = vsel %vm1120, %v2840, 0
      %v2890 = vsel %vm1120, %v2841, 0
      %v2893 = vsel %vm1120, %v2842, 0
      %v2896 = vsel %vm1120, %v2843, 0
      %v2899 = vsel %vm1120, %v2844, 0
      %v2902 = vsel %vm1120, %v2845, 0
      %v2905 = vsel %vm1120, %v2846, 0
      %2907 = vmatpush.bf16.msra.mxu0 0
      %2908 = vmatpush.bf16.msra.mxu0 0
      %2909 = vmatpush.bf16.msra.mxu0 0
      %2910 = vmatpush.bf16.msra.mxu0 0
      %2911 = vmatpush.bf16.msra.mxu0 0
      %2912 = vmatpush.bf16.msra.mxu0 0
      %2913 = vmatpush.bf16.msra.mxu0 %v2856
      %2914 = vmatpush.bf16.msra.mxu0 %v2855
      %2915 = vmatmul.bf16.gmra.mxu0 %v2860
      %v2916 = vpop.f32.mrf.mxu0
      %v2917 = vadd.f32 0.0, %v2916
      %v2918 = vpop.f32.mrf.mxu0
      %v2919 = vadd.f32 0.0, %v2918
      %2920 = vmatmul.bf16.gmra.mxu0 %v2863
      %v2921 = vpop.f32.mrf.mxu0
      %v2922 = vadd.f32 0.0, %v2921
      %v2923 = vpop.f32.mrf.mxu0
      %v2924 = vadd.f32 0.0, %v2923
      %2925 = vmatmul.bf16.gmra.mxu0 %v2866
      %v2926 = vpop.f32.mrf.mxu0
      %v2927 = vadd.f32 0.0, %v2926
      %v2928 = vpop.f32.mrf.mxu0
      %v2929 = vadd.f32 0.0, %v2928
      %2930 = vmatmul.bf16.gmra.mxu0 %v2869
      %v2931 = vpop.f32.mrf.mxu0
      %v2932 = vadd.f32 0.0, %v2931
      %v2933 = vpop.f32.mrf.mxu0
      %v2934 = vadd.f32 0.0, %v2933
      %2935 = vmatmul.bf16.gmra.mxu0 %v2872
      %v2936 = vpop.f32.mrf.mxu0
      %v2937 = vadd.f32 0.0, %v2936
      %v2938 = vpop.f32.mrf.mxu0
      %v2939 = vadd.f32 0.0, %v2938
      %2940 = vmatmul.bf16.gmra.mxu0 %v2875
      %v2941 = vpop.f32.mrf.mxu0
      %v2942 = vadd.f32 0.0, %v2941
      %v2943 = vpop.f32.mrf.mxu0
      %v2944 = vadd.f32 0.0, %v2943
      %2945 = vmatmul.bf16.gmra.mxu0 %v2878
      %v2946 = vpop.f32.mrf.mxu0
      %v2947 = vadd.f32 0.0, %v2946
      %v2948 = vpop.f32.mrf.mxu0
      %v2949 = vadd.f32 0.0, %v2948
      %2950 = vmatmul.bf16.gmra.mxu0 %v2881
      %v2951 = vpop.f32.mrf.mxu0
      %v2952 = vadd.f32 0.0, %v2951
      %v2953 = vpop.f32.mrf.mxu0
      %v2954 = vadd.f32 0.0, %v2953
      %2955 = vmatmul.bf16.gmra.mxu0 %v2884
      %v2956 = vpop.f32.mrf.mxu0
      %v2957 = vadd.f32 0.0, %v2956
      %v2958 = vpop.f32.mrf.mxu0
      %v2959 = vadd.f32 0.0, %v2958
      %2960 = vmatmul.bf16.gmra.mxu0 %v2887
      %v2961 = vpop.f32.mrf.mxu0
      %v2962 = vadd.f32 0.0, %v2961
      %v2963 = vpop.f32.mrf.mxu0
      %v2964 = vadd.f32 0.0, %v2963
      %2965 = vmatmul.bf16.gmra.mxu0 %v2890
      %v2966 = vpop.f32.mrf.mxu0
      %v2967 = vadd.f32 0.0, %v2966
      %v2968 = vpop.f32.mrf.mxu0
      %v2969 = vadd.f32 0.0, %v2968
      %2970 = vmatmul.bf16.gmra.mxu0 %v2893
      %v2971 = vpop.f32.mrf.mxu0
      %v2972 = vadd.f32 0.0, %v2971
      %v2973 = vpop.f32.mrf.mxu0
      %v2974 = vadd.f32 0.0, %v2973
      %2975 = vmatmul.bf16.gmra.mxu0 %v2896
      %v2976 = vpop.f32.mrf.mxu0
      %v2977 = vadd.f32 0.0, %v2976
      %v2978 = vpop.f32.mrf.mxu0
      %v2979 = vadd.f32 0.0, %v2978
      %2980 = vmatmul.bf16.gmra.mxu0 %v2899
      %v2981 = vpop.f32.mrf.mxu0
      %v2982 = vadd.f32 0.0, %v2981
      %v2983 = vpop.f32.mrf.mxu0
      %v2984 = vadd.f32 0.0, %v2983
      %2985 = vmatmul.bf16.gmra.mxu0 %v2902
      %v2986 = vpop.f32.mrf.mxu0
      %v2987 = vadd.f32 0.0, %v2986
      %v2988 = vpop.f32.mrf.mxu0
      %v2989 = vadd.f32 0.0, %v2988
      %2990 = vmatmul.bf16.gmra.mxu0 %v2905
      %v2991 = vpop.f32.mrf.mxu0
      %v2992 = vadd.f32 0.0, %v2991
      %v2993 = vpop.f32.mrf.mxu0
      %v2994 = vadd.f32 0.0, %v2993
      %2995 = vdwg.mxu0
      %v2996 = vadd.f32 %v2730, %v2917
      %v2997 = vadd.f32 %v2731, %v2919
      %v2998 = vadd.f32 %v2732, %v2922
      %v2999 = vadd.f32 %v2733, %v2924
      %v3000 = vadd.f32 %v2734, %v2927
      %v3001 = vadd.f32 %v2735, %v2929
      %v3002 = vadd.f32 %v2736, %v2932
      %v3003 = vadd.f32 %v2737, %v2934
      %v3004 = vadd.f32 %v2738, %v2937
      %v3005 = vadd.f32 %v2739, %v2939
      %v3006 = vadd.f32 %v2740, %v2942
      %v3007 = vadd.f32 %v2741, %v2944
      %v3008 = vadd.f32 %v2742, %v2947
      %v3009 = vadd.f32 %v2743, %v2949
      %v3010 = vadd.f32 %v2744, %v2952
      %v3011 = vadd.f32 %v2745, %v2954
      %v3012 = vadd.f32 %v2746, %v2957
      %v3013 = vadd.f32 %v2747, %v2959
      %v3014 = vadd.f32 %v2748, %v2962
      %v3015 = vadd.f32 %v2749, %v2964
      %v3016 = vadd.f32 %v2750, %v2967
      %v3017 = vadd.f32 %v2751, %v2969
      %v3018 = vadd.f32 %v2752, %v2972
      %v3019 = vadd.f32 %v2753, %v2974
      %v3020 = vadd.f32 %v2754, %v2977
      %v3021 = vadd.f32 %v2755, %v2979
      %v3022 = vadd.f32 %v2756, %v2982
      %v3023 = vadd.f32 %v2757, %v2984
      %v3024 = vadd.f32 %v2758, %v2987
      %v3025 = vadd.f32 %v2759, %v2989
      %v3026 = vadd.f32 %v2760, %v2992
      %v3027 = vadd.f32 %v2761, %v2994
      %v3028 = vld [vmem:[%s2127 + $0x8] sm:$0xf]
      %v3029 = vld [vmem:[%s2127 + $0xc] sm:$0xf]
      %v3030 = vld [vmem:[%s2127 + $0x10] sm:$0x1]
      %v3031 = vld [vmem:[%s2127 + $0x20] sm:$0xf]
      %v3032 = vld [vmem:[%s2127 + $0x24] sm:$0xf]
      %v3033 = vld [vmem:[%s2127 + $0x28] sm:$0x1]
      %v3034 = vld [vmem:[%s2127 + $0x38] sm:$0xf]
      %v3035 = vld [vmem:[%s2127 + $0x3c] sm:$0xf]
      %v3036 = vld [vmem:[%s2127 + $0x40] sm:$0x1]
      %v3037 = vld [vmem:[%s2127 + $0x50] sm:$0xf]
      %v3038 = vld [vmem:[%s2127 + $0x54] sm:$0xf]
      %v3039 = vld [vmem:[%s2127 + $0x58] sm:$0x1]
      %v3040 = vld [vmem:[%s2127 + $0x68] sm:$0xf]
      %v3041 = vld [vmem:[%s2127 + $0x6c] sm:$0xf]
      %v3042 = vld [vmem:[%s2127 + $0x70] sm:$0x1]
      %v3043 = vld [vmem:[%s2127 + $0x80] sm:$0xf]
      %v3044 = vld [vmem:[%s2127 + $0x84] sm:$0xf]
      %v3045 = vld [vmem:[%s2127 + $0x88] sm:$0x1]
      %v3046 = vld [vmem:[%s2127 + $0x98] sm:$0xf]
      %v3047 = vld [vmem:[%s2127 + $0x9c] sm:$0xf]
      %v3048 = vld [vmem:[%s2127 + $0xa0] sm:$0x1]
      %v3049 = vld [vmem:[%s2127 + $0xb0] sm:$0xf]
      %v3050 = vld [vmem:[%s2127 + $0xb4] sm:$0xf]
      %v3051 = vld [vmem:[%s2127 + $0xb8] sm:$0x1]
      %v3052 = vld [vmem:[%s2127 + $0xc8] sm:$0xf]
      %v3053 = vld [vmem:[%s2127 + $0xcc] sm:$0xf]
      %v3054 = vld [vmem:[%s2127 + $0xd0] sm:$0x1]
      %v3055 = vld [vmem:[%s2127 + $0xe0] sm:$0xf]
      %v3056 = vld [vmem:[%s2127 + $0xe4] sm:$0xf]
      %v3057 = vld [vmem:[%s2127 + $0xe8] sm:$0x1]
      %v3058 = vld [vmem:[%s2127 + $0xf8] sm:$0xf]
      %v3059 = vld [vmem:[%s2127 + $0xfc] sm:$0xf]
      %v3060 = vld [vmem:[%s2127 + $0x100] sm:$0x1]
      %v3061 = vld [vmem:[%s2127 + $0x110] sm:$0xf]
      %v3062 = vld [vmem:[%s2127 + $0x114] sm:$0xf]
      %v3063 = vld [vmem:[%s2127 + $0x118] sm:$0x1]
      %v3064 = vld [vmem:[%s2127 + $0x128] sm:$0xf]
      %v3065 = vld [vmem:[%s2127 + $0x12c] sm:$0xf]
      %v3066 = vld [vmem:[%s2127 + $0x130] sm:$0x1]
      %v3067 = vld [vmem:[%s2127 + $0x140] sm:$0xf]
      %v3068 = vld [vmem:[%s2127 + $0x144] sm:$0xf]
      %v3069 = vld [vmem:[%s2127 + $0x148] sm:$0x1]
      %v3070 = vld [vmem:[%s2127 + $0x158] sm:$0xf]
      %v3071 = vld [vmem:[%s2127 + $0x15c] sm:$0xf]
      %v3072 = vld [vmem:[%s2127 + $0x160] sm:$0x1]
      %v3073 = vld [vmem:[%s2127 + $0x170] sm:$0xf]
      %v3074 = vld [vmem:[%s2127 + $0x174] sm:$0xf]
      %v3075 = vld [vmem:[%s2127 + $0x178] sm:$0x1]
      %v3077 = vshrl.u32 %v3028, 16
      %v3079 = vrot.slane %v3077, 4
      %v3080 = vshll.u32 %v3028, 16
      %v3082 = vrot.slane %v3080, 5
      %v3083 = vor.u32 %v3079, %v3082
      %v3084 = vrot.slane %v3083, 4
      %v3086 = vshll.u32 %v3029, 16
      %v3088 = vrot.slane %v3086, 5
      %v3089 = vsel %vm1505, %v3084, %v3088
      %v3090 = vshrl.u32 %v3029, 16
      %v3092 = vrot.slane %v3090, 4
      %v3093 = vor.u32 %v3092, %v3088
      %v3094 = vrot.slane %v3093, 4
      %v3096 = vshll.u32 %v3030, 16
      %v3098 = vrot.slane %v3096, 5
      %v3099 = vsel %vm1505, %v3094, %v3098
      %v3101 = vshrl.u32 %v3031, 16
      %v3103 = vrot.slane %v3101, 4
      %v3104 = vshll.u32 %v3031, 16
      %v3106 = vrot.slane %v3104, 5
      %v3107 = vor.u32 %v3103, %v3106
      %v3108 = vrot.slane %v3107, 4
      %v3110 = vshll.u32 %v3032, 16
      %v3112 = vrot.slane %v3110, 5
      %v3113 = vsel %vm1505, %v3108, %v3112
      %v3114 = vshrl.u32 %v3032, 16
      %v3116 = vrot.slane %v3114, 4
      %v3117 = vor.u32 %v3116, %v3112
      %v3118 = vrot.slane %v3117, 4
      %v3120 = vshll.u32 %v3033, 16
      %v3122 = vrot.slane %v3120, 5
      %v3123 = vsel %vm1505, %v3118, %v3122
      %v3125 = vshrl.u32 %v3034, 16
      %v3127 = vrot.slane %v3125, 4
      %v3128 = vshll.u32 %v3034, 16
      %v3130 = vrot.slane %v3128, 5
      %v3131 = vor.u32 %v3127, %v3130
      %v3132 = vrot.slane %v3131, 4
      %v3134 = vshll.u32 %v3035, 16
      %v3136 = vrot.slane %v3134, 5
      %v3137 = vsel %vm1505, %v3132, %v3136
      %v3138 = vshrl.u32 %v3035, 16
      %v3140 = vrot.slane %v3138, 4
      %v3141 = vor.u32 %v3140, %v3136
      %v3142 = vrot.slane %v3141, 4
      %v3144 = vshll.u32 %v3036, 16
      %v3146 = vrot.slane %v3144, 5
      %v3147 = vsel %vm1505, %v3142, %v3146
      %v3149 = vshrl.u32 %v3037, 16
      %v3151 = vrot.slane %v3149, 4
      %v3152 = vshll.u32 %v3037, 16
      %v3154 = vrot.slane %v3152, 5
      %v3155 = vor.u32 %v3151, %v3154
      %v3156 = vrot.slane %v3155, 4
      %v3158 = vshll.u32 %v3038, 16
      %v3160 = vrot.slane %v3158, 5
      %v3161 = vsel %vm1505, %v3156, %v3160
      %v3162 = vshrl.u32 %v3038, 16
      %v3164 = vrot.slane %v3162, 4
      %v3165 = vor.u32 %v3164, %v3160
      %v3166 = vrot.slane %v3165, 4
      %v3168 = vshll.u32 %v3039, 16
      %v3170 = vrot.slane %v3168, 5
      %v3171 = vsel %vm1505, %v3166, %v3170
      %v3173 = vshrl.u32 %v3040, 16
      %v3175 = vrot.slane %v3173, 4
      %v3176 = vshll.u32 %v3040, 16
      %v3178 = vrot.slane %v3176, 5
      %v3179 = vor.u32 %v3175, %v3178
      %v3180 = vrot.slane %v3179, 4
      %v3182 = vshll.u32 %v3041, 16
      %v3184 = vrot.slane %v3182, 5
      %v3185 = vsel %vm1505, %v3180, %v3184
      %v3186 = vshrl.u32 %v3041, 16
      %v3188 = vrot.slane %v3186, 4
      %v3189 = vor.u32 %v3188, %v3184
      %v3190 = vrot.slane %v3189, 4
      %v3192 = vshll.u32 %v3042, 16
      %v3194 = vrot.slane %v3192, 5
      %v3195 = vsel %vm1505, %v3190, %v3194
      %v3197 = vshrl.u32 %v3043, 16
      %v3199 = vrot.slane %v3197, 4
      %v3200 = vshll.u32 %v3043, 16
      %v3202 = vrot.slane %v3200, 5
      %v3203 = vor.u32 %v3199, %v3202
      %v3204 = vrot.slane %v3203, 4
      %v3206 = vshll.u32 %v3044, 16
      %v3208 = vrot.slane %v3206, 5
      %v3209 = vsel %vm1505, %v3204, %v3208
      %v3210 = vshrl.u32 %v3044, 16
      %v3212 = vrot.slane %v3210, 4
      %v3213 = vor.u32 %v3212, %v3208
      %v3214 = vrot.slane %v3213, 4
      %v3216 = vshll.u32 %v3045, 16
      %v3218 = vrot.slane %v3216, 5
      %v3219 = vsel %vm1505, %v3214, %v3218
      %v3221 = vshrl.u32 %v3046, 16
      %v3223 = vrot.slane %v3221, 4
      %v3224 = vshll.u32 %v3046, 16
      %v3226 = vrot.slane %v3224, 5
      %v3227 = vor.u32 %v3223, %v3226
      %v3228 = vrot.slane %v3227, 4
      %v3230 = vshll.u32 %v3047, 16
      %v3232 = vrot.slane %v3230, 5
      %v3233 = vsel %vm1505, %v3228, %v3232
      %v3234 = vshrl.u32 %v3047, 16
      %v3236 = vrot.slane %v3234, 4
      %v3237 = vor.u32 %v3236, %v3232
      %v3238 = vrot.slane %v3237, 4
      %v3240 = vshll.u32 %v3048, 16
      %v3242 = vrot.slane %v3240, 5
      %v3243 = vsel %vm1505, %v3238, %v3242
      %v3245 = vshrl.u32 %v3049, 16
      %v3247 = vrot.slane %v3245, 4
      %v3248 = vshll.u32 %v3049, 16
      %v3250 = vrot.slane %v3248, 5
      %v3251 = vor.u32 %v3247, %v3250
      %v3252 = vrot.slane %v3251, 4
      %v3254 = vshll.u32 %v3050, 16
      %v3256 = vrot.slane %v3254, 5
      %v3257 = vsel %vm1505, %v3252, %v3256
      %v3258 = vshrl.u32 %v3050, 16
      %v3260 = vrot.slane %v3258, 4
      %v3261 = vor.u32 %v3260, %v3256
      %v3262 = vrot.slane %v3261, 4
      %v3264 = vshll.u32 %v3051, 16
      %v3266 = vrot.slane %v3264, 5
      %v3267 = vsel %vm1505, %v3262, %v3266
      %v3269 = vshrl.u32 %v3052, 16
      %v3271 = vrot.slane %v3269, 4
      %v3272 = vshll.u32 %v3052, 16
      %v3274 = vrot.slane %v3272, 5
      %v3275 = vor.u32 %v3271, %v3274
      %v3276 = vrot.slane %v3275, 4
      %v3278 = vshll.u32 %v3053, 16
      %v3280 = vrot.slane %v3278, 5
      %v3281 = vsel %vm1505, %v3276, %v3280
      %v3282 = vshrl.u32 %v3053, 16
      %v3284 = vrot.slane %v3282, 4
      %v3285 = vor.u32 %v3284, %v3280
      %v3286 = vrot.slane %v3285, 4
      %v3288 = vshll.u32 %v3054, 16
      %v3290 = vrot.slane %v3288, 5
      %v3291 = vsel %vm1505, %v3286, %v3290
      %v3293 = vshrl.u32 %v3055, 16
      %v3295 = vrot.slane %v3293, 4
      %v3296 = vshll.u32 %v3055, 16
      %v3298 = vrot.slane %v3296, 5
      %v3299 = vor.u32 %v3295, %v3298
      %v3300 = vrot.slane %v3299, 4
      %v3302 = vshll.u32 %v3056, 16
      %v3304 = vrot.slane %v3302, 5
      %v3305 = vsel %vm1505, %v3300, %v3304
      %v3306 = vshrl.u32 %v3056, 16
      %v3308 = vrot.slane %v3306, 4
      %v3309 = vor.u32 %v3308, %v3304
      %v3310 = vrot.slane %v3309, 4
      %v3312 = vshll.u32 %v3057, 16
      %v3314 = vrot.slane %v3312, 5
      %v3315 = vsel %vm1505, %v3310, %v3314
      %v3317 = vshrl.u32 %v3058, 16
      %v3319 = vrot.slane %v3317, 4
      %v3320 = vshll.u32 %v3058, 16
      %v3322 = vrot.slane %v3320, 5
      %v3323 = vor.u32 %v3319, %v3322
      %v3324 = vrot.slane %v3323, 4
      %v3326 = vshll.u32 %v3059, 16
      %v3328 = vrot.slane %v3326, 5
      %v3329 = vsel %vm1505, %v3324, %v3328
      %v3330 = vshrl.u32 %v3059, 16
      %v3332 = vrot.slane %v3330, 4
      %v3333 = vor.u32 %v3332, %v3328
      %v3334 = vrot.slane %v3333, 4
      %v3336 = vshll.u32 %v3060, 16
      %v3338 = vrot.slane %v3336, 5
      %v3339 = vsel %vm1505, %v3334, %v3338
      %v3341 = vshrl.u32 %v3061, 16
      %v3343 = vrot.slane %v3341, 4
      %v3344 = vshll.u32 %v3061, 16
      %v3346 = vrot.slane %v3344, 5
      %v3347 = vor.u32 %v3343, %v3346
      %v3348 = vrot.slane %v3347, 4
      %v3350 = vshll.u32 %v3062, 16
      %v3352 = vrot.slane %v3350, 5
      %v3353 = vsel %vm1505, %v3348, %v3352
      %v3354 = vshrl.u32 %v3062, 16
      %v3356 = vrot.slane %v3354, 4
      %v3357 = vor.u32 %v3356, %v3352
      %v3358 = vrot.slane %v3357, 4
      %v3360 = vshll.u32 %v3063, 16
      %v3362 = vrot.slane %v3360, 5
      %v3363 = vsel %vm1505, %v3358, %v3362
      %v3365 = vshrl.u32 %v3064, 16
      %v3367 = vrot.slane %v3365, 4
      %v3368 = vshll.u32 %v3064, 16
      %v3370 = vrot.slane %v3368, 5
      %v3371 = vor.u32 %v3367, %v3370
      %v3372 = vrot.slane %v3371, 4
      %v3374 = vshll.u32 %v3065, 16
      %v3376 = vrot.slane %v3374, 5
      %v3377 = vsel %vm1505, %v3372, %v3376
      %v3378 = vshrl.u32 %v3065, 16
      %v3380 = vrot.slane %v3378, 4
      %v3381 = vor.u32 %v3380, %v3376
      %v3382 = vrot.slane %v3381, 4
      %v3384 = vshll.u32 %v3066, 16
      %v3386 = vrot.slane %v3384, 5
      %v3387 = vsel %vm1505, %v3382, %v3386
      %v3389 = vshrl.u32 %v3067, 16
      %v3391 = vrot.slane %v3389, 4
      %v3392 = vshll.u32 %v3067, 16
      %v3394 = vrot.slane %v3392, 5
      %v3395 = vor.u32 %v3391, %v3394
      %v3396 = vrot.slane %v3395, 4
      %v3398 = vshll.u32 %v3068, 16
      %v3400 = vrot.slane %v3398, 5
      %v3401 = vsel %vm1505, %v3396, %v3400
      %v3402 = vshrl.u32 %v3068, 16
      %v3404 = vrot.slane %v3402, 4
      %v3405 = vor.u32 %v3404, %v3400
      %v3406 = vrot.slane %v3405, 4
      %v3408 = vshll.u32 %v3069, 16
      %v3410 = vrot.slane %v3408, 5
      %v3411 = vsel %vm1505, %v3406, %v3410
      %v3413 = vshrl.u32 %v3070, 16
      %v3415 = vrot.slane %v3413, 4
      %v3416 = vshll.u32 %v3070, 16
      %v3418 = vrot.slane %v3416, 5
      %v3419 = vor.u32 %v3415, %v3418
      %v3420 = vrot.slane %v3419, 4
      %v3422 = vshll.u32 %v3071, 16
      %v3424 = vrot.slane %v3422, 5
      %v3425 = vsel %vm1505, %v3420, %v3424
      %v3426 = vshrl.u32 %v3071, 16
      %v3428 = vrot.slane %v3426, 4
      %v3429 = vor.u32 %v3428, %v3424
      %v3430 = vrot.slane %v3429, 4
      %v3432 = vshll.u32 %v3072, 16
      %v3434 = vrot.slane %v3432, 5
      %v3435 = vsel %vm1505, %v3430, %v3434
      %v3437 = vshrl.u32 %v3073, 16
      %v3439 = vrot.slane %v3437, 4
      %v3440 = vshll.u32 %v3073, 16
      %v3442 = vrot.slane %v3440, 5
      %v3443 = vor.u32 %v3439, %v3442
      %v3444 = vrot.slane %v3443, 4
      %v3446 = vshll.u32 %v3074, 16
      %v3448 = vrot.slane %v3446, 5
      %v3449 = vsel %vm1505, %v3444, %v3448
      %v3450 = vshrl.u32 %v3074, 16
      %v3452 = vrot.slane %v3450, 4
      %v3453 = vor.u32 %v3452, %v3448
      %v3454 = vrot.slane %v3453, 4
      %v3456 = vshll.u32 %v3075, 16
      %v3458 = vrot.slane %v3456, 5
      %v3459 = vsel %vm1505, %v3454, %v3458
      %s3460 = scalar_lea.vmem %s1, 80
      %v3461 = vld [vmem:[%s3460] sm:$0xf]
      %v3462 = vld [vmem:[%s3460 + $0x4] sm:$0xf]
      %v3463 = vld [vmem:[%s3460 + $0x8] sm:$0xf]
      %v3464 = vld [vmem:[%s3460 + $0xc] sm:$0xf]
      %v3465 = vunpack.c.l.b16 %v3089
      %v3466 = vunpack.c.l.b16 %v3099
      %v3467 = vunpack.c.l.b16 %v3113
      %v3468 = vunpack.c.l.b16 %v3123
      %v3469 = vunpack.c.l.b16 %v3137
      %v3470 = vunpack.c.l.b16 %v3147
      %v3471 = vunpack.c.l.b16 %v3161
      %v3472 = vunpack.c.l.b16 %v3171
      %v3473 = vunpack.c.l.b16 %v3185
      %v3474 = vunpack.c.l.b16 %v3195
      %v3475 = vunpack.c.l.b16 %v3209
      %v3476 = vunpack.c.l.b16 %v3219
      %v3477 = vunpack.c.l.b16 %v3233
      %v3478 = vunpack.c.l.b16 %v3243
      %v3479 = vunpack.c.l.b16 %v3257
      %v3480 = vunpack.c.l.b16 %v3267
      %v3481 = vunpack.c.l.b16 %v3281
      %v3482 = vunpack.c.l.b16 %v3291
      %v3483 = vunpack.c.l.b16 %v3305
      %v3484 = vunpack.c.l.b16 %v3315
      %v3485 = vunpack.c.l.b16 %v3329
      %v3486 = vunpack.c.l.b16 %v3339
      %v3487 = vunpack.c.l.b16 %v3353
      %v3488 = vunpack.c.l.b16 %v3363
      %v3489 = vunpack.c.l.b16 %v3377
      %v3490 = vunpack.c.l.b16 %v3387
      %v3491 = vunpack.c.l.b16 %v3401
      %v3492 = vunpack.c.l.b16 %v3411
      %v3493 = vunpack.c.l.b16 %v3425
      %v3494 = vunpack.c.l.b16 %v3435
      %v3495 = vunpack.c.l.b16 %v3449
      %v3496 = vunpack.c.l.b16 %v3459
      %v3497 = vpack.c.b16 %v3466, %v3465
      %v3498 = vpack.c.b16 %v3468, %v3467
      %v3499 = vpack.c.b16 %v3470, %v3469
      %v3500 = vpack.c.b16 %v3472, %v3471
      %v3501 = vpack.c.b16 %v3474, %v3473
      %v3502 = vpack.c.b16 %v3476, %v3475
      %v3503 = vpack.c.b16 %v3478, %v3477
      %v3504 = vpack.c.b16 %v3480, %v3479
      %v3505 = vpack.c.b16 %v3482, %v3481
      %v3506 = vpack.c.b16 %v3484, %v3483
      %v3507 = vpack.c.b16 %v3486, %v3485
      %v3508 = vpack.c.b16 %v3488, %v3487
      %v3509 = vpack.c.b16 %v3490, %v3489
      %v3510 = vpack.c.b16 %v3492, %v3491
      %v3511 = vpack.c.b16 %v3494, %v3493
      %v3512 = vpack.c.b16 %v3496, %v3495
      %v3517 = vunpack.c.l.b16 %v3461
      %v3518 = vunpack.c.l.b16 %v3462
      %v3519 = vunpack.c.l.b16 %v3463
      %v3520 = vunpack.c.l.b16 %v3464
      %v3521 = vpack.c.b16 %v3518, %v3517
      %v3522 = vpack.c.b16 %v3520, %v3519
      %v3526 = vsel %vm1120, %v3497, 0
      %v3529 = vsel %vm1120, %v3498, 0
      %v3532 = vsel %vm1120, %v3499, 0
      %v3535 = vsel %vm1120, %v3500, 0
      %v3538 = vsel %vm1120, %v3501, 0
      %v3541 = vsel %vm1120, %v3502, 0
      %v3544 = vsel %vm1120, %v3503, 0
      %v3547 = vsel %vm1120, %v3504, 0
      %v3550 = vsel %vm1120, %v3505, 0
      %v3553 = vsel %vm1120, %v3506, 0
      %v3556 = vsel %vm1120, %v3507, 0
      %v3559 = vsel %vm1120, %v3508, 0
      %v3562 = vsel %vm1120, %v3509, 0
      %v3565 = vsel %vm1120, %v3510, 0
      %v3568 = vsel %vm1120, %v3511, 0
      %v3571 = vsel %vm1120, %v3512, 0
      %3573 = vmatpush.bf16.msra.mxu0 0
      %3574 = vmatpush.bf16.msra.mxu0 0
      %3575 = vmatpush.bf16.msra.mxu0 0
      %3576 = vmatpush.bf16.msra.mxu0 0
      %3577 = vmatpush.bf16.msra.mxu0 0
      %3578 = vmatpush.bf16.msra.mxu0 0
      %3579 = vmatpush.bf16.msra.mxu0 %v3522
      %3580 = vmatpush.bf16.msra.mxu0 %v3521
      %3581 = vmatmul.bf16.gmra.mxu0 %v3526
      %v3582 = vpop.f32.mrf.mxu0
      %v3583 = vadd.f32 0.0, %v3582
      %v3584 = vpop.f32.mrf.mxu0
      %v3585 = vadd.f32 0.0, %v3584
      %3586 = vmatmul.bf16.gmra.mxu0 %v3529
      %v3587 = vpop.f32.mrf.mxu0
      %v3588 = vadd.f32 0.0, %v3587
      %v3589 = vpop.f32.mrf.mxu0
      %v3590 = vadd.f32 0.0, %v3589
      %3591 = vmatmul.bf16.gmra.mxu0 %v3532
      %v3592 = vpop.f32.mrf.mxu0
      %v3593 = vadd.f32 0.0, %v3592
      %v3594 = vpop.f32.mrf.mxu0
      %v3595 = vadd.f32 0.0, %v3594
      %3596 = vmatmul.bf16.gmra.mxu0 %v3535
      %v3597 = vpop.f32.mrf.mxu0
      %v3598 = vadd.f32 0.0, %v3597
      %v3599 = vpop.f32.mrf.mxu0
      %v3600 = vadd.f32 0.0, %v3599
      %3601 = vmatmul.bf16.gmra.mxu0 %v3538
      %v3602 = vpop.f32.mrf.mxu0
      %v3603 = vadd.f32 0.0, %v3602
      %v3604 = vpop.f32.mrf.mxu0
      %v3605 = vadd.f32 0.0, %v3604
      %3606 = vmatmul.bf16.gmra.mxu0 %v3541
      %v3607 = vpop.f32.mrf.mxu0
      %v3608 = vadd.f32 0.0, %v3607
      %v3609 = vpop.f32.mrf.mxu0
      %v3610 = vadd.f32 0.0, %v3609
      %3611 = vmatmul.bf16.gmra.mxu0 %v3544
      %v3612 = vpop.f32.mrf.mxu0
      %v3613 = vadd.f32 0.0, %v3612
      %v3614 = vpop.f32.mrf.mxu0
      %v3615 = vadd.f32 0.0, %v3614
      %3616 = vmatmul.bf16.gmra.mxu0 %v3547
      %v3617 = vpop.f32.mrf.mxu0
      %v3618 = vadd.f32 0.0, %v3617
      %v3619 = vpop.f32.mrf.mxu0
      %v3620 = vadd.f32 0.0, %v3619
      %3621 = vmatmul.bf16.gmra.mxu0 %v3550
      %v3622 = vpop.f32.mrf.mxu0
      %v3623 = vadd.f32 0.0, %v3622
      %v3624 = vpop.f32.mrf.mxu0
      %v3625 = vadd.f32 0.0, %v3624
      %3626 = vmatmul.bf16.gmra.mxu0 %v3553
      %v3627 = vpop.f32.mrf.mxu0
      %v3628 = vadd.f32 0.0, %v3627
      %v3629 = vpop.f32.mrf.mxu0
      %v3630 = vadd.f32 0.0, %v3629
      %3631 = vmatmul.bf16.gmra.mxu0 %v3556
      %v3632 = vpop.f32.mrf.mxu0
      %v3633 = vadd.f32 0.0, %v3632
      %v3634 = vpop.f32.mrf.mxu0
      %v3635 = vadd.f32 0.0, %v3634
      %3636 = vmatmul.bf16.gmra.mxu0 %v3559
      %v3637 = vpop.f32.mrf.mxu0
      %v3638 = vadd.f32 0.0, %v3637
      %v3639 = vpop.f32.mrf.mxu0
      %v3640 = vadd.f32 0.0, %v3639
      %3641 = vmatmul.bf16.gmra.mxu0 %v3562
      %v3642 = vpop.f32.mrf.mxu0
      %v3643 = vadd.f32 0.0, %v3642
      %v3644 = vpop.f32.mrf.mxu0
      %v3645 = vadd.f32 0.0, %v3644
      %3646 = vmatmul.bf16.gmra.mxu0 %v3565
      %v3647 = vpop.f32.mrf.mxu0
      %v3648 = vadd.f32 0.0, %v3647
      %v3649 = vpop.f32.mrf.mxu0
      %v3650 = vadd.f32 0.0, %v3649
      %3651 = vmatmul.bf16.gmra.mxu0 %v3568
      %v3652 = vpop.f32.mrf.mxu0
      %v3653 = vadd.f32 0.0, %v3652
      %v3654 = vpop.f32.mrf.mxu0
      %v3655 = vadd.f32 0.0, %v3654
      %3656 = vmatmul.bf16.gmra.mxu0 %v3571
      %v3657 = vpop.f32.mrf.mxu0
      %v3658 = vadd.f32 0.0, %v3657
      %v3659 = vpop.f32.mrf.mxu0
      %v3660 = vadd.f32 0.0, %v3659
      %3661 = vdwg.mxu0
      %v3662 = vadd.f32 %v2996, %v3583
      %v3663 = vadd.f32 %v2997, %v3585
      %v3664 = vadd.f32 %v2998, %v3588
      %v3665 = vadd.f32 %v2999, %v3590
      %v3666 = vadd.f32 %v3000, %v3593
      %v3667 = vadd.f32 %v3001, %v3595
      %v3668 = vadd.f32 %v3002, %v3598
      %v3669 = vadd.f32 %v3003, %v3600
      %v3670 = vadd.f32 %v3004, %v3603
      %v3671 = vadd.f32 %v3005, %v3605
      %v3672 = vadd.f32 %v3006, %v3608
      %v3673 = vadd.f32 %v3007, %v3610
      %v3674 = vadd.f32 %v3008, %v3613
      %v3675 = vadd.f32 %v3009, %v3615
      %v3676 = vadd.f32 %v3010, %v3618
      %v3677 = vadd.f32 %v3011, %v3620
      %v3678 = vadd.f32 %v3012, %v3623
      %v3679 = vadd.f32 %v3013, %v3625
      %v3680 = vadd.f32 %v3014, %v3628
      %v3681 = vadd.f32 %v3015, %v3630
      %v3682 = vadd.f32 %v3016, %v3633
      %v3683 = vadd.f32 %v3017, %v3635
      %v3684 = vadd.f32 %v3018, %v3638
      %v3685 = vadd.f32 %v3019, %v3640
      %v3686 = vadd.f32 %v3020, %v3643
      %v3687 = vadd.f32 %v3021, %v3645
      %v3688 = vadd.f32 %v3022, %v3648
      %v3689 = vadd.f32 %v3023, %v3650
      %v3690 = vadd.f32 %v3024, %v3653
      %v3691 = vadd.f32 %v3025, %v3655
      %v3692 = vadd.f32 %v3026, %v3658
      %v3693 = vadd.f32 %v3027, %v3660
      %s3694 = sadd.s32 %s612, 2
      %s3695 = smul.u32 %s3694, 6
      %s3696 = smul.addr %s3695, 4
      %s3697 = scalar_lea.vmem [#allocation2], %s3696
      %v3698 = vld [vmem:[%s3697 + $0x4] sm:$0x8]
      %v3699 = vld [vmem:[%s3697 + $0x8] sm:$0xf]
      %v3700 = vld [vmem:[%s3697 + $0xc] sm:$0xf]
      %v3701 = vld [vmem:[%s3697 + $0x1c] sm:$0x8]
      %v3702 = vld [vmem:[%s3697 + $0x20] sm:$0xf]
      %v3703 = vld [vmem:[%s3697 + $0x24] sm:$0xf]
      %v3704 = vld [vmem:[%s3697 + $0x34] sm:$0x8]
      %v3705 = vld [vmem:[%s3697 + $0x38] sm:$0xf]
      %v3706 = vld [vmem:[%s3697 + $0x3c] sm:$0xf]
      %v3707 = vld [vmem:[%s3697 + $0x4c] sm:$0x8]
      %v3708 = vld [vmem:[%s3697 + $0x50] sm:$0xf]
      %v3709 = vld [vmem:[%s3697 + $0x54] sm:$0xf]
      %v3710 = vld [vmem:[%s3697 + $0x64] sm:$0x8]
      %v3711 = vld [vmem:[%s3697 + $0x68] sm:$0xf]
      %v3712 = vld [vmem:[%s3697 + $0x6c] sm:$0xf]
      %v3713 = vld [vmem:[%s3697 + $0x7c] sm:$0x8]
      %v3714 = vld [vmem:[%s3697 + $0x80] sm:$0xf]
      %v3715 = vld [vmem:[%s3697 + $0x84] sm:$0xf]
      %v3716 = vld [vmem:[%s3697 + $0x94] sm:$0x8]
      %v3717 = vld [vmem:[%s3697 + $0x98] sm:$0xf]
      %v3718 = vld [vmem:[%s3697 + $0x9c] sm:$0xf]
      %v3719 = vld [vmem:[%s3697 + $0xac] sm:$0x8]
      %v3720 = vld [vmem:[%s3697 + $0xb0] sm:$0xf]
      %v3721 = vld [vmem:[%s3697 + $0xb4] sm:$0xf]
      %v3722 = vld [vmem:[%s3697 + $0xc4] sm:$0x8]
      %v3723 = vld [vmem:[%s3697 + $0xc8] sm:$0xf]
      %v3724 = vld [vmem:[%s3697 + $0xcc] sm:$0xf]
      %v3725 = vld [vmem:[%s3697 + $0xdc] sm:$0x8]
      %v3726 = vld [vmem:[%s3697 + $0xe0] sm:$0xf]
      %v3727 = vld [vmem:[%s3697 + $0xe4] sm:$0xf]
      %v3728 = vld [vmem:[%s3697 + $0xf4] sm:$0x8]
      %v3729 = vld [vmem:[%s3697 + $0xf8] sm:$0xf]
      %v3730 = vld [vmem:[%s3697 + $0xfc] sm:$0xf]
      %v3731 = vld [vmem:[%s3697 + $0x10c] sm:$0x8]
      %v3732 = vld [vmem:[%s3697 + $0x110] sm:$0xf]
      %v3733 = vld [vmem:[%s3697 + $0x114] sm:$0xf]
      %v3734 = vld [vmem:[%s3697 + $0x124] sm:$0x8]
      %v3735 = vld [vmem:[%s3697 + $0x128] sm:$0xf]
      %v3736 = vld [vmem:[%s3697 + $0x12c] sm:$0xf]
      %v3737 = vld [vmem:[%s3697 + $0x13c] sm:$0x8]
      %v3738 = vld [vmem:[%s3697 + $0x140] sm:$0xf]
      %v3739 = vld [vmem:[%s3697 + $0x144] sm:$0xf]
      %v3740 = vld [vmem:[%s3697 + $0x154] sm:$0x8]
      %v3741 = vld [vmem:[%s3697 + $0x158] sm:$0xf]
      %v3742 = vld [vmem:[%s3697 + $0x15c] sm:$0xf]
      %v3743 = vld [vmem:[%s3697 + $0x16c] sm:$0x8]
      %v3744 = vld [vmem:[%s3697 + $0x170] sm:$0xf]
      %v3745 = vld [vmem:[%s3697 + $0x174] sm:$0xf]
      %v3747 = vshrl.u32 %v3698, 16
      %v3749 = vrot.slane %v3747, 7
      %v3750 = vrot.slane %v3749, 4
      %v3752 = vshrl.u32 %v3699, 16
      %v3754 = vrot.slane %v3752, 7
      %v3755 = vshll.u32 %v3699, 16
      %v3757 = vor.u32 %v3754, %v3755
      %v3758 = vsel %vm666, %v3750, %v3757
      %v3759 = vrot.slane %v3754, 4
      %v3761 = vshrl.u32 %v3700, 16
      %v3763 = vrot.slane %v3761, 7
      %v3764 = vshll.u32 %v3700, 16
      %v3766 = vor.u32 %v3763, %v3764
      %v3767 = vsel %vm666, %v3759, %v3766
      %v3769 = vshrl.u32 %v3701, 16
      %v3771 = vrot.slane %v3769, 7
      %v3772 = vrot.slane %v3771, 4
      %v3774 = vshrl.u32 %v3702, 16
      %v3776 = vrot.slane %v3774, 7
      %v3777 = vshll.u32 %v3702, 16
      %v3779 = vor.u32 %v3776, %v3777
      %v3780 = vsel %vm666, %v3772, %v3779
      %v3781 = vrot.slane %v3776, 4
      %v3783 = vshrl.u32 %v3703, 16
      %v3785 = vrot.slane %v3783, 7
      %v3786 = vshll.u32 %v3703, 16
      %v3788 = vor.u32 %v3785, %v3786
      %v3789 = vsel %vm666, %v3781, %v3788
      %v3791 = vshrl.u32 %v3704, 16
      %v3793 = vrot.slane %v3791, 7
      %v3794 = vrot.slane %v3793, 4
      %v3796 = vshrl.u32 %v3705, 16
      %v3798 = vrot.slane %v3796, 7
      %v3799 = vshll.u32 %v3705, 16
      %v3801 = vor.u32 %v3798, %v3799
      %v3802 = vsel %vm666, %v3794, %v3801
      %v3803 = vrot.slane %v3798, 4
      %v3805 = vshrl.u32 %v3706, 16
      %v3807 = vrot.slane %v3805, 7
      %v3808 = vshll.u32 %v3706, 16
      %v3810 = vor.u32 %v3807, %v3808
      %v3811 = vsel %vm666, %v3803, %v3810
      %v3813 = vshrl.u32 %v3707, 16
      %v3815 = vrot.slane %v3813, 7
      %v3816 = vrot.slane %v3815, 4
      %v3818 = vshrl.u32 %v3708, 16
      %v3820 = vrot.slane %v3818, 7
      %v3821 = vshll.u32 %v3708, 16
      %v3823 = vor.u32 %v3820, %v3821
      %v3824 = vsel %vm666, %v3816, %v3823
      %v3825 = vrot.slane %v3820, 4
      %v3827 = vshrl.u32 %v3709, 16
      %v3829 = vrot.slane %v3827, 7
      %v3830 = vshll.u32 %v3709, 16
      %v3832 = vor.u32 %v3829, %v3830
      %v3833 = vsel %vm666, %v3825, %v3832
      %v3835 = vshrl.u32 %v3710, 16
      %v3837 = vrot.slane %v3835, 7
      %v3838 = vrot.slane %v3837, 4
      %v3840 = vshrl.u32 %v3711, 16
      %v3842 = vrot.slane %v3840, 7
      %v3843 = vshll.u32 %v3711, 16
      %v3845 = vor.u32 %v3842, %v3843
      %v3846 = vsel %vm666, %v3838, %v3845
      %v3847 = vrot.slane %v3842, 4
      %v3849 = vshrl.u32 %v3712, 16
      %v3851 = vrot.slane %v3849, 7
      %v3852 = vshll.u32 %v3712, 16
      %v3854 = vor.u32 %v3851, %v3852
      %v3855 = vsel %vm666, %v3847, %v3854
      %v3857 = vshrl.u32 %v3713, 16
      %v3859 = vrot.slane %v3857, 7
      %v3860 = vrot.slane %v3859, 4
      %v3862 = vshrl.u32 %v3714, 16
      %v3864 = vrot.slane %v3862, 7
      %v3865 = vshll.u32 %v3714, 16
      %v3867 = vor.u32 %v3864, %v3865
      %v3868 = vsel %vm666, %v3860, %v3867
      %v3869 = vrot.slane %v3864, 4
      %v3871 = vshrl.u32 %v3715, 16
      %v3873 = vrot.slane %v3871, 7
      %v3874 = vshll.u32 %v3715, 16
      %v3876 = vor.u32 %v3873, %v3874
      %v3877 = vsel %vm666, %v3869, %v3876
      %v3879 = vshrl.u32 %v3716, 16
      %v3881 = vrot.slane %v3879, 7
      %v3882 = vrot.slane %v3881, 4
      %v3884 = vshrl.u32 %v3717, 16
      %v3886 = vrot.slane %v3884, 7
      %v3887 = vshll.u32 %v3717, 16
      %v3889 = vor.u32 %v3886, %v3887
      %v3890 = vsel %vm666, %v3882, %v3889
      %v3891 = vrot.slane %v3886, 4
      %v3893 = vshrl.u32 %v3718, 16
      %v3895 = vrot.slane %v3893, 7
      %v3896 = vshll.u32 %v3718, 16
      %v3898 = vor.u32 %v3895, %v3896
      %v3899 = vsel %vm666, %v3891, %v3898
      %v3901 = vshrl.u32 %v3719, 16
      %v3903 = vrot.slane %v3901, 7
      %v3904 = vrot.slane %v3903, 4
      %v3906 = vshrl.u32 %v3720, 16
      %v3908 = vrot.slane %v3906, 7
      %v3909 = vshll.u32 %v3720, 16
      %v3911 = vor.u32 %v3908, %v3909
      %v3912 = vsel %vm666, %v3904, %v3911
      %v3913 = vrot.slane %v3908, 4
      %v3915 = vshrl.u32 %v3721, 16
      %v3917 = vrot.slane %v3915, 7
      %v3918 = vshll.u32 %v3721, 16
      %v3920 = vor.u32 %v3917, %v3918
      %v3921 = vsel %vm666, %v3913, %v3920
      %v3923 = vshrl.u32 %v3722, 16
      %v3925 = vrot.slane %v3923, 7
      %v3926 = vrot.slane %v3925, 4
      %v3928 = vshrl.u32 %v3723, 16
      %v3930 = vrot.slane %v3928, 7
      %v3931 = vshll.u32 %v3723, 16
      %v3933 = vor.u32 %v3930, %v3931
      %v3934 = vsel %vm666, %v3926, %v3933
      %v3935 = vrot.slane %v3930, 4
      %v3937 = vshrl.u32 %v3724, 16
      %v3939 = vrot.slane %v3937, 7
      %v3940 = vshll.u32 %v3724, 16
      %v3942 = vor.u32 %v3939, %v3940
      %v3943 = vsel %vm666, %v3935, %v3942
      %v3945 = vshrl.u32 %v3725, 16
      %v3947 = vrot.slane %v3945, 7
      %v3948 = vrot.slane %v3947, 4
      %v3950 = vshrl.u32 %v3726, 16
      %v3952 = vrot.slane %v3950, 7
      %v3953 = vshll.u32 %v3726, 16
      %v3955 = vor.u32 %v3952, %v3953
      %v3956 = vsel %vm666, %v3948, %v3955
      %v3957 = vrot.slane %v3952, 4
      %v3959 = vshrl.u32 %v3727, 16
      %v3961 = vrot.slane %v3959, 7
      %v3962 = vshll.u32 %v3727, 16
      %v3964 = vor.u32 %v3961, %v3962
      %v3965 = vsel %vm666, %v3957, %v3964
      %v3967 = vshrl.u32 %v3728, 16
      %v3969 = vrot.slane %v3967, 7
      %v3970 = vrot.slane %v3969, 4
      %v3972 = vshrl.u32 %v3729, 16
      %v3974 = vrot.slane %v3972, 7
      %v3975 = vshll.u32 %v3729, 16
      %v3977 = vor.u32 %v3974, %v3975
      %v3978 = vsel %vm666, %v3970, %v3977
      %v3979 = vrot.slane %v3974, 4
      %v3981 = vshrl.u32 %v3730, 16
      %v3983 = vrot.slane %v3981, 7
      %v3984 = vshll.u32 %v3730, 16
      %v3986 = vor.u32 %v3983, %v3984
      %v3987 = vsel %vm666, %v3979, %v3986
      %v3989 = vshrl.u32 %v3731, 16
      %v3991 = vrot.slane %v3989, 7
      %v3992 = vrot.slane %v3991, 4
      %v3994 = vshrl.u32 %v3732, 16
      %v3996 = vrot.slane %v3994, 7
      %v3997 = vshll.u32 %v3732, 16
      %v3999 = vor.u32 %v3996, %v3997
      %v4000 = vsel %vm666, %v3992, %v3999
      %v4001 = vrot.slane %v3996, 4
      %v4003 = vshrl.u32 %v3733, 16
      %v4005 = vrot.slane %v4003, 7
      %v4006 = vshll.u32 %v3733, 16
      %v4008 = vor.u32 %v4005, %v4006
      %v4009 = vsel %vm666, %v4001, %v4008
      %v4011 = vshrl.u32 %v3734, 16
      %v4013 = vrot.slane %v4011, 7
      %v4014 = vrot.slane %v4013, 4
      %v4016 = vshrl.u32 %v3735, 16
      %v4018 = vrot.slane %v4016, 7
      %v4019 = vshll.u32 %v3735, 16
      %v4021 = vor.u32 %v4018, %v4019
      %v4022 = vsel %vm666, %v4014, %v4021
      %v4023 = vrot.slane %v4018, 4
      %v4025 = vshrl.u32 %v3736, 16
      %v4027 = vrot.slane %v4025, 7
      %v4028 = vshll.u32 %v3736, 16
      %v4030 = vor.u32 %v4027, %v4028
      %v4031 = vsel %vm666, %v4023, %v4030
      %v4033 = vshrl.u32 %v3737, 16
      %v4035 = vrot.slane %v4033, 7
      %v4036 = vrot.slane %v4035, 4
      %v4038 = vshrl.u32 %v3738, 16
      %v4040 = vrot.slane %v4038, 7
      %v4041 = vshll.u32 %v3738, 16
      %v4043 = vor.u32 %v4040, %v4041
      %v4044 = vsel %vm666, %v4036, %v4043
      %v4045 = vrot.slane %v4040, 4
      %v4047 = vshrl.u32 %v3739, 16
      %v4049 = vrot.slane %v4047, 7
      %v4050 = vshll.u32 %v3739, 16
      %v4052 = vor.u32 %v4049, %v4050
      %v4053 = vsel %vm666, %v4045, %v4052
      %v4055 = vshrl.u32 %v3740, 16
      %v4057 = vrot.slane %v4055, 7
      %v4058 = vrot.slane %v4057, 4
      %v4060 = vshrl.u32 %v3741, 16
      %v4062 = vrot.slane %v4060, 7
      %v4063 = vshll.u32 %v3741, 16
      %v4065 = vor.u32 %v4062, %v4063
      %v4066 = vsel %vm666, %v4058, %v4065
      %v4067 = vrot.slane %v4062, 4
      %v4069 = vshrl.u32 %v3742, 16
      %v4071 = vrot.slane %v4069, 7
      %v4072 = vshll.u32 %v3742, 16
      %v4074 = vor.u32 %v4071, %v4072
      %v4075 = vsel %vm666, %v4067, %v4074
      %v4077 = vshrl.u32 %v3743, 16
      %v4079 = vrot.slane %v4077, 7
      %v4080 = vrot.slane %v4079, 4
      %v4082 = vshrl.u32 %v3744, 16
      %v4084 = vrot.slane %v4082, 7
      %v4085 = vshll.u32 %v3744, 16
      %v4087 = vor.u32 %v4084, %v4085
      %v4088 = vsel %vm666, %v4080, %v4087
      %v4089 = vrot.slane %v4084, 4
      %v4091 = vshrl.u32 %v3745, 16
      %v4093 = vrot.slane %v4091, 7
      %v4094 = vshll.u32 %v3745, 16
      %v4096 = vor.u32 %v4093, %v4094
      %v4097 = vsel %vm666, %v4089, %v4096
      %s4098 = scalar_lea.vmem %s1, 96
      %v4099 = vld [vmem:[%s4098] sm:$0xf]
      %v4100 = vld [vmem:[%s4098 + $0x4] sm:$0xf]
      %v4101 = vld [vmem:[%s4098 + $0x8] sm:$0xf]
      %v4102 = vld [vmem:[%s4098 + $0xc] sm:$0xf]
      %v4103 = vunpack.c.l.b16 %v3758
      %v4104 = vunpack.c.l.b16 %v3767
      %v4105 = vunpack.c.l.b16 %v3780
      %v4106 = vunpack.c.l.b16 %v3789
      %v4107 = vunpack.c.l.b16 %v3802
      %v4108 = vunpack.c.l.b16 %v3811
      %v4109 = vunpack.c.l.b16 %v3824
      %v4110 = vunpack.c.l.b16 %v3833
      %v4111 = vunpack.c.l.b16 %v3846
      %v4112 = vunpack.c.l.b16 %v3855
      %v4113 = vunpack.c.l.b16 %v3868
      %v4114 = vunpack.c.l.b16 %v3877
      %v4115 = vunpack.c.l.b16 %v3890
      %v4116 = vunpack.c.l.b16 %v3899
      %v4117 = vunpack.c.l.b16 %v3912
      %v4118 = vunpack.c.l.b16 %v3921
      %v4119 = vunpack.c.l.b16 %v3934
      %v4120 = vunpack.c.l.b16 %v3943
      %v4121 = vunpack.c.l.b16 %v3956
      %v4122 = vunpack.c.l.b16 %v3965
      %v4123 = vunpack.c.l.b16 %v3978
      %v4124 = vunpack.c.l.b16 %v3987
      %v4125 = vunpack.c.l.b16 %v4000
      %v4126 = vunpack.c.l.b16 %v4009
      %v4127 = vunpack.c.l.b16 %v4022
      %v4128 = vunpack.c.l.b16 %v4031
      %v4129 = vunpack.c.l.b16 %v4044
      %v4130 = vunpack.c.l.b16 %v4053
      %v4131 = vunpack.c.l.b16 %v4066
      %v4132 = vunpack.c.l.b16 %v4075
      %v4133 = vunpack.c.l.b16 %v4088
      %v4134 = vunpack.c.l.b16 %v4097
      %v4135 = vpack.c.b16 %v4104, %v4103
      %v4136 = vpack.c.b16 %v4106, %v4105
      %v4137 = vpack.c.b16 %v4108, %v4107
      %v4138 = vpack.c.b16 %v4110, %v4109
      %v4139 = vpack.c.b16 %v4112, %v4111
      %v4140 = vpack.c.b16 %v4114, %v4113
      %v4141 = vpack.c.b16 %v4116, %v4115
      %v4142 = vpack.c.b16 %v4118, %v4117
      %v4143 = vpack.c.b16 %v4120, %v4119
      %v4144 = vpack.c.b16 %v4122, %v4121
      %v4145 = vpack.c.b16 %v4124, %v4123
      %v4146 = vpack.c.b16 %v4126, %v4125
      %v4147 = vpack.c.b16 %v4128, %v4127
      %v4148 = vpack.c.b16 %v4130, %v4129
      %v4149 = vpack.c.b16 %v4132, %v4131
      %v4150 = vpack.c.b16 %v4134, %v4133
      %v4155 = vunpack.c.l.b16 %v4099
      %v4156 = vunpack.c.l.b16 %v4100
      %v4157 = vunpack.c.l.b16 %v4101
      %v4158 = vunpack.c.l.b16 %v4102
      %v4159 = vpack.c.b16 %v4156, %v4155
      %v4160 = vpack.c.b16 %v4158, %v4157
      %v4164 = vsel %vm1120, %v4135, 0
      %v4167 = vsel %vm1120, %v4136, 0
      %v4170 = vsel %vm1120, %v4137, 0
      %v4173 = vsel %vm1120, %v4138, 0
      %v4176 = vsel %vm1120, %v4139, 0
      %v4179 = vsel %vm1120, %v4140, 0
      %v4182 = vsel %vm1120, %v4141, 0
      %v4185 = vsel %vm1120, %v4142, 0
      %v4188 = vsel %vm1120, %v4143, 0
      %v4191 = vsel %vm1120, %v4144, 0
      %v4194 = vsel %vm1120, %v4145, 0
      %v4197 = vsel %vm1120, %v4146, 0
      %v4200 = vsel %vm1120, %v4147, 0
      %v4203 = vsel %vm1120, %v4148, 0
      %v4206 = vsel %vm1120, %v4149, 0
      %v4209 = vsel %vm1120, %v4150, 0
      %4211 = vmatpush.bf16.msra.mxu0 0
      %4212 = vmatpush.bf16.msra.mxu0 0
      %4213 = vmatpush.bf16.msra.mxu0 0
      %4214 = vmatpush.bf16.msra.mxu0 0
      %4215 = vmatpush.bf16.msra.mxu0 0
      %4216 = vmatpush.bf16.msra.mxu0 0
      %4217 = vmatpush.bf16.msra.mxu0 %v4160
      %4218 = vmatpush.bf16.msra.mxu0 %v4159
      %4219 = vmatmul.bf16.gmra.mxu0 %v4164
      %v4220 = vpop.f32.mrf.mxu0
      %v4221 = vadd.f32 0.0, %v4220
      %v4222 = vpop.f32.mrf.mxu0
      %v4223 = vadd.f32 0.0, %v4222
      %4224 = vmatmul.bf16.gmra.mxu0 %v4167
      %v4225 = vpop.f32.mrf.mxu0
      %v4226 = vadd.f32 0.0, %v4225
      %v4227 = vpop.f32.mrf.mxu0
      %v4228 = vadd.f32 0.0, %v4227
      %4229 = vmatmul.bf16.gmra.mxu0 %v4170
      %v4230 = vpop.f32.mrf.mxu0
      %v4231 = vadd.f32 0.0, %v4230
      %v4232 = vpop.f32.mrf.mxu0
      %v4233 = vadd.f32 0.0, %v4232
      %4234 = vmatmul.bf16.gmra.mxu0 %v4173
      %v4235 = vpop.f32.mrf.mxu0
      %v4236 = vadd.f32 0.0, %v4235
      %v4237 = vpop.f32.mrf.mxu0
      %v4238 = vadd.f32 0.0, %v4237
      %4239 = vmatmul.bf16.gmra.mxu0 %v4176
      %v4240 = vpop.f32.mrf.mxu0
      %v4241 = vadd.f32 0.0, %v4240
      %v4242 = vpop.f32.mrf.mxu0
      %v4243 = vadd.f32 0.0, %v4242
      %4244 = vmatmul.bf16.gmra.mxu0 %v4179
      %v4245 = vpop.f32.mrf.mxu0
      %v4246 = vadd.f32 0.0, %v4245
      %v4247 = vpop.f32.mrf.mxu0
      %v4248 = vadd.f32 0.0, %v4247
      %4249 = vmatmul.bf16.gmra.mxu0 %v4182
      %v4250 = vpop.f32.mrf.mxu0
      %v4251 = vadd.f32 0.0, %v4250
      %v4252 = vpop.f32.mrf.mxu0
      %v4253 = vadd.f32 0.0, %v4252
      %4254 = vmatmul.bf16.gmra.mxu0 %v4185
      %v4255 = vpop.f32.mrf.mxu0
      %v4256 = vadd.f32 0.0, %v4255
      %v4257 = vpop.f32.mrf.mxu0
      %v4258 = vadd.f32 0.0, %v4257
      %4259 = vmatmul.bf16.gmra.mxu0 %v4188
      %v4260 = vpop.f32.mrf.mxu0
      %v4261 = vadd.f32 0.0, %v4260
      %v4262 = vpop.f32.mrf.mxu0
      %v4263 = vadd.f32 0.0, %v4262
      %4264 = vmatmul.bf16.gmra.mxu0 %v4191
      %v4265 = vpop.f32.mrf.mxu0
      %v4266 = vadd.f32 0.0, %v4265
      %v4267 = vpop.f32.mrf.mxu0
      %v4268 = vadd.f32 0.0, %v4267
      %4269 = vmatmul.bf16.gmra.mxu0 %v4194
      %v4270 = vpop.f32.mrf.mxu0
      %v4271 = vadd.f32 0.0, %v4270
      %v4272 = vpop.f32.mrf.mxu0
      %v4273 = vadd.f32 0.0, %v4272
      %4274 = vmatmul.bf16.gmra.mxu0 %v4197
      %v4275 = vpop.f32.mrf.mxu0
      %v4276 = vadd.f32 0.0, %v4275
      %v4277 = vpop.f32.mrf.mxu0
      %v4278 = vadd.f32 0.0, %v4277
      %4279 = vmatmul.bf16.gmra.mxu0 %v4200
      %v4280 = vpop.f32.mrf.mxu0
      %v4281 = vadd.f32 0.0, %v4280
      %v4282 = vpop.f32.mrf.mxu0
      %v4283 = vadd.f32 0.0, %v4282
      %4284 = vmatmul.bf16.gmra.mxu0 %v4203
      %v4285 = vpop.f32.mrf.mxu0
      %v4286 = vadd.f32 0.0, %v4285
      %v4287 = vpop.f32.mrf.mxu0
      %v4288 = vadd.f32 0.0, %v4287
      %4289 = vmatmul.bf16.gmra.mxu0 %v4206
      %v4290 = vpop.f32.mrf.mxu0
      %v4291 = vadd.f32 0.0, %v4290
      %v4292 = vpop.f32.mrf.mxu0
      %v4293 = vadd.f32 0.0, %v4292
      %4294 = vmatmul.bf16.gmra.mxu0 %v4209
      %v4295 = vpop.f32.mrf.mxu0
      %v4296 = vadd.f32 0.0, %v4295
      %v4297 = vpop.f32.mrf.mxu0
      %v4298 = vadd.f32 0.0, %v4297
      %4299 = vdwg.mxu0
      %v4300 = vadd.f32 %v3662, %v4221
      %v4301 = vadd.f32 %v3663, %v4223
      %v4302 = vadd.f32 %v3664, %v4226
      %v4303 = vadd.f32 %v3665, %v4228
      %v4304 = vadd.f32 %v3666, %v4231
      %v4305 = vadd.f32 %v3667, %v4233
      %v4306 = vadd.f32 %v3668, %v4236
      %v4307 = vadd.f32 %v3669, %v4238
      %v4308 = vadd.f32 %v3670, %v4241
      %v4309 = vadd.f32 %v3671, %v4243
      %v4310 = vadd.f32 %v3672, %v4246
      %v4311 = vadd.f32 %v3673, %v4248
      %v4312 = vadd.f32 %v3674, %v4251
      %v4313 = vadd.f32 %v3675, %v4253
      %v4314 = vadd.f32 %v3676, %v4256
      %v4315 = vadd.f32 %v3677, %v4258
      %v4316 = vadd.f32 %v3678, %v4261
      %v4317 = vadd.f32 %v3679, %v4263
      %v4318 = vadd.f32 %v3680, %v4266
      %v4319 = vadd.f32 %v3681, %v4268
      %v4320 = vadd.f32 %v3682, %v4271
      %v4321 = vadd.f32 %v3683, %v4273
      %v4322 = vadd.f32 %v3684, %v4276
      %v4323 = vadd.f32 %v3685, %v4278
      %v4324 = vadd.f32 %v3686, %v4281
      %v4325 = vadd.f32 %v3687, %v4283
      %v4326 = vadd.f32 %v3688, %v4286
      %v4327 = vadd.f32 %v3689, %v4288
      %v4328 = vadd.f32 %v3690, %v4291
      %v4329 = vadd.f32 %v3691, %v4293
      %v4330 = vadd.f32 %v3692, %v4296
      %v4331 = vadd.f32 %v3693, %v4298
      %s4332 = scalar_lea.vmem %s1, 112
      %v4333 = vld [vmem:[%s4332] sm:$0xf]
      %v4334 = vld [vmem:[%s4332 + $0x4] sm:$0xf]
      %v4335 = vld [vmem:[%s4332 + $0x8] sm:$0xf]
      %v4336 = vld [vmem:[%s4332 + $0xc] sm:$0xf]
      %v4369 = vunpack.c.l.b16 %v3699
      %v4370 = vunpack.c.l.b16 %v3700
      %v4371 = vunpack.c.l.b16 %v3702
      %v4372 = vunpack.c.l.b16 %v3703
      %v4373 = vunpack.c.l.b16 %v3705
      %v4374 = vunpack.c.l.b16 %v3706
      %v4375 = vunpack.c.l.b16 %v3708
      %v4376 = vunpack.c.l.b16 %v3709
      %v4377 = vunpack.c.l.b16 %v3711
      %v4378 = vunpack.c.l.b16 %v3712
      %v4379 = vunpack.c.l.b16 %v3714
      %v4380 = vunpack.c.l.b16 %v3715
      %v4381 = vunpack.c.l.b16 %v3717
      %v4382 = vunpack.c.l.b16 %v3718
      %v4383 = vunpack.c.l.b16 %v3720
      %v4384 = vunpack.c.l.b16 %v3721
      %v4385 = vunpack.c.l.b16 %v3723
      %v4386 = vunpack.c.l.b16 %v3724
      %v4387 = vunpack.c.l.b16 %v3726
      %v4388 = vunpack.c.l.b16 %v3727
      %v4389 = vunpack.c.l.b16 %v3729
      %v4390 = vunpack.c.l.b16 %v3730
      %v4391 = vunpack.c.l.b16 %v3732
      %v4392 = vunpack.c.l.b16 %v3733
      %v4393 = vunpack.c.l.b16 %v3735
      %v4394 = vunpack.c.l.b16 %v3736
      %v4395 = vunpack.c.l.b16 %v3738
      %v4396 = vunpack.c.l.b16 %v3739
      %v4397 = vunpack.c.l.b16 %v3741
      %v4398 = vunpack.c.l.b16 %v3742
      %v4399 = vunpack.c.l.b16 %v3744
      %v4400 = vunpack.c.l.b16 %v3745
      %v4401 = vpack.c.b16 %v4370, %v4369
      %v4402 = vpack.c.b16 %v4372, %v4371
      %v4403 = vpack.c.b16 %v4374, %v4373
      %v4404 = vpack.c.b16 %v4376, %v4375
      %v4405 = vpack.c.b16 %v4378, %v4377
      %v4406 = vpack.c.b16 %v4380, %v4379
      %v4407 = vpack.c.b16 %v4382, %v4381
      %v4408 = vpack.c.b16 %v4384, %v4383
      %v4409 = vpack.c.b16 %v4386, %v4385
      %v4410 = vpack.c.b16 %v4388, %v4387
      %v4411 = vpack.c.b16 %v4390, %v4389
      %v4412 = vpack.c.b16 %v4392, %v4391
      %v4413 = vpack.c.b16 %v4394, %v4393
      %v4414 = vpack.c.b16 %v4396, %v4395
      %v4415 = vpack.c.b16 %v4398, %v4397
      %v4416 = vpack.c.b16 %v4400, %v4399
      %v4421 = vunpack.c.l.b16 %v4333
      %v4422 = vunpack.c.l.b16 %v4334
      %v4423 = vunpack.c.l.b16 %v4335
      %v4424 = vunpack.c.l.b16 %v4336
      %v4425 = vpack.c.b16 %v4422, %v4421
      %v4426 = vpack.c.b16 %v4424, %v4423
      %v4430 = vsel %vm1120, %v4401, 0
      %v4433 = vsel %vm1120, %v4402, 0
      %v4436 = vsel %vm1120, %v4403, 0
      %v4439 = vsel %vm1120, %v4404, 0
      %v4442 = vsel %vm1120, %v4405, 0
      %v4445 = vsel %vm1120, %v4406, 0
      %v4448 = vsel %vm1120, %v4407, 0
      %v4451 = vsel %vm1120, %v4408, 0
      %v4454 = vsel %vm1120, %v4409, 0
      %v4457 = vsel %vm1120, %v4410, 0
      %v4460 = vsel %vm1120, %v4411, 0
      %v4463 = vsel %vm1120, %v4412, 0
      %v4466 = vsel %vm1120, %v4413, 0
      %v4469 = vsel %vm1120, %v4414, 0
      %v4472 = vsel %vm1120, %v4415, 0
      %v4475 = vsel %vm1120, %v4416, 0
      %4477 = vmatpush.bf16.msra.mxu0 0
      %4478 = vmatpush.bf16.msra.mxu0 0
      %4479 = vmatpush.bf16.msra.mxu0 0
      %4480 = vmatpush.bf16.msra.mxu0 0
      %4481 = vmatpush.bf16.msra.mxu0 0
      %4482 = vmatpush.bf16.msra.mxu0 0
      %4483 = vmatpush.bf16.msra.mxu0 %v4426
      %4484 = vmatpush.bf16.msra.mxu0 %v4425
      %4485 = vmatmul.bf16.gmra.mxu0 %v4430
      %v4486 = vpop.f32.mrf.mxu0
      %v4487 = vadd.f32 0.0, %v4486
      %v4488 = vpop.f32.mrf.mxu0
      %v4489 = vadd.f32 0.0, %v4488
      %4490 = vmatmul.bf16.gmra.mxu0 %v4433
      %v4491 = vpop.f32.mrf.mxu0
      %v4492 = vadd.f32 0.0, %v4491
      %v4493 = vpop.f32.mrf.mxu0
      %v4494 = vadd.f32 0.0, %v4493
      %4495 = vmatmul.bf16.gmra.mxu0 %v4436
      %v4496 = vpop.f32.mrf.mxu0
      %v4497 = vadd.f32 0.0, %v4496
      %v4498 = vpop.f32.mrf.mxu0
      %v4499 = vadd.f32 0.0, %v4498
      %4500 = vmatmul.bf16.gmra.mxu0 %v4439
      %v4501 = vpop.f32.mrf.mxu0
      %v4502 = vadd.f32 0.0, %v4501
      %v4503 = vpop.f32.mrf.mxu0
      %v4504 = vadd.f32 0.0, %v4503
      %4505 = vmatmul.bf16.gmra.mxu0 %v4442
      %v4506 = vpop.f32.mrf.mxu0
      %v4507 = vadd.f32 0.0, %v4506
      %v4508 = vpop.f32.mrf.mxu0
      %v4509 = vadd.f32 0.0, %v4508
      %4510 = vmatmul.bf16.gmra.mxu0 %v4445
      %v4511 = vpop.f32.mrf.mxu0
      %v4512 = vadd.f32 0.0, %v4511
      %v4513 = vpop.f32.mrf.mxu0
      %v4514 = vadd.f32 0.0, %v4513
      %4515 = vmatmul.bf16.gmra.mxu0 %v4448
      %v4516 = vpop.f32.mrf.mxu0
      %v4517 = vadd.f32 0.0, %v4516
      %v4518 = vpop.f32.mrf.mxu0
      %v4519 = vadd.f32 0.0, %v4518
      %4520 = vmatmul.bf16.gmra.mxu0 %v4451
      %v4521 = vpop.f32.mrf.mxu0
      %v4522 = vadd.f32 0.0, %v4521
      %v4523 = vpop.f32.mrf.mxu0
      %v4524 = vadd.f32 0.0, %v4523
      %4525 = vmatmul.bf16.gmra.mxu0 %v4454
      %v4526 = vpop.f32.mrf.mxu0
      %v4527 = vadd.f32 0.0, %v4526
      %v4528 = vpop.f32.mrf.mxu0
      %v4529 = vadd.f32 0.0, %v4528
      %4530 = vmatmul.bf16.gmra.mxu0 %v4457
      %v4531 = vpop.f32.mrf.mxu0
      %v4532 = vadd.f32 0.0, %v4531
      %v4533 = vpop.f32.mrf.mxu0
      %v4534 = vadd.f32 0.0, %v4533
      %4535 = vmatmul.bf16.gmra.mxu0 %v4460
      %v4536 = vpop.f32.mrf.mxu0
      %v4537 = vadd.f32 0.0, %v4536
      %v4538 = vpop.f32.mrf.mxu0
      %v4539 = vadd.f32 0.0, %v4538
      %4540 = vmatmul.bf16.gmra.mxu0 %v4463
      %v4541 = vpop.f32.mrf.mxu0
      %v4542 = vadd.f32 0.0, %v4541
      %v4543 = vpop.f32.mrf.mxu0
      %v4544 = vadd.f32 0.0, %v4543
      %4545 = vmatmul.bf16.gmra.mxu0 %v4466
      %v4546 = vpop.f32.mrf.mxu0
      %v4547 = vadd.f32 0.0, %v4546
      %v4548 = vpop.f32.mrf.mxu0
      %v4549 = vadd.f32 0.0, %v4548
      %4550 = vmatmul.bf16.gmra.mxu0 %v4469
      %v4551 = vpop.f32.mrf.mxu0
      %v4552 = vadd.f32 0.0, %v4551
      %v4553 = vpop.f32.mrf.mxu0
      %v4554 = vadd.f32 0.0, %v4553
      %4555 = vmatmul.bf16.gmra.mxu0 %v4472
      %v4556 = vpop.f32.mrf.mxu0
      %v4557 = vadd.f32 0.0, %v4556
      %v4558 = vpop.f32.mrf.mxu0
      %v4559 = vadd.f32 0.0, %v4558
      %4560 = vmatmul.bf16.gmra.mxu0 %v4475
      %v4561 = vpop.f32.mrf.mxu0
      %v4562 = vadd.f32 0.0, %v4561
      %v4563 = vpop.f32.mrf.mxu0
      %v4564 = vadd.f32 0.0, %v4563
      %4565 = vdwg.mxu0
      %v4566 = vadd.f32 %v4300, %v4487
      %v4567 = vadd.f32 %v4301, %v4489
      %v4568 = vadd.f32 %v4302, %v4492
      %v4569 = vadd.f32 %v4303, %v4494
      %v4570 = vadd.f32 %v4304, %v4497
      %v4571 = vadd.f32 %v4305, %v4499
      %v4572 = vadd.f32 %v4306, %v4502
      %v4573 = vadd.f32 %v4307, %v4504
      %v4574 = vadd.f32 %v4308, %v4507
      %v4575 = vadd.f32 %v4309, %v4509
      %v4576 = vadd.f32 %v4310, %v4512
      %v4577 = vadd.f32 %v4311, %v4514
      %v4578 = vadd.f32 %v4312, %v4517
      %v4579 = vadd.f32 %v4313, %v4519
      %v4580 = vadd.f32 %v4314, %v4522
      %v4581 = vadd.f32 %v4315, %v4524
      %v4582 = vadd.f32 %v4316, %v4527
      %v4583 = vadd.f32 %v4317, %v4529
      %v4584 = vadd.f32 %v4318, %v4532
      %v4585 = vadd.f32 %v4319, %v4534
      %v4586 = vadd.f32 %v4320, %v4537
      %v4587 = vadd.f32 %v4321, %v4539
      %v4588 = vadd.f32 %v4322, %v4542
      %v4589 = vadd.f32 %v4323, %v4544
      %v4590 = vadd.f32 %v4324, %v4547
      %v4591 = vadd.f32 %v4325, %v4549
      %v4592 = vadd.f32 %v4326, %v4552
      %v4593 = vadd.f32 %v4327, %v4554
      %v4594 = vadd.f32 %v4328, %v4557
      %v4595 = vadd.f32 %v4329, %v4559
      %v4596 = vadd.f32 %v4330, %v4562
      %v4597 = vadd.f32 %v4331, %v4564
      %v4598 = vld [vmem:[%s3697 + $0x8] sm:$0xf]
      %v4599 = vld [vmem:[%s3697 + $0xc] sm:$0xf]
      %v4600 = vld [vmem:[%s3697 + $0x10] sm:$0x1]
      %v4601 = vld [vmem:[%s3697 + $0x20] sm:$0xf]
      %v4602 = vld [vmem:[%s3697 + $0x24] sm:$0xf]
      %v4603 = vld [vmem:[%s3697 + $0x28] sm:$0x1]
      %v4604 = vld [vmem:[%s3697 + $0x38] sm:$0xf]
      %v4605 = vld [vmem:[%s3697 + $0x3c] sm:$0xf]
      %v4606 = vld [vmem:[%s3697 + $0x40] sm:$0x1]
      %v4607 = vld [vmem:[%s3697 + $0x50] sm:$0xf]
      %v4608 = vld [vmem:[%s3697 + $0x54] sm:$0xf]
      %v4609 = vld [vmem:[%s3697 + $0x58] sm:$0x1]
      %v4610 = vld [vmem:[%s3697 + $0x68] sm:$0xf]
      %v4611 = vld [vmem:[%s3697 + $0x6c] sm:$0xf]
      %v4612 = vld [vmem:[%s3697 + $0x70] sm:$0x1]
      %v4613 = vld [vmem:[%s3697 + $0x80] sm:$0xf]
      %v4614 = vld [vmem:[%s3697 + $0x84] sm:$0xf]
      %v4615 = vld [vmem:[%s3697 + $0x88] sm:$0x1]
      %v4616 = vld [vmem:[%s3697 + $0x98] sm:$0xf]
      %v4617 = vld [vmem:[%s3697 + $0x9c] sm:$0xf]
      %v4618 = vld [vmem:[%s3697 + $0xa0] sm:$0x1]
      %v4619 = vld [vmem:[%s3697 + $0xb0] sm:$0xf]
      %v4620 = vld [vmem:[%s3697 + $0xb4] sm:$0xf]
      %v4621 = vld [vmem:[%s3697 + $0xb8] sm:$0x1]
      %v4622 = vld [vmem:[%s3697 + $0xc8] sm:$0xf]
      %v4623 = vld [vmem:[%s3697 + $0xcc] sm:$0xf]
      %v4624 = vld [vmem:[%s3697 + $0xd0] sm:$0x1]
      %v4625 = vld [vmem:[%s3697 + $0xe0] sm:$0xf]
      %v4626 = vld [vmem:[%s3697 + $0xe4] sm:$0xf]
      %v4627 = vld [vmem:[%s3697 + $0xe8] sm:$0x1]
      %v4628 = vld [vmem:[%s3697 + $0xf8] sm:$0xf]
      %v4629 = vld [vmem:[%s3697 + $0xfc] sm:$0xf]
      %v4630 = vld [vmem:[%s3697 + $0x100] sm:$0x1]
      %v4631 = vld [vmem:[%s3697 + $0x110] sm:$0xf]
      %v4632 = vld [vmem:[%s3697 + $0x114] sm:$0xf]
      %v4633 = vld [vmem:[%s3697 + $0x118] sm:$0x1]
      %v4634 = vld [vmem:[%s3697 + $0x128] sm:$0xf]
      %v4635 = vld [vmem:[%s3697 + $0x12c] sm:$0xf]
      %v4636 = vld [vmem:[%s3697 + $0x130] sm:$0x1]
      %v4637 = vld [vmem:[%s3697 + $0x140] sm:$0xf]
      %v4638 = vld [vmem:[%s3697 + $0x144] sm:$0xf]
      %v4639 = vld [vmem:[%s3697 + $0x148] sm:$0x1]
      %v4640 = vld [vmem:[%s3697 + $0x158] sm:$0xf]
      %v4641 = vld [vmem:[%s3697 + $0x15c] sm:$0xf]
      %v4642 = vld [vmem:[%s3697 + $0x160] sm:$0x1]
      %v4643 = vld [vmem:[%s3697 + $0x170] sm:$0xf]
      %v4644 = vld [vmem:[%s3697 + $0x174] sm:$0xf]
      %v4645 = vld [vmem:[%s3697 + $0x178] sm:$0x1]
      %v4647 = vshrl.u32 %v4598, 16
      %v4649 = vrot.slane %v4647, 4
      %v4650 = vshll.u32 %v4598, 16
      %v4652 = vrot.slane %v4650, 5
      %v4653 = vor.u32 %v4649, %v4652
      %v4654 = vrot.slane %v4653, 4
      %v4656 = vshll.u32 %v4599, 16
      %v4658 = vrot.slane %v4656, 5
      %v4659 = vsel %vm1505, %v4654, %v4658
      %v4660 = vshrl.u32 %v4599, 16
      %v4662 = vrot.slane %v4660, 4
      %v4663 = vor.u32 %v4662, %v4658
      %v4664 = vrot.slane %v4663, 4
      %v4666 = vshll.u32 %v4600, 16
      %v4668 = vrot.slane %v4666, 5
      %v4669 = vsel %vm1505, %v4664, %v4668
      %v4671 = vshrl.u32 %v4601, 16
      %v4673 = vrot.slane %v4671, 4
      %v4674 = vshll.u32 %v4601, 16
      %v4676 = vrot.slane %v4674, 5
      %v4677 = vor.u32 %v4673, %v4676
      %v4678 = vrot.slane %v4677, 4
      %v4680 = vshll.u32 %v4602, 16
      %v4682 = vrot.slane %v4680, 5
      %v4683 = vsel %vm1505, %v4678, %v4682
      %v4684 = vshrl.u32 %v4602, 16
      %v4686 = vrot.slane %v4684, 4
      %v4687 = vor.u32 %v4686, %v4682
      %v4688 = vrot.slane %v4687, 4
      %v4690 = vshll.u32 %v4603, 16
      %v4692 = vrot.slane %v4690, 5
      %v4693 = vsel %vm1505, %v4688, %v4692
      %v4695 = vshrl.u32 %v4604, 16
      %v4697 = vrot.slane %v4695, 4
      %v4698 = vshll.u32 %v4604, 16
      %v4700 = vrot.slane %v4698, 5
      %v4701 = vor.u32 %v4697, %v4700
      %v4702 = vrot.slane %v4701, 4
      %v4704 = vshll.u32 %v4605, 16
      %v4706 = vrot.slane %v4704, 5
      %v4707 = vsel %vm1505, %v4702, %v4706
      %v4708 = vshrl.u32 %v4605, 16
      %v4710 = vrot.slane %v4708, 4
      %v4711 = vor.u32 %v4710, %v4706
      %v4712 = vrot.slane %v4711, 4
      %v4714 = vshll.u32 %v4606, 16
      %v4716 = vrot.slane %v4714, 5
      %v4717 = vsel %vm1505, %v4712, %v4716
      %v4719 = vshrl.u32 %v4607, 16
      %v4721 = vrot.slane %v4719, 4
      %v4722 = vshll.u32 %v4607, 16
      %v4724 = vrot.slane %v4722, 5
      %v4725 = vor.u32 %v4721, %v4724
      %v4726 = vrot.slane %v4725, 4
      %v4728 = vshll.u32 %v4608, 16
      %v4730 = vrot.slane %v4728, 5
      %v4731 = vsel %vm1505, %v4726, %v4730
      %v4732 = vshrl.u32 %v4608, 16
      %v4734 = vrot.slane %v4732, 4
      %v4735 = vor.u32 %v4734, %v4730
      %v4736 = vrot.slane %v4735, 4
      %v4738 = vshll.u32 %v4609, 16
      %v4740 = vrot.slane %v4738, 5
      %v4741 = vsel %vm1505, %v4736, %v4740
      %v4743 = vshrl.u32 %v4610, 16
      %v4745 = vrot.slane %v4743, 4
      %v4746 = vshll.u32 %v4610, 16
      %v4748 = vrot.slane %v4746, 5
      %v4749 = vor.u32 %v4745, %v4748
      %v4750 = vrot.slane %v4749, 4
      %v4752 = vshll.u32 %v4611, 16
      %v4754 = vrot.slane %v4752, 5
      %v4755 = vsel %vm1505, %v4750, %v4754
      %v4756 = vshrl.u32 %v4611, 16
      %v4758 = vrot.slane %v4756, 4
      %v4759 = vor.u32 %v4758, %v4754
      %v4760 = vrot.slane %v4759, 4
      %v4762 = vshll.u32 %v4612, 16
      %v4764 = vrot.slane %v4762, 5
      %v4765 = vsel %vm1505, %v4760, %v4764
      %v4767 = vshrl.u32 %v4613, 16
      %v4769 = vrot.slane %v4767, 4
      %v4770 = vshll.u32 %v4613, 16
      %v4772 = vrot.slane %v4770, 5
      %v4773 = vor.u32 %v4769, %v4772
      %v4774 = vrot.slane %v4773, 4
      %v4776 = vshll.u32 %v4614, 16
      %v4778 = vrot.slane %v4776, 5
      %v4779 = vsel %vm1505, %v4774, %v4778
      %v4780 = vshrl.u32 %v4614, 16
      %v4782 = vrot.slane %v4780, 4
      %v4783 = vor.u32 %v4782, %v4778
      %v4784 = vrot.slane %v4783, 4
      %v4786 = vshll.u32 %v4615, 16
      %v4788 = vrot.slane %v4786, 5
      %v4789 = vsel %vm1505, %v4784, %v4788
      %v4791 = vshrl.u32 %v4616, 16
      %v4793 = vrot.slane %v4791, 4
      %v4794 = vshll.u32 %v4616, 16
      %v4796 = vrot.slane %v4794, 5
      %v4797 = vor.u32 %v4793, %v4796
      %v4798 = vrot.slane %v4797, 4
      %v4800 = vshll.u32 %v4617, 16
      %v4802 = vrot.slane %v4800, 5
      %v4803 = vsel %vm1505, %v4798, %v4802
      %v4804 = vshrl.u32 %v4617, 16
      %v4806 = vrot.slane %v4804, 4
      %v4807 = vor.u32 %v4806, %v4802
      %v4808 = vrot.slane %v4807, 4
      %v4810 = vshll.u32 %v4618, 16
      %v4812 = vrot.slane %v4810, 5
      %v4813 = vsel %vm1505, %v4808, %v4812
      %v4815 = vshrl.u32 %v4619, 16
      %v4817 = vrot.slane %v4815, 4
      %v4818 = vshll.u32 %v4619, 16
      %v4820 = vrot.slane %v4818, 5
      %v4821 = vor.u32 %v4817, %v4820
      %v4822 = vrot.slane %v4821, 4
      %v4824 = vshll.u32 %v4620, 16
      %v4826 = vrot.slane %v4824, 5
      %v4827 = vsel %vm1505, %v4822, %v4826
      %v4828 = vshrl.u32 %v4620, 16
      %v4830 = vrot.slane %v4828, 4
      %v4831 = vor.u32 %v4830, %v4826
      %v4832 = vrot.slane %v4831, 4
      %v4834 = vshll.u32 %v4621, 16
      %v4836 = vrot.slane %v4834, 5
      %v4837 = vsel %vm1505, %v4832, %v4836
      %v4839 = vshrl.u32 %v4622, 16
      %v4841 = vrot.slane %v4839, 4
      %v4842 = vshll.u32 %v4622, 16
      %v4844 = vrot.slane %v4842, 5
      %v4845 = vor.u32 %v4841, %v4844
      %v4846 = vrot.slane %v4845, 4
      %v4848 = vshll.u32 %v4623, 16
      %v4850 = vrot.slane %v4848, 5
      %v4851 = vsel %vm1505, %v4846, %v4850
      %v4852 = vshrl.u32 %v4623, 16
      %v4854 = vrot.slane %v4852, 4
      %v4855 = vor.u32 %v4854, %v4850
      %v4856 = vrot.slane %v4855, 4
      %v4858 = vshll.u32 %v4624, 16
      %v4860 = vrot.slane %v4858, 5
      %v4861 = vsel %vm1505, %v4856, %v4860
      %v4863 = vshrl.u32 %v4625, 16
      %v4865 = vrot.slane %v4863, 4
      %v4866 = vshll.u32 %v4625, 16
      %v4868 = vrot.slane %v4866, 5
      %v4869 = vor.u32 %v4865, %v4868
      %v4870 = vrot.slane %v4869, 4
      %v4872 = vshll.u32 %v4626, 16
      %v4874 = vrot.slane %v4872, 5
      %v4875 = vsel %vm1505, %v4870, %v4874
      %v4876 = vshrl.u32 %v4626, 16
      %v4878 = vrot.slane %v4876, 4
      %v4879 = vor.u32 %v4878, %v4874
      %v4880 = vrot.slane %v4879, 4
      %v4882 = vshll.u32 %v4627, 16
      %v4884 = vrot.slane %v4882, 5
      %v4885 = vsel %vm1505, %v4880, %v4884
      %v4887 = vshrl.u32 %v4628, 16
      %v4889 = vrot.slane %v4887, 4
      %v4890 = vshll.u32 %v4628, 16
      %v4892 = vrot.slane %v4890, 5
      %v4893 = vor.u32 %v4889, %v4892
      %v4894 = vrot.slane %v4893, 4
      %v4896 = vshll.u32 %v4629, 16
      %v4898 = vrot.slane %v4896, 5
      %v4899 = vsel %vm1505, %v4894, %v4898
      %v4900 = vshrl.u32 %v4629, 16
      %v4902 = vrot.slane %v4900, 4
      %v4903 = vor.u32 %v4902, %v4898
      %v4904 = vrot.slane %v4903, 4
      %v4906 = vshll.u32 %v4630, 16
      %v4908 = vrot.slane %v4906, 5
      %v4909 = vsel %vm1505, %v4904, %v4908
      %v4911 = vshrl.u32 %v4631, 16
      %v4913 = vrot.slane %v4911, 4
      %v4914 = vshll.u32 %v4631, 16
      %v4916 = vrot.slane %v4914, 5
      %v4917 = vor.u32 %v4913, %v4916
      %v4918 = vrot.slane %v4917, 4
      %v4920 = vshll.u32 %v4632, 16
      %v4922 = vrot.slane %v4920, 5
      %v4923 = vsel %vm1505, %v4918, %v4922
      %v4924 = vshrl.u32 %v4632, 16
      %v4926 = vrot.slane %v4924, 4
      %v4927 = vor.u32 %v4926, %v4922
      %v4928 = vrot.slane %v4927, 4
      %v4930 = vshll.u32 %v4633, 16
      %v4932 = vrot.slane %v4930, 5
      %v4933 = vsel %vm1505, %v4928, %v4932
      %v4935 = vshrl.u32 %v4634, 16
      %v4937 = vrot.slane %v4935, 4
      %v4938 = vshll.u32 %v4634, 16
      %v4940 = vrot.slane %v4938, 5
      %v4941 = vor.u32 %v4937, %v4940
      %v4942 = vrot.slane %v4941, 4
      %v4944 = vshll.u32 %v4635, 16
      %v4946 = vrot.slane %v4944, 5
      %v4947 = vsel %vm1505, %v4942, %v4946
      %v4948 = vshrl.u32 %v4635, 16
      %v4950 = vrot.slane %v4948, 4
      %v4951 = vor.u32 %v4950, %v4946
      %v4952 = vrot.slane %v4951, 4
      %v4954 = vshll.u32 %v4636, 16
      %v4956 = vrot.slane %v4954, 5
      %v4957 = vsel %vm1505, %v4952, %v4956
      %v4959 = vshrl.u32 %v4637, 16
      %v4961 = vrot.slane %v4959, 4
      %v4962 = vshll.u32 %v4637, 16
      %v4964 = vrot.slane %v4962, 5
      %v4965 = vor.u32 %v4961, %v4964
      %v4966 = vrot.slane %v4965, 4
      %v4968 = vshll.u32 %v4638, 16
      %v4970 = vrot.slane %v4968, 5
      %v4971 = vsel %vm1505, %v4966, %v4970
      %v4972 = vshrl.u32 %v4638, 16
      %v4974 = vrot.slane %v4972, 4
      %v4975 = vor.u32 %v4974, %v4970
      %v4976 = vrot.slane %v4975, 4
      %v4978 = vshll.u32 %v4639, 16
      %v4980 = vrot.slane %v4978, 5
      %v4981 = vsel %vm1505, %v4976, %v4980
      %v4983 = vshrl.u32 %v4640, 16
      %v4985 = vrot.slane %v4983, 4
      %v4986 = vshll.u32 %v4640, 16
      %v4988 = vrot.slane %v4986, 5
      %v4989 = vor.u32 %v4985, %v4988
      %v4990 = vrot.slane %v4989, 4
      %v4992 = vshll.u32 %v4641, 16
      %v4994 = vrot.slane %v4992, 5
      %v4995 = vsel %vm1505, %v4990, %v4994
      %v4996 = vshrl.u32 %v4641, 16
      %v4998 = vrot.slane %v4996, 4
      %v4999 = vor.u32 %v4998, %v4994
      %v5000 = vrot.slane %v4999, 4
      %v5002 = vshll.u32 %v4642, 16
      %v5004 = vrot.slane %v5002, 5
      %v5005 = vsel %vm1505, %v5000, %v5004
      %v5007 = vshrl.u32 %v4643, 16
      %v5009 = vrot.slane %v5007, 4
      %v5010 = vshll.u32 %v4643, 16
      %v5012 = vrot.slane %v5010, 5
      %v5013 = vor.u32 %v5009, %v5012
      %v5014 = vrot.slane %v5013, 4
      %v5016 = vshll.u32 %v4644, 16
      %v5018 = vrot.slane %v5016, 5
      %v5019 = vsel %vm1505, %v5014, %v5018
      %v5020 = vshrl.u32 %v4644, 16
      %v5022 = vrot.slane %v5020, 4
      %v5023 = vor.u32 %v5022, %v5018
      %v5024 = vrot.slane %v5023, 4
      %v5026 = vshll.u32 %v4645, 16
      %v5028 = vrot.slane %v5026, 5
      %v5029 = vsel %vm1505, %v5024, %v5028
      %s5030 = scalar_lea.vmem %s1, 128
      %v5031 = vld [vmem:[%s5030] sm:$0xf]
      %v5032 = vld [vmem:[%s5030 + $0x4] sm:$0xf]
      %v5033 = vld [vmem:[%s5030 + $0x8] sm:$0xf]
      %v5034 = vld [vmem:[%s5030 + $0xc] sm:$0xf]
      %v5035 = vunpack.c.l.b16 %v4659
      %v5036 = vunpack.c.l.b16 %v4669
      %v5037 = vunpack.c.l.b16 %v4683
      %v5038 = vunpack.c.l.b16 %v4693
      %v5039 = vunpack.c.l.b16 %v4707
      %v5040 = vunpack.c.l.b16 %v4717
      %v5041 = vunpack.c.l.b16 %v4731
      %v5042 = vunpack.c.l.b16 %v4741
      %v5043 = vunpack.c.l.b16 %v4755
      %v5044 = vunpack.c.l.b16 %v4765
      %v5045 = vunpack.c.l.b16 %v4779
      %v5046 = vunpack.c.l.b16 %v4789
      %v5047 = vunpack.c.l.b16 %v4803
      %v5048 = vunpack.c.l.b16 %v4813
      %v5049 = vunpack.c.l.b16 %v4827
      %v5050 = vunpack.c.l.b16 %v4837
      %v5051 = vunpack.c.l.b16 %v4851
      %v5052 = vunpack.c.l.b16 %v4861
      %v5053 = vunpack.c.l.b16 %v4875
      %v5054 = vunpack.c.l.b16 %v4885
      %v5055 = vunpack.c.l.b16 %v4899
      %v5056 = vunpack.c.l.b16 %v4909
      %v5057 = vunpack.c.l.b16 %v4923
      %v5058 = vunpack.c.l.b16 %v4933
      %v5059 = vunpack.c.l.b16 %v4947
      %v5060 = vunpack.c.l.b16 %v4957
      %v5061 = vunpack.c.l.b16 %v4971
      %v5062 = vunpack.c.l.b16 %v4981
      %v5063 = vunpack.c.l.b16 %v4995
      %v5064 = vunpack.c.l.b16 %v5005
      %v5065 = vunpack.c.l.b16 %v5019
      %v5066 = vunpack.c.l.b16 %v5029
      %v5067 = vpack.c.b16 %v5036, %v5035
      %v5068 = vpack.c.b16 %v5038, %v5037
      %v5069 = vpack.c.b16 %v5040, %v5039
      %v5070 = vpack.c.b16 %v5042, %v5041
      %v5071 = vpack.c.b16 %v5044, %v5043
      %v5072 = vpack.c.b16 %v5046, %v5045
      %v5073 = vpack.c.b16 %v5048, %v5047
      %v5074 = vpack.c.b16 %v5050, %v5049
      %v5075 = vpack.c.b16 %v5052, %v5051
      %v5076 = vpack.c.b16 %v5054, %v5053
      %v5077 = vpack.c.b16 %v5056, %v5055
      %v5078 = vpack.c.b16 %v5058, %v5057
      %v5079 = vpack.c.b16 %v5060, %v5059
      %v5080 = vpack.c.b16 %v5062, %v5061
      %v5081 = vpack.c.b16 %v5064, %v5063
      %v5082 = vpack.c.b16 %v5066, %v5065
      %v5087 = vunpack.c.l.b16 %v5031
      %v5088 = vunpack.c.l.b16 %v5032
      %v5089 = vunpack.c.l.b16 %v5033
      %v5090 = vunpack.c.l.b16 %v5034
      %v5091 = vpack.c.b16 %v5088, %v5087
      %v5092 = vpack.c.b16 %v5090, %v5089
      %v5096 = vsel %vm1120, %v5067, 0
      %v5099 = vsel %vm1120, %v5068, 0
      %v5102 = vsel %vm1120, %v5069, 0
      %v5105 = vsel %vm1120, %v5070, 0
      %v5108 = vsel %vm1120, %v5071, 0
      %v5111 = vsel %vm1120, %v5072, 0
      %v5114 = vsel %vm1120, %v5073, 0
      %v5117 = vsel %vm1120, %v5074, 0
      %v5120 = vsel %vm1120, %v5075, 0
      %v5123 = vsel %vm1120, %v5076, 0
      %v5126 = vsel %vm1120, %v5077, 0
      %v5129 = vsel %vm1120, %v5078, 0
      %v5132 = vsel %vm1120, %v5079, 0
      %v5135 = vsel %vm1120, %v5080, 0
      %v5138 = vsel %vm1120, %v5081, 0
      %v5141 = vsel %vm1120, %v5082, 0
      %5143 = vmatpush.bf16.msra.mxu0 0
      %5144 = vmatpush.bf16.msra.mxu0 0
      %5145 = vmatpush.bf16.msra.mxu0 0
      %5146 = vmatpush.bf16.msra.mxu0 0
      %5147 = vmatpush.bf16.msra.mxu0 0
      %5148 = vmatpush.bf16.msra.mxu0 0
      %5149 = vmatpush.bf16.msra.mxu0 %v5092
      %5150 = vmatpush.bf16.msra.mxu0 %v5091
      %5151 = vmatmul.bf16.gmra.mxu0 %v5096
      %v5152 = vpop.f32.mrf.mxu0
      %v5153 = vadd.f32 0.0, %v5152
      %v5154 = vpop.f32.mrf.mxu0
      %v5155 = vadd.f32 0.0, %v5154
      %5156 = vmatmul.bf16.gmra.mxu0 %v5099
      %v5157 = vpop.f32.mrf.mxu0
      %v5158 = vadd.f32 0.0, %v5157
      %v5159 = vpop.f32.mrf.mxu0
      %v5160 = vadd.f32 0.0, %v5159
      %5161 = vmatmul.bf16.gmra.mxu0 %v5102
      %v5162 = vpop.f32.mrf.mxu0
      %v5163 = vadd.f32 0.0, %v5162
      %v5164 = vpop.f32.mrf.mxu0
      %v5165 = vadd.f32 0.0, %v5164
      %5166 = vmatmul.bf16.gmra.mxu0 %v5105
      %v5167 = vpop.f32.mrf.mxu0
      %v5168 = vadd.f32 0.0, %v5167
      %v5169 = vpop.f32.mrf.mxu0
      %v5170 = vadd.f32 0.0, %v5169
      %5171 = vmatmul.bf16.gmra.mxu0 %v5108
      %v5172 = vpop.f32.mrf.mxu0
      %v5173 = vadd.f32 0.0, %v5172
      %v5174 = vpop.f32.mrf.mxu0
      %v5175 = vadd.f32 0.0, %v5174
      %5176 = vmatmul.bf16.gmra.mxu0 %v5111
      %v5177 = vpop.f32.mrf.mxu0
      %v5178 = vadd.f32 0.0, %v5177
      %v5179 = vpop.f32.mrf.mxu0
      %v5180 = vadd.f32 0.0, %v5179
      %5181 = vmatmul.bf16.gmra.mxu0 %v5114
      %v5182 = vpop.f32.mrf.mxu0
      %v5183 = vadd.f32 0.0, %v5182
      %v5184 = vpop.f32.mrf.mxu0
      %v5185 = vadd.f32 0.0, %v5184
      %5186 = vmatmul.bf16.gmra.mxu0 %v5117
      %v5187 = vpop.f32.mrf.mxu0
      %v5188 = vadd.f32 0.0, %v5187
      %v5189 = vpop.f32.mrf.mxu0
      %v5190 = vadd.f32 0.0, %v5189
      %5191 = vmatmul.bf16.gmra.mxu0 %v5120
      %v5192 = vpop.f32.mrf.mxu0
      %v5193 = vadd.f32 0.0, %v5192
      %v5194 = vpop.f32.mrf.mxu0
      %v5195 = vadd.f32 0.0, %v5194
      %5196 = vmatmul.bf16.gmra.mxu0 %v5123
      %v5197 = vpop.f32.mrf.mxu0
      %v5198 = vadd.f32 0.0, %v5197
      %v5199 = vpop.f32.mrf.mxu0
      %v5200 = vadd.f32 0.0, %v5199
      %5201 = vmatmul.bf16.gmra.mxu0 %v5126
      %v5202 = vpop.f32.mrf.mxu0
      %v5203 = vadd.f32 0.0, %v5202
      %v5204 = vpop.f32.mrf.mxu0
      %v5205 = vadd.f32 0.0, %v5204
      %5206 = vmatmul.bf16.gmra.mxu0 %v5129
      %v5207 = vpop.f32.mrf.mxu0
      %v5208 = vadd.f32 0.0, %v5207
      %v5209 = vpop.f32.mrf.mxu0
      %v5210 = vadd.f32 0.0, %v5209
      %5211 = vmatmul.bf16.gmra.mxu0 %v5132
      %v5212 = vpop.f32.mrf.mxu0
      %v5213 = vadd.f32 0.0, %v5212
      %v5214 = vpop.f32.mrf.mxu0
      %v5215 = vadd.f32 0.0, %v5214
      %5216 = vmatmul.bf16.gmra.mxu0 %v5135
      %v5217 = vpop.f32.mrf.mxu0
      %v5218 = vadd.f32 0.0, %v5217
      %v5219 = vpop.f32.mrf.mxu0
      %v5220 = vadd.f32 0.0, %v5219
      %5221 = vmatmul.bf16.gmra.mxu0 %v5138
      %v5222 = vpop.f32.mrf.mxu0
      %v5223 = vadd.f32 0.0, %v5222
      %v5224 = vpop.f32.mrf.mxu0
      %v5225 = vadd.f32 0.0, %v5224
      %5226 = vmatmul.bf16.gmra.mxu0 %v5141
      %v5227 = vpop.f32.mrf.mxu0
      %v5228 = vadd.f32 0.0, %v5227
      %v5229 = vpop.f32.mrf.mxu0
      %v5230 = vadd.f32 0.0, %v5229
      %5231 = vdwg.mxu0
      %v5232 = vadd.f32 %v4566, %v5153
      %v5233 = vadd.f32 %v4567, %v5155
      %v5234 = vadd.f32 %v4568, %v5158
      %v5235 = vadd.f32 %v4569, %v5160
      %v5236 = vadd.f32 %v4570, %v5163
      %v5237 = vadd.f32 %v4571, %v5165
      %v5238 = vadd.f32 %v4572, %v5168
      %v5239 = vadd.f32 %v4573, %v5170
      %v5240 = vadd.f32 %v4574, %v5173
      %v5241 = vadd.f32 %v4575, %v5175
      %v5242 = vadd.f32 %v4576, %v5178
      %v5243 = vadd.f32 %v4577, %v5180
      %v5244 = vadd.f32 %v4578, %v5183
      %v5245 = vadd.f32 %v4579, %v5185
      %v5246 = vadd.f32 %v4580, %v5188
      %v5247 = vadd.f32 %v4581, %v5190
      %v5248 = vadd.f32 %v4582, %v5193
      %v5249 = vadd.f32 %v4583, %v5195
      %v5250 = vadd.f32 %v4584, %v5198
      %v5251 = vadd.f32 %v4585, %v5200
      %v5252 = vadd.f32 %v4586, %v5203
      %v5253 = vadd.f32 %v4587, %v5205
      %v5254 = vadd.f32 %v4588, %v5208
      %v5255 = vadd.f32 %v4589, %v5210
      %v5256 = vadd.f32 %v4590, %v5213
      %v5257 = vadd.f32 %v4591, %v5215
      %v5258 = vadd.f32 %v4592, %v5218
      %v5259 = vadd.f32 %v4593, %v5220
      %v5260 = vadd.f32 %v4594, %v5223
      %v5261 = vadd.f32 %v4595, %v5225
      %v5262 = vadd.f32 %v4596, %v5228
      %v5263 = vadd.f32 %v4597, %v5230
      %v5264 = vld [vmem:[%s2] sm:$0x1]
      %v5266 = vperm.slane %v5264, 0
      %v5268 = vadd.f32 %v5232, %v5266
      %v5269 = vadd.f32 %v5233, %v5266
      %v5270 = vadd.f32 %v5234, %v5266
      %v5271 = vadd.f32 %v5235, %v5266
      %v5272 = vadd.f32 %v5236, %v5266
      %v5273 = vadd.f32 %v5237, %v5266
      %v5274 = vadd.f32 %v5238, %v5266
      %v5275 = vadd.f32 %v5239, %v5266
      %v5276 = vadd.f32 %v5240, %v5266
      %v5277 = vadd.f32 %v5241, %v5266
      %v5278 = vadd.f32 %v5242, %v5266
      %v5279 = vadd.f32 %v5243, %v5266
      %v5280 = vadd.f32 %v5244, %v5266
      %v5281 = vadd.f32 %v5245, %v5266
      %v5282 = vadd.f32 %v5246, %v5266
      %v5283 = vadd.f32 %v5247, %v5266
      %v5284 = vadd.f32 %v5248, %v5266
      %v5285 = vadd.f32 %v5249, %v5266
      %v5286 = vadd.f32 %v5250, %v5266
      %v5287 = vadd.f32 %v5251, %v5266
      %v5288 = vadd.f32 %v5252, %v5266
      %v5289 = vadd.f32 %v5253, %v5266
      %v5290 = vadd.f32 %v5254, %v5266
      %v5291 = vadd.f32 %v5255, %v5266
      %v5292 = vadd.f32 %v5256, %v5266
      %v5293 = vadd.f32 %v5257, %v5266
      %v5294 = vadd.f32 %v5258, %v5266
      %v5295 = vadd.f32 %v5259, %v5266
      %v5296 = vadd.f32 %v5260, %v5266
      %v5297 = vadd.f32 %v5261, %v5266
      %v5298 = vadd.f32 %v5262, %v5266
      %v5299 = vadd.f32 %v5263, %v5266
      %v5300 = vpack.c.bf16 %v5268, %v5268
      %v5301 = vpack.c.bf16 %v5269, %v5269
      %v5302 = vpack.c.bf16 %v5270, %v5270
      %v5303 = vpack.c.bf16 %v5271, %v5271
      %v5304 = vpack.c.bf16 %v5272, %v5272
      %v5305 = vpack.c.bf16 %v5273, %v5273
      %v5306 = vpack.c.bf16 %v5274, %v5274
      %v5307 = vpack.c.bf16 %v5275, %v5275
      %v5308 = vpack.c.bf16 %v5276, %v5276
      %v5309 = vpack.c.bf16 %v5277, %v5277
      %v5310 = vpack.c.bf16 %v5278, %v5278
      %v5311 = vpack.c.bf16 %v5279, %v5279
      %v5312 = vpack.c.bf16 %v5280, %v5280
      %v5313 = vpack.c.bf16 %v5281, %v5281
      %v5314 = vpack.c.bf16 %v5282, %v5282
      %v5315 = vpack.c.bf16 %v5283, %v5283
      %v5316 = vpack.c.bf16 %v5284, %v5284
      %v5317 = vpack.c.bf16 %v5285, %v5285
      %v5318 = vpack.c.bf16 %v5286, %v5286
      %v5319 = vpack.c.bf16 %v5287, %v5287
      %v5320 = vpack.c.bf16 %v5288, %v5288
      %v5321 = vpack.c.bf16 %v5289, %v5289
      %v5322 = vpack.c.bf16 %v5290, %v5290
      %v5323 = vpack.c.bf16 %v5291, %v5291
      %v5324 = vpack.c.bf16 %v5292, %v5292
      %v5325 = vpack.c.bf16 %v5293, %v5293
      %v5326 = vpack.c.bf16 %v5294, %v5294
      %v5327 = vpack.c.bf16 %v5295, %v5295
      %v5328 = vpack.c.bf16 %v5296, %v5296
      %v5329 = vpack.c.bf16 %v5297, %v5297
      %v5330 = vpack.c.bf16 %v5298, %v5298
      %v5331 = vpack.c.bf16 %v5299, %v5299
      %vm5332 = vcmask 257024
      %5333 = vst.msk [vmem:[%s287] sm:$0xf] %vm5332, %v5300
      %5334 = vst.msk [vmem:[%s287 + $0x4] sm:$0xf] %vm5332, %v5301
      %5335 = vst.msk [vmem:[%s287 + $0x8] sm:$0xf] %vm5332, %v5302
      %5336 = vst.msk [vmem:[%s287 + $0xc] sm:$0xf] %vm5332, %v5303
      %5337 = vst.msk [vmem:[%s287 + $0x10] sm:$0xf] %vm5332, %v5304
      %5338 = vst.msk [vmem:[%s287 + $0x14] sm:$0xf] %vm5332, %v5305
      %5339 = vst.msk [vmem:[%s287 + $0x18] sm:$0xf] %vm5332, %v5306
      %5340 = vst.msk [vmem:[%s287 + $0x1c] sm:$0xf] %vm5332, %v5307
      %5341 = vst.msk [vmem:[%s287 + $0x20] sm:$0xf] %vm5332, %v5308
      %5342 = vst.msk [vmem:[%s287 + $0x24] sm:$0xf] %vm5332, %v5309
      %5343 = vst.msk [vmem:[%s287 + $0x28] sm:$0xf] %vm5332, %v5310
      %5344 = vst.msk [vmem:[%s287 + $0x2c] sm:$0xf] %vm5332, %v5311
      %5345 = vst.msk [vmem:[%s287 + $0x30] sm:$0xf] %vm5332, %v5312
      %5346 = vst.msk [vmem:[%s287 + $0x34] sm:$0xf] %vm5332, %v5313
      %5347 = vst.msk [vmem:[%s287 + $0x38] sm:$0xf] %vm5332, %v5314
      %5348 = vst.msk [vmem:[%s287 + $0x3c] sm:$0xf] %vm5332, %v5315
      %5349 = vst.msk [vmem:[%s287 + $0x40] sm:$0xf] %vm5332, %v5316
      %5350 = vst.msk [vmem:[%s287 + $0x44] sm:$0xf] %vm5332, %v5317
      %5351 = vst.msk [vmem:[%s287 + $0x48] sm:$0xf] %vm5332, %v5318
      %5352 = vst.msk [vmem:[%s287 + $0x4c] sm:$0xf] %vm5332, %v5319
      %5353 = vst.msk [vmem:[%s287 + $0x50] sm:$0xf] %vm5332, %v5320
      %5354 = vst.msk [vmem:[%s287 + $0x54] sm:$0xf] %vm5332, %v5321
      %5355 = vst.msk [vmem:[%s287 + $0x58] sm:$0xf] %vm5332, %v5322
      %5356 = vst.msk [vmem:[%s287 + $0x5c] sm:$0xf] %vm5332, %v5323
      %5357 = vst.msk [vmem:[%s287 + $0x60] sm:$0xf] %vm5332, %v5324
      %5358 = vst.msk [vmem:[%s287 + $0x64] sm:$0xf] %vm5332, %v5325
      %5359 = vst.msk [vmem:[%s287 + $0x68] sm:$0xf] %vm5332, %v5326
      %5360 = vst.msk [vmem:[%s287 + $0x6c] sm:$0xf] %vm5332, %v5327
      %5361 = vst.msk [vmem:[%s287 + $0x70] sm:$0xf] %vm5332, %v5328
      %5362 = vst.msk [vmem:[%s287 + $0x74] sm:$0xf] %vm5332, %v5329
      %5363 = vst.msk [vmem:[%s287 + $0x78] sm:$0xf] %vm5332, %v5330
      %5364 = vst.msk [vmem:[%s287 + $0x7c] sm:$0xf] %vm5332, %v5331
      %v5365 = vunpack.c.l.bf16 %v5300
      %v5366 = vunpack.c.l.bf16 %v5301
      %v5367 = vunpack.c.l.bf16 %v5302
      %v5368 = vunpack.c.l.bf16 %v5303
      %v5369 = vunpack.c.l.bf16 %v5304
      %v5370 = vunpack.c.l.bf16 %v5305
      %v5371 = vunpack.c.l.bf16 %v5306
      %v5372 = vunpack.c.l.bf16 %v5307
      %v5373 = vunpack.c.l.bf16 %v5308
      %v5374 = vunpack.c.l.bf16 %v5309
      %v5375 = vunpack.c.l.bf16 %v5310
      %v5376 = vunpack.c.l.bf16 %v5311
      %v5377 = vunpack.c.l.bf16 %v5312
      %v5378 = vunpack.c.l.bf16 %v5313
      %v5379 = vunpack.c.l.bf16 %v5314
      %v5380 = vunpack.c.l.bf16 %v5315
      %v5381 = vunpack.c.l.bf16 %v5316
      %v5382 = vunpack.c.l.bf16 %v5317
      %v5383 = vunpack.c.l.bf16 %v5318
      %v5384 = vunpack.c.l.bf16 %v5319
      %v5385 = vunpack.c.l.bf16 %v5320
      %v5386 = vunpack.c.l.bf16 %v5321
      %v5387 = vunpack.c.l.bf16 %v5322
      %v5388 = vunpack.c.l.bf16 %v5323
      %v5389 = vunpack.c.l.bf16 %v5324
      %v5390 = vunpack.c.l.bf16 %v5325
      %v5391 = vunpack.c.l.bf16 %v5326
      %v5392 = vunpack.c.l.bf16 %v5327
      %v5393 = vunpack.c.l.bf16 %v5328
      %v5394 = vunpack.c.l.bf16 %v5329
      %v5395 = vunpack.c.l.bf16 %v5330
      %v5396 = vunpack.c.l.bf16 %v5331
      %v5397 = vsel %vm1120, %v5365, 0.0
      %v5398 = vsel %vm1120, %v5366, 0.0
      %v5399 = vadd.f32 %v5397, %v5398
      %v5400 = vsel %vm1120, %v5367, 0.0
      %v5401 = vadd.f32 %v5399, %v5400
      %v5402 = vsel %vm1120, %v5368, 0.0
      %v5403 = vadd.f32 %v5401, %v5402
      %v5404 = vsel %vm1120, %v5369, 0.0
      %v5405 = vadd.f32 %v5403, %v5404
      %v5406 = vsel %vm1120, %v5370, 0.0
      %v5407 = vadd.f32 %v5405, %v5406
      %v5408 = vsel %vm1120, %v5371, 0.0
      %v5409 = vadd.f32 %v5407, %v5408
      %v5410 = vsel %vm1120, %v5372, 0.0
      %v5411 = vadd.f32 %v5409, %v5410
      %v5412 = vsel %vm1120, %v5373, 0.0
      %v5413 = vadd.f32 %v5411, %v5412
      %v5414 = vsel %vm1120, %v5374, 0.0
      %v5415 = vadd.f32 %v5413, %v5414
      %v5416 = vsel %vm1120, %v5375, 0.0
      %v5417 = vadd.f32 %v5415, %v5416
      %v5418 = vsel %vm1120, %v5376, 0.0
      %v5419 = vadd.f32 %v5417, %v5418
      %v5420 = vsel %vm1120, %v5377, 0.0
      %v5421 = vadd.f32 %v5419, %v5420
      %v5422 = vsel %vm1120, %v5378, 0.0
      %v5423 = vadd.f32 %v5421, %v5422
      %v5424 = vsel %vm1120, %v5379, 0.0
      %v5425 = vadd.f32 %v5423, %v5424
      %v5426 = vsel %vm1120, %v5380, 0.0
      %v5427 = vadd.f32 %v5425, %v5426
      %v5428 = vsel %vm1120, %v5381, 0.0
      %v5429 = vadd.f32 %v5427, %v5428
      %v5430 = vsel %vm1120, %v5382, 0.0
      %v5431 = vadd.f32 %v5429, %v5430
      %v5432 = vsel %vm1120, %v5383, 0.0
      %v5433 = vadd.f32 %v5431, %v5432
      %v5434 = vsel %vm1120, %v5384, 0.0
      %v5435 = vadd.f32 %v5433, %v5434
      %v5436 = vsel %vm1120, %v5385, 0.0
      %v5437 = vadd.f32 %v5435, %v5436
      %v5438 = vsel %vm1120, %v5386, 0.0
      %v5439 = vadd.f32 %v5437, %v5438
      %v5440 = vsel %vm1120, %v5387, 0.0
      %v5441 = vadd.f32 %v5439, %v5440
      %v5442 = vsel %vm1120, %v5388, 0.0
      %v5443 = vadd.f32 %v5441, %v5442
      %v5444 = vsel %vm1120, %v5389, 0.0
      %v5445 = vadd.f32 %v5443, %v5444
      %v5446 = vsel %vm1120, %v5390, 0.0
      %v5447 = vadd.f32 %v5445, %v5446
      %v5448 = vsel %vm1120, %v5391, 0.0
      %v5449 = vadd.f32 %v5447, %v5448
      %v5450 = vsel %vm1120, %v5392, 0.0
      %v5451 = vadd.f32 %v5449, %v5450
      %v5452 = vsel %vm1120, %v5393, 0.0
      %v5453 = vadd.f32 %v5451, %v5452
      %v5454 = vsel %vm1120, %v5394, 0.0
      %v5455 = vadd.f32 %v5453, %v5454
      %v5456 = vsel %vm1120, %v5395, 0.0
      %v5457 = vadd.f32 %v5455, %v5456
      %v5458 = vsel %vm1120, %v5396, 0.0
      %v5459 = vadd.f32 %v5457, %v5458
      %v5460 = vrot.slane %v5459, 4
      %v5461 = vadd.f32 %v5459, %v5460
      %v5462 = vrot.slane %v5461, 2
      %v5463 = vadd.f32 %v5461, %v5462
      %v5464 = vrot.slane %v5463, 1
      %v5465 = vadd.f32 %v5463, %v5464
      %v5466 = vmul.f32 %v5465, 0.00390625
      %v5467 = vsub.f32 %v5365, %v5466
      %v5468 = vsub.f32 %v5366, %v5466
      %v5469 = vsub.f32 %v5367, %v5466
      %v5470 = vsub.f32 %v5368, %v5466
      %v5471 = vsub.f32 %v5369, %v5466
      %v5472 = vsub.f32 %v5370, %v5466
      %v5473 = vsub.f32 %v5371, %v5466
      %v5474 = vsub.f32 %v5372, %v5466
      %v5475 = vsub.f32 %v5373, %v5466
      %v5476 = vsub.f32 %v5374, %v5466
      %v5477 = vsub.f32 %v5375, %v5466
      %v5478 = vsub.f32 %v5376, %v5466
      %v5479 = vsub.f32 %v5377, %v5466
      %v5480 = vsub.f32 %v5378, %v5466
      %v5481 = vsub.f32 %v5379, %v5466
      %v5482 = vsub.f32 %v5380, %v5466
      %v5483 = vsub.f32 %v5381, %v5466
      %v5484 = vsub.f32 %v5382, %v5466
      %v5485 = vsub.f32 %v5383, %v5466
      %v5486 = vsub.f32 %v5384, %v5466
      %v5487 = vsub.f32 %v5385, %v5466
      %v5488 = vsub.f32 %v5386, %v5466
      %v5489 = vsub.f32 %v5387, %v5466
      %v5490 = vsub.f32 %v5388, %v5466
      %v5491 = vsub.f32 %v5389, %v5466
      %v5492 = vsub.f32 %v5390, %v5466
      %v5493 = vsub.f32 %v5391, %v5466
      %v5494 = vsub.f32 %v5392, %v5466
      %v5495 = vsub.f32 %v5393, %v5466
      %v5496 = vsub.f32 %v5394, %v5466
      %v5497 = vsub.f32 %v5395, %v5466
      %v5498 = vsub.f32 %v5396, %v5466
      %v5499 = vmul.f32 %v5467, %v5467
      %v5500 = vmul.f32 %v5468, %v5468
      %v5501 = vmul.f32 %v5469, %v5469
      %v5502 = vmul.f32 %v5470, %v5470
      %v5503 = vmul.f32 %v5471, %v5471
      %v5504 = vmul.f32 %v5472, %v5472
      %v5505 = vmul.f32 %v5473, %v5473
      %v5506 = vmul.f32 %v5474, %v5474
      %v5507 = vmul.f32 %v5475, %v5475
      %v5508 = vmul.f32 %v5476, %v5476
      %v5509 = vmul.f32 %v5477, %v5477
      %v5510 = vmul.f32 %v5478, %v5478
      %v5511 = vmul.f32 %v5479, %v5479
      %v5512 = vmul.f32 %v5480, %v5480
      %v5513 = vmul.f32 %v5481, %v5481
      %v5514 = vmul.f32 %v5482, %v5482
      %v5515 = vmul.f32 %v5483, %v5483
      %v5516 = vmul.f32 %v5484, %v5484
      %v5517 = vmul.f32 %v5485, %v5485
      %v5518 = vmul.f32 %v5486, %v5486
      %v5519 = vmul.f32 %v5487, %v5487
      %v5520 = vmul.f32 %v5488, %v5488
      %v5521 = vmul.f32 %v5489, %v5489
      %v5522 = vmul.f32 %v5490, %v5490
      %v5523 = vmul.f32 %v5491, %v5491
      %v5524 = vmul.f32 %v5492, %v5492
      %v5525 = vmul.f32 %v5493, %v5493
      %v5526 = vmul.f32 %v5494, %v5494
      %v5527 = vmul.f32 %v5495, %v5495
      %v5528 = vmul.f32 %v5496, %v5496
      %v5529 = vmul.f32 %v5497, %v5497
      %v5530 = vmul.f32 %v5498, %v5498
      %v5531 = vsel %vm1120, %v5499, 0.0
      %v5532 = vsel %vm1120, %v5500, 0.0
      %v5533 = vadd.f32 %v5531, %v5532
      %v5534 = vsel %vm1120, %v5501, 0.0
      %v5535 = vadd.f32 %v5533, %v5534
      %v5536 = vsel %vm1120, %v5502, 0.0
      %v5537 = vadd.f32 %v5535, %v5536
      %v5538 = vsel %vm1120, %v5503, 0.0
      %v5539 = vadd.f32 %v5537, %v5538
      %v5540 = vsel %vm1120, %v5504, 0.0
      %v5541 = vadd.f32 %v5539, %v5540
      %v5542 = vsel %vm1120, %v5505, 0.0
      %v5543 = vadd.f32 %v5541, %v5542
      %v5544 = vsel %vm1120, %v5506, 0.0
      %v5545 = vadd.f32 %v5543, %v5544
      %v5546 = vsel %vm1120, %v5507, 0.0
      %v5547 = vadd.f32 %v5545, %v5546
      %v5548 = vsel %vm1120, %v5508, 0.0
      %v5549 = vadd.f32 %v5547, %v5548
      %v5550 = vsel %vm1120, %v5509, 0.0
      %v5551 = vadd.f32 %v5549, %v5550
      %v5552 = vsel %vm1120, %v5510, 0.0
      %v5553 = vadd.f32 %v5551, %v5552
      %v5554 = vsel %vm1120, %v5511, 0.0
      %v5555 = vadd.f32 %v5553, %v5554
      %v5556 = vsel %vm1120, %v5512, 0.0
      %v5557 = vadd.f32 %v5555, %v5556
      %v5558 = vsel %vm1120, %v5513, 0.0
      %v5559 = vadd.f32 %v5557, %v5558
      %v5560 = vsel %vm1120, %v5514, 0.0
      %v5561 = vadd.f32 %v5559, %v5560
      %v5562 = vsel %vm1120, %v5515, 0.0
      %v5563 = vadd.f32 %v5561, %v5562
      %v5564 = vsel %vm1120, %v5516, 0.0
      %v5565 = vadd.f32 %v5563, %v5564
      %v5566 = vsel %vm1120, %v5517, 0.0
      %v5567 = vadd.f32 %v5565, %v5566
      %v5568 = vsel %vm1120, %v5518, 0.0
      %v5569 = vadd.f32 %v5567, %v5568
      %v5570 = vsel %vm1120, %v5519, 0.0
      %v5571 = vadd.f32 %v5569, %v5570
      %v5572 = vsel %vm1120, %v5520, 0.0
      %v5573 = vadd.f32 %v5571, %v5572
      %v5574 = vsel %vm1120, %v5521, 0.0
      %v5575 = vadd.f32 %v5573, %v5574
      %v5576 = vsel %vm1120, %v5522, 0.0
      %v5577 = vadd.f32 %v5575, %v5576
      %v5578 = vsel %vm1120, %v5523, 0.0
      %v5579 = vadd.f32 %v5577, %v5578
      %v5580 = vsel %vm1120, %v5524, 0.0
      %v5581 = vadd.f32 %v5579, %v5580
      %v5582 = vsel %vm1120, %v5525, 0.0
      %v5583 = vadd.f32 %v5581, %v5582
      %v5584 = vsel %vm1120, %v5526, 0.0
      %v5585 = vadd.f32 %v5583, %v5584
      %v5586 = vsel %vm1120, %v5527, 0.0
      %v5587 = vadd.f32 %v5585, %v5586
      %v5588 = vsel %vm1120, %v5528, 0.0
      %v5589 = vadd.f32 %v5587, %v5588
      %v5590 = vsel %vm1120, %v5529, 0.0
      %v5591 = vadd.f32 %v5589, %v5590
      %v5592 = vsel %vm1120, %v5530, 0.0
      %v5593 = vadd.f32 %v5591, %v5592
      %v5594 = vrot.slane %v5593, 4
      %v5595 = vadd.f32 %v5593, %v5594
      %v5596 = vrot.slane %v5595, 2
      %v5597 = vadd.f32 %v5595, %v5596
      %v5598 = vrot.slane %v5597, 1
      %v5599 = vadd.f32 %v5597, %v5598
      %vm5600 = vcmask 1040384
      %v5601 = vsel %vm5600, %v5465, %v5599
      %vm5602 = vcmask 254976
      %5603 = vst.msk [vmem:[%s295] sm:$0x3] %vm5602, %v5601
      %s5604 = smul.u32 16, %s23
      %p5605 = scmp.lt.s32.totalorder %s22, 1
      %s5606 = scalar_select %p5605, %s22, 1
      %p5607 = scmp.lt.s32.totalorder %s5604, 15
      %s5608 = scalar_select %p5607, %s5604, 15
      %s5609 = smul.addr %s5608, 2
      %s5610 = smul.addr %s5606, 32
      %s5611 = sadd.s32 %s5609, %s5610
      %s5612 = smul.addr %s5611, 4
      %s5613 = scalar_lea.vmem %s5, %s5612
      %p5614 = scmp.lt.s32.totalorder %s22, 1
      %s5615 = scalar_select %p5614, %s22, 1
      %p5616 = scmp.lt.s32.totalorder %s23, 0
      %s5617 = scalar_select %p5616, %s23, 0
      %s5618 = sadd.s32 %s5617, %s5615
      %s5619 = smul.addr %s5618, 2
      %s5620 = scalar_lea.vmem %s6, %s5619
      // Predicated region
      $region45: #{double_conv_forward.4} parent=39 // pred_check
        %p5621 = pneg %p160
      $region46: #{double_conv_forward.4} parent=39 // pred_check_branch
        %5623 = sbr.rel (%p5621) target = $region48
      $region47: #{double_conv_forward.4} parent=39 // pred_region
        %s5624 = smul.u32 16, %s23
      $region48: #{double_conv_forward.4} parent=39 // pred_fallthru
        _
      // Predicated region
      $region49: #{double_conv_forward.4} parent=39 // pred_check
        %p5625 = pneg %p188
      $region50: #{double_conv_forward.4} parent=39 // pred_check_branch
        %5627 = sbr.rel (%p5625) target = $region52
      $region51: #{double_conv_forward.4} parent=39 // pred_region
        _
      $region52: #{double_conv_forward.4} parent=39 // pred_fallthru
        _
    $region40: #{double_conv_forward.4} parent=5 // pred_fallthru
      _
    %p5628 = scmp.le.s32.totalorder 2, %s13
    // Predicated region
    $region53: #{double_conv_forward.4} parent=5 // pred_check
      %p5629 = pneg %p5628
    $region54: #{double_conv_forward.4} parent=5 // pred_check_branch
      %5631 = sbr.rel (%p5629) target = $region56
    $region55: #{double_conv_forward.4} parent=5 // pred_region
      %s5632 = ssub.s32 %s13, 2
      // Predicated region
      $region57: #{double_conv_forward.4} parent=55 // pred_check
        %p5633 = pneg %p166
      $region58: #{double_conv_forward.4} parent=55 // pred_check_branch
        %5635 = sbr.rel (%p5633) target = $region60
      $region59: #{double_conv_forward.4} parent=55 // pred_region
        %s5636 = smul.u32 16, %s25
        %p5637 = scmp.lt.s32.totalorder %s24, 1
        %s5638 = scalar_select %p5637, %s24, 1
        %p5639 = scmp.lt.s32.totalorder %s5636, 15
        %s5640 = scalar_select %p5639, %s5636, 15
        %s5641 = smul.addr %s5640, 2
        %s5642 = smul.addr %s5638, 32
        %s5643 = sadd.s32 %s5641, %s5642
        %s5644 = smul.addr %s5643, 4
        %s5645 = scalar_lea.vmem %s5, %s5644
      $region60: #{double_conv_forward.4} parent=55 // pred_fallthru
        _
      // Predicated region
      $region61: #{double_conv_forward.4} parent=55 // pred_check
        %p5646 = pneg %p194
      $region62: #{double_conv_forward.4} parent=55 // pred_check_branch
        %5648 = sbr.rel (%p5646) target = $region64
      $region63: #{double_conv_forward.4} parent=55 // pred_region
        %p5649 = scmp.lt.s32.totalorder %s24, 1
        %s5650 = scalar_select %p5649, %s24, 1
        %p5651 = scmp.lt.s32.totalorder %s25, 0
        %s5652 = scalar_select %p5651, %s25, 0
        %s5653 = sadd.s32 %s5652, %s5650
        %s5654 = smul.addr %s5653, 2
        %s5655 = scalar_lea.vmem %s6, %s5654
      $region64: #{double_conv_forward.4} parent=55 // pred_fallthru
        _
    $region56: #{double_conv_forward.4} parent=5 // pred_fallthru
      _
  $region6: #{double_conv_forward.4} parent=0 // loop_footer
    %s17 = sadd.s32 1, %s13
  $region7: #{double_conv_forward.4} parent=0 // loop_footer_branch
    %12 = sbr.rel target = $region3
  $region8: #{double_conv_forward.4} parent=0 // loop_exit
    _

</llo_original>
